<compile_context>
chip_gen: v7x
topology: tpu7x:2x2x1
jax: 0.10.0
libtpu: 0.0.40
codegen_flags: <defaults>
</compile_context>

<pallas_src>
import jax
import jax.numpy as jnp
from jax import lax
from jax.experimental import pallas as pl
from jax.experimental.pallas import tpu as pltpu


# ----------------------------------------------------------------------------
# Fused kernel: one grid step == one batch sample.
#   act1[oy, ox*16 + c]  conv1 output (15 valid rows + 1 pad, 240 lanes)
#   act2[py, px*32 + d]  conv2 output ( 7 valid rows + 1 pad, 224 lanes)
#   y3[0, n]             dense1 output (256 lanes)
#   o_ref[0, :6]         logits (stored into a 128-lane padded row)
# ----------------------------------------------------------------------------
def _dqn_kernel(x_ref, rsel1_ref, g1_ref, b1_ref, psel2_ref, g2_ref, b2_ref,
                w3_ref, b3_ref, w4_ref, b4_ref, o_ref):
    f32 = jnp.float32
    bf16 = jnp.bfloat16

    xb = x_ref[...].astype(bf16)                                  # (72, 72)

    # ---- conv1 (1->16, k=30, s=3) + ReLU --------------------------------
    acc1 = jnp.zeros((16, 240), f32)
    for kh in range(30):
        # rows[oy, j] = x[3*oy + kh, j]  (row gather as a 0/1 matmul on MXU)
        rows = jnp.dot(rsel1_ref[kh], xb, preferred_element_type=f32)
        acc1 = acc1 + jnp.dot(rows.astype(bf16), g1_ref[kh],
                              preferred_element_type=f32)
    act1 = jnp.maximum(acc1 + b1_ref[...], 0.0).astype(bf16)       # (16, 240)

    # ---- conv2 (16->32, k=3, s=2) + ReLU --------------------------------
    acc2 = jnp.zeros((8, 224), f32)
    for k in range(3):
        rows = jnp.dot(psel2_ref[k], act1, preferred_element_type=f32)
        acc2 = acc2 + jnp.dot(rows.astype(bf16), g2_ref[k],
                              preferred_element_type=f32)
    act2 = jnp.maximum(acc2 + b2_ref[...], 0.0)                    # (8, 224) f32

    # ---- dense1 (1568 -> 256) + ReLU ------------------------------------
    acc3 = jnp.zeros((1, 256), f32)
    for py in range(7):
        row = act2[py:py + 1, :].astype(bf16)                      # (1, 224)
        acc3 = acc3 + jnp.dot(row, w3_ref[py], preferred_element_type=f32)
    y3 = jnp.maximum(acc3 + b3_ref[...], 0.0).astype(bf16)         # (1, 256)

    # ---- out (256 -> 6, padded to 128 lanes) ----------------------------
    y4 = jnp.dot(y3, w4_ref[...], preferred_element_type=f32) + b4_ref[...]
    o_ref[...] = y4.astype(o_ref.dtype)                            # (1, 128)


# ----------------------------------------------------------------------------
# One-time parameter preprocessing (hoisted out of the forward pass).
# ----------------------------------------------------------------------------
def prepare_params(p):
    f32, bf16 = jnp.float32, jnp.bfloat16
    w1 = p["w1"].astype(f32)   # (16, 1, 30, 30)
    b1 = p["b1"].astype(f32)   # (16,)
    w2 = p["w2"].astype(f32)   # (32, 16, 3, 3)
    b2 = p["b2"].astype(f32)   # (32,)
    w3 = p["w3"].astype(f32)   # (256, 1568)
    b3 = p["b3"].astype(f32)   # (256,)
    w4 = p["w4"].astype(f32)   # (6, 256)
    b4 = p["b4"].astype(f32)   # (6,)

    # conv1 row selection: rsel1[kh, oy, i] = 1 iff i == 3*oy + kh (oy < 15)
    kh = jnp.arange(30)[:, None, None]
    oy = jnp.arange(16)[None, :, None]
    i = jnp.arange(72)[None, None, :]
    rsel1 = ((i == 3 * oy + kh) & (oy < 15)).astype(bf16)          # (30, 16, 72)

    # conv1 weight slabs: g1[kh, j, ox*16+c] = w1[c,0,kh, j-3*ox] (0<=.<30)
    wc = w1[:, 0]                                                  # (16, 30, 30)
    j = jnp.arange(72)[:, None]
    ox = jnp.arange(15)[None, :]
    kw = j - 3 * ox                                                # (72, 15)
    valid = (kw >= 0) & (kw < 30)
    g1 = wc[:, :, jnp.clip(kw, 0, 29)]                             # (16,30,72,15)
    g1 = jnp.where(valid[None, None], g1, 0.0)
    g1 = g1.transpose(1, 2, 3, 0).reshape(30, 72, 240).astype(bf16)
    b1t = jnp.tile(b1, 15).reshape(1, 240)                         # [ox*16+c] -> b1[c]

    # conv2 row selection: psel2[k, py, oy] = 1 iff oy == 2*py + k (py < 7)
    k = jnp.arange(3)[:, None, None]
    py = jnp.arange(8)[None, :, None]
    oy2 = jnp.arange(16)[None, None, :]
    psel2 = ((oy2 == 2 * py + k) & (py < 7)).astype(bf16)          # (3, 8, 16)

    # conv2 weight slabs: g2[k, ox*16+c, px*32+d] = w2[d,c,k, ox-2*px] (0<=.<3)
    ox2 = jnp.arange(15)[:, None]
    px = jnp.arange(7)[None, :]
    kw2 = ox2 - 2 * px                                             # (15, 7)
    valid2 = (kw2 >= 0) & (kw2 < 3)
    g2 = w2[:, :, :, jnp.clip(kw2, 0, 2)]                          # (32,16,3,15,7)
    g2 = jnp.where(valid2[None, None, None], g2, 0.0)
    g2 = g2.transpose(2, 3, 1, 4, 0).reshape(3, 240, 224).astype(bf16)
    b2t = jnp.tile(b2, 7).reshape(1, 224)                          # [px*32+d] -> b2[d]

    # dense1: w3c[py, px*32+d, n] = w3[n, d*49 + py*7 + px]  (PyTorch flatten)
    w3c = (w3.reshape(256, 32, 7, 7).transpose(2, 3, 1, 0)
             .reshape(7, 224, 256).astype(bf16))
    b3r = b3.reshape(1, 256)

    # out layer padded to 128 lanes
    w4p = jnp.zeros((256, 128), f32).at[:, :6].set(w4.T).astype(bf16)
    b4p = jnp.zeros((1, 128), f32).at[0, :6].set(b4)

    return dict(rsel1=rsel1, g1=g1, b1t=b1t, psel2=psel2, g2=g2, b2t=b2t,
                w3c=w3c, b3r=b3r, w4p=w4p, b4p=b4p)


# ----------------------------------------------------------------------------
# Forward pass equivalent to DeepQNetwork.forward (x is NCHW: (N,1,72,72))
# ----------------------------------------------------------------------------
@jax.jit
def dqn_forward(x, pp):
    n = x.shape[0]
    x2 = x.reshape(n, 72, 72).astype(jnp.float32)   # squeeze C=1 (metadata only)

    out = pl.pallas_call(
        _dqn_kernel,
        out_shape=jax.ShapeDtypeStruct((n, 1, 128), jnp.float32),
        grid=(n,),
        in_specs=[
            pl.BlockSpec((None, 72, 72), lambda b: (b, 0, 0)),    # x (per sample)
            pl.BlockSpec((30, 16, 72), lambda b: (0, 0, 0)),      # rsel1
            pl.BlockSpec((30, 72, 240), lambda b: (0, 0, 0)),     # g1
            pl.BlockSpec((1, 240), lambda b: (0, 0)),             # b1t
            pl.BlockSpec((3, 8, 16), lambda b: (0, 0, 0)),        # psel2
            pl.BlockSpec((3, 240, 224), lambda b: (0, 0, 0)),     # g2
            pl.BlockSpec((1, 224), lambda b: (0, 0)),             # b2t
            pl.BlockSpec((7, 224, 256), lambda b: (0, 0, 0)),     # w3c
            pl.BlockSpec((1, 256), lambda b: (0, 0)),             # b3r
            pl.BlockSpec((256, 128), lambda b: (0, 0)),           # w4p
            pl.BlockSpec((1, 128), lambda b: (0, 0)),             # b4p
        ],
        out_specs=pl.BlockSpec((None, 1, 128), lambda b: (b, 0, 0)),
        compiler_params=pltpu.CompilerParams(
            dimension_semantics=("parallel",)),
    )(x2, pp["rsel1"], pp["g1"], pp["b1t"], pp["psel2"], pp["g2"], pp["b2t"],
      pp["w3c"], pp["b3r"], pp["w4p"], pp["b4p"])

    return out[:, 0, :6]


# ----------------------------------------------------------------------------
# Pure-JAX reference (lax conv) for correctness checking.
# ----------------------------------------------------------------------------
def dqn_forward_ref(x, params):
    dn = ("NCHW", "OIHW", "NCHW")
    y = lax.conv_general_dilated(x, params["w1"], (3, 3), "VALID",
                                 dimension_numbers=dn)
    y = jnp.maximum(y + params["b1"][None, :, None, None], 0.0)
    y = lax.conv_general_dilated(y, params["w2"], (2, 2), "VALID",
                                 dimension_numbers=dn)
    y = jnp.maximum(y + params["b2"][None, :, None, None], 0.0)
    y = y.reshape(y.shape[0], 32 * 7 * 7)
    y = jnp.maximum(y @ params["w3"].T + params["b3"], 0.0)
    y = y @ params["w4"].T + params["b4"]
    return y


def make_params(key):
    ks = jax.random.split(key, 8)
    s = 0.05
    return {
        "w1": s * jax.random.normal(ks[0], (16, 1, 30, 30), jnp.float32),
        "b1": s * jax.random.normal(ks[1], (16,), jnp.float32),
        "w2": s * jax.random.normal(ks[2], (32, 16, 3, 3), jnp.float32),
        "b2": s * jax.random.normal(ks[3], (32,), jnp.float32),
        "w3": s * jax.random.normal(ks[4], (256, 32 * 7 * 7), jnp.float32),
        "b3": s * jax.random.normal(ks[5], (256,), jnp.float32),
        "w4": s * jax.random.normal(ks[6], (6, 256), jnp.float32),
        "b4": s * jax.random.normal(ks[7], (6,), jnp.float32),
    }


if __name__ == "__main__":
    key = jax.random.PRNGKey(0)
    k_x, k_p = jax.random.split(key)

    batch = 2
    x = jax.random.normal(k_x, (batch, 1, 72, 72), jnp.float32)  # NCHW
    params = make_params(k_p)
    prepped = prepare_params(params)                              # one-time prep

    out = jax.block_until_ready(dqn_forward(x, prepped))
    assert out.shape == (batch, 6), out.shape

    ref = jax.block_until_ready(dqn_forward_ref(x, params))
    max_err = float(jnp.max(jnp.abs(out - ref)))
    # bf16 MXU operands with f32 accumulation -> small quantization noise.
    assert jnp.allclose(out, ref, rtol=5e-2, atol=5e-2), max_err

    print("KERNEL_OK")
</pallas_src>

<mosaic_0001>
module attributes {stable_mosaic.version = 11 : i64} {
  func.func @_dqn_kernel(%arg0: i32, %arg1: memref<1x72x72xf32, #tpu.memory_space<vmem>>, %arg2: memref<30x16x72xbf16, #tpu.memory_space<vmem>>, %arg3: memref<30x72x240xbf16, #tpu.memory_space<vmem>>, %arg4: memref<1x240xf32, #tpu.memory_space<vmem>>, %arg5: memref<3x8x16xbf16, #tpu.memory_space<vmem>>, %arg6: memref<3x240x224xbf16, #tpu.memory_space<vmem>>, %arg7: memref<1x224xf32, #tpu.memory_space<vmem>>, %arg8: memref<7x224x256xbf16, #tpu.memory_space<vmem>>, %arg9: memref<1x256xf32, #tpu.memory_space<vmem>>, %arg10: memref<256x128xbf16, #tpu.memory_space<vmem>>, %arg11: memref<1x128xf32, #tpu.memory_space<vmem>>, %arg12: memref<1x1x128xf32, #tpu.memory_space<vmem>>) attributes {dimension_semantics = [#tpu.dimension_semantics<parallel>], iteration_bounds = array<i64: 2>, scalar_prefetch = 0 : i64, scratch_operands = 0 : i64, tpu.core_type = #tpu.core_type<tc>, window_params = [{transform_indices = @transform_0, window_bounds = array<i64: 1, 72, 72>}, {pipeline_mode = #tpu.pipeline_mode<synchronous>, transform_indices = @transform_1, window_bounds = array<i64: 30, 16, 72>}, {pipeline_mode = #tpu.pipeline_mode<synchronous>, transform_indices = @transform_2, window_bounds = array<i64: 30, 72, 240>}, {pipeline_mode = #tpu.pipeline_mode<synchronous>, transform_indices = @transform_3, window_bounds = array<i64: 1, 240>}, {pipeline_mode = #tpu.pipeline_mode<synchronous>, transform_indices = @transform_4, window_bounds = array<i64: 3, 8, 16>}, {pipeline_mode = #tpu.pipeline_mode<synchronous>, transform_indices = @transform_5, window_bounds = array<i64: 3, 240, 224>}, {pipeline_mode = #tpu.pipeline_mode<synchronous>, transform_indices = @transform_6, window_bounds = array<i64: 1, 224>}, {pipeline_mode = #tpu.pipeline_mode<synchronous>, transform_indices = @transform_7, window_bounds = array<i64: 7, 224, 256>}, {pipeline_mode = #tpu.pipeline_mode<synchronous>, transform_indices = @transform_8, window_bounds = array<i64: 1, 256>}, {pipeline_mode = #tpu.pipeline_mode<synchronous>, transform_indices = @transform_9, window_bounds = array<i64: 256, 128>}, {pipeline_mode = #tpu.pipeline_mode<synchronous>, transform_indices = @transform_10, window_bounds = array<i64: 1, 128>}, {transform_indices = @transform_11, window_bounds = array<i64: 1, 1, 128>}]} {
    %c0 = arith.constant 0 : index
    %c0_0 = arith.constant 0 : index
    %c0_1 = arith.constant 0 : index
    %0 = vector.load %arg1[%c0, %c0_0, %c0_1] : memref<1x72x72xf32, #tpu.memory_space<vmem>>, vector<1x72x72xf32>
    %1 = vector.shape_cast %0 : vector<1x72x72xf32> to vector<72x72xf32>
    %2 = arith.truncf %1 : vector<72x72xf32> to vector<72x72xbf16>
    %cst = arith.constant 0.000000e+00 : f32
    %3 = vector.broadcast %cst : f32 to vector<16x240xf32>
    %c0_2 = arith.constant 0 : index
    %c0_3 = arith.constant 0 : index
    %c0_4 = arith.constant 0 : index
    %4 = vector.load %arg2[%c0_2, %c0_3, %c0_4] : memref<30x16x72xbf16, #tpu.memory_space<vmem>>, vector<1x16x72xbf16>
    %5 = vector.shape_cast %4 : vector<1x16x72xbf16> to vector<16x72xbf16>
    %cst_5 = arith.constant dense<0.000000e+00> : vector<16x72xf32>
    %6 = tpu.matmul %5, %2, %cst_5 {dimension_numbers = #tpu.dot_dimension_numbers<[1], [0], [0], [1], [0, 0, 1, 1], [], []>} : vector<16x72xbf16>, vector<72x72xbf16>, vector<16x72xf32> -> vector<16x72xf32>
    %7 = arith.truncf %6 : vector<16x72xf32> to vector<16x72xbf16>
    %c0_6 = arith.constant 0 : index
    %c0_7 = arith.constant 0 : index
    %c0_8 = arith.constant 0 : index
    %8 = vector.load %arg3[%c0_6, %c0_7, %c0_8] : memref<30x72x240xbf16, #tpu.memory_space<vmem>>, vector<1x72x240xbf16>
    %9 = vector.shape_cast %8 : vector<1x72x240xbf16> to vector<72x240xbf16>
    %cst_9 = arith.constant dense<0.000000e+00> : vector<16x240xf32>
    %10 = tpu.matmul %7, %9, %cst_9 {dimension_numbers = #tpu.dot_dimension_numbers<[1], [0], [0], [1], [0, 0, 1, 1], [], []>} : vector<16x72xbf16>, vector<72x240xbf16>, vector<16x240xf32> -> vector<16x240xf32>
    %11 = arith.addf %3, %10 : vector<16x240xf32>
    %c1 = arith.constant 1 : index
    %c0_10 = arith.constant 0 : index
    %c0_11 = arith.constant 0 : index
    %12 = vector.load %arg2[%c1, %c0_10, %c0_11] : memref<30x16x72xbf16, #tpu.memory_space<vmem>>, vector<1x16x72xbf16>
    %13 = vector.shape_cast %12 : vector<1x16x72xbf16> to vector<16x72xbf16>
    %cst_12 = arith.constant dense<0.000000e+00> : vector<16x72xf32>
    %14 = tpu.matmul %13, %2, %cst_12 {dimension_numbers = #tpu.dot_dimension_numbers<[1], [0], [0], [1], [0, 0, 1, 1], [], []>} : vector<16x72xbf16>, vector<72x72xbf16>, vector<16x72xf32> -> vector<16x72xf32>
    %15 = arith.truncf %14 : vector<16x72xf32> to vector<16x72xbf16>
    %c1_13 = arith.constant 1 : index
    %c0_14 = arith.constant 0 : index
    %c0_15 = arith.constant 0 : index
    %16 = vector.load %arg3[%c1_13, %c0_14, %c0_15] : memref<30x72x240xbf16, #tpu.memory_space<vmem>>, vector<1x72x240xbf16>
    %17 = vector.shape_cast %16 : vector<1x72x240xbf16> to vector<72x240xbf16>
    %cst_16 = arith.constant dense<0.000000e+00> : vector<16x240xf32>
    %18 = tpu.matmul %15, %17, %cst_16 {dimension_numbers = #tpu.dot_dimension_numbers<[1], [0], [0], [1], [0, 0, 1, 1], [], []>} : vector<16x72xbf16>, vector<72x240xbf16>, vector<16x240xf32> -> vector<16x240xf32>
    %19 = arith.addf %11, %18 : vector<16x240xf32>
    %c2 = arith.constant 2 : index
    %c0_17 = arith.constant 0 : index
    %c0_18 = arith.constant 0 : index
    %20 = vector.load %arg2[%c2, %c0_17, %c0_18] : memref<30x16x72xbf16, #tpu.memory_space<vmem>>, vector<1x16x72xbf16>
    %21 = vector.shape_cast %20 : vector<1x16x72xbf16> to vector<16x72xbf16>
    %cst_19 = arith.constant dense<0.000000e+00> : vector<16x72xf32>
    %22 = tpu.matmul %21, %2, %cst_19 {dimension_numbers = #tpu.dot_dimension_numbers<[1], [0], [0], [1], [0, 0, 1, 1], [], []>} : vector<16x72xbf16>, vector<72x72xbf16>, vector<16x72xf32> -> vector<16x72xf32>
    %23 = arith.truncf %22 : vector<16x72xf32> to vector<16x72xbf16>
    %c2_20 = arith.constant 2 : index
    %c0_21 = arith.constant 0 : index
    %c0_22 = arith.constant 0 : index
    %24 = vector.load %arg3[%c2_20, %c0_21, %c0_22] : memref<30x72x240xbf16, #tpu.memory_space<vmem>>, vector<1x72x240xbf16>
    %25 = vector.shape_cast %24 : vector<1x72x240xbf16> to vector<72x240xbf16>
    %cst_23 = arith.constant dense<0.000000e+00> : vector<16x240xf32>
    %26 = tpu.matmul %23, %25, %cst_23 {dimension_numbers = #tpu.dot_dimension_numbers<[1], [0], [0], [1], [0, 0, 1, 1], [], []>} : vector<16x72xbf16>, vector<72x240xbf16>, vector<16x240xf32> -> vector<16x240xf32>
    %27 = arith.addf %19, %26 : vector<16x240xf32>
    %c3 = arith.constant 3 : index
    %c0_24 = arith.constant 0 : index
    %c0_25 = arith.constant 0 : index
    %28 = vector.load %arg2[%c3, %c0_24, %c0_25] : memref<30x16x72xbf16, #tpu.memory_space<vmem>>, vector<1x16x72xbf16>
    %29 = vector.shape_cast %28 : vector<1x16x72xbf16> to vector<16x72xbf16>
    %cst_26 = arith.constant dense<0.000000e+00> : vector<16x72xf32>
    %30 = tpu.matmul %29, %2, %cst_26 {dimension_numbers = #tpu.dot_dimension_numbers<[1], [0], [0], [1], [0, 0, 1, 1], [], []>} : vector<16x72xbf16>, vector<72x72xbf16>, vector<16x72xf32> -> vector<16x72xf32>
    %31 = arith.truncf %30 : vector<16x72xf32> to vector<16x72xbf16>
    %c3_27 = arith.constant 3 : index
    %c0_28 = arith.constant 0 : index
    %c0_29 = arith.constant 0 : index
    %32 = vector.load %arg3[%c3_27, %c0_28, %c0_29] : memref<30x72x240xbf16, #tpu.memory_space<vmem>>, vector<1x72x240xbf16>
    %33 = vector.shape_cast %32 : vector<1x72x240xbf16> to vector<72x240xbf16>
    %cst_30 = arith.constant dense<0.000000e+00> : vector<16x240xf32>
    %34 = tpu.matmul %31, %33, %cst_30 {dimension_numbers = #tpu.dot_dimension_numbers<[1], [0], [0], [1], [0, 0, 1, 1], [], []>} : vector<16x72xbf16>, vector<72x240xbf16>, vector<16x240xf32> -> vector<16x240xf32>
    %35 = arith.addf %27, %34 : vector<16x240xf32>
    %c4 = arith.constant 4 : index
    %c0_31 = arith.constant 0 : index
    %c0_32 = arith.constant 0 : index
    %36 = vector.load %arg2[%c4, %c0_31, %c0_32] : memref<30x16x72xbf16, #tpu.memory_space<vmem>>, vector<1x16x72xbf16>
    %37 = vector.shape_cast %36 : vector<1x16x72xbf16> to vector<16x72xbf16>
    %cst_33 = arith.constant dense<0.000000e+00> : vector<16x72xf32>
    %38 = tpu.matmul %37, %2, %cst_33 {dimension_numbers = #tpu.dot_dimension_numbers<[1], [0], [0], [1], [0, 0, 1, 1], [], []>} : vector<16x72xbf16>, vector<72x72xbf16>, vector<16x72xf32> -> vector<16x72xf32>
    %39 = arith.truncf %38 : vector<16x72xf32> to vector<16x72xbf16>
    %c4_34 = arith.constant 4 : index
    %c0_35 = arith.constant 0 : index
    %c0_36 = arith.constant 0 : index
    %40 = vector.load %arg3[%c4_34, %c0_35, %c0_36] : memref<30x72x240xbf16, #tpu.memory_space<vmem>>, vector<1x72x240xbf16>
    %41 = vector.shape_cast %40 : vector<1x72x240xbf16> to vector<72x240xbf16>
    %cst_37 = arith.constant dense<0.000000e+00> : vector<16x240xf32>
    %42 = tpu.matmul %39, %41, %cst_37 {dimension_numbers = #tpu.dot_dimension_numbers<[1], [0], [0], [1], [0, 0, 1, 1], [], []>} : vector<16x72xbf16>, vector<72x240xbf16>, vector<16x240xf32> -> vector<16x240xf32>
    %43 = arith.addf %35, %42 : vector<16x240xf32>
    %c5 = arith.constant 5 : index
    %c0_38 = arith.constant 0 : index
    %c0_39 = arith.constant 0 : index
    %44 = vector.load %arg2[%c5, %c0_38, %c0_39] : memref<30x16x72xbf16, #tpu.memory_space<vmem>>, vector<1x16x72xbf16>
    %45 = vector.shape_cast %44 : vector<1x16x72xbf16> to vector<16x72xbf16>
    %cst_40 = arith.constant dense<0.000000e+00> : vector<16x72xf32>
    %46 = tpu.matmul %45, %2, %cst_40 {dimension_numbers = #tpu.dot_dimension_numbers<[1], [0], [0], [1], [0, 0, 1, 1], [], []>} : vector<16x72xbf16>, vector<72x72xbf16>, vector<16x72xf32> -> vector<16x72xf32>
    %47 = arith.truncf %46 : vector<16x72xf32> to vector<16x72xbf16>
    %c5_41 = arith.constant 5 : index
    %c0_42 = arith.constant 0 : index
    %c0_43 = arith.constant 0 : index
    %48 = vector.load %arg3[%c5_41, %c0_42, %c0_43] : memref<30x72x240xbf16, #tpu.memory_space<vmem>>, vector<1x72x240xbf16>
    %49 = vector.shape_cast %48 : vector<1x72x240xbf16> to vector<72x240xbf16>
    %cst_44 = arith.constant dense<0.000000e+00> : vector<16x240xf32>
    %50 = tpu.matmul %47, %49, %cst_44 {dimension_numbers = #tpu.dot_dimension_numbers<[1], [0], [0], [1], [0, 0, 1, 1], [], []>} : vector<16x72xbf16>, vector<72x240xbf16>, vector<16x240xf32> -> vector<16x240xf32>
    %51 = arith.addf %43, %50 : vector<16x240xf32>
    %c6 = arith.constant 6 : index
    %c0_45 = arith.constant 0 : index
    %c0_46 = arith.constant 0 : index
    %52 = vector.load %arg2[%c6, %c0_45, %c0_46] : memref<30x16x72xbf16, #tpu.memory_space<vmem>>, vector<1x16x72xbf16>
    %53 = vector.shape_cast %52 : vector<1x16x72xbf16> to vector<16x72xbf16>
    %cst_47 = arith.constant dense<0.000000e+00> : vector<16x72xf32>
    %54 = tpu.matmul %53, %2, %cst_47 {dimension_numbers = #tpu.dot_dimension_numbers<[1], [0], [0], [1], [0, 0, 1, 1], [], []>} : vector<16x72xbf16>, vector<72x72xbf16>, vector<16x72xf32> -> vector<16x72xf32>
    %55 = arith.truncf %54 : vector<16x72xf32> to vector<16x72xbf16>
    %c6_48 = arith.constant 6 : index
    %c0_49 = arith.constant 0 : index
    %c0_50 = arith.constant 0 : index
    %56 = vector.load %arg3[%c6_48, %c0_49, %c0_50] : memref<30x72x240xbf16, #tpu.memory_space<vmem>>, vector<1x72x240xbf16>
    %57 = vector.shape_cast %56 : vector<1x72x240xbf16> to vector<72x240xbf16>
    %cst_51 = arith.constant dense<0.000000e+00> : vector<16x240xf32>
    %58 = tpu.matmul %55, %57, %cst_51 {dimension_numbers = #tpu.dot_dimension_numbers<[1], [0], [0], [1], [0, 0, 1, 1], [], []>} : vector<16x72xbf16>, vector<72x240xbf16>, vector<16x240xf32> -> vector<16x240xf32>
    %59 = arith.addf %51, %58 : vector<16x240xf32>
    %c7 = arith.constant 7 : index
    %c0_52 = arith.constant 0 : index
    %c0_53 = arith.constant 0 : index
    %60 = vector.load %arg2[%c7, %c0_52, %c0_53] : memref<30x16x72xbf16, #tpu.memory_space<vmem>>, vector<1x16x72xbf16>
    %61 = vector.shape_cast %60 : vector<1x16x72xbf16> to vector<16x72xbf16>
    %cst_54 = arith.constant dense<0.000000e+00> : vector<16x72xf32>
    %62 = tpu.matmul %61, %2, %cst_54 {dimension_numbers = #tpu.dot_dimension_numbers<[1], [0], [0], [1], [0, 0, 1, 1], [], []>} : vector<16x72xbf16>, vector<72x72xbf16>, vector<16x72xf32> -> vector<16x72xf32>
    %63 = arith.truncf %62 : vector<16x72xf32> to vector<16x72xbf16>
    %c7_55 = arith.constant 7 : index
    %c0_56 = arith.constant 0 : index
    %c0_57 = arith.constant 0 : index
    %64 = vector.load %arg3[%c7_55, %c0_56, %c0_57] : memref<30x72x240xbf16, #tpu.memory_space<vmem>>, vector<1x72x240xbf16>
    %65 = vector.shape_cast %64 : vector<1x72x240xbf16> to vector<72x240xbf16>
    %cst_58 = arith.constant dense<0.000000e+00> : vector<16x240xf32>
    %66 = tpu.matmul %63, %65, %cst_58 {dimension_numbers = #tpu.dot_dimension_numbers<[1], [0], [0], [1], [0, 0, 1, 1], [], []>} : vector<16x72xbf16>, vector<72x240xbf16>, vector<16x240xf32> -> vector<16x240xf32>
    %67 = arith.addf %59, %66 : vector<16x240xf32>
    %c8 = arith.constant 8 : index
    %c0_59 = arith.constant 0 : index
    %c0_60 = arith.constant 0 : index
    %68 = vector.load %arg2[%c8, %c0_59, %c0_60] : memref<30x16x72xbf16, #tpu.memory_space<vmem>>, vector<1x16x72xbf16>
    %69 = vector.shape_cast %68 : vector<1x16x72xbf16> to vector<16x72xbf16>
    %cst_61 = arith.constant dense<0.000000e+00> : vector<16x72xf32>
    %70 = tpu.matmul %69, %2, %cst_61 {dimension_numbers = #tpu.dot_dimension_numbers<[1], [0], [0], [1], [0, 0, 1, 1], [], []>} : vector<16x72xbf16>, vector<72x72xbf16>, vector<16x72xf32> -> vector<16x72xf32>
    %71 = arith.truncf %70 : vector<16x72xf32> to vector<16x72xbf16>
    %c8_62 = arith.constant 8 : index
    %c0_63 = arith.constant 0 : index
    %c0_64 = arith.constant 0 : index
    %72 = vector.load %arg3[%c8_62, %c0_63, %c0_64] : memref<30x72x240xbf16, #tpu.memory_space<vmem>>, vector<1x72x240xbf16>
    %73 = vector.shape_cast %72 : vector<1x72x240xbf16> to vector<72x240xbf16>
    %cst_65 = arith.constant dense<0.000000e+00> : vector<16x240xf32>
    %74 = tpu.matmul %71, %73, %cst_65 {dimension_numbers = #tpu.dot_dimension_numbers<[1], [0], [0], [1], [0, 0, 1, 1], [], []>} : vector<16x72xbf16>, vector<72x240xbf16>, vector<16x240xf32> -> vector<16x240xf32>
    %75 = arith.addf %67, %74 : vector<16x240xf32>
    %c9 = arith.constant 9 : index
    %c0_66 = arith.constant 0 : index
    %c0_67 = arith.constant 0 : index
    %76 = vector.load %arg2[%c9, %c0_66, %c0_67] : memref<30x16x72xbf16, #tpu.memory_space<vmem>>, vector<1x16x72xbf16>
    %77 = vector.shape_cast %76 : vector<1x16x72xbf16> to vector<16x72xbf16>
    %cst_68 = arith.constant dense<0.000000e+00> : vector<16x72xf32>
    %78 = tpu.matmul %77, %2, %cst_68 {dimension_numbers = #tpu.dot_dimension_numbers<[1], [0], [0], [1], [0, 0, 1, 1], [], []>} : vector<16x72xbf16>, vector<72x72xbf16>, vector<16x72xf32> -> vector<16x72xf32>
    %79 = arith.truncf %78 : vector<16x72xf32> to vector<16x72xbf16>
    %c9_69 = arith.constant 9 : index
    %c0_70 = arith.constant 0 : index
    %c0_71 = arith.constant 0 : index
    %80 = vector.load %arg3[%c9_69, %c0_70, %c0_71] : memref<30x72x240xbf16, #tpu.memory_space<vmem>>, vector<1x72x240xbf16>
    %81 = vector.shape_cast %80 : vector<1x72x240xbf16> to vector<72x240xbf16>
    %cst_72 = arith.constant dense<0.000000e+00> : vector<16x240xf32>
    %82 = tpu.matmul %79, %81, %cst_72 {dimension_numbers = #tpu.dot_dimension_numbers<[1], [0], [0], [1], [0, 0, 1, 1], [], []>} : vector<16x72xbf16>, vector<72x240xbf16>, vector<16x240xf32> -> vector<16x240xf32>
    %83 = arith.addf %75, %82 : vector<16x240xf32>
    %c10 = arith.constant 10 : index
    %c0_73 = arith.constant 0 : index
    %c0_74 = arith.constant 0 : index
    %84 = vector.load %arg2[%c10, %c0_73, %c0_74] : memref<30x16x72xbf16, #tpu.memory_space<vmem>>, vector<1x16x72xbf16>
    %85 = vector.shape_cast %84 : vector<1x16x72xbf16> to vector<16x72xbf16>
    %cst_75 = arith.constant dense<0.000000e+00> : vector<16x72xf32>
    %86 = tpu.matmul %85, %2, %cst_75 {dimension_numbers = #tpu.dot_dimension_numbers<[1], [0], [0], [1], [0, 0, 1, 1], [], []>} : vector<16x72xbf16>, vector<72x72xbf16>, vector<16x72xf32> -> vector<16x72xf32>
    %87 = arith.truncf %86 : vector<16x72xf32> to vector<16x72xbf16>
    %c10_76 = arith.constant 10 : index
    %c0_77 = arith.constant 0 : index
    %c0_78 = arith.constant 0 : index
    %88 = vector.load %arg3[%c10_76, %c0_77, %c0_78] : memref<30x72x240xbf16, #tpu.memory_space<vmem>>, vector<1x72x240xbf16>
    %89 = vector.shape_cast %88 : vector<1x72x240xbf16> to vector<72x240xbf16>
    %cst_79 = arith.constant dense<0.000000e+00> : vector<16x240xf32>
    %90 = tpu.matmul %87, %89, %cst_79 {dimension_numbers = #tpu.dot_dimension_numbers<[1], [0], [0], [1], [0, 0, 1, 1], [], []>} : vector<16x72xbf16>, vector<72x240xbf16>, vector<16x240xf32> -> vector<16x240xf32>
    %91 = arith.addf %83, %90 : vector<16x240xf32>
    %c11 = arith.constant 11 : index
    %c0_80 = arith.constant 0 : index
    %c0_81 = arith.constant 0 : index
    %92 = vector.load %arg2[%c11, %c0_80, %c0_81] : memref<30x16x72xbf16, #tpu.memory_space<vmem>>, vector<1x16x72xbf16>
    %93 = vector.shape_cast %92 : vector<1x16x72xbf16> to vector<16x72xbf16>
    %cst_82 = arith.constant dense<0.000000e+00> : vector<16x72xf32>
    %94 = tpu.matmul %93, %2, %cst_82 {dimension_numbers = #tpu.dot_dimension_numbers<[1], [0], [0], [1], [0, 0, 1, 1], [], []>} : vector<16x72xbf16>, vector<72x72xbf16>, vector<16x72xf32> -> vector<16x72xf32>
    %95 = arith.truncf %94 : vector<16x72xf32> to vector<16x72xbf16>
    %c11_83 = arith.constant 11 : index
    %c0_84 = arith.constant 0 : index
    %c0_85 = arith.constant 0 : index
    %96 = vector.load %arg3[%c11_83, %c0_84, %c0_85] : memref<30x72x240xbf16, #tpu.memory_space<vmem>>, vector<1x72x240xbf16>
    %97 = vector.shape_cast %96 : vector<1x72x240xbf16> to vector<72x240xbf16>
    %cst_86 = arith.constant dense<0.000000e+00> : vector<16x240xf32>
    %98 = tpu.matmul %95, %97, %cst_86 {dimension_numbers = #tpu.dot_dimension_numbers<[1], [0], [0], [1], [0, 0, 1, 1], [], []>} : vector<16x72xbf16>, vector<72x240xbf16>, vector<16x240xf32> -> vector<16x240xf32>
    %99 = arith.addf %91, %98 : vector<16x240xf32>
    %c12 = arith.constant 12 : index
    %c0_87 = arith.constant 0 : index
    %c0_88 = arith.constant 0 : index
    %100 = vector.load %arg2[%c12, %c0_87, %c0_88] : memref<30x16x72xbf16, #tpu.memory_space<vmem>>, vector<1x16x72xbf16>
    %101 = vector.shape_cast %100 : vector<1x16x72xbf16> to vector<16x72xbf16>
    %cst_89 = arith.constant dense<0.000000e+00> : vector<16x72xf32>
    %102 = tpu.matmul %101, %2, %cst_89 {dimension_numbers = #tpu.dot_dimension_numbers<[1], [0], [0], [1], [0, 0, 1, 1], [], []>} : vector<16x72xbf16>, vector<72x72xbf16>, vector<16x72xf32> -> vector<16x72xf32>
    %103 = arith.truncf %102 : vector<16x72xf32> to vector<16x72xbf16>
    %c12_90 = arith.constant 12 : index
    %c0_91 = arith.constant 0 : index
    %c0_92 = arith.constant 0 : index
    %104 = vector.load %arg3[%c12_90, %c0_91, %c0_92] : memref<30x72x240xbf16, #tpu.memory_space<vmem>>, vector<1x72x240xbf16>
    %105 = vector.shape_cast %104 : vector<1x72x240xbf16> to vector<72x240xbf16>
    %cst_93 = arith.constant dense<0.000000e+00> : vector<16x240xf32>
    %106 = tpu.matmul %103, %105, %cst_93 {dimension_numbers = #tpu.dot_dimension_numbers<[1], [0], [0], [1], [0, 0, 1, 1], [], []>} : vector<16x72xbf16>, vector<72x240xbf16>, vector<16x240xf32> -> vector<16x240xf32>
    %107 = arith.addf %99, %106 : vector<16x240xf32>
    %c13 = arith.constant 13 : index
    %c0_94 = arith.constant 0 : index
    %c0_95 = arith.constant 0 : index
    %108 = vector.load %arg2[%c13, %c0_94, %c0_95] : memref<30x16x72xbf16, #tpu.memory_space<vmem>>, vector<1x16x72xbf16>
    %109 = vector.shape_cast %108 : vector<1x16x72xbf16> to vector<16x72xbf16>
    %cst_96 = arith.constant dense<0.000000e+00> : vector<16x72xf32>
    %110 = tpu.matmul %109, %2, %cst_96 {dimension_numbers = #tpu.dot_dimension_numbers<[1], [0], [0], [1], [0, 0, 1, 1], [], []>} : vector<16x72xbf16>, vector<72x72xbf16>, vector<16x72xf32> -> vector<16x72xf32>
    %111 = arith.truncf %110 : vector<16x72xf32> to vector<16x72xbf16>
    %c13_97 = arith.constant 13 : index
    %c0_98 = arith.constant 0 : index
    %c0_99 = arith.constant 0 : index
    %112 = vector.load %arg3[%c13_97, %c0_98, %c0_99] : memref<30x72x240xbf16, #tpu.memory_space<vmem>>, vector<1x72x240xbf16>
    %113 = vector.shape_cast %112 : vector<1x72x240xbf16> to vector<72x240xbf16>
    %cst_100 = arith.constant dense<0.000000e+00> : vector<16x240xf32>
    %114 = tpu.matmul %111, %113, %cst_100 {dimension_numbers = #tpu.dot_dimension_numbers<[1], [0], [0], [1], [0, 0, 1, 1], [], []>} : vector<16x72xbf16>, vector<72x240xbf16>, vector<16x240xf32> -> vector<16x240xf32>
    %115 = arith.addf %107, %114 : vector<16x240xf32>
    %c14 = arith.constant 14 : index
    %c0_101 = arith.constant 0 : index
    %c0_102 = arith.constant 0 : index
    %116 = vector.load %arg2[%c14, %c0_101, %c0_102] : memref<30x16x72xbf16, #tpu.memory_space<vmem>>, vector<1x16x72xbf16>
    %117 = vector.shape_cast %116 : vector<1x16x72xbf16> to vector<16x72xbf16>
    %cst_103 = arith.constant dense<0.000000e+00> : vector<16x72xf32>
    %118 = tpu.matmul %117, %2, %cst_103 {dimension_numbers = #tpu.dot_dimension_numbers<[1], [0], [0], [1], [0, 0, 1, 1], [], []>} : vector<16x72xbf16>, vector<72x72xbf16>, vector<16x72xf32> -> vector<16x72xf32>
    %119 = arith.truncf %118 : vector<16x72xf32> to vector<16x72xbf16>
    %c14_104 = arith.constant 14 : index
    %c0_105 = arith.constant 0 : index
    %c0_106 = arith.constant 0 : index
    %120 = vector.load %arg3[%c14_104, %c0_105, %c0_106] : memref<30x72x240xbf16, #tpu.memory_space<vmem>>, vector<1x72x240xbf16>
    %121 = vector.shape_cast %120 : vector<1x72x240xbf16> to vector<72x240xbf16>
    %cst_107 = arith.constant dense<0.000000e+00> : vector<16x240xf32>
    %122 = tpu.matmul %119, %121, %cst_107 {dimension_numbers = #tpu.dot_dimension_numbers<[1], [0], [0], [1], [0, 0, 1, 1], [], []>} : vector<16x72xbf16>, vector<72x240xbf16>, vector<16x240xf32> -> vector<16x240xf32>
    %123 = arith.addf %115, %122 : vector<16x240xf32>
    %c15 = arith.constant 15 : index
    %c0_108 = arith.constant 0 : index
    %c0_109 = arith.constant 0 : index
    %124 = vector.load %arg2[%c15, %c0_108, %c0_109] : memref<30x16x72xbf16, #tpu.memory_space<vmem>>, vector<1x16x72xbf16>
    %125 = vector.shape_cast %124 : vector<1x16x72xbf16> to vector<16x72xbf16>
    %cst_110 = arith.constant dense<0.000000e+00> : vector<16x72xf32>
    %126 = tpu.matmul %125, %2, %cst_110 {dimension_numbers = #tpu.dot_dimension_numbers<[1], [0], [0], [1], [0, 0, 1, 1], [], []>} : vector<16x72xbf16>, vector<72x72xbf16>, vector<16x72xf32> -> vector<16x72xf32>
    %127 = arith.truncf %126 : vector<16x72xf32> to vector<16x72xbf16>
    %c15_111 = arith.constant 15 : index
    %c0_112 = arith.constant 0 : index
    %c0_113 = arith.constant 0 : index
    %128 = vector.load %arg3[%c15_111, %c0_112, %c0_113] : memref<30x72x240xbf16, #tpu.memory_space<vmem>>, vector<1x72x240xbf16>
    %129 = vector.shape_cast %128 : vector<1x72x240xbf16> to vector<72x240xbf16>
    %cst_114 = arith.constant dense<0.000000e+00> : vector<16x240xf32>
    %130 = tpu.matmul %127, %129, %cst_114 {dimension_numbers = #tpu.dot_dimension_numbers<[1], [0], [0], [1], [0, 0, 1, 1], [], []>} : vector<16x72xbf16>, vector<72x240xbf16>, vector<16x240xf32> -> vector<16x240xf32>
    %131 = arith.addf %123, %130 : vector<16x240xf32>
    %c16 = arith.constant 16 : index
    %c0_115 = arith.constant 0 : index
    %c0_116 = arith.constant 0 : index
    %132 = vector.load %arg2[%c16, %c0_115, %c0_116] : memref<30x16x72xbf16, #tpu.memory_space<vmem>>, vector<1x16x72xbf16>
    %133 = vector.shape_cast %132 : vector<1x16x72xbf16> to vector<16x72xbf16>
    %cst_117 = arith.constant dense<0.000000e+00> : vector<16x72xf32>
    %134 = tpu.matmul %133, %2, %cst_117 {dimension_numbers = #tpu.dot_dimension_numbers<[1], [0], [0], [1], [0, 0, 1, 1], [], []>} : vector<16x72xbf16>, vector<72x72xbf16>, vector<16x72xf32> -> vector<16x72xf32>
    %135 = arith.truncf %134 : vector<16x72xf32> to vector<16x72xbf16>
    %c16_118 = arith.constant 16 : index
    %c0_119 = arith.constant 0 : index
    %c0_120 = arith.constant 0 : index
    %136 = vector.load %arg3[%c16_118, %c0_119, %c0_120] : memref<30x72x240xbf16, #tpu.memory_space<vmem>>, vector<1x72x240xbf16>
    %137 = vector.shape_cast %136 : vector<1x72x240xbf16> to vector<72x240xbf16>
    %cst_121 = arith.constant dense<0.000000e+00> : vector<16x240xf32>
    %138 = tpu.matmul %135, %137, %cst_121 {dimension_numbers = #tpu.dot_dimension_numbers<[1], [0], [0], [1], [0, 0, 1, 1], [], []>} : vector<16x72xbf16>, vector<72x240xbf16>, vector<16x240xf32> -> vector<16x240xf32>
    %139 = arith.addf %131, %138 : vector<16x240xf32>
    %c17 = arith.constant 17 : index
    %c0_122 = arith.constant 0 : index
    %c0_123 = arith.constant 0 : index
    %140 = vector.load %arg2[%c17, %c0_122, %c0_123] : memref<30x16x72xbf16, #tpu.memory_space<vmem>>, vector<1x16x72xbf16>
    %141 = vector.shape_cast %140 : vector<1x16x72xbf16> to vector<16x72xbf16>
    %cst_124 = arith.constant dense<0.000000e+00> : vector<16x72xf32>
    %142 = tpu.matmul %141, %2, %cst_124 {dimension_numbers = #tpu.dot_dimension_numbers<[1], [0], [0], [1], [0, 0, 1, 1], [], []>} : vector<16x72xbf16>, vector<72x72xbf16>, vector<16x72xf32> -> vector<16x72xf32>
    %143 = arith.truncf %142 : vector<16x72xf32> to vector<16x72xbf16>
    %c17_125 = arith.constant 17 : index
    %c0_126 = arith.constant 0 : index
    %c0_127 = arith.constant 0 : index
    %144 = vector.load %arg3[%c17_125, %c0_126, %c0_127] : memref<30x72x240xbf16, #tpu.memory_space<vmem>>, vector<1x72x240xbf16>
    %145 = vector.shape_cast %144 : vector<1x72x240xbf16> to vector<72x240xbf16>
    %cst_128 = arith.constant dense<0.000000e+00> : vector<16x240xf32>
    %146 = tpu.matmul %143, %145, %cst_128 {dimension_numbers = #tpu.dot_dimension_numbers<[1], [0], [0], [1], [0, 0, 1, 1], [], []>} : vector<16x72xbf16>, vector<72x240xbf16>, vector<16x240xf32> -> vector<16x240xf32>
    %147 = arith.addf %139, %146 : vector<16x240xf32>
    %c18 = arith.constant 18 : index
    %c0_129 = arith.constant 0 : index
    %c0_130 = arith.constant 0 : index
    %148 = vector.load %arg2[%c18, %c0_129, %c0_130] : memref<30x16x72xbf16, #tpu.memory_space<vmem>>, vector<1x16x72xbf16>
    %149 = vector.shape_cast %148 : vector<1x16x72xbf16> to vector<16x72xbf16>
    %cst_131 = arith.constant dense<0.000000e+00> : vector<16x72xf32>
    %150 = tpu.matmul %149, %2, %cst_131 {dimension_numbers = #tpu.dot_dimension_numbers<[1], [0], [0], [1], [0, 0, 1, 1], [], []>} : vector<16x72xbf16>, vector<72x72xbf16>, vector<16x72xf32> -> vector<16x72xf32>
    %151 = arith.truncf %150 : vector<16x72xf32> to vector<16x72xbf16>
    %c18_132 = arith.constant 18 : index
    %c0_133 = arith.constant 0 : index
    %c0_134 = arith.constant 0 : index
    %152 = vector.load %arg3[%c18_132, %c0_133, %c0_134] : memref<30x72x240xbf16, #tpu.memory_space<vmem>>, vector<1x72x240xbf16>
    %153 = vector.shape_cast %152 : vector<1x72x240xbf16> to vector<72x240xbf16>
    %cst_135 = arith.constant dense<0.000000e+00> : vector<16x240xf32>
    %154 = tpu.matmul %151, %153, %cst_135 {dimension_numbers = #tpu.dot_dimension_numbers<[1], [0], [0], [1], [0, 0, 1, 1], [], []>} : vector<16x72xbf16>, vector<72x240xbf16>, vector<16x240xf32> -> vector<16x240xf32>
    %155 = arith.addf %147, %154 : vector<16x240xf32>
    %c19 = arith.constant 19 : index
    %c0_136 = arith.constant 0 : index
    %c0_137 = arith.constant 0 : index
    %156 = vector.load %arg2[%c19, %c0_136, %c0_137] : memref<30x16x72xbf16, #tpu.memory_space<vmem>>, vector<1x16x72xbf16>
    %157 = vector.shape_cast %156 : vector<1x16x72xbf16> to vector<16x72xbf16>
    %cst_138 = arith.constant dense<0.000000e+00> : vector<16x72xf32>
    %158 = tpu.matmul %157, %2, %cst_138 {dimension_numbers = #tpu.dot_dimension_numbers<[1], [0], [0], [1], [0, 0, 1, 1], [], []>} : vector<16x72xbf16>, vector<72x72xbf16>, vector<16x72xf32> -> vector<16x72xf32>
    %159 = arith.truncf %158 : vector<16x72xf32> to vector<16x72xbf16>
    %c19_139 = arith.constant 19 : index
    %c0_140 = arith.constant 0 : index
    %c0_141 = arith.constant 0 : index
    %160 = vector.load %arg3[%c19_139, %c0_140, %c0_141] : memref<30x72x240xbf16, #tpu.memory_space<vmem>>, vector<1x72x240xbf16>
    %161 = vector.shape_cast %160 : vector<1x72x240xbf16> to vector<72x240xbf16>
    %cst_142 = arith.constant dense<0.000000e+00> : vector<16x240xf32>
    %162 = tpu.matmul %159, %161, %cst_142 {dimension_numbers = #tpu.dot_dimension_numbers<[1], [0], [0], [1], [0, 0, 1, 1], [], []>} : vector<16x72xbf16>, vector<72x240xbf16>, vector<16x240xf32> -> vector<16x240xf32>
    %163 = arith.addf %155, %162 : vector<16x240xf32>
    %c20 = arith.constant 20 : index
    %c0_143 = arith.constant 0 : index
    %c0_144 = arith.constant 0 : index
    %164 = vector.load %arg2[%c20, %c0_143, %c0_144] : memref<30x16x72xbf16, #tpu.memory_space<vmem>>, vector<1x16x72xbf16>
    %165 = vector.shape_cast %164 : vector<1x16x72xbf16> to vector<16x72xbf16>
    %cst_145 = arith.constant dense<0.000000e+00> : vector<16x72xf32>
    %166 = tpu.matmul %165, %2, %cst_145 {dimension_numbers = #tpu.dot_dimension_numbers<[1], [0], [0], [1], [0, 0, 1, 1], [], []>} : vector<16x72xbf16>, vector<72x72xbf16>, vector<16x72xf32> -> vector<16x72xf32>
    %167 = arith.truncf %166 : vector<16x72xf32> to vector<16x72xbf16>
    %c20_146 = arith.constant 20 : index
    %c0_147 = arith.constant 0 : index
    %c0_148 = arith.constant 0 : index
    %168 = vector.load %arg3[%c20_146, %c0_147, %c0_148] : memref<30x72x240xbf16, #tpu.memory_space<vmem>>, vector<1x72x240xbf16>
    %169 = vector.shape_cast %168 : vector<1x72x240xbf16> to vector<72x240xbf16>
    %cst_149 = arith.constant dense<0.000000e+00> : vector<16x240xf32>
    %170 = tpu.matmul %167, %169, %cst_149 {dimension_numbers = #tpu.dot_dimension_numbers<[1], [0], [0], [1], [0, 0, 1, 1], [], []>} : vector<16x72xbf16>, vector<72x240xbf16>, vector<16x240xf32> -> vector<16x240xf32>
    %171 = arith.addf %163, %170 : vector<16x240xf32>
    %c21 = arith.constant 21 : index
    %c0_150 = arith.constant 0 : index
    %c0_151 = arith.constant 0 : index
    %172 = vector.load %arg2[%c21, %c0_150, %c0_151] : memref<30x16x72xbf16, #tpu.memory_space<vmem>>, vector<1x16x72xbf16>
    %173 = vector.shape_cast %172 : vector<1x16x72xbf16> to vector<16x72xbf16>
    %cst_152 = arith.constant dense<0.000000e+00> : vector<16x72xf32>
    %174 = tpu.matmul %173, %2, %cst_152 {dimension_numbers = #tpu.dot_dimension_numbers<[1], [0], [0], [1], [0, 0, 1, 1], [], []>} : vector<16x72xbf16>, vector<72x72xbf16>, vector<16x72xf32> -> vector<16x72xf32>
    %175 = arith.truncf %174 : vector<16x72xf32> to vector<16x72xbf16>
    %c21_153 = arith.constant 21 : index
    %c0_154 = arith.constant 0 : index
    %c0_155 = arith.constant 0 : index
    %176 = vector.load %arg3[%c21_153, %c0_154, %c0_155] : memref<30x72x240xbf16, #tpu.memory_space<vmem>>, vector<1x72x240xbf16>
    %177 = vector.shape_cast %176 : vector<1x72x240xbf16> to vector<72x240xbf16>
    %cst_156 = arith.constant dense<0.000000e+00> : vector<16x240xf32>
    %178 = tpu.matmul %175, %177, %cst_156 {dimension_numbers = #tpu.dot_dimension_numbers<[1], [0], [0], [1], [0, 0, 1, 1], [], []>} : vector<16x72xbf16>, vector<72x240xbf16>, vector<16x240xf32> -> vector<16x240xf32>
    %179 = arith.addf %171, %178 : vector<16x240xf32>
    %c22 = arith.constant 22 : index
    %c0_157 = arith.constant 0 : index
    %c0_158 = arith.constant 0 : index
    %180 = vector.load %arg2[%c22, %c0_157, %c0_158] : memref<30x16x72xbf16, #tpu.memory_space<vmem>>, vector<1x16x72xbf16>
    %181 = vector.shape_cast %180 : vector<1x16x72xbf16> to vector<16x72xbf16>
    %cst_159 = arith.constant dense<0.000000e+00> : vector<16x72xf32>
    %182 = tpu.matmul %181, %2, %cst_159 {dimension_numbers = #tpu.dot_dimension_numbers<[1], [0], [0], [1], [0, 0, 1, 1], [], []>} : vector<16x72xbf16>, vector<72x72xbf16>, vector<16x72xf32> -> vector<16x72xf32>
    %183 = arith.truncf %182 : vector<16x72xf32> to vector<16x72xbf16>
    %c22_160 = arith.constant 22 : index
    %c0_161 = arith.constant 0 : index
    %c0_162 = arith.constant 0 : index
    %184 = vector.load %arg3[%c22_160, %c0_161, %c0_162] : memref<30x72x240xbf16, #tpu.memory_space<vmem>>, vector<1x72x240xbf16>
    %185 = vector.shape_cast %184 : vector<1x72x240xbf16> to vector<72x240xbf16>
    %cst_163 = arith.constant dense<0.000000e+00> : vector<16x240xf32>
    %186 = tpu.matmul %183, %185, %cst_163 {dimension_numbers = #tpu.dot_dimension_numbers<[1], [0], [0], [1], [0, 0, 1, 1], [], []>} : vector<16x72xbf16>, vector<72x240xbf16>, vector<16x240xf32> -> vector<16x240xf32>
    %187 = arith.addf %179, %186 : vector<16x240xf32>
    %c23 = arith.constant 23 : index
    %c0_164 = arith.constant 0 : index
    %c0_165 = arith.constant 0 : index
    %188 = vector.load %arg2[%c23, %c0_164, %c0_165] : memref<30x16x72xbf16, #tpu.memory_space<vmem>>, vector<1x16x72xbf16>
    %189 = vector.shape_cast %188 : vector<1x16x72xbf16> to vector<16x72xbf16>
    %cst_166 = arith.constant dense<0.000000e+00> : vector<16x72xf32>
    %190 = tpu.matmul %189, %2, %cst_166 {dimension_numbers = #tpu.dot_dimension_numbers<[1], [0], [0], [1], [0, 0, 1, 1], [], []>} : vector<16x72xbf16>, vector<72x72xbf16>, vector<16x72xf32> -> vector<16x72xf32>
    %191 = arith.truncf %190 : vector<16x72xf32> to vector<16x72xbf16>
    %c23_167 = arith.constant 23 : index
    %c0_168 = arith.constant 0 : index
    %c0_169 = arith.constant 0 : index
    %192 = vector.load %arg3[%c23_167, %c0_168, %c0_169] : memref<30x72x240xbf16, #tpu.memory_space<vmem>>, vector<1x72x240xbf16>
    %193 = vector.shape_cast %192 : vector<1x72x240xbf16> to vector<72x240xbf16>
    %cst_170 = arith.constant dense<0.000000e+00> : vector<16x240xf32>
    %194 = tpu.matmul %191, %193, %cst_170 {dimension_numbers = #tpu.dot_dimension_numbers<[1], [0], [0], [1], [0, 0, 1, 1], [], []>} : vector<16x72xbf16>, vector<72x240xbf16>, vector<16x240xf32> -> vector<16x240xf32>
    %195 = arith.addf %187, %194 : vector<16x240xf32>
    %c24 = arith.constant 24 : index
    %c0_171 = arith.constant 0 : index
    %c0_172 = arith.constant 0 : index
    %196 = vector.load %arg2[%c24, %c0_171, %c0_172] : memref<30x16x72xbf16, #tpu.memory_space<vmem>>, vector<1x16x72xbf16>
    %197 = vector.shape_cast %196 : vector<1x16x72xbf16> to vector<16x72xbf16>
    %cst_173 = arith.constant dense<0.000000e+00> : vector<16x72xf32>
    %198 = tpu.matmul %197, %2, %cst_173 {dimension_numbers = #tpu.dot_dimension_numbers<[1], [0], [0], [1], [0, 0, 1, 1], [], []>} : vector<16x72xbf16>, vector<72x72xbf16>, vector<16x72xf32> -> vector<16x72xf32>
    %199 = arith.truncf %198 : vector<16x72xf32> to vector<16x72xbf16>
    %c24_174 = arith.constant 24 : index
    %c0_175 = arith.constant 0 : index
    %c0_176 = arith.constant 0 : index
    %200 = vector.load %arg3[%c24_174, %c0_175, %c0_176] : memref<30x72x240xbf16, #tpu.memory_space<vmem>>, vector<1x72x240xbf16>
    %201 = vector.shape_cast %200 : vector<1x72x240xbf16> to vector<72x240xbf16>
    %cst_177 = arith.constant dense<0.000000e+00> : vector<16x240xf32>
    %202 = tpu.matmul %199, %201, %cst_177 {dimension_numbers = #tpu.dot_dimension_numbers<[1], [0], [0], [1], [0, 0, 1, 1], [], []>} : vector<16x72xbf16>, vector<72x240xbf16>, vector<16x240xf32> -> vector<16x240xf32>
    %203 = arith.addf %195, %202 : vector<16x240xf32>
    %c25 = arith.constant 25 : index
    %c0_178 = arith.constant 0 : index
    %c0_179 = arith.constant 0 : index
    %204 = vector.load %arg2[%c25, %c0_178, %c0_179] : memref<30x16x72xbf16, #tpu.memory_space<vmem>>, vector<1x16x72xbf16>
    %205 = vector.shape_cast %204 : vector<1x16x72xbf16> to vector<16x72xbf16>
    %cst_180 = arith.constant dense<0.000000e+00> : vector<16x72xf32>
    %206 = tpu.matmul %205, %2, %cst_180 {dimension_numbers = #tpu.dot_dimension_numbers<[1], [0], [0], [1], [0, 0, 1, 1], [], []>} : vector<16x72xbf16>, vector<72x72xbf16>, vector<16x72xf32> -> vector<16x72xf32>
    %207 = arith.truncf %206 : vector<16x72xf32> to vector<16x72xbf16>
    %c25_181 = arith.constant 25 : index
    %c0_182 = arith.constant 0 : index
    %c0_183 = arith.constant 0 : index
    %208 = vector.load %arg3[%c25_181, %c0_182, %c0_183] : memref<30x72x240xbf16, #tpu.memory_space<vmem>>, vector<1x72x240xbf16>
    %209 = vector.shape_cast %208 : vector<1x72x240xbf16> to vector<72x240xbf16>
    %cst_184 = arith.constant dense<0.000000e+00> : vector<16x240xf32>
    %210 = tpu.matmul %207, %209, %cst_184 {dimension_numbers = #tpu.dot_dimension_numbers<[1], [0], [0], [1], [0, 0, 1, 1], [], []>} : vector<16x72xbf16>, vector<72x240xbf16>, vector<16x240xf32> -> vector<16x240xf32>
    %211 = arith.addf %203, %210 : vector<16x240xf32>
    %c26 = arith.constant 26 : index
    %c0_185 = arith.constant 0 : index
    %c0_186 = arith.constant 0 : index
    %212 = vector.load %arg2[%c26, %c0_185, %c0_186] : memref<30x16x72xbf16, #tpu.memory_space<vmem>>, vector<1x16x72xbf16>
    %213 = vector.shape_cast %212 : vector<1x16x72xbf16> to vector<16x72xbf16>
    %cst_187 = arith.constant dense<0.000000e+00> : vector<16x72xf32>
    %214 = tpu.matmul %213, %2, %cst_187 {dimension_numbers = #tpu.dot_dimension_numbers<[1], [0], [0], [1], [0, 0, 1, 1], [], []>} : vector<16x72xbf16>, vector<72x72xbf16>, vector<16x72xf32> -> vector<16x72xf32>
    %215 = arith.truncf %214 : vector<16x72xf32> to vector<16x72xbf16>
    %c26_188 = arith.constant 26 : index
    %c0_189 = arith.constant 0 : index
    %c0_190 = arith.constant 0 : index
    %216 = vector.load %arg3[%c26_188, %c0_189, %c0_190] : memref<30x72x240xbf16, #tpu.memory_space<vmem>>, vector<1x72x240xbf16>
    %217 = vector.shape_cast %216 : vector<1x72x240xbf16> to vector<72x240xbf16>
    %cst_191 = arith.constant dense<0.000000e+00> : vector<16x240xf32>
    %218 = tpu.matmul %215, %217, %cst_191 {dimension_numbers = #tpu.dot_dimension_numbers<[1], [0], [0], [1], [0, 0, 1, 1], [], []>} : vector<16x72xbf16>, vector<72x240xbf16>, vector<16x240xf32> -> vector<16x240xf32>
    %219 = arith.addf %211, %218 : vector<16x240xf32>
    %c27 = arith.constant 27 : index
    %c0_192 = arith.constant 0 : index
    %c0_193 = arith.constant 0 : index
    %220 = vector.load %arg2[%c27, %c0_192, %c0_193] : memref<30x16x72xbf16, #tpu.memory_space<vmem>>, vector<1x16x72xbf16>
    %221 = vector.shape_cast %220 : vector<1x16x72xbf16> to vector<16x72xbf16>
    %cst_194 = arith.constant dense<0.000000e+00> : vector<16x72xf32>
    %222 = tpu.matmul %221, %2, %cst_194 {dimension_numbers = #tpu.dot_dimension_numbers<[1], [0], [0], [1], [0, 0, 1, 1], [], []>} : vector<16x72xbf16>, vector<72x72xbf16>, vector<16x72xf32> -> vector<16x72xf32>
    %223 = arith.truncf %222 : vector<16x72xf32> to vector<16x72xbf16>
    %c27_195 = arith.constant 27 : index
    %c0_196 = arith.constant 0 : index
    %c0_197 = arith.constant 0 : index
    %224 = vector.load %arg3[%c27_195, %c0_196, %c0_197] : memref<30x72x240xbf16, #tpu.memory_space<vmem>>, vector<1x72x240xbf16>
    %225 = vector.shape_cast %224 : vector<1x72x240xbf16> to vector<72x240xbf16>
    %cst_198 = arith.constant dense<0.000000e+00> : vector<16x240xf32>
    %226 = tpu.matmul %223, %225, %cst_198 {dimension_numbers = #tpu.dot_dimension_numbers<[1], [0], [0], [1], [0, 0, 1, 1], [], []>} : vector<16x72xbf16>, vector<72x240xbf16>, vector<16x240xf32> -> vector<16x240xf32>
    %227 = arith.addf %219, %226 : vector<16x240xf32>
    %c28 = arith.constant 28 : index
    %c0_199 = arith.constant 0 : index
    %c0_200 = arith.constant 0 : index
    %228 = vector.load %arg2[%c28, %c0_199, %c0_200] : memref<30x16x72xbf16, #tpu.memory_space<vmem>>, vector<1x16x72xbf16>
    %229 = vector.shape_cast %228 : vector<1x16x72xbf16> to vector<16x72xbf16>
    %cst_201 = arith.constant dense<0.000000e+00> : vector<16x72xf32>
    %230 = tpu.matmul %229, %2, %cst_201 {dimension_numbers = #tpu.dot_dimension_numbers<[1], [0], [0], [1], [0, 0, 1, 1], [], []>} : vector<16x72xbf16>, vector<72x72xbf16>, vector<16x72xf32> -> vector<16x72xf32>
    %231 = arith.truncf %230 : vector<16x72xf32> to vector<16x72xbf16>
    %c28_202 = arith.constant 28 : index
    %c0_203 = arith.constant 0 : index
    %c0_204 = arith.constant 0 : index
    %232 = vector.load %arg3[%c28_202, %c0_203, %c0_204] : memref<30x72x240xbf16, #tpu.memory_space<vmem>>, vector<1x72x240xbf16>
    %233 = vector.shape_cast %232 : vector<1x72x240xbf16> to vector<72x240xbf16>
    %cst_205 = arith.constant dense<0.000000e+00> : vector<16x240xf32>
    %234 = tpu.matmul %231, %233, %cst_205 {dimension_numbers = #tpu.dot_dimension_numbers<[1], [0], [0], [1], [0, 0, 1, 1], [], []>} : vector<16x72xbf16>, vector<72x240xbf16>, vector<16x240xf32> -> vector<16x240xf32>
    %235 = arith.addf %227, %234 : vector<16x240xf32>
    %c29 = arith.constant 29 : index
    %c0_206 = arith.constant 0 : index
    %c0_207 = arith.constant 0 : index
    %236 = vector.load %arg2[%c29, %c0_206, %c0_207] : memref<30x16x72xbf16, #tpu.memory_space<vmem>>, vector<1x16x72xbf16>
    %237 = vector.shape_cast %236 : vector<1x16x72xbf16> to vector<16x72xbf16>
    %cst_208 = arith.constant dense<0.000000e+00> : vector<16x72xf32>
    %238 = tpu.matmul %237, %2, %cst_208 {dimension_numbers = #tpu.dot_dimension_numbers<[1], [0], [0], [1], [0, 0, 1, 1], [], []>} : vector<16x72xbf16>, vector<72x72xbf16>, vector<16x72xf32> -> vector<16x72xf32>
    %239 = arith.truncf %238 : vector<16x72xf32> to vector<16x72xbf16>
    %c29_209 = arith.constant 29 : index
    %c0_210 = arith.constant 0 : index
    %c0_211 = arith.constant 0 : index
    %240 = vector.load %arg3[%c29_209, %c0_210, %c0_211] : memref<30x72x240xbf16, #tpu.memory_space<vmem>>, vector<1x72x240xbf16>
    %241 = vector.shape_cast %240 : vector<1x72x240xbf16> to vector<72x240xbf16>
    %cst_212 = arith.constant dense<0.000000e+00> : vector<16x240xf32>
    %242 = tpu.matmul %239, %241, %cst_212 {dimension_numbers = #tpu.dot_dimension_numbers<[1], [0], [0], [1], [0, 0, 1, 1], [], []>} : vector<16x72xbf16>, vector<72x240xbf16>, vector<16x240xf32> -> vector<16x240xf32>
    %243 = arith.addf %235, %242 : vector<16x240xf32>
    %c0_213 = arith.constant 0 : index
    %c0_214 = arith.constant 0 : index
    %244 = vector.load %arg4[%c0_213, %c0_214] : memref<1x240xf32, #tpu.memory_space<vmem>>, vector<1x240xf32>
    %245 = vector.broadcast %244 : vector<1x240xf32> to vector<16x240xf32>
    %246 = arith.addf %243, %245 : vector<16x240xf32>
    %cst_215 = arith.constant 0.000000e+00 : f32
    %247 = vector.broadcast %cst_215 : f32 to vector<16x240xf32>
    %248 = arith.maximumf %246, %247 : vector<16x240xf32>
    %249 = arith.truncf %248 : vector<16x240xf32> to vector<16x240xbf16>
    %cst_216 = arith.constant 0.000000e+00 : f32
    %250 = vector.broadcast %cst_216 : f32 to vector<8x224xf32>
    %c0_217 = arith.constant 0 : index
    %c0_218 = arith.constant 0 : index
    %c0_219 = arith.constant 0 : index
    %251 = vector.load %arg5[%c0_217, %c0_218, %c0_219] : memref<3x8x16xbf16, #tpu.memory_space<vmem>>, vector<1x8x16xbf16>
    %252 = vector.shape_cast %251 : vector<1x8x16xbf16> to vector<8x16xbf16>
    %cst_220 = arith.constant dense<0.000000e+00> : vector<8x240xf32>
    %253 = tpu.matmul %252, %249, %cst_220 {dimension_numbers = #tpu.dot_dimension_numbers<[1], [0], [0], [1], [0, 0, 1, 1], [], []>} : vector<8x16xbf16>, vector<16x240xbf16>, vector<8x240xf32> -> vector<8x240xf32>
    %254 = arith.truncf %253 : vector<8x240xf32> to vector<8x240xbf16>
    %c0_221 = arith.constant 0 : index
    %c0_222 = arith.constant 0 : index
    %c0_223 = arith.constant 0 : index
    %255 = vector.load %arg6[%c0_221, %c0_222, %c0_223] : memref<3x240x224xbf16, #tpu.memory_space<vmem>>, vector<1x240x224xbf16>
    %256 = vector.shape_cast %255 : vector<1x240x224xbf16> to vector<240x224xbf16>
    %cst_224 = arith.constant dense<0.000000e+00> : vector<8x224xf32>
    %257 = tpu.matmul %254, %256, %cst_224 {dimension_numbers = #tpu.dot_dimension_numbers<[1], [0], [0], [1], [0, 0, 1, 1], [], []>} : vector<8x240xbf16>, vector<240x224xbf16>, vector<8x224xf32> -> vector<8x224xf32>
    %258 = arith.addf %250, %257 : vector<8x224xf32>
    %c1_225 = arith.constant 1 : index
    %c0_226 = arith.constant 0 : index
    %c0_227 = arith.constant 0 : index
    %259 = vector.load %arg5[%c1_225, %c0_226, %c0_227] : memref<3x8x16xbf16, #tpu.memory_space<vmem>>, vector<1x8x16xbf16>
    %260 = vector.shape_cast %259 : vector<1x8x16xbf16> to vector<8x16xbf16>
    %cst_228 = arith.constant dense<0.000000e+00> : vector<8x240xf32>
    %261 = tpu.matmul %260, %249, %cst_228 {dimension_numbers = #tpu.dot_dimension_numbers<[1], [0], [0], [1], [0, 0, 1, 1], [], []>} : vector<8x16xbf16>, vector<16x240xbf16>, vector<8x240xf32> -> vector<8x240xf32>
    %262 = arith.truncf %261 : vector<8x240xf32> to vector<8x240xbf16>
    %c1_229 = arith.constant 1 : index
    %c0_230 = arith.constant 0 : index
    %c0_231 = arith.constant 0 : index
    %263 = vector.load %arg6[%c1_229, %c0_230, %c0_231] : memref<3x240x224xbf16, #tpu.memory_space<vmem>>, vector<1x240x224xbf16>
    %264 = vector.shape_cast %263 : vector<1x240x224xbf16> to vector<240x224xbf16>
    %cst_232 = arith.constant dense<0.000000e+00> : vector<8x224xf32>
    %265 = tpu.matmul %262, %264, %cst_232 {dimension_numbers = #tpu.dot_dimension_numbers<[1], [0], [0], [1], [0, 0, 1, 1], [], []>} : vector<8x240xbf16>, vector<240x224xbf16>, vector<8x224xf32> -> vector<8x224xf32>
    %266 = arith.addf %258, %265 : vector<8x224xf32>
    %c2_233 = arith.constant 2 : index
    %c0_234 = arith.constant 0 : index
    %c0_235 = arith.constant 0 : index
    %267 = vector.load %arg5[%c2_233, %c0_234, %c0_235] : memref<3x8x16xbf16, #tpu.memory_space<vmem>>, vector<1x8x16xbf16>
    %268 = vector.shape_cast %267 : vector<1x8x16xbf16> to vector<8x16xbf16>
    %cst_236 = arith.constant dense<0.000000e+00> : vector<8x240xf32>
    %269 = tpu.matmul %268, %249, %cst_236 {dimension_numbers = #tpu.dot_dimension_numbers<[1], [0], [0], [1], [0, 0, 1, 1], [], []>} : vector<8x16xbf16>, vector<16x240xbf16>, vector<8x240xf32> -> vector<8x240xf32>
    %270 = arith.truncf %269 : vector<8x240xf32> to vector<8x240xbf16>
    %c2_237 = arith.constant 2 : index
    %c0_238 = arith.constant 0 : index
    %c0_239 = arith.constant 0 : index
    %271 = vector.load %arg6[%c2_237, %c0_238, %c0_239] : memref<3x240x224xbf16, #tpu.memory_space<vmem>>, vector<1x240x224xbf16>
    %272 = vector.shape_cast %271 : vector<1x240x224xbf16> to vector<240x224xbf16>
    %cst_240 = arith.constant dense<0.000000e+00> : vector<8x224xf32>
    %273 = tpu.matmul %270, %272, %cst_240 {dimension_numbers = #tpu.dot_dimension_numbers<[1], [0], [0], [1], [0, 0, 1, 1], [], []>} : vector<8x240xbf16>, vector<240x224xbf16>, vector<8x224xf32> -> vector<8x224xf32>
    %274 = arith.addf %266, %273 : vector<8x224xf32>
    %c0_241 = arith.constant 0 : index
    %c0_242 = arith.constant 0 : index
    %275 = vector.load %arg7[%c0_241, %c0_242] : memref<1x224xf32, #tpu.memory_space<vmem>>, vector<1x224xf32>
    %276 = vector.broadcast %275 : vector<1x224xf32> to vector<8x224xf32>
    %277 = arith.addf %274, %276 : vector<8x224xf32>
    %cst_243 = arith.constant 0.000000e+00 : f32
    %278 = vector.broadcast %cst_243 : f32 to vector<8x224xf32>
    %279 = arith.maximumf %277, %278 : vector<8x224xf32>
    %cst_244 = arith.constant 0.000000e+00 : f32
    %280 = vector.broadcast %cst_244 : f32 to vector<1x256xf32>
    %281 = vector.extract_strided_slice %279 {offsets = [0, 0], sizes = [1, 224], strides = [1, 1]} : vector<8x224xf32> to vector<1x224xf32>
    %282 = arith.truncf %281 : vector<1x224xf32> to vector<1x224xbf16>
    %c0_245 = arith.constant 0 : index
    %c0_246 = arith.constant 0 : index
    %c0_247 = arith.constant 0 : index
    %283 = vector.load %arg8[%c0_245, %c0_246, %c0_247] : memref<7x224x256xbf16, #tpu.memory_space<vmem>>, vector<1x224x256xbf16>
    %284 = vector.shape_cast %283 : vector<1x224x256xbf16> to vector<224x256xbf16>
    %cst_248 = arith.constant dense<0.000000e+00> : vector<1x256xf32>
    %285 = tpu.matmul %282, %284, %cst_248 {dimension_numbers = #tpu.dot_dimension_numbers<[1], [0], [0], [1], [0, 0, 1, 1], [], []>} : vector<1x224xbf16>, vector<224x256xbf16>, vector<1x256xf32> -> vector<1x256xf32>
    %286 = arith.addf %280, %285 : vector<1x256xf32>
    %287 = vector.extract_strided_slice %279 {offsets = [1, 0], sizes = [1, 224], strides = [1, 1]} : vector<8x224xf32> to vector<1x224xf32>
    %288 = arith.truncf %287 : vector<1x224xf32> to vector<1x224xbf16>
    %c1_249 = arith.constant 1 : index
    %c0_250 = arith.constant 0 : index
    %c0_251 = arith.constant 0 : index
    %289 = vector.load %arg8[%c1_249, %c0_250, %c0_251] : memref<7x224x256xbf16, #tpu.memory_space<vmem>>, vector<1x224x256xbf16>
    %290 = vector.shape_cast %289 : vector<1x224x256xbf16> to vector<224x256xbf16>
    %cst_252 = arith.constant dense<0.000000e+00> : vector<1x256xf32>
    %291 = tpu.matmul %288, %290, %cst_252 {dimension_numbers = #tpu.dot_dimension_numbers<[1], [0], [0], [1], [0, 0, 1, 1], [], []>} : vector<1x224xbf16>, vector<224x256xbf16>, vector<1x256xf32> -> vector<1x256xf32>
    %292 = arith.addf %286, %291 : vector<1x256xf32>
    %293 = vector.extract_strided_slice %279 {offsets = [2, 0], sizes = [1, 224], strides = [1, 1]} : vector<8x224xf32> to vector<1x224xf32>
    %294 = arith.truncf %293 : vector<1x224xf32> to vector<1x224xbf16>
    %c2_253 = arith.constant 2 : index
    %c0_254 = arith.constant 0 : index
    %c0_255 = arith.constant 0 : index
    %295 = vector.load %arg8[%c2_253, %c0_254, %c0_255] : memref<7x224x256xbf16, #tpu.memory_space<vmem>>, vector<1x224x256xbf16>
    %296 = vector.shape_cast %295 : vector<1x224x256xbf16> to vector<224x256xbf16>
    %cst_256 = arith.constant dense<0.000000e+00> : vector<1x256xf32>
    %297 = tpu.matmul %294, %296, %cst_256 {dimension_numbers = #tpu.dot_dimension_numbers<[1], [0], [0], [1], [0, 0, 1, 1], [], []>} : vector<1x224xbf16>, vector<224x256xbf16>, vector<1x256xf32> -> vector<1x256xf32>
    %298 = arith.addf %292, %297 : vector<1x256xf32>
    %299 = vector.extract_strided_slice %279 {offsets = [3, 0], sizes = [1, 224], strides = [1, 1]} : vector<8x224xf32> to vector<1x224xf32>
    %300 = arith.truncf %299 : vector<1x224xf32> to vector<1x224xbf16>
    %c3_257 = arith.constant 3 : index
    %c0_258 = arith.constant 0 : index
    %c0_259 = arith.constant 0 : index
    %301 = vector.load %arg8[%c3_257, %c0_258, %c0_259] : memref<7x224x256xbf16, #tpu.memory_space<vmem>>, vector<1x224x256xbf16>
    %302 = vector.shape_cast %301 : vector<1x224x256xbf16> to vector<224x256xbf16>
    %cst_260 = arith.constant dense<0.000000e+00> : vector<1x256xf32>
    %303 = tpu.matmul %300, %302, %cst_260 {dimension_numbers = #tpu.dot_dimension_numbers<[1], [0], [0], [1], [0, 0, 1, 1], [], []>} : vector<1x224xbf16>, vector<224x256xbf16>, vector<1x256xf32> -> vector<1x256xf32>
    %304 = arith.addf %298, %303 : vector<1x256xf32>
    %305 = vector.extract_strided_slice %279 {offsets = [4, 0], sizes = [1, 224], strides = [1, 1]} : vector<8x224xf32> to vector<1x224xf32>
    %306 = arith.truncf %305 : vector<1x224xf32> to vector<1x224xbf16>
    %c4_261 = arith.constant 4 : index
    %c0_262 = arith.constant 0 : index
    %c0_263 = arith.constant 0 : index
    %307 = vector.load %arg8[%c4_261, %c0_262, %c0_263] : memref<7x224x256xbf16, #tpu.memory_space<vmem>>, vector<1x224x256xbf16>
    %308 = vector.shape_cast %307 : vector<1x224x256xbf16> to vector<224x256xbf16>
    %cst_264 = arith.constant dense<0.000000e+00> : vector<1x256xf32>
    %309 = tpu.matmul %306, %308, %cst_264 {dimension_numbers = #tpu.dot_dimension_numbers<[1], [0], [0], [1], [0, 0, 1, 1], [], []>} : vector<1x224xbf16>, vector<224x256xbf16>, vector<1x256xf32> -> vector<1x256xf32>
    %310 = arith.addf %304, %309 : vector<1x256xf32>
    %311 = vector.extract_strided_slice %279 {offsets = [5, 0], sizes = [1, 224], strides = [1, 1]} : vector<8x224xf32> to vector<1x224xf32>
    %312 = arith.truncf %311 : vector<1x224xf32> to vector<1x224xbf16>
    %c5_265 = arith.constant 5 : index
    %c0_266 = arith.constant 0 : index
    %c0_267 = arith.constant 0 : index
    %313 = vector.load %arg8[%c5_265, %c0_266, %c0_267] : memref<7x224x256xbf16, #tpu.memory_space<vmem>>, vector<1x224x256xbf16>
    %314 = vector.shape_cast %313 : vector<1x224x256xbf16> to vector<224x256xbf16>
    %cst_268 = arith.constant dense<0.000000e+00> : vector<1x256xf32>
    %315 = tpu.matmul %312, %314, %cst_268 {dimension_numbers = #tpu.dot_dimension_numbers<[1], [0], [0], [1], [0, 0, 1, 1], [], []>} : vector<1x224xbf16>, vector<224x256xbf16>, vector<1x256xf32> -> vector<1x256xf32>
    %316 = arith.addf %310, %315 : vector<1x256xf32>
    %317 = vector.extract_strided_slice %279 {offsets = [6, 0], sizes = [1, 224], strides = [1, 1]} : vector<8x224xf32> to vector<1x224xf32>
    %318 = arith.truncf %317 : vector<1x224xf32> to vector<1x224xbf16>
    %c6_269 = arith.constant 6 : index
    %c0_270 = arith.constant 0 : index
    %c0_271 = arith.constant 0 : index
    %319 = vector.load %arg8[%c6_269, %c0_270, %c0_271] : memref<7x224x256xbf16, #tpu.memory_space<vmem>>, vector<1x224x256xbf16>
    %320 = vector.shape_cast %319 : vector<1x224x256xbf16> to vector<224x256xbf16>
    %cst_272 = arith.constant dense<0.000000e+00> : vector<1x256xf32>
    %321 = tpu.matmul %318, %320, %cst_272 {dimension_numbers = #tpu.dot_dimension_numbers<[1], [0], [0], [1], [0, 0, 1, 1], [], []>} : vector<1x224xbf16>, vector<224x256xbf16>, vector<1x256xf32> -> vector<1x256xf32>
    %322 = arith.addf %316, %321 : vector<1x256xf32>
    %c0_273 = arith.constant 0 : index
    %c0_274 = arith.constant 0 : index
    %323 = vector.load %arg9[%c0_273, %c0_274] : memref<1x256xf32, #tpu.memory_space<vmem>>, vector<1x256xf32>
    %324 = arith.addf %322, %323 : vector<1x256xf32>
    %cst_275 = arith.constant 0.000000e+00 : f32
    %325 = vector.broadcast %cst_275 : f32 to vector<1x256xf32>
    %326 = arith.maximumf %324, %325 : vector<1x256xf32>
    %327 = arith.truncf %326 : vector<1x256xf32> to vector<1x256xbf16>
    %c0_276 = arith.constant 0 : index
    %c0_277 = arith.constant 0 : index
    %328 = vector.load %arg10[%c0_276, %c0_277] : memref<256x128xbf16, #tpu.memory_space<vmem>>, vector<256x128xbf16>
    %cst_278 = arith.constant dense<0.000000e+00> : vector<1x128xf32>
    %329 = tpu.matmul %327, %328, %cst_278 {dimension_numbers = #tpu.dot_dimension_numbers<[1], [0], [0], [1], [0, 0, 1, 1], [], []>} : vector<1x256xbf16>, vector<256x128xbf16>, vector<1x128xf32> -> vector<1x128xf32>
    %c0_279 = arith.constant 0 : index
    %c0_280 = arith.constant 0 : index
    %330 = vector.load %arg11[%c0_279, %c0_280] : memref<1x128xf32, #tpu.memory_space<vmem>>, vector<1x128xf32>
    %331 = arith.addf %329, %330 : vector<1x128xf32>
    %c0_281 = arith.constant 0 : index
    %c0_282 = arith.constant 0 : index
    %c0_283 = arith.constant 0 : index
    %332 = vector.load %arg12[%c0_281, %c0_282, %c0_283] : memref<1x1x128xf32, #tpu.memory_space<vmem>>, vector<1x1x128xf32>
    %333 = vector.shape_cast %332 : vector<1x1x128xf32> to vector<1x128xf32>
    %334 = vector.shape_cast %331 : vector<1x128xf32> to vector<1x1x128xf32>
    tpu.vector_store %arg12[%c0_281, %c0_282, %c0_283], %334 {strides = array<i32>} : memref<1x1x128xf32, #tpu.memory_space<vmem>>, vector<1x1x128xf32>,
    return
  }
  func.func @transform_0(%arg0: i32) -> (i32, i32, i32) {
    %c0_i32 = arith.constant 0 : i32
    %c0_i32_0 = arith.constant 0 : i32
    %c0_i32_1 = arith.constant 0 : i32
    return %arg0, %c0_i32, %c0_i32_0 : i32, i32, i32
  }
  func.func @transform_1(%arg0: i32) -> (i32, i32, i32) {
    %c0_i32 = arith.constant 0 : i32
    %c0_i32_0 = arith.constant 0 : i32
    %c0_i32_1 = arith.constant 0 : i32
    %c0_i32_2 = arith.constant 0 : i32
    return %c0_i32, %c0_i32_0, %c0_i32_1 : i32, i32, i32
  }
  func.func @transform_2(%arg0: i32) -> (i32, i32, i32) {
    %c0_i32 = arith.constant 0 : i32
    %c0_i32_0 = arith.constant 0 : i32
    %c0_i32_1 = arith.constant 0 : i32
    %c0_i32_2 = arith.constant 0 : i32
    return %c0_i32, %c0_i32_0, %c0_i32_1 : i32, i32, i32
  }
  func.func @transform_3(%arg0: i32) -> (i32, i32) {
    %c0_i32 = arith.constant 0 : i32
    %c0_i32_0 = arith.constant 0 : i32
    %c0_i32_1 = arith.constant 0 : i32
    return %c0_i32, %c0_i32_0 : i32, i32
  }
  func.func @transform_4(%arg0: i32) -> (i32, i32, i32) {
    %c0_i32 = arith.constant 0 : i32
    %c0_i32_0 = arith.constant 0 : i32
    %c0_i32_1 = arith.constant 0 : i32
    %c0_i32_2 = arith.constant 0 : i32
    return %c0_i32, %c0_i32_0, %c0_i32_1 : i32, i32, i32
  }
  func.func @transform_5(%arg0: i32) -> (i32, i32, i32) {
    %c0_i32 = arith.constant 0 : i32
    %c0_i32_0 = arith.constant 0 : i32
    %c0_i32_1 = arith.constant 0 : i32
    %c0_i32_2 = arith.constant 0 : i32
    return %c0_i32, %c0_i32_0, %c0_i32_1 : i32, i32, i32
  }
  func.func @transform_6(%arg0: i32) -> (i32, i32) {
    %c0_i32 = arith.constant 0 : i32
    %c0_i32_0 = arith.constant 0 : i32
    %c0_i32_1 = arith.constant 0 : i32
    return %c0_i32, %c0_i32_0 : i32, i32
  }
  func.func @transform_7(%arg0: i32) -> (i32, i32, i32) {
    %c0_i32 = arith.constant 0 : i32
    %c0_i32_0 = arith.constant 0 : i32
    %c0_i32_1 = arith.constant 0 : i32
    %c0_i32_2 = arith.constant 0 : i32
    return %c0_i32, %c0_i32_0, %c0_i32_1 : i32, i32, i32
  }
  func.func @transform_8(%arg0: i32) -> (i32, i32) {
    %c0_i32 = arith.constant 0 : i32
    %c0_i32_0 = arith.constant 0 : i32
    %c0_i32_1 = arith.constant 0 : i32
    return %c0_i32, %c0_i32_0 : i32, i32
  }
  func.func @transform_9(%arg0: i32) -> (i32, i32) {
    %c0_i32 = arith.constant 0 : i32
    %c0_i32_0 = arith.constant 0 : i32
    %c0_i32_1 = arith.constant 0 : i32
    return %c0_i32, %c0_i32_0 : i32, i32
  }
  func.func @transform_10(%arg0: i32) -> (i32, i32) {
    %c0_i32 = arith.constant 0 : i32
    %c0_i32_0 = arith.constant 0 : i32
    %c0_i32_1 = arith.constant 0 : i32
    return %c0_i32, %c0_i32_0 : i32, i32
  }
  func.func @transform_11(%arg0: i32) -> (i32, i32, i32) {
    %c0_i32 = arith.constant 0 : i32
    %c0_i32_0 = arith.constant 0 : i32
    %c0_i32_1 = arith.constant 0 : i32
    return %arg0, %c0_i32, %c0_i32_0 : i32, i32, i32
  }
}

</mosaic_0001>

<llo_original>
// kernel: dqn_forward.1
$region0: #{dqn_forward.1}
  #allocation0 [shape = 'u32[]', space=smem, size = 0x4, offset = 0x4, fixed_abs, tag = 'smem constant byte address 0x4 - core index']
  #allocation1 [shape = 'u32[144,128]{1,0:T(1,128)}', space=vmem, size = 0x12000, scoped, tag = 'internal scratch']
  %s0 = inlined_call_operand.hbm [shape: f32[2,72,72], index: 0, kind: input, shape index: {}]
  %s1 = inlined_call_operand.hbm [shape: bf16[30,16,72], index: 1, kind: input, shape index: {}]
  %s2 = inlined_call_operand.hbm [shape: bf16[30,72,240], index: 2, kind: input, shape index: {}]
  %s3 = inlined_call_operand.hbm [shape: f32[1,240], index: 3, kind: input, shape index: {}]
  %s4 = inlined_call_operand.hbm [shape: bf16[3,8,16], index: 4, kind: input, shape index: {}]
  %s5 = inlined_call_operand.vmem [shape: bf16[3,240,224], index: 5, kind: input, shape index: {}]
  %s6 = inlined_call_operand.hbm [shape: f32[1,224], index: 6, kind: input, shape index: {}]
  %s7 = inlined_call_operand.hbm [shape: bf16[7,224,256], index: 7, kind: input, shape index: {}]
  %s8 = inlined_call_operand.hbm [shape: f32[1,256], index: 8, kind: input, shape index: {}]
  %s9 = inlined_call_operand.hbm [shape: bf16[256,128], index: 9, kind: input, shape index: {}]
  %s10 = inlined_call_operand.hbm [shape: f32[1,128], index: 10, kind: input, shape index: {}]
  %s11 = inlined_call_operand.hbm [shape: f32[2,1,128], index: 11, kind: output, shape index: {}]
  %s12 = sld [smem:[#allocation0]]
  $region117: #{dqn_forward.1} parent=0
    _
  %s14 = ssub.s32 1, %s12
  %s15 = scalar_select 0, %s14, %s12
  $region1: #{dqn_forward.1} parent=0
    #allocation2 [shape = 'u8[73728]{0}', space=vmem, size = 0x12000, scoped, tag = 'input window, operand 0']
    #allocation3 [shape = 's32[2]{0}', space=sflag, size = 0x8, scoped, tag = 'scoped memory for dqn_forward.1']
    #allocation4 [shape = 's32[2]{0}', space=sflag, size = 0x8, scoped, tag = 'scoped memory for dqn_forward.1']
    #allocation5 [shape = 'u8[122880]{0}', space=vmem, size = 0x1e000, scoped, tag = 'input window, operand 1, single buffered']
    #allocation6 [shape = 's32[1]{0}', space=sflag, size = 0x4, scoped, tag = 'scoped memory for dqn_forward.1']
    #allocation7 [shape = 'u8[1105920]{0}', space=vmem, size = 0x10e000, scoped, tag = 'input window, operand 2, single buffered']
    #allocation8 [shape = 'u8[1024]{0}', space=vmem, size = 0x400, scoped, tag = 'input window, operand 3, single buffered']
    #allocation9 [shape = 's32[1]{0}', space=sflag, size = 0x4, scoped, tag = 'scoped memory for dqn_forward.1']
    #allocation10 [shape = 'u8[6144]{0}', space=vmem, size = 0x1800, scoped, tag = 'input window, operand 4, single buffered']
    #allocation11 [shape = 'u8[1024]{0}', space=vmem, size = 0x400, scoped, tag = 'input window, operand 6, single buffered']
    #allocation12 [shape = 's32[1]{0}', space=sflag, size = 0x4, scoped, tag = 'scoped memory for dqn_forward.1']
    #allocation13 [shape = 'u8[802816]{0}', space=vmem, size = 0xc4000, scoped, tag = 'input window, operand 7, single buffered']
    #allocation14 [shape = 'u8[1024]{0}', space=vmem, size = 0x400, scoped, tag = 'input window, operand 8, single buffered']
    #allocation15 [shape = 's32[1]{0}', space=sflag, size = 0x4, scoped, tag = 'scoped memory for dqn_forward.1']
    #allocation16 [shape = 'u8[65536]{0}', space=vmem, size = 0x10000, scoped, tag = 'input window, operand 9, single buffered']
    #allocation17 [shape = 'u8[512]{0}', space=vmem, size = 0x400, scoped, tag = 'input window, operand 10, single buffered']
    #allocation18 [shape = 's32[1]{0}', space=sflag, size = 0x4, scoped, tag = 'scoped memory for dqn_forward.1']
    #allocation19 [shape = 'u8[1024]{0}', space=vmem, size = 0x400, scoped, tag = 'output window, operand 0']
    %16 = vsyncpa [#allocation3], 0
    %s17 = scalar_lea.sflag [#allocation3], 1
    %18 = vsyncpa %s17, 0
    %19 = vsyncpa [#allocation6], 0
    %20 = vsyncpa [#allocation9], 0
    %21 = vsyncpa [#allocation12], 0
    %22 = vsyncpa [#allocation15], 0
    %23 = vsyncpa [#allocation18], 0
    %24 = vsyncpa [#allocation4], 0
    %s25 = scalar_lea.sflag [#allocation4], 1
    %26 = vsyncpa %s25, 0
    loop: start=0, step=1, limit=4
    $region2: #{dqn_forward.1} parent=1 // loop_pre_header
      _
    $region3: #{dqn_forward.1} parent=1 // loop_header
      %s28 = sphi 0, %s32
      %p29 = scmp.ge.s32.totalorder %s28, 4
      %s38 = sphi 0, %s40
      %s41 = sphi 0, %s38
      %s42 = sphi 0, %s41
      %s58 = sphi 0, %s42
      %s62 = sphi 0, %s62
      %s64 = sphi 0, %s62
      %s65 = sphi 0, %s64
      %s79 = sphi 0, %s65
      %s83 = sphi 0, %s83
      %s85 = sphi 0, %s83
      %s86 = sphi 0, %s85
      %s100 = sphi 0, %s86
      %s104 = sphi 0, %s104
      %s106 = sphi 0, %s104
      %s107 = sphi 0, %s106
      %s121 = sphi 0, %s107
      %s125 = sphi 0, %s125
      %s127 = sphi 0, %s125
      %s128 = sphi 0, %s127
      %s142 = sphi 0, %s128
      %s146 = sphi 0, %s146
      %s148 = sphi 0, %s146
      %s149 = sphi 0, %s148
      %s163 = sphi 0, %s149
      %s167 = sphi 0, %s167
      %s169 = sphi 0, %s167
      %s170 = sphi 0, %s169
      %s184 = sphi 0, %s170
      %s188 = sphi 0, %s188
      %s190 = sphi 0, %s188
      %s191 = sphi 0, %s190
      %s205 = sphi 0, %s191
      %s209 = sphi 0, %s209
      %s211 = sphi 0, %s209
      %s212 = sphi 0, %s211
      %s226 = sphi 0, %s212
      %s230 = sphi 0, %s230
      %s232 = sphi 0, %s230
      %s233 = sphi 0, %s232
      %s247 = sphi 0, %s233
      %s251 = sphi 0, %s251
      %s253 = sphi 0, %s251
      %s254 = sphi 0, %s253
      %s268 = sphi 0, %s254
      %s274 = sphi 0, %s276
      %s277 = sphi 0, %s274
      %s278 = sphi 0, %s277
      %s294 = sphi 0, %s278
    $region4: #{dqn_forward.1} parent=1 // loop_header_branch
      %31 = sbr.rel (%p29) target = $region8
    $region5: #{dqn_forward.1} parent=1 // loop_body
      %s33 = ssub.s32 %s28, 1
      %s34 = ssub.s32 %s28, 2
      %s35 = sadd.s32 %s28, 1
      %s36 = ssub.s32 %s28, %s35
      %p37 = scmp.eq.s32.totalorder %s36, 0
      %s39 = sadd.s32 %s38, 1
      %s40 = scalar_select %p37, %s38, %s39
      %p43 = pneg %p37
      %p44 = scmp.eq.s32.totalorder %s28, 1
      %p45 = por %p43, %p44
      %p46 = scmp.ne.s32.totalorder %s38, %s41
      %p47 = scmp.eq.s32.totalorder %s28, 0
      %p48 = por %p46, %p47
      %p49 = scmp.ne.s32.totalorder %s38, %s41
      %p50 = scmp.eq.s32.totalorder %s33, 1
      %p51 = por %p49, %p50
      %p52 = scmp.ne.s32.totalorder %s41, %s42
      %p53 = scmp.eq.s32.totalorder %s33, 0
      %p54 = por %p52, %p53
      %p55 = scmp.ne.s32.totalorder %s41, %s42
      %p56 = scmp.eq.s32.totalorder %s34, 1
      %p57 = por %p55, %p56
      %p59 = scmp.ne.s32.totalorder %s42, %s58
      %p60 = scmp.eq.s32.totalorder %s34, 0
      %p61 = por %p59, %p60
      %s63 = sadd.s32 %s62, 1
      %p66 = scmp.eq.s32.totalorder %s28, 1
      %p67 = scmp.ne.s32.totalorder %s62, %s64
      %p68 = scmp.eq.s32.totalorder %s28, 0
      %p69 = por %p67, %p68
      %p70 = scmp.ne.s32.totalorder %s62, %s64
      %p71 = scmp.eq.s32.totalorder %s33, 1
      %p72 = por %p70, %p71
      %p73 = scmp.ne.s32.totalorder %s64, %s65
      %p74 = scmp.eq.s32.totalorder %s33, 0
      %p75 = por %p73, %p74
      %p76 = scmp.ne.s32.totalorder %s64, %s65
      %p77 = scmp.eq.s32.totalorder %s34, 1
      %p78 = por %p76, %p77
      %p80 = scmp.ne.s32.totalorder %s65, %s79
      %p81 = scmp.eq.s32.totalorder %s34, 0
      %p82 = por %p80, %p81
      %s84 = sadd.s32 %s83, 1
      %p87 = scmp.eq.s32.totalorder %s28, 1
      %p88 = scmp.ne.s32.totalorder %s83, %s85
      %p89 = scmp.eq.s32.totalorder %s28, 0
      %p90 = por %p88, %p89
      %p91 = scmp.ne.s32.totalorder %s83, %s85
      %p92 = scmp.eq.s32.totalorder %s33, 1
      %p93 = por %p91, %p92
      %p94 = scmp.ne.s32.totalorder %s85, %s86
      %p95 = scmp.eq.s32.totalorder %s33, 0
      %p96 = por %p94, %p95
      %p97 = scmp.ne.s32.totalorder %s85, %s86
      %p98 = scmp.eq.s32.totalorder %s34, 1
      %p99 = por %p97, %p98
      %p101 = scmp.ne.s32.totalorder %s86, %s100
      %p102 = scmp.eq.s32.totalorder %s34, 0
      %p103 = por %p101, %p102
      %s105 = sadd.s32 %s104, 1
      %p108 = scmp.eq.s32.totalorder %s28, 1
      %p109 = scmp.ne.s32.totalorder %s104, %s106
      %p110 = scmp.eq.s32.totalorder %s28, 0
      %p111 = por %p109, %p110
      %p112 = scmp.ne.s32.totalorder %s104, %s106
      %p113 = scmp.eq.s32.totalorder %s33, 1
      %p114 = por %p112, %p113
      %p115 = scmp.ne.s32.totalorder %s106, %s107
      %p116 = scmp.eq.s32.totalorder %s33, 0
      %p117 = por %p115, %p116
      %p118 = scmp.ne.s32.totalorder %s106, %s107
      %p119 = scmp.eq.s32.totalorder %s34, 1
      %p120 = por %p118, %p119
      %p122 = scmp.ne.s32.totalorder %s107, %s121
      %p123 = scmp.eq.s32.totalorder %s34, 0
      %p124 = por %p122, %p123
      %s126 = sadd.s32 %s125, 1
      %p129 = scmp.eq.s32.totalorder %s28, 1
      %p130 = scmp.ne.s32.totalorder %s125, %s127
      %p131 = scmp.eq.s32.totalorder %s28, 0
      %p132 = por %p130, %p131
      %p133 = scmp.ne.s32.totalorder %s125, %s127
      %p134 = scmp.eq.s32.totalorder %s33, 1
      %p135 = por %p133, %p134
      %p136 = scmp.ne.s32.totalorder %s127, %s128
      %p137 = scmp.eq.s32.totalorder %s33, 0
      %p138 = por %p136, %p137
      %p139 = scmp.ne.s32.totalorder %s127, %s128
      %p140 = scmp.eq.s32.totalorder %s34, 1
      %p141 = por %p139, %p140
      %p143 = scmp.ne.s32.totalorder %s128, %s142
      %p144 = scmp.eq.s32.totalorder %s34, 0
      %p145 = por %p143, %p144
      %s147 = sadd.s32 %s146, 1
      %p150 = scmp.eq.s32.totalorder %s28, 1
      %p151 = scmp.ne.s32.totalorder %s146, %s148
      %p152 = scmp.eq.s32.totalorder %s28, 0
      %p153 = por %p151, %p152
      %p154 = scmp.ne.s32.totalorder %s146, %s148
      %p155 = scmp.eq.s32.totalorder %s33, 1
      %p156 = por %p154, %p155
      %p157 = scmp.ne.s32.totalorder %s148, %s149
      %p158 = scmp.eq.s32.totalorder %s33, 0
      %p159 = por %p157, %p158
      %p160 = scmp.ne.s32.totalorder %s148, %s149
      %p161 = scmp.eq.s32.totalorder %s34, 1
      %p162 = por %p160, %p161
      %p164 = scmp.ne.s32.totalorder %s149, %s163
      %p165 = scmp.eq.s32.totalorder %s34, 0
      %p166 = por %p164, %p165
      %s168 = sadd.s32 %s167, 1
      %p171 = scmp.eq.s32.totalorder %s28, 1
      %p172 = scmp.ne.s32.totalorder %s167, %s169
      %p173 = scmp.eq.s32.totalorder %s28, 0
      %p174 = por %p172, %p173
      %p175 = scmp.ne.s32.totalorder %s167, %s169
      %p176 = scmp.eq.s32.totalorder %s33, 1
      %p177 = por %p175, %p176
      %p178 = scmp.ne.s32.totalorder %s169, %s170
      %p179 = scmp.eq.s32.totalorder %s33, 0
      %p180 = por %p178, %p179
      %p181 = scmp.ne.s32.totalorder %s169, %s170
      %p182 = scmp.eq.s32.totalorder %s34, 1
      %p183 = por %p181, %p182
      %p185 = scmp.ne.s32.totalorder %s170, %s184
      %p186 = scmp.eq.s32.totalorder %s34, 0
      %p187 = por %p185, %p186
      %s189 = sadd.s32 %s188, 1
      %p192 = scmp.eq.s32.totalorder %s28, 1
      %p193 = scmp.ne.s32.totalorder %s188, %s190
      %p194 = scmp.eq.s32.totalorder %s28, 0
      %p195 = por %p193, %p194
      %p196 = scmp.ne.s32.totalorder %s188, %s190
      %p197 = scmp.eq.s32.totalorder %s33, 1
      %p198 = por %p196, %p197
      %p199 = scmp.ne.s32.totalorder %s190, %s191
      %p200 = scmp.eq.s32.totalorder %s33, 0
      %p201 = por %p199, %p200
      %p202 = scmp.ne.s32.totalorder %s190, %s191
      %p203 = scmp.eq.s32.totalorder %s34, 1
      %p204 = por %p202, %p203
      %p206 = scmp.ne.s32.totalorder %s191, %s205
      %p207 = scmp.eq.s32.totalorder %s34, 0
      %p208 = por %p206, %p207
      %s210 = sadd.s32 %s209, 1
      %p213 = scmp.eq.s32.totalorder %s28, 1
      %p214 = scmp.ne.s32.totalorder %s209, %s211
      %p215 = scmp.eq.s32.totalorder %s28, 0
      %p216 = por %p214, %p215
      %p217 = scmp.ne.s32.totalorder %s209, %s211
      %p218 = scmp.eq.s32.totalorder %s33, 1
      %p219 = por %p217, %p218
      %p220 = scmp.ne.s32.totalorder %s211, %s212
      %p221 = scmp.eq.s32.totalorder %s33, 0
      %p222 = por %p220, %p221
      %p223 = scmp.ne.s32.totalorder %s211, %s212
      %p224 = scmp.eq.s32.totalorder %s34, 1
      %p225 = por %p223, %p224
      %p227 = scmp.ne.s32.totalorder %s212, %s226
      %p228 = scmp.eq.s32.totalorder %s34, 0
      %p229 = por %p227, %p228
      %s231 = sadd.s32 %s230, 1
      %p234 = scmp.eq.s32.totalorder %s28, 1
      %p235 = scmp.ne.s32.totalorder %s230, %s232
      %p236 = scmp.eq.s32.totalorder %s28, 0
      %p237 = por %p235, %p236
      %p238 = scmp.ne.s32.totalorder %s230, %s232
      %p239 = scmp.eq.s32.totalorder %s33, 1
      %p240 = por %p238, %p239
      %p241 = scmp.ne.s32.totalorder %s232, %s233
      %p242 = scmp.eq.s32.totalorder %s33, 0
      %p243 = por %p241, %p242
      %p244 = scmp.ne.s32.totalorder %s232, %s233
      %p245 = scmp.eq.s32.totalorder %s34, 1
      %p246 = por %p244, %p245
      %p248 = scmp.ne.s32.totalorder %s233, %s247
      %p249 = scmp.eq.s32.totalorder %s34, 0
      %p250 = por %p248, %p249
      %s252 = sadd.s32 %s251, 1
      %p255 = scmp.eq.s32.totalorder %s28, 1
      %p256 = scmp.ne.s32.totalorder %s251, %s253
      %p257 = scmp.eq.s32.totalorder %s28, 0
      %p258 = por %p256, %p257
      %p259 = scmp.ne.s32.totalorder %s251, %s253
      %p260 = scmp.eq.s32.totalorder %s33, 1
      %p261 = por %p259, %p260
      %p262 = scmp.ne.s32.totalorder %s253, %s254
      %p263 = scmp.eq.s32.totalorder %s33, 0
      %p264 = por %p262, %p263
      %p265 = scmp.ne.s32.totalorder %s253, %s254
      %p266 = scmp.eq.s32.totalorder %s34, 1
      %p267 = por %p265, %p266
      %p269 = scmp.ne.s32.totalorder %s254, %s268
      %p270 = scmp.eq.s32.totalorder %s34, 0
      %p271 = por %p269, %p270
      %s272 = ssub.s32 %s28, %s35
      %p273 = scmp.eq.s32.totalorder %s272, 0
      %s275 = sadd.s32 %s274, 1
      %s276 = scalar_select %p273, %s274, %s275
      %p279 = pneg %p273
      %p280 = scmp.eq.s32.totalorder %s28, 1
      %p281 = por %p279, %p280
      %p282 = scmp.ne.s32.totalorder %s274, %s277
      %p283 = scmp.eq.s32.totalorder %s28, 0
      %p284 = por %p282, %p283
      %p285 = scmp.ne.s32.totalorder %s274, %s277
      %p286 = scmp.eq.s32.totalorder %s33, 1
      %p287 = por %p285, %p286
      %p288 = scmp.ne.s32.totalorder %s277, %s278
      %p289 = scmp.eq.s32.totalorder %s33, 0
      %p290 = por %p288, %p289
      %p291 = scmp.ne.s32.totalorder %s277, %s278
      %p292 = scmp.eq.s32.totalorder %s34, 1
      %p293 = por %p291, %p292
      %p295 = scmp.ne.s32.totalorder %s278, %s294
      %p296 = scmp.eq.s32.totalorder %s34, 0
      %p297 = por %p295, %p296
      %p298 = scmp.le.s32.totalorder 1, %s28
      %p299 = scmp.lt.s32.totalorder %s28, 3
      %p300 = pnand %p298, %p299
      %p301 = pneg %p300
      // Predicated region
      $region9: #{dqn_forward.1} parent=5 // pred_check
        _
      $region10: #{dqn_forward.1} parent=5 // pred_check_branch
        %303 = sbr.rel (%p300) target = $region12
      $region11: #{dqn_forward.1} parent=5 // pred_region
        %s304 = ssub.s32 %s28, 1
        // Predicated region
        $region13: #{dqn_forward.1} parent=11 // pred_check
          %p305 = pneg %p75
        $region14: #{dqn_forward.1} parent=11 // pred_check_branch
          %307 = sbr.rel (%p305) target = $region16
        $region15: #{dqn_forward.1} parent=11 // pred_region
          %s309 = ssub.s32 3840, 3840
          %310 = vsyncadd [#allocation6], %s309
          %s311 = sshll.u32 [#allocation5], 4
          %s312 = int_to_ptr.vmem [resolvable:$true] %s311
          %317 = dma.hbm_to_vmem [thread:$0]  %s1, 3840, %s312, [#allocation6], 64, 64, 4
        $region16: #{dqn_forward.1} parent=11 // pred_fallthru
          _
        // Predicated region
        $region17: #{dqn_forward.1} parent=11 // pred_check
          %p318 = pneg %p96
        $region18: #{dqn_forward.1} parent=11 // pred_check_branch
          %320 = sbr.rel (%p318) target = $region20
        $region19: #{dqn_forward.1} parent=11 // pred_region
          %s322 = ssub.s32 34560, 34560
          %323 = vsyncadd [#allocation6], %s322
          %s324 = sshll.u32 [#allocation7], 4
          %s325 = int_to_ptr.vmem [resolvable:$true] %s324
          %330 = dma.hbm_to_vmem [thread:$0]  %s2, 34560, %s325, [#allocation6], 128, 128, 8
        $region20: #{dqn_forward.1} parent=11 // pred_fallthru
          _
        // Predicated region
        $region21: #{dqn_forward.1} parent=11 // pred_check
          %p331 = pneg %p117
        $region22: #{dqn_forward.1} parent=11 // pred_check_branch
          %333 = sbr.rel (%p331) target = $region24
        $region23: #{dqn_forward.1} parent=11 // pred_region
          %s335 = ssub.s32 32, 32
          %336 = vsyncadd [#allocation9], %s335
          %s338 = sshll.u32 [#allocation8], 4
          %s339 = int_to_ptr.vmem [resolvable:$true] %s338
          %341 = dma.hbm_to_vmem [thread:$0]  %s3, 32, %s339, [#allocation9]
        $region24: #{dqn_forward.1} parent=11 // pred_fallthru
          _
        // Predicated region
        $region25: #{dqn_forward.1} parent=11 // pred_check
          %p342 = pneg %p138
        $region26: #{dqn_forward.1} parent=11 // pred_check_branch
          %344 = sbr.rel (%p342) target = $region28
        $region27: #{dqn_forward.1} parent=11 // pred_region
          %s346 = ssub.s32 192, 192
          %347 = vsyncadd [#allocation9], %s346
          %s348 = sshll.u32 [#allocation10], 4
          %s349 = int_to_ptr.vmem [resolvable:$true] %s348
          %354 = dma.hbm_to_vmem [thread:$0]  %s4, 192, %s349, [#allocation9], 64, 64, 4
        $region28: #{dqn_forward.1} parent=11 // pred_fallthru
          _
        // Predicated region
        $region29: #{dqn_forward.1} parent=11 // pred_check
          %p355 = pneg %p159
        $region30: #{dqn_forward.1} parent=11 // pred_check_branch
          %357 = sbr.rel (%p355) target = $region32
        $region31: #{dqn_forward.1} parent=11 // pred_region
          _
        $region32: #{dqn_forward.1} parent=11 // pred_fallthru
          _
        // Predicated region
        $region33: #{dqn_forward.1} parent=11 // pred_check
          %p358 = pneg %p180
        $region34: #{dqn_forward.1} parent=11 // pred_check_branch
          %360 = sbr.rel (%p358) target = $region36
        $region35: #{dqn_forward.1} parent=11 // pred_region
          %s362 = ssub.s32 32, 32
          %363 = vsyncadd [#allocation12], %s362
          %s365 = sshll.u32 [#allocation11], 4
          %s366 = int_to_ptr.vmem [resolvable:$true] %s365
          %368 = dma.hbm_to_vmem [thread:$0]  %s6, 32, %s366, [#allocation12]
        $region36: #{dqn_forward.1} parent=11 // pred_fallthru
          _
        // Predicated region
        $region37: #{dqn_forward.1} parent=11 // pred_check
          %p369 = pneg %p201
        $region38: #{dqn_forward.1} parent=11 // pred_check_branch
          %371 = sbr.rel (%p369) target = $region40
        $region39: #{dqn_forward.1} parent=11 // pred_region
          %s373 = ssub.s32 25088, 25088
          %374 = vsyncadd [#allocation12], %s373
          %s375 = sshll.u32 [#allocation13], 4
          %s376 = int_to_ptr.vmem [resolvable:$true] %s375
          %381 = dma.hbm_to_vmem [thread:$0]  %s7, 25088, %s376, [#allocation12], 128, 128, 8
        $region40: #{dqn_forward.1} parent=11 // pred_fallthru
          _
        // Predicated region
        $region41: #{dqn_forward.1} parent=11 // pred_check
          %p382 = pneg %p222
        $region42: #{dqn_forward.1} parent=11 // pred_check_branch
          %384 = sbr.rel (%p382) target = $region44
        $region43: #{dqn_forward.1} parent=11 // pred_region
          %s386 = ssub.s32 32, 32
          %387 = vsyncadd [#allocation15], %s386
          %s389 = sshll.u32 [#allocation14], 4
          %s390 = int_to_ptr.vmem [resolvable:$true] %s389
          %392 = dma.hbm_to_vmem [thread:$0]  %s8, 32, %s390, [#allocation15]
        $region44: #{dqn_forward.1} parent=11 // pred_fallthru
          _
        // Predicated region
        $region45: #{dqn_forward.1} parent=11 // pred_check
          %p393 = pneg %p243
        $region46: #{dqn_forward.1} parent=11 // pred_check_branch
          %395 = sbr.rel (%p393) target = $region48
        $region47: #{dqn_forward.1} parent=11 // pred_region
          %s397 = ssub.s32 2048, 2048
          %398 = vsyncadd [#allocation15], %s397
          %s399 = sshll.u32 [#allocation16], 4
          %s400 = int_to_ptr.vmem [resolvable:$true] %s399
          %405 = dma.hbm_to_vmem [thread:$0]  %s9, 2048, %s400, [#allocation15], 64, 64, 4
        $region48: #{dqn_forward.1} parent=11 // pred_fallthru
          _
        // Predicated region
        $region49: #{dqn_forward.1} parent=11 // pred_check
          %p406 = pneg %p264
        $region50: #{dqn_forward.1} parent=11 // pred_check_branch
          %408 = sbr.rel (%p406) target = $region52
        $region51: #{dqn_forward.1} parent=11 // pred_region
          %s410 = ssub.s32 16, 16
          %411 = vsyncadd [#allocation18], %s410
          %s413 = sshll.u32 [#allocation17], 4
          %s414 = int_to_ptr.vmem [resolvable:$true] %s413
          %416 = dma.hbm_to_vmem [thread:$0]  %s10, 16, %s414, [#allocation18]
        $region52: #{dqn_forward.1} parent=11 // pred_fallthru
          _
      $region12: #{dqn_forward.1} parent=5 // pred_fallthru
        _
      %p417 = scmp.lt.s32.totalorder %s28, 2
      // Predicated region
      $region53: #{dqn_forward.1} parent=5 // pred_check
        %p418 = pneg %p417
      $region54: #{dqn_forward.1} parent=5 // pred_check_branch
        %420 = sbr.rel (%p418) target = $region56
      $region55: #{dqn_forward.1} parent=5 // pred_region
        // Predicated region
        $region57: #{dqn_forward.1} parent=55 // pred_check
          %p421 = pneg %p48
        $region58: #{dqn_forward.1} parent=55 // pred_check_branch
          %423 = sbr.rel (%p421) target = $region60
        $region59: #{dqn_forward.1} parent=55 // pred_region
          %s424 = sand.u32 %s38, 1
          %s425 = scalar_lea.sflag [#allocation3], %s424
          %s426 = sand.u32 %s38, 1
          %s427 = smul.addr %s426, 72
          %s428 = scalar_lea.vmem [#allocation2], %s427
          %s430 = ssub.s32 1152, 1152
          %431 = vsyncadd %s425, %s430
          %s432 = smul.addr %s28, 9
          %s433 = smul.addr %s432, 128
          %s434 = scalar_lea.hbm %s0, %s433
          %s435 = sshll.u32 %s428, 4
          %s436 = int_to_ptr.vmem [resolvable:$true] %s435
          %441 = dma.hbm_to_vmem [thread:$0]  %s434, 1152, %s436, %s425, 128, 128, 8
        $region60: #{dqn_forward.1} parent=55 // pred_fallthru
          _
      $region56: #{dqn_forward.1} parent=5 // pred_fallthru
        _
      %p442 = scmp.le.s32.totalorder 1, %s28
      %p443 = scmp.lt.s32.totalorder %s28, 3
      %p444 = pnand %p442, %p443
      %p445 = pneg %p444
      // Predicated region
      $region61: #{dqn_forward.1} parent=5 // pred_check
        _
      $region62: #{dqn_forward.1} parent=5 // pred_check_branch
        %447 = sbr.rel (%p444) target = $region64
      $region63: #{dqn_forward.1} parent=5 // pred_region
        %s448 = ssub.s32 %s28, 1
        %s449 = sand.u32 %s41, 1
        %s450 = scalar_lea.sflag [#allocation3], %s449
        %s451 = sand.u32 %s41, 1
        %s452 = smul.addr %s451, 72
        %s453 = scalar_lea.vmem [#allocation2], %s452
        // Predicated region
        $region65: #{dqn_forward.1} parent=63 // pred_check
          %p454 = pneg %p54
        $region66: #{dqn_forward.1} parent=63 // pred_check_branch
          %456 = sbr.rel (%p454) target = $region68
        $region67: #{dqn_forward.1} parent=63 // pred_region
          %457 = dma.done %s450, 1152
        $region68: #{dqn_forward.1} parent=63 // pred_fallthru
          _
        // Predicated region
        $region69: #{dqn_forward.1} parent=63 // pred_check
          %p458 = pneg %p75
        $region70: #{dqn_forward.1} parent=63 // pred_check_branch
          %460 = sbr.rel (%p458) target = $region72
        $region71: #{dqn_forward.1} parent=63 // pred_region
          %461 = dma.done [#allocation6], 3840
        $region72: #{dqn_forward.1} parent=63 // pred_fallthru
          _
        // Predicated region
        $region73: #{dqn_forward.1} parent=63 // pred_check
          %p462 = pneg %p96
        $region74: #{dqn_forward.1} parent=63 // pred_check_branch
          %464 = sbr.rel (%p462) target = $region76
        $region75: #{dqn_forward.1} parent=63 // pred_region
          %465 = dma.done [#allocation6], 34560
        $region76: #{dqn_forward.1} parent=63 // pred_fallthru
          _
        // Predicated region
        $region77: #{dqn_forward.1} parent=63 // pred_check
          %p466 = pneg %p117
        $region78: #{dqn_forward.1} parent=63 // pred_check_branch
          %468 = sbr.rel (%p466) target = $region80
        $region79: #{dqn_forward.1} parent=63 // pred_region
          %469 = dma.done [#allocation9], 32
        $region80: #{dqn_forward.1} parent=63 // pred_fallthru
          _
        // Predicated region
        $region81: #{dqn_forward.1} parent=63 // pred_check
          %p470 = pneg %p138
        $region82: #{dqn_forward.1} parent=63 // pred_check_branch
          %472 = sbr.rel (%p470) target = $region84
        $region83: #{dqn_forward.1} parent=63 // pred_region
          %473 = dma.done [#allocation9], 192
        $region84: #{dqn_forward.1} parent=63 // pred_fallthru
          _
        // Predicated region
        $region85: #{dqn_forward.1} parent=63 // pred_check
          %p474 = pneg %p180
        $region86: #{dqn_forward.1} parent=63 // pred_check_branch
          %476 = sbr.rel (%p474) target = $region88
        $region87: #{dqn_forward.1} parent=63 // pred_region
          %477 = dma.done [#allocation12], 32
        $region88: #{dqn_forward.1} parent=63 // pred_fallthru
          _
        // Predicated region
        $region89: #{dqn_forward.1} parent=63 // pred_check
          %p478 = pneg %p201
        $region90: #{dqn_forward.1} parent=63 // pred_check_branch
          %480 = sbr.rel (%p478) target = $region92
        $region91: #{dqn_forward.1} parent=63 // pred_region
          %481 = dma.done [#allocation12], 25088
        $region92: #{dqn_forward.1} parent=63 // pred_fallthru
          _
        // Predicated region
        $region93: #{dqn_forward.1} parent=63 // pred_check
          %p482 = pneg %p222
        $region94: #{dqn_forward.1} parent=63 // pred_check_branch
          %484 = sbr.rel (%p482) target = $region96
        $region95: #{dqn_forward.1} parent=63 // pred_region
          %485 = dma.done [#allocation15], 32
        $region96: #{dqn_forward.1} parent=63 // pred_fallthru
          _
        // Predicated region
        $region97: #{dqn_forward.1} parent=63 // pred_check
          %p486 = pneg %p243
        $region98: #{dqn_forward.1} parent=63 // pred_check_branch
          %488 = sbr.rel (%p486) target = $region100
        $region99: #{dqn_forward.1} parent=63 // pred_region
          %489 = dma.done [#allocation15], 2048
        $region100: #{dqn_forward.1} parent=63 // pred_fallthru
          _
        // Predicated region
        $region101: #{dqn_forward.1} parent=63 // pred_check
          %p490 = pneg %p264
        $region102: #{dqn_forward.1} parent=63 // pred_check_branch
          %492 = sbr.rel (%p490) target = $region104
        $region103: #{dqn_forward.1} parent=63 // pred_region
          %493 = dma.done [#allocation18], 16
        $region104: #{dqn_forward.1} parent=63 // pred_fallthru
          _
        %s494 = sand.u32 %s41, 1
        %s495 = scalar_lea.sflag [#allocation3], %s494
        %s496 = sand.u32 %s41, 1
        %s497 = smul.addr %s496, 72
        %s498 = scalar_lea.vmem [#allocation2], %s497
        %p499 = pneg %p54
        %p500 = pneg %p51
        %p501 = pneg %p75
        %p502 = pneg %p72
        %p503 = pneg %p96
        %p504 = pneg %p93
        %p505 = pneg %p117
        %p506 = pneg %p114
        %p507 = pneg %p138
        %p508 = pneg %p135
        %p509 = pneg %p159
        %p510 = pneg %p156
        %p511 = pneg %p180
        %p512 = pneg %p177
        %p513 = pneg %p201
        %p514 = pneg %p198
        %p515 = pneg %p222
        %p516 = pneg %p219
        %p517 = pneg %p243
        %p518 = pneg %p240
        %p519 = pneg %p264
        %p520 = pneg %p261
        %p521 = pneg %p290
        %p522 = pneg %p287
        %s523 = sand.u32 %s277, 1
        %s524 = scalar_lea.sflag [#allocation4], %s523
        %s525 = sand.u32 %s277, 1
        %s526 = scalar_lea.vmem [#allocation19], %s525
        %v528 = vld [vmem:[%s453] sm:$0xff]
        %v529 = vld [vmem:[%s453 + $0x8] sm:$0xff]
        %v530 = vld [vmem:[%s453 + $0x10] sm:$0xff]
        %v531 = vld [vmem:[%s453 + $0x18] sm:$0xff]
        %v532 = vld [vmem:[%s453 + $0x20] sm:$0xff]
        %v533 = vld [vmem:[%s453 + $0x28] sm:$0xff]
        %v534 = vld [vmem:[%s453 + $0x30] sm:$0xff]
        %v535 = vld [vmem:[%s453 + $0x38] sm:$0xff]
        %v536 = vld [vmem:[%s453 + $0x40] sm:$0xff]
        %v537 = vpack.c.bf16 %v529, %v528
        %v538 = vpack.c.bf16 %v531, %v530
        %v539 = vpack.c.bf16 %v533, %v532
        %v540 = vpack.c.bf16 %v535, %v534
        %v541 = vpack.c.bf16 %v536, %v536
        %v542 = vld [vmem:[#allocation5] sm:$0xf]
        %v543 = vld [vmem:[#allocation5 + $0x4] sm:$0xf]
        %v546 = vunpack.c.l.b16 %v542
        %v547 = vunpack.c.l.b16 %v543
        %v548 = vpack.c.b16 %v547, %v546
        %vm549 = vcmask 588800
        %v551 = vsel %vm549, %v548, 0
        %vm553 = vcmask 1043456
        %v555 = vsel %vm553, %v541, 0
        %557 = vmatprep.subr.bf16.mxu0 0
        %558 = vmatpush1.bf16.msra.mxu0 %v537
        %559 = vmatprep.subr.bf16.mxu0 0
        %560 = vmatpush1.bf16.msra.mxu0 %v538
        %561 = vmatprep.subr.bf16.mxu0 0
        %562 = vmatpush1.bf16.msra.mxu0 %v539
        %563 = vmatprep.subr.bf16.mxu0 0
        %564 = vmatpush1.bf16.msra.mxu0 %v540
        %565 = vmatprep.subr.bf16.mxu0 0
        %566 = vmatpush1.bf16.msra.mxu0 %v555
        %567 = vmatprep.subr.bf16.mxu0 0
        %568 = vmatpush1.bf16.msra.mxu0 0
        %569 = vmatprep.subr.bf16.mxu0 0
        %570 = vmatpush1.bf16.msra.mxu0 0
        %571 = vmatprep.subr.bf16.mxu0 0
        %572 = vmatpush1.bf16.msra.mxu0 0
        %573 = vmatprep.subr.bf16.mxu0 0
        %574 = vmatpush1.bf16.msra.mxu0 0
        %575 = vmatprep.subr.bf16.mxu0 0
        %576 = vmatpush1.bf16.msra.mxu0 0
        %577 = vmatprep.subr.bf16.mxu0 0
        %578 = vmatpush1.bf16.msra.mxu0 0
        %579 = vmatprep.subr.bf16.mxu0 0
        %580 = vmatpush1.bf16.msra.mxu0 0
        %581 = vmatprep.subr.bf16.mxu0 0
        %582 = vmatpush1.bf16.msra.mxu0 0
        %583 = vmatprep.subr.bf16.mxu0 0
        %584 = vmatpush1.bf16.msra.mxu0 0
        %585 = vmatprep.subr.bf16.mxu0 0
        %586 = vmatpush1.bf16.msra.mxu0 0
        %587 = vmatprep.subr.bf16.mxu0 0
        %588 = vmatpush1.bf16.msra.mxu0 0
        %589 = vmatprep.mubr.bf16.mxu0 0
        %590 = vmatmul.mubr.bf16.gmra.mrb[0].mxu0 %v551
        %v591 = vpop.f32.mrb[0].mxu0
        %v592 = vadd.f32 0.0, %v591
        %v593 = vpop.f32.mrb[0].mxu0
        %v594 = vpop.f32.mrb[0].mxu0
        %v595 = vadd.f32 0.0, %v594
        %v596 = vpop.f32.mrb[0].mxu0
        %597 = vdwg.mxu0
        %v598 = vpack.c.bf16 %v595, %v592
        %v599 = vld [vmem:[#allocation7] sm:$0xff]
        %v600 = vld [vmem:[#allocation7 + $0x8] sm:$0xff]
        %v601 = vld [vmem:[#allocation7 + $0x10] sm:$0xff]
        %v602 = vld [vmem:[#allocation7 + $0x18] sm:$0xff]
        %v603 = vld [vmem:[#allocation7 + $0x20] sm:$0xff]
        %v604 = vld [vmem:[#allocation7 + $0x28] sm:$0xff]
        %v605 = vld [vmem:[#allocation7 + $0x30] sm:$0xff]
        %v606 = vld [vmem:[#allocation7 + $0x38] sm:$0xff]
        %v607 = vld [vmem:[#allocation7 + $0x40] sm:$0xff]
        %s608 = scalar_lea.vmem [#allocation5], 8
        %v609 = vld [vmem:[%s608] sm:$0xf]
        %v610 = vld [vmem:[%s608 + $0x4] sm:$0xf]
        %v613 = vunpack.c.l.b16 %v609
        %v614 = vunpack.c.l.b16 %v610
        %v615 = vpack.c.b16 %v614, %v613
        %v617 = vsel %vm549, %v615, 0
        %619 = vmatprep.subr.bf16.mxu0 0
        %620 = vmatpush1.bf16.msra.mxu0 %v537
        %621 = vmatprep.subr.bf16.mxu0 0
        %622 = vmatpush1.bf16.msra.mxu0 %v538
        %623 = vmatprep.subr.bf16.mxu0 0
        %624 = vmatpush1.bf16.msra.mxu0 %v539
        %625 = vmatprep.subr.bf16.mxu0 0
        %626 = vmatpush1.bf16.msra.mxu0 %v540
        %627 = vmatprep.subr.bf16.mxu0 0
        %628 = vmatpush1.bf16.msra.mxu0 %v555
        %629 = vmatprep.subr.bf16.mxu0 0
        %630 = vmatpush1.bf16.msra.mxu0 0
        %631 = vmatprep.subr.bf16.mxu0 0
        %632 = vmatpush1.bf16.msra.mxu0 0
        %633 = vmatprep.subr.bf16.mxu0 0
        %634 = vmatpush1.bf16.msra.mxu0 0
        %635 = vmatprep.subr.bf16.mxu0 0
        %636 = vmatpush1.bf16.msra.mxu0 0
        %637 = vmatprep.subr.bf16.mxu0 0
        %638 = vmatpush1.bf16.msra.mxu0 0
        %639 = vmatprep.subr.bf16.mxu0 0
        %640 = vmatpush1.bf16.msra.mxu0 0
        %641 = vmatprep.subr.bf16.mxu0 0
        %642 = vmatpush1.bf16.msra.mxu0 0
        %643 = vmatprep.subr.bf16.mxu0 0
        %644 = vmatpush1.bf16.msra.mxu0 0
        %645 = vmatprep.subr.bf16.mxu0 0
        %646 = vmatpush1.bf16.msra.mxu0 0
        %647 = vmatprep.subr.bf16.mxu0 0
        %648 = vmatpush1.bf16.msra.mxu0 0
        %649 = vmatprep.subr.bf16.mxu0 0
        %650 = vmatpush1.bf16.msra.mxu0 0
        %651 = vmatprep.mubr.bf16.mxu0 0
        %652 = vmatmul.mubr.bf16.gmra.mrb[0].mxu0 %v617
        %v653 = vpop.f32.mrb[0].mxu0
        %v654 = vadd.f32 0.0, %v653
        %v655 = vpop.f32.mrb[0].mxu0
        %v656 = vpop.f32.mrb[0].mxu0
        %v657 = vadd.f32 0.0, %v656
        %v658 = vpop.f32.mrb[0].mxu0
        %659 = vdwg.mxu0
        %v660 = vpack.c.bf16 %v657, %v654
        %s661 = scalar_lea.vmem [#allocation7], 72
        %v662 = vld [vmem:[%s661] sm:$0xff]
        %v663 = vld [vmem:[%s661 + $0x8] sm:$0xff]
        %v664 = vld [vmem:[%s661 + $0x10] sm:$0xff]
        %v665 = vld [vmem:[%s661 + $0x18] sm:$0xff]
        %v666 = vld [vmem:[%s661 + $0x20] sm:$0xff]
        %v667 = vld [vmem:[%s661 + $0x28] sm:$0xff]
        %v668 = vld [vmem:[%s661 + $0x30] sm:$0xff]
        %v669 = vld [vmem:[%s661 + $0x38] sm:$0xff]
        %v670 = vld [vmem:[%s661 + $0x40] sm:$0xff]
        %v680 = vunpack.c.l.b16 %v662
        %v681 = vunpack.c.h.b16 %v662
        %v682 = vunpack.c.l.b16 %v663
        %v683 = vunpack.c.h.b16 %v663
        %v684 = vunpack.c.l.b16 %v664
        %v685 = vunpack.c.h.b16 %v664
        %v686 = vunpack.c.l.b16 %v665
        %v687 = vunpack.c.h.b16 %v665
        %v688 = vunpack.c.l.b16 %v666
        %v689 = vunpack.c.h.b16 %v666
        %v690 = vunpack.c.l.b16 %v667
        %v691 = vunpack.c.h.b16 %v667
        %v692 = vunpack.c.l.b16 %v668
        %v693 = vunpack.c.h.b16 %v668
        %v694 = vunpack.c.l.b16 %v669
        %v695 = vunpack.c.h.b16 %v669
        %v696 = vunpack.c.l.b16 %v670
        %v697 = vunpack.c.h.b16 %v670
        %v698 = vpack.c.b16 %v682, %v680
        %v699 = vpack.c.b16 %v683, %v681
        %v700 = vpack.c.b16 %v686, %v684
        %v701 = vpack.c.b16 %v687, %v685
        %v702 = vpack.c.b16 %v690, %v688
        %v703 = vpack.c.b16 %v691, %v689
        %v704 = vpack.c.b16 %v694, %v692
        %v705 = vpack.c.b16 %v695, %v693
        %v706 = vpack.c.b16 %v696, %v696
        %v707 = vpack.c.b16 %v697, %v697
        %v717 = vsel %vm549, %v660, 0
        %v720 = vsel %vm553, %v706, 0
        %v723 = vsel %vm553, %v707, 0
        %725 = vmatprep.subr.bf16.mxu0 %v699
        %726 = vmatpush1.bf16.msra.mxu0 %v698
        %727 = vmatprep.subr.bf16.mxu0 %v701
        %728 = vmatpush1.bf16.msra.mxu0 %v700
        %729 = vmatprep.subr.bf16.mxu0 %v703
        %730 = vmatpush1.bf16.msra.mxu0 %v702
        %731 = vmatprep.subr.bf16.mxu0 %v705
        %732 = vmatpush1.bf16.msra.mxu0 %v704
        %733 = vmatprep.subr.bf16.mxu0 %v723
        %734 = vmatpush1.bf16.msra.mxu0 %v720
        %735 = vmatprep.subr.bf16.mxu0 0
        %736 = vmatpush1.bf16.msra.mxu0 0
        %737 = vmatprep.subr.bf16.mxu0 0
        %738 = vmatpush1.bf16.msra.mxu0 0
        %739 = vmatprep.subr.bf16.mxu0 0
        %740 = vmatpush1.bf16.msra.mxu0 0
        %741 = vmatprep.subr.bf16.mxu0 0
        %742 = vmatpush1.bf16.msra.mxu0 0
        %743 = vmatprep.subr.bf16.mxu0 0
        %744 = vmatpush1.bf16.msra.mxu0 0
        %745 = vmatprep.subr.bf16.mxu0 0
        %746 = vmatpush1.bf16.msra.mxu0 0
        %747 = vmatprep.subr.bf16.mxu0 0
        %748 = vmatpush1.bf16.msra.mxu0 0
        %749 = vmatprep.subr.bf16.mxu0 0
        %750 = vmatpush1.bf16.msra.mxu0 0
        %751 = vmatprep.subr.bf16.mxu0 0
        %752 = vmatpush1.bf16.msra.mxu0 0
        %753 = vmatprep.subr.bf16.mxu0 0
        %754 = vmatpush1.bf16.msra.mxu0 0
        %755 = vmatprep.subr.bf16.mxu0 0
        %756 = vmatpush1.bf16.msra.mxu0 0
        %757 = vmatprep.mubr.bf16.mxu0 0
        %758 = vmatmul.mubr.bf16.gmra.mrb[0].mxu0 %v717
        %v759 = vpop.f32.mrb[0].mxu0
        %v760 = vadd.f32 0.0, %v759
        %v761 = vpop.f32.mrb[0].mxu0
        %v762 = vadd.f32 0.0, %v761
        %v763 = vpop.f32.mrb[0].mxu0
        %v764 = vadd.f32 0.0, %v763
        %v765 = vpop.f32.mrb[0].mxu0
        %v766 = vadd.f32 0.0, %v765
        %767 = vdwg.mxu0
        %v777 = vunpack.c.l.b16 %v599
        %v778 = vunpack.c.h.b16 %v599
        %v779 = vunpack.c.l.b16 %v600
        %v780 = vunpack.c.h.b16 %v600
        %v781 = vunpack.c.l.b16 %v601
        %v782 = vunpack.c.h.b16 %v601
        %v783 = vunpack.c.l.b16 %v602
        %v784 = vunpack.c.h.b16 %v602
        %v785 = vunpack.c.l.b16 %v603
        %v786 = vunpack.c.h.b16 %v603
        %v787 = vunpack.c.l.b16 %v604
        %v788 = vunpack.c.h.b16 %v604
        %v789 = vunpack.c.l.b16 %v605
        %v790 = vunpack.c.h.b16 %v605
        %v791 = vunpack.c.l.b16 %v606
        %v792 = vunpack.c.h.b16 %v606
        %v793 = vunpack.c.l.b16 %v607
        %v794 = vunpack.c.h.b16 %v607
        %v795 = vpack.c.b16 %v779, %v777
        %v796 = vpack.c.b16 %v780, %v778
        %v797 = vpack.c.b16 %v783, %v781
        %v798 = vpack.c.b16 %v784, %v782
        %v799 = vpack.c.b16 %v787, %v785
        %v800 = vpack.c.b16 %v788, %v786
        %v801 = vpack.c.b16 %v791, %v789
        %v802 = vpack.c.b16 %v792, %v790
        %v803 = vpack.c.b16 %v793, %v793
        %v804 = vpack.c.b16 %v794, %v794
        %v814 = vsel %vm549, %v598, 0
        %v817 = vsel %vm553, %v803, 0
        %v820 = vsel %vm553, %v804, 0
        %822 = vmatprep.subr.bf16.mxu0 %v796
        %823 = vmatpush1.bf16.msra.mxu0 %v795
        %824 = vmatprep.subr.bf16.mxu0 %v798
        %825 = vmatpush1.bf16.msra.mxu0 %v797
        %826 = vmatprep.subr.bf16.mxu0 %v800
        %827 = vmatpush1.bf16.msra.mxu0 %v799
        %828 = vmatprep.subr.bf16.mxu0 %v802
        %829 = vmatpush1.bf16.msra.mxu0 %v801
        %830 = vmatprep.subr.bf16.mxu0 %v820
        %831 = vmatpush1.bf16.msra.mxu0 %v817
        %832 = vmatprep.subr.bf16.mxu0 0
        %833 = vmatpush1.bf16.msra.mxu0 0
        %834 = vmatprep.subr.bf16.mxu0 0
        %835 = vmatpush1.bf16.msra.mxu0 0
        %836 = vmatprep.subr.bf16.mxu0 0
        %837 = vmatpush1.bf16.msra.mxu0 0
        %838 = vmatprep.subr.bf16.mxu0 0
        %839 = vmatpush1.bf16.msra.mxu0 0
        %840 = vmatprep.subr.bf16.mxu0 0
        %841 = vmatpush1.bf16.msra.mxu0 0
        %842 = vmatprep.subr.bf16.mxu0 0
        %843 = vmatpush1.bf16.msra.mxu0 0
        %844 = vmatprep.subr.bf16.mxu0 0
        %845 = vmatpush1.bf16.msra.mxu0 0
        %846 = vmatprep.subr.bf16.mxu0 0
        %847 = vmatpush1.bf16.msra.mxu0 0
        %848 = vmatprep.subr.bf16.mxu0 0
        %849 = vmatpush1.bf16.msra.mxu0 0
        %850 = vmatprep.subr.bf16.mxu0 0
        %851 = vmatpush1.bf16.msra.mxu0 0
        %852 = vmatprep.subr.bf16.mxu0 0
        %853 = vmatpush1.bf16.msra.mxu0 0
        %854 = vmatprep.mubr.bf16.mxu0 0
        %855 = vmatmul.mubr.bf16.gmra.mrb[0].mxu0 %v814
        %v856 = vpop.f32.mrb[0].mxu0
        %v857 = vadd.f32 %v760, %v856
        %v858 = vpop.f32.mrb[0].mxu0
        %v859 = vadd.f32 %v762, %v858
        %v860 = vpop.f32.mrb[0].mxu0
        %v861 = vadd.f32 %v764, %v860
        %v862 = vpop.f32.mrb[0].mxu0
        %v863 = vadd.f32 %v766, %v862
        %864 = vdwg.mxu0
        %s865 = scalar_lea.vmem [#allocation5], 16
        %v866 = vld [vmem:[%s865] sm:$0xf]
        %v867 = vld [vmem:[%s865 + $0x4] sm:$0xf]
        %v870 = vunpack.c.l.b16 %v866
        %v871 = vunpack.c.l.b16 %v867
        %v872 = vpack.c.b16 %v871, %v870
        %v874 = vsel %vm549, %v872, 0
        %876 = vmatprep.subr.bf16.mxu0 0
        %877 = vmatpush1.bf16.msra.mxu0 %v537
        %878 = vmatprep.subr.bf16.mxu0 0
        %879 = vmatpush1.bf16.msra.mxu0 %v538
        %880 = vmatprep.subr.bf16.mxu0 0
        %881 = vmatpush1.bf16.msra.mxu0 %v539
        %882 = vmatprep.subr.bf16.mxu0 0
        %883 = vmatpush1.bf16.msra.mxu0 %v540
        %884 = vmatprep.subr.bf16.mxu0 0
        %885 = vmatpush1.bf16.msra.mxu0 %v555
        %886 = vmatprep.subr.bf16.mxu0 0
        %887 = vmatpush1.bf16.msra.mxu0 0
        %888 = vmatprep.subr.bf16.mxu0 0
        %889 = vmatpush1.bf16.msra.mxu0 0
        %890 = vmatprep.subr.bf16.mxu0 0
        %891 = vmatpush1.bf16.msra.mxu0 0
        %892 = vmatprep.subr.bf16.mxu0 0
        %893 = vmatpush1.bf16.msra.mxu0 0
        %894 = vmatprep.subr.bf16.mxu0 0
        %895 = vmatpush1.bf16.msra.mxu0 0
        %896 = vmatprep.subr.bf16.mxu0 0
        %897 = vmatpush1.bf16.msra.mxu0 0
        %898 = vmatprep.subr.bf16.mxu0 0
        %899 = vmatpush1.bf16.msra.mxu0 0
        %900 = vmatprep.subr.bf16.mxu0 0
        %901 = vmatpush1.bf16.msra.mxu0 0
        %902 = vmatprep.subr.bf16.mxu0 0
        %903 = vmatpush1.bf16.msra.mxu0 0
        %904 = vmatprep.subr.bf16.mxu0 0
        %905 = vmatpush1.bf16.msra.mxu0 0
        %906 = vmatprep.subr.bf16.mxu0 0
        %907 = vmatpush1.bf16.msra.mxu0 0
        %908 = vmatprep.mubr.bf16.mxu0 0
        %909 = vmatmul.mubr.bf16.gmra.mrb[0].mxu0 %v874
        %v910 = vpop.f32.mrb[0].mxu0
        %v911 = vadd.f32 0.0, %v910
        %v912 = vpop.f32.mrb[0].mxu0
        %v913 = vpop.f32.mrb[0].mxu0
        %v914 = vadd.f32 0.0, %v913
        %v915 = vpop.f32.mrb[0].mxu0
        %916 = vdwg.mxu0
        %v917 = vpack.c.bf16 %v914, %v911
        %s918 = scalar_lea.vmem [#allocation7], 144
        %v919 = vld [vmem:[%s918] sm:$0xff]
        %v920 = vld [vmem:[%s918 + $0x8] sm:$0xff]
        %v921 = vld [vmem:[%s918 + $0x10] sm:$0xff]
        %v922 = vld [vmem:[%s918 + $0x18] sm:$0xff]
        %v923 = vld [vmem:[%s918 + $0x20] sm:$0xff]
        %v924 = vld [vmem:[%s918 + $0x28] sm:$0xff]
        %v925 = vld [vmem:[%s918 + $0x30] sm:$0xff]
        %v926 = vld [vmem:[%s918 + $0x38] sm:$0xff]
        %v927 = vld [vmem:[%s918 + $0x40] sm:$0xff]
        %v937 = vunpack.c.l.b16 %v919
        %v938 = vunpack.c.h.b16 %v919
        %v939 = vunpack.c.l.b16 %v920
        %v940 = vunpack.c.h.b16 %v920
        %v941 = vunpack.c.l.b16 %v921
        %v942 = vunpack.c.h.b16 %v921
        %v943 = vunpack.c.l.b16 %v922
        %v944 = vunpack.c.h.b16 %v922
        %v945 = vunpack.c.l.b16 %v923
        %v946 = vunpack.c.h.b16 %v923
        %v947 = vunpack.c.l.b16 %v924
        %v948 = vunpack.c.h.b16 %v924
        %v949 = vunpack.c.l.b16 %v925
        %v950 = vunpack.c.h.b16 %v925
        %v951 = vunpack.c.l.b16 %v926
        %v952 = vunpack.c.h.b16 %v926
        %v953 = vunpack.c.l.b16 %v927
        %v954 = vunpack.c.h.b16 %v927
        %v955 = vpack.c.b16 %v939, %v937
        %v956 = vpack.c.b16 %v940, %v938
        %v957 = vpack.c.b16 %v943, %v941
        %v958 = vpack.c.b16 %v944, %v942
        %v959 = vpack.c.b16 %v947, %v945
        %v960 = vpack.c.b16 %v948, %v946
        %v961 = vpack.c.b16 %v951, %v949
        %v962 = vpack.c.b16 %v952, %v950
        %v963 = vpack.c.b16 %v953, %v953
        %v964 = vpack.c.b16 %v954, %v954
        %v974 = vsel %vm549, %v917, 0
        %v977 = vsel %vm553, %v963, 0
        %v980 = vsel %vm553, %v964, 0
        %982 = vmatprep.subr.bf16.mxu0 %v956
        %983 = vmatpush1.bf16.msra.mxu0 %v955
        %984 = vmatprep.subr.bf16.mxu0 %v958
        %985 = vmatpush1.bf16.msra.mxu0 %v957
        %986 = vmatprep.subr.bf16.mxu0 %v960
        %987 = vmatpush1.bf16.msra.mxu0 %v959
        %988 = vmatprep.subr.bf16.mxu0 %v962
        %989 = vmatpush1.bf16.msra.mxu0 %v961
        %990 = vmatprep.subr.bf16.mxu0 %v980
        %991 = vmatpush1.bf16.msra.mxu0 %v977
        %992 = vmatprep.subr.bf16.mxu0 0
        %993 = vmatpush1.bf16.msra.mxu0 0
        %994 = vmatprep.subr.bf16.mxu0 0
        %995 = vmatpush1.bf16.msra.mxu0 0
        %996 = vmatprep.subr.bf16.mxu0 0
        %997 = vmatpush1.bf16.msra.mxu0 0
        %998 = vmatprep.subr.bf16.mxu0 0
        %999 = vmatpush1.bf16.msra.mxu0 0
        %1000 = vmatprep.subr.bf16.mxu0 0
        %1001 = vmatpush1.bf16.msra.mxu0 0
        %1002 = vmatprep.subr.bf16.mxu0 0
        %1003 = vmatpush1.bf16.msra.mxu0 0
        %1004 = vmatprep.subr.bf16.mxu0 0
        %1005 = vmatpush1.bf16.msra.mxu0 0
        %1006 = vmatprep.subr.bf16.mxu0 0
        %1007 = vmatpush1.bf16.msra.mxu0 0
        %1008 = vmatprep.subr.bf16.mxu0 0
        %1009 = vmatpush1.bf16.msra.mxu0 0
        %1010 = vmatprep.subr.bf16.mxu0 0
        %1011 = vmatpush1.bf16.msra.mxu0 0
        %1012 = vmatprep.subr.bf16.mxu0 0
        %1013 = vmatpush1.bf16.msra.mxu0 0
        %1014 = vmatprep.mubr.bf16.mxu0 0
        %1015 = vmatmul.mubr.bf16.gmra.mrb[0].mxu0 %v974
        %v1016 = vpop.f32.mrb[0].mxu0
        %v1017 = vadd.f32 0.0, %v1016
        %v1018 = vpop.f32.mrb[0].mxu0
        %v1019 = vadd.f32 0.0, %v1018
        %v1020 = vpop.f32.mrb[0].mxu0
        %v1021 = vadd.f32 0.0, %v1020
        %v1022 = vpop.f32.mrb[0].mxu0
        %v1023 = vadd.f32 0.0, %v1022
        %1024 = vdwg.mxu0
        %v1025 = vadd.f32 %v857, %v1017
        %v1026 = vadd.f32 %v859, %v1019
        %v1027 = vadd.f32 %v861, %v1021
        %v1028 = vadd.f32 %v863, %v1023
        %s1029 = scalar_lea.vmem [#allocation5], 24
        %v1030 = vld [vmem:[%s1029] sm:$0xf]
        %v1031 = vld [vmem:[%s1029 + $0x4] sm:$0xf]
        %v1034 = vunpack.c.l.b16 %v1030
        %v1035 = vunpack.c.l.b16 %v1031
        %v1036 = vpack.c.b16 %v1035, %v1034
        %v1038 = vsel %vm549, %v1036, 0
        %1040 = vmatprep.subr.bf16.mxu0 0
        %1041 = vmatpush1.bf16.msra.mxu0 %v537
        %1042 = vmatprep.subr.bf16.mxu0 0
        %1043 = vmatpush1.bf16.msra.mxu0 %v538
        %1044 = vmatprep.subr.bf16.mxu0 0
        %1045 = vmatpush1.bf16.msra.mxu0 %v539
        %1046 = vmatprep.subr.bf16.mxu0 0
        %1047 = vmatpush1.bf16.msra.mxu0 %v540
        %1048 = vmatprep.subr.bf16.mxu0 0
        %1049 = vmatpush1.bf16.msra.mxu0 %v555
        %1050 = vmatprep.subr.bf16.mxu0 0
        %1051 = vmatpush1.bf16.msra.mxu0 0
        %1052 = vmatprep.subr.bf16.mxu0 0
        %1053 = vmatpush1.bf16.msra.mxu0 0
        %1054 = vmatprep.subr.bf16.mxu0 0
        %1055 = vmatpush1.bf16.msra.mxu0 0
        %1056 = vmatprep.subr.bf16.mxu0 0
        %1057 = vmatpush1.bf16.msra.mxu0 0
        %1058 = vmatprep.subr.bf16.mxu0 0
        %1059 = vmatpush1.bf16.msra.mxu0 0
        %1060 = vmatprep.subr.bf16.mxu0 0
        %1061 = vmatpush1.bf16.msra.mxu0 0
        %1062 = vmatprep.subr.bf16.mxu0 0
        %1063 = vmatpush1.bf16.msra.mxu0 0
        %1064 = vmatprep.subr.bf16.mxu0 0
        %1065 = vmatpush1.bf16.msra.mxu0 0
        %1066 = vmatprep.subr.bf16.mxu0 0
        %1067 = vmatpush1.bf16.msra.mxu0 0
        %1068 = vmatprep.subr.bf16.mxu0 0
        %1069 = vmatpush1.bf16.msra.mxu0 0
        %1070 = vmatprep.subr.bf16.mxu0 0
        %1071 = vmatpush1.bf16.msra.mxu0 0
        %1072 = vmatprep.mubr.bf16.mxu0 0
        %1073 = vmatmul.mubr.bf16.gmra.mrb[0].mxu0 %v1038
        %v1074 = vpop.f32.mrb[0].mxu0
        %v1075 = vadd.f32 0.0, %v1074
        %v1076 = vpop.f32.mrb[0].mxu0
        %v1077 = vpop.f32.mrb[0].mxu0
        %v1078 = vadd.f32 0.0, %v1077
        %v1079 = vpop.f32.mrb[0].mxu0
        %1080 = vdwg.mxu0
        %v1081 = vpack.c.bf16 %v1078, %v1075
        %s1082 = scalar_lea.vmem [#allocation7], 216
        %v1083 = vld [vmem:[%s1082] sm:$0xff]
        %v1084 = vld [vmem:[%s1082 + $0x8] sm:$0xff]
        %v1085 = vld [vmem:[%s1082 + $0x10] sm:$0xff]
        %v1086 = vld [vmem:[%s1082 + $0x18] sm:$0xff]
        %v1087 = vld [vmem:[%s1082 + $0x20] sm:$0xff]
        %v1088 = vld [vmem:[%s1082 + $0x28] sm:$0xff]
        %v1089 = vld [vmem:[%s1082 + $0x30] sm:$0xff]
        %v1090 = vld [vmem:[%s1082 + $0x38] sm:$0xff]
        %v1091 = vld [vmem:[%s1082 + $0x40] sm:$0xff]
        %v1101 = vunpack.c.l.b16 %v1083
        %v1102 = vunpack.c.h.b16 %v1083
        %v1103 = vunpack.c.l.b16 %v1084
        %v1104 = vunpack.c.h.b16 %v1084
        %v1105 = vunpack.c.l.b16 %v1085
        %v1106 = vunpack.c.h.b16 %v1085
        %v1107 = vunpack.c.l.b16 %v1086
        %v1108 = vunpack.c.h.b16 %v1086
        %v1109 = vunpack.c.l.b16 %v1087
        %v1110 = vunpack.c.h.b16 %v1087
        %v1111 = vunpack.c.l.b16 %v1088
        %v1112 = vunpack.c.h.b16 %v1088
        %v1113 = vunpack.c.l.b16 %v1089
        %v1114 = vunpack.c.h.b16 %v1089
        %v1115 = vunpack.c.l.b16 %v1090
        %v1116 = vunpack.c.h.b16 %v1090
        %v1117 = vunpack.c.l.b16 %v1091
        %v1118 = vunpack.c.h.b16 %v1091
        %v1119 = vpack.c.b16 %v1103, %v1101
        %v1120 = vpack.c.b16 %v1104, %v1102
        %v1121 = vpack.c.b16 %v1107, %v1105
        %v1122 = vpack.c.b16 %v1108, %v1106
        %v1123 = vpack.c.b16 %v1111, %v1109
        %v1124 = vpack.c.b16 %v1112, %v1110
        %v1125 = vpack.c.b16 %v1115, %v1113
        %v1126 = vpack.c.b16 %v1116, %v1114
        %v1127 = vpack.c.b16 %v1117, %v1117
        %v1128 = vpack.c.b16 %v1118, %v1118
        %v1138 = vsel %vm549, %v1081, 0
        %v1141 = vsel %vm553, %v1127, 0
        %v1144 = vsel %vm553, %v1128, 0
        %1146 = vmatprep.subr.bf16.mxu0 %v1120
        %1147 = vmatpush1.bf16.msra.mxu0 %v1119
        %1148 = vmatprep.subr.bf16.mxu0 %v1122
        %1149 = vmatpush1.bf16.msra.mxu0 %v1121
        %1150 = vmatprep.subr.bf16.mxu0 %v1124
        %1151 = vmatpush1.bf16.msra.mxu0 %v1123
        %1152 = vmatprep.subr.bf16.mxu0 %v1126
        %1153 = vmatpush1.bf16.msra.mxu0 %v1125
        %1154 = vmatprep.subr.bf16.mxu0 %v1144
        %1155 = vmatpush1.bf16.msra.mxu0 %v1141
        %1156 = vmatprep.subr.bf16.mxu0 0
        %1157 = vmatpush1.bf16.msra.mxu0 0
        %1158 = vmatprep.subr.bf16.mxu0 0
        %1159 = vmatpush1.bf16.msra.mxu0 0
        %1160 = vmatprep.subr.bf16.mxu0 0
        %1161 = vmatpush1.bf16.msra.mxu0 0
        %1162 = vmatprep.subr.bf16.mxu0 0
        %1163 = vmatpush1.bf16.msra.mxu0 0
        %1164 = vmatprep.subr.bf16.mxu0 0
        %1165 = vmatpush1.bf16.msra.mxu0 0
        %1166 = vmatprep.subr.bf16.mxu0 0
        %1167 = vmatpush1.bf16.msra.mxu0 0
        %1168 = vmatprep.subr.bf16.mxu0 0
        %1169 = vmatpush1.bf16.msra.mxu0 0
        %1170 = vmatprep.subr.bf16.mxu0 0
        %1171 = vmatpush1.bf16.msra.mxu0 0
        %1172 = vmatprep.subr.bf16.mxu0 0
        %1173 = vmatpush1.bf16.msra.mxu0 0
        %1174 = vmatprep.subr.bf16.mxu0 0
        %1175 = vmatpush1.bf16.msra.mxu0 0
        %1176 = vmatprep.subr.bf16.mxu0 0
        %1177 = vmatpush1.bf16.msra.mxu0 0
        %1178 = vmatprep.mubr.bf16.mxu0 0
        %1179 = vmatmul.mubr.bf16.gmra.mrb[0].mxu0 %v1138
        %v1180 = vpop.f32.mrb[0].mxu0
        %v1181 = vadd.f32 0.0, %v1180
        %v1182 = vpop.f32.mrb[0].mxu0
        %v1183 = vadd.f32 0.0, %v1182
        %v1184 = vpop.f32.mrb[0].mxu0
        %v1185 = vadd.f32 0.0, %v1184
        %v1186 = vpop.f32.mrb[0].mxu0
        %v1187 = vadd.f32 0.0, %v1186
        %1188 = vdwg.mxu0
        %v1189 = vadd.f32 %v1025, %v1181
        %v1190 = vadd.f32 %v1026, %v1183
        %v1191 = vadd.f32 %v1027, %v1185
        %v1192 = vadd.f32 %v1028, %v1187
        %s1193 = scalar_lea.vmem [#allocation5], 32
        %v1194 = vld [vmem:[%s1193] sm:$0xf]
        %v1195 = vld [vmem:[%s1193 + $0x4] sm:$0xf]
        %v1198 = vunpack.c.l.b16 %v1194
        %v1199 = vunpack.c.l.b16 %v1195
        %v1200 = vpack.c.b16 %v1199, %v1198
        %v1202 = vsel %vm549, %v1200, 0
        %1204 = vmatprep.subr.bf16.mxu0 0
        %1205 = vmatpush1.bf16.msra.mxu0 %v537
        %1206 = vmatprep.subr.bf16.mxu0 0
        %1207 = vmatpush1.bf16.msra.mxu0 %v538
        %1208 = vmatprep.subr.bf16.mxu0 0
        %1209 = vmatpush1.bf16.msra.mxu0 %v539
        %1210 = vmatprep.subr.bf16.mxu0 0
        %1211 = vmatpush1.bf16.msra.mxu0 %v540
        %1212 = vmatprep.subr.bf16.mxu0 0
        %1213 = vmatpush1.bf16.msra.mxu0 %v555
        %1214 = vmatprep.subr.bf16.mxu0 0
        %1215 = vmatpush1.bf16.msra.mxu0 0
        %1216 = vmatprep.subr.bf16.mxu0 0
        %1217 = vmatpush1.bf16.msra.mxu0 0
        %1218 = vmatprep.subr.bf16.mxu0 0
        %1219 = vmatpush1.bf16.msra.mxu0 0
        %1220 = vmatprep.subr.bf16.mxu0 0
        %1221 = vmatpush1.bf16.msra.mxu0 0
        %1222 = vmatprep.subr.bf16.mxu0 0
        %1223 = vmatpush1.bf16.msra.mxu0 0
        %1224 = vmatprep.subr.bf16.mxu0 0
        %1225 = vmatpush1.bf16.msra.mxu0 0
        %1226 = vmatprep.subr.bf16.mxu0 0
        %1227 = vmatpush1.bf16.msra.mxu0 0
        %1228 = vmatprep.subr.bf16.mxu0 0
        %1229 = vmatpush1.bf16.msra.mxu0 0
        %1230 = vmatprep.subr.bf16.mxu0 0
        %1231 = vmatpush1.bf16.msra.mxu0 0
        %1232 = vmatprep.subr.bf16.mxu0 0
        %1233 = vmatpush1.bf16.msra.mxu0 0
        %1234 = vmatprep.subr.bf16.mxu0 0
        %1235 = vmatpush1.bf16.msra.mxu0 0
        %1236 = vmatprep.mubr.bf16.mxu0 0
        %1237 = vmatmul.mubr.bf16.gmra.mrb[0].mxu0 %v1202
        %v1238 = vpop.f32.mrb[0].mxu0
        %v1239 = vadd.f32 0.0, %v1238
        %v1240 = vpop.f32.mrb[0].mxu0
        %v1241 = vpop.f32.mrb[0].mxu0
        %v1242 = vadd.f32 0.0, %v1241
        %v1243 = vpop.f32.mrb[0].mxu0
        %1244 = vdwg.mxu0
        %v1245 = vpack.c.bf16 %v1242, %v1239
        %s1246 = scalar_lea.vmem [#allocation7], 288
        %v1247 = vld [vmem:[%s1246] sm:$0xff]
        %v1248 = vld [vmem:[%s1246 + $0x8] sm:$0xff]
        %v1249 = vld [vmem:[%s1246 + $0x10] sm:$0xff]
        %v1250 = vld [vmem:[%s1246 + $0x18] sm:$0xff]
        %v1251 = vld [vmem:[%s1246 + $0x20] sm:$0xff]
        %v1252 = vld [vmem:[%s1246 + $0x28] sm:$0xff]
        %v1253 = vld [vmem:[%s1246 + $0x30] sm:$0xff]
        %v1254 = vld [vmem:[%s1246 + $0x38] sm:$0xff]
        %v1255 = vld [vmem:[%s1246 + $0x40] sm:$0xff]
        %v1265 = vunpack.c.l.b16 %v1247
        %v1266 = vunpack.c.h.b16 %v1247
        %v1267 = vunpack.c.l.b16 %v1248
        %v1268 = vunpack.c.h.b16 %v1248
        %v1269 = vunpack.c.l.b16 %v1249
        %v1270 = vunpack.c.h.b16 %v1249
        %v1271 = vunpack.c.l.b16 %v1250
        %v1272 = vunpack.c.h.b16 %v1250
        %v1273 = vunpack.c.l.b16 %v1251
        %v1274 = vunpack.c.h.b16 %v1251
        %v1275 = vunpack.c.l.b16 %v1252
        %v1276 = vunpack.c.h.b16 %v1252
        %v1277 = vunpack.c.l.b16 %v1253
        %v1278 = vunpack.c.h.b16 %v1253
        %v1279 = vunpack.c.l.b16 %v1254
        %v1280 = vunpack.c.h.b16 %v1254
        %v1281 = vunpack.c.l.b16 %v1255
        %v1282 = vunpack.c.h.b16 %v1255
        %v1283 = vpack.c.b16 %v1267, %v1265
        %v1284 = vpack.c.b16 %v1268, %v1266
        %v1285 = vpack.c.b16 %v1271, %v1269
        %v1286 = vpack.c.b16 %v1272, %v1270
        %v1287 = vpack.c.b16 %v1275, %v1273
        %v1288 = vpack.c.b16 %v1276, %v1274
        %v1289 = vpack.c.b16 %v1279, %v1277
        %v1290 = vpack.c.b16 %v1280, %v1278
        %v1291 = vpack.c.b16 %v1281, %v1281
        %v1292 = vpack.c.b16 %v1282, %v1282
        %v1302 = vsel %vm549, %v1245, 0
        %v1305 = vsel %vm553, %v1291, 0
        %v1308 = vsel %vm553, %v1292, 0
        %1310 = vmatprep.subr.bf16.mxu0 %v1284
        %1311 = vmatpush1.bf16.msra.mxu0 %v1283
        %1312 = vmatprep.subr.bf16.mxu0 %v1286
        %1313 = vmatpush1.bf16.msra.mxu0 %v1285
        %1314 = vmatprep.subr.bf16.mxu0 %v1288
        %1315 = vmatpush1.bf16.msra.mxu0 %v1287
        %1316 = vmatprep.subr.bf16.mxu0 %v1290
        %1317 = vmatpush1.bf16.msra.mxu0 %v1289
        %1318 = vmatprep.subr.bf16.mxu0 %v1308
        %1319 = vmatpush1.bf16.msra.mxu0 %v1305
        %1320 = vmatprep.subr.bf16.mxu0 0
        %1321 = vmatpush1.bf16.msra.mxu0 0
        %1322 = vmatprep.subr.bf16.mxu0 0
        %1323 = vmatpush1.bf16.msra.mxu0 0
        %1324 = vmatprep.subr.bf16.mxu0 0
        %1325 = vmatpush1.bf16.msra.mxu0 0
        %1326 = vmatprep.subr.bf16.mxu0 0
        %1327 = vmatpush1.bf16.msra.mxu0 0
        %1328 = vmatprep.subr.bf16.mxu0 0
        %1329 = vmatpush1.bf16.msra.mxu0 0
        %1330 = vmatprep.subr.bf16.mxu0 0
        %1331 = vmatpush1.bf16.msra.mxu0 0
        %1332 = vmatprep.subr.bf16.mxu0 0
        %1333 = vmatpush1.bf16.msra.mxu0 0
        %1334 = vmatprep.subr.bf16.mxu0 0
        %1335 = vmatpush1.bf16.msra.mxu0 0
        %1336 = vmatprep.subr.bf16.mxu0 0
        %1337 = vmatpush1.bf16.msra.mxu0 0
        %1338 = vmatprep.subr.bf16.mxu0 0
        %1339 = vmatpush1.bf16.msra.mxu0 0
        %1340 = vmatprep.subr.bf16.mxu0 0
        %1341 = vmatpush1.bf16.msra.mxu0 0
        %1342 = vmatprep.mubr.bf16.mxu0 0
        %1343 = vmatmul.mubr.bf16.gmra.mrb[0].mxu0 %v1302
        %v1344 = vpop.f32.mrb[0].mxu0
        %v1345 = vadd.f32 0.0, %v1344
        %v1346 = vpop.f32.mrb[0].mxu0
        %v1347 = vadd.f32 0.0, %v1346
        %v1348 = vpop.f32.mrb[0].mxu0
        %v1349 = vadd.f32 0.0, %v1348
        %v1350 = vpop.f32.mrb[0].mxu0
        %v1351 = vadd.f32 0.0, %v1350
        %1352 = vdwg.mxu0
        %v1353 = vadd.f32 %v1189, %v1345
        %v1354 = vadd.f32 %v1190, %v1347
        %v1355 = vadd.f32 %v1191, %v1349
        %v1356 = vadd.f32 %v1192, %v1351
        %s1357 = scalar_lea.vmem [#allocation5], 40
        %v1358 = vld [vmem:[%s1357] sm:$0xf]
        %v1359 = vld [vmem:[%s1357 + $0x4] sm:$0xf]
        %v1362 = vunpack.c.l.b16 %v1358
        %v1363 = vunpack.c.l.b16 %v1359
        %v1364 = vpack.c.b16 %v1363, %v1362
        %v1366 = vsel %vm549, %v1364, 0
        %1368 = vmatprep.subr.bf16.mxu0 0
        %1369 = vmatpush1.bf16.msra.mxu0 %v537
        %1370 = vmatprep.subr.bf16.mxu0 0
        %1371 = vmatpush1.bf16.msra.mxu0 %v538
        %1372 = vmatprep.subr.bf16.mxu0 0
        %1373 = vmatpush1.bf16.msra.mxu0 %v539
        %1374 = vmatprep.subr.bf16.mxu0 0
        %1375 = vmatpush1.bf16.msra.mxu0 %v540
        %1376 = vmatprep.subr.bf16.mxu0 0
        %1377 = vmatpush1.bf16.msra.mxu0 %v555
        %1378 = vmatprep.subr.bf16.mxu0 0
        %1379 = vmatpush1.bf16.msra.mxu0 0
        %1380 = vmatprep.subr.bf16.mxu0 0
        %1381 = vmatpush1.bf16.msra.mxu0 0
        %1382 = vmatprep.subr.bf16.mxu0 0
        %1383 = vmatpush1.bf16.msra.mxu0 0
        %1384 = vmatprep.subr.bf16.mxu0 0
        %1385 = vmatpush1.bf16.msra.mxu0 0
        %1386 = vmatprep.subr.bf16.mxu0 0
        %1387 = vmatpush1.bf16.msra.mxu0 0
        %1388 = vmatprep.subr.bf16.mxu0 0
        %1389 = vmatpush1.bf16.msra.mxu0 0
        %1390 = vmatprep.subr.bf16.mxu0 0
        %1391 = vmatpush1.bf16.msra.mxu0 0
        %1392 = vmatprep.subr.bf16.mxu0 0
        %1393 = vmatpush1.bf16.msra.mxu0 0
        %1394 = vmatprep.subr.bf16.mxu0 0
        %1395 = vmatpush1.bf16.msra.mxu0 0
        %1396 = vmatprep.subr.bf16.mxu0 0
        %1397 = vmatpush1.bf16.msra.mxu0 0
        %1398 = vmatprep.subr.bf16.mxu0 0
        %1399 = vmatpush1.bf16.msra.mxu0 0
        %1400 = vmatprep.mubr.bf16.mxu0 0
        %1401 = vmatmul.mubr.bf16.gmra.mrb[0].mxu0 %v1366
        %v1402 = vpop.f32.mrb[0].mxu0
        %v1403 = vadd.f32 0.0, %v1402
        %v1404 = vpop.f32.mrb[0].mxu0
        %v1405 = vpop.f32.mrb[0].mxu0
        %v1406 = vadd.f32 0.0, %v1405
        %v1407 = vpop.f32.mrb[0].mxu0
        %1408 = vdwg.mxu0
        %v1409 = vpack.c.bf16 %v1406, %v1403
        %s1410 = scalar_lea.vmem [#allocation7], 360
        %v1411 = vld [vmem:[%s1410] sm:$0xff]
        %v1412 = vld [vmem:[%s1410 + $0x8] sm:$0xff]
        %v1413 = vld [vmem:[%s1410 + $0x10] sm:$0xff]
        %v1414 = vld [vmem:[%s1410 + $0x18] sm:$0xff]
        %v1415 = vld [vmem:[%s1410 + $0x20] sm:$0xff]
        %v1416 = vld [vmem:[%s1410 + $0x28] sm:$0xff]
        %v1417 = vld [vmem:[%s1410 + $0x30] sm:$0xff]
        %v1418 = vld [vmem:[%s1410 + $0x38] sm:$0xff]
        %v1419 = vld [vmem:[%s1410 + $0x40] sm:$0xff]
        %v1429 = vunpack.c.l.b16 %v1411
        %v1430 = vunpack.c.h.b16 %v1411
        %v1431 = vunpack.c.l.b16 %v1412
        %v1432 = vunpack.c.h.b16 %v1412
        %v1433 = vunpack.c.l.b16 %v1413
        %v1434 = vunpack.c.h.b16 %v1413
        %v1435 = vunpack.c.l.b16 %v1414
        %v1436 = vunpack.c.h.b16 %v1414
        %v1437 = vunpack.c.l.b16 %v1415
        %v1438 = vunpack.c.h.b16 %v1415
        %v1439 = vunpack.c.l.b16 %v1416
        %v1440 = vunpack.c.h.b16 %v1416
        %v1441 = vunpack.c.l.b16 %v1417
        %v1442 = vunpack.c.h.b16 %v1417
        %v1443 = vunpack.c.l.b16 %v1418
        %v1444 = vunpack.c.h.b16 %v1418
        %v1445 = vunpack.c.l.b16 %v1419
        %v1446 = vunpack.c.h.b16 %v1419
        %v1447 = vpack.c.b16 %v1431, %v1429
        %v1448 = vpack.c.b16 %v1432, %v1430
        %v1449 = vpack.c.b16 %v1435, %v1433
        %v1450 = vpack.c.b16 %v1436, %v1434
        %v1451 = vpack.c.b16 %v1439, %v1437
        %v1452 = vpack.c.b16 %v1440, %v1438
        %v1453 = vpack.c.b16 %v1443, %v1441
        %v1454 = vpack.c.b16 %v1444, %v1442
        %v1455 = vpack.c.b16 %v1445, %v1445
        %v1456 = vpack.c.b16 %v1446, %v1446
        %v1466 = vsel %vm549, %v1409, 0
        %v1469 = vsel %vm553, %v1455, 0
        %v1472 = vsel %vm553, %v1456, 0
        %1474 = vmatprep.subr.bf16.mxu0 %v1448
        %1475 = vmatpush1.bf16.msra.mxu0 %v1447
        %1476 = vmatprep.subr.bf16.mxu0 %v1450
        %1477 = vmatpush1.bf16.msra.mxu0 %v1449
        %1478 = vmatprep.subr.bf16.mxu0 %v1452
        %1479 = vmatpush1.bf16.msra.mxu0 %v1451
        %1480 = vmatprep.subr.bf16.mxu0 %v1454
        %1481 = vmatpush1.bf16.msra.mxu0 %v1453
        %1482 = vmatprep.subr.bf16.mxu0 %v1472
        %1483 = vmatpush1.bf16.msra.mxu0 %v1469
        %1484 = vmatprep.subr.bf16.mxu0 0
        %1485 = vmatpush1.bf16.msra.mxu0 0
        %1486 = vmatprep.subr.bf16.mxu0 0
        %1487 = vmatpush1.bf16.msra.mxu0 0
        %1488 = vmatprep.subr.bf16.mxu0 0
        %1489 = vmatpush1.bf16.msra.mxu0 0
        %1490 = vmatprep.subr.bf16.mxu0 0
        %1491 = vmatpush1.bf16.msra.mxu0 0
        %1492 = vmatprep.subr.bf16.mxu0 0
        %1493 = vmatpush1.bf16.msra.mxu0 0
        %1494 = vmatprep.subr.bf16.mxu0 0
        %1495 = vmatpush1.bf16.msra.mxu0 0
        %1496 = vmatprep.subr.bf16.mxu0 0
        %1497 = vmatpush1.bf16.msra.mxu0 0
        %1498 = vmatprep.subr.bf16.mxu0 0
        %1499 = vmatpush1.bf16.msra.mxu0 0
        %1500 = vmatprep.subr.bf16.mxu0 0
        %1501 = vmatpush1.bf16.msra.mxu0 0
        %1502 = vmatprep.subr.bf16.mxu0 0
        %1503 = vmatpush1.bf16.msra.mxu0 0
        %1504 = vmatprep.subr.bf16.mxu0 0
        %1505 = vmatpush1.bf16.msra.mxu0 0
        %1506 = vmatprep.mubr.bf16.mxu0 0
        %1507 = vmatmul.mubr.bf16.gmra.mrb[0].mxu0 %v1466
        %v1508 = vpop.f32.mrb[0].mxu0
        %v1509 = vadd.f32 0.0, %v1508
        %v1510 = vpop.f32.mrb[0].mxu0
        %v1511 = vadd.f32 0.0, %v1510
        %v1512 = vpop.f32.mrb[0].mxu0
        %v1513 = vadd.f32 0.0, %v1512
        %v1514 = vpop.f32.mrb[0].mxu0
        %v1515 = vadd.f32 0.0, %v1514
        %1516 = vdwg.mxu0
        %v1517 = vadd.f32 %v1353, %v1509
        %v1518 = vadd.f32 %v1354, %v1511
        %v1519 = vadd.f32 %v1355, %v1513
        %v1520 = vadd.f32 %v1356, %v1515
        %s1521 = scalar_lea.vmem [#allocation5], 48
        %v1522 = vld [vmem:[%s1521] sm:$0xf]
        %v1523 = vld [vmem:[%s1521 + $0x4] sm:$0xf]
        %v1526 = vunpack.c.l.b16 %v1522
        %v1527 = vunpack.c.l.b16 %v1523
        %v1528 = vpack.c.b16 %v1527, %v1526
        %v1530 = vsel %vm549, %v1528, 0
        %1532 = vmatprep.subr.bf16.mxu0 0
        %1533 = vmatpush1.bf16.msra.mxu0 %v537
        %1534 = vmatprep.subr.bf16.mxu0 0
        %1535 = vmatpush1.bf16.msra.mxu0 %v538
        %1536 = vmatprep.subr.bf16.mxu0 0
        %1537 = vmatpush1.bf16.msra.mxu0 %v539
        %1538 = vmatprep.subr.bf16.mxu0 0
        %1539 = vmatpush1.bf16.msra.mxu0 %v540
        %1540 = vmatprep.subr.bf16.mxu0 0
        %1541 = vmatpush1.bf16.msra.mxu0 %v555
        %1542 = vmatprep.subr.bf16.mxu0 0
        %1543 = vmatpush1.bf16.msra.mxu0 0
        %1544 = vmatprep.subr.bf16.mxu0 0
        %1545 = vmatpush1.bf16.msra.mxu0 0
        %1546 = vmatprep.subr.bf16.mxu0 0
        %1547 = vmatpush1.bf16.msra.mxu0 0
        %1548 = vmatprep.subr.bf16.mxu0 0
        %1549 = vmatpush1.bf16.msra.mxu0 0
        %1550 = vmatprep.subr.bf16.mxu0 0
        %1551 = vmatpush1.bf16.msra.mxu0 0
        %1552 = vmatprep.subr.bf16.mxu0 0
        %1553 = vmatpush1.bf16.msra.mxu0 0
        %1554 = vmatprep.subr.bf16.mxu0 0
        %1555 = vmatpush1.bf16.msra.mxu0 0
        %1556 = vmatprep.subr.bf16.mxu0 0
        %1557 = vmatpush1.bf16.msra.mxu0 0
        %1558 = vmatprep.subr.bf16.mxu0 0
        %1559 = vmatpush1.bf16.msra.mxu0 0
        %1560 = vmatprep.subr.bf16.mxu0 0
        %1561 = vmatpush1.bf16.msra.mxu0 0
        %1562 = vmatprep.subr.bf16.mxu0 0
        %1563 = vmatpush1.bf16.msra.mxu0 0
        %1564 = vmatprep.mubr.bf16.mxu0 0
        %1565 = vmatmul.mubr.bf16.gmra.mrb[0].mxu0 %v1530
        %v1566 = vpop.f32.mrb[0].mxu0
        %v1567 = vadd.f32 0.0, %v1566
        %v1568 = vpop.f32.mrb[0].mxu0
        %v1569 = vpop.f32.mrb[0].mxu0
        %v1570 = vadd.f32 0.0, %v1569
        %v1571 = vpop.f32.mrb[0].mxu0
        %1572 = vdwg.mxu0
        %v1573 = vpack.c.bf16 %v1570, %v1567
        %s1574 = scalar_lea.vmem [#allocation7], 432
        %v1575 = vld [vmem:[%s1574] sm:$0xff]
        %v1576 = vld [vmem:[%s1574 + $0x8] sm:$0xff]
        %v1577 = vld [vmem:[%s1574 + $0x10] sm:$0xff]
        %v1578 = vld [vmem:[%s1574 + $0x18] sm:$0xff]
        %v1579 = vld [vmem:[%s1574 + $0x20] sm:$0xff]
        %v1580 = vld [vmem:[%s1574 + $0x28] sm:$0xff]
        %v1581 = vld [vmem:[%s1574 + $0x30] sm:$0xff]
        %v1582 = vld [vmem:[%s1574 + $0x38] sm:$0xff]
        %v1583 = vld [vmem:[%s1574 + $0x40] sm:$0xff]
        %v1593 = vunpack.c.l.b16 %v1575
        %v1594 = vunpack.c.h.b16 %v1575
        %v1595 = vunpack.c.l.b16 %v1576
        %v1596 = vunpack.c.h.b16 %v1576
        %v1597 = vunpack.c.l.b16 %v1577
        %v1598 = vunpack.c.h.b16 %v1577
        %v1599 = vunpack.c.l.b16 %v1578
        %v1600 = vunpack.c.h.b16 %v1578
        %v1601 = vunpack.c.l.b16 %v1579
        %v1602 = vunpack.c.h.b16 %v1579
        %v1603 = vunpack.c.l.b16 %v1580
        %v1604 = vunpack.c.h.b16 %v1580
        %v1605 = vunpack.c.l.b16 %v1581
        %v1606 = vunpack.c.h.b16 %v1581
        %v1607 = vunpack.c.l.b16 %v1582
        %v1608 = vunpack.c.h.b16 %v1582
        %v1609 = vunpack.c.l.b16 %v1583
        %v1610 = vunpack.c.h.b16 %v1583
        %v1611 = vpack.c.b16 %v1595, %v1593
        %v1612 = vpack.c.b16 %v1596, %v1594
        %v1613 = vpack.c.b16 %v1599, %v1597
        %v1614 = vpack.c.b16 %v1600, %v1598
        %v1615 = vpack.c.b16 %v1603, %v1601
        %v1616 = vpack.c.b16 %v1604, %v1602
        %v1617 = vpack.c.b16 %v1607, %v1605
        %v1618 = vpack.c.b16 %v1608, %v1606
        %v1619 = vpack.c.b16 %v1609, %v1609
        %v1620 = vpack.c.b16 %v1610, %v1610
        %v1630 = vsel %vm549, %v1573, 0
        %v1633 = vsel %vm553, %v1619, 0
        %v1636 = vsel %vm553, %v1620, 0
        %1638 = vmatprep.subr.bf16.mxu0 %v1612
        %1639 = vmatpush1.bf16.msra.mxu0 %v1611
        %1640 = vmatprep.subr.bf16.mxu0 %v1614
        %1641 = vmatpush1.bf16.msra.mxu0 %v1613
        %1642 = vmatprep.subr.bf16.mxu0 %v1616
        %1643 = vmatpush1.bf16.msra.mxu0 %v1615
        %1644 = vmatprep.subr.bf16.mxu0 %v1618
        %1645 = vmatpush1.bf16.msra.mxu0 %v1617
        %1646 = vmatprep.subr.bf16.mxu0 %v1636
        %1647 = vmatpush1.bf16.msra.mxu0 %v1633
        %1648 = vmatprep.subr.bf16.mxu0 0
        %1649 = vmatpush1.bf16.msra.mxu0 0
        %1650 = vmatprep.subr.bf16.mxu0 0
        %1651 = vmatpush1.bf16.msra.mxu0 0
        %1652 = vmatprep.subr.bf16.mxu0 0
        %1653 = vmatpush1.bf16.msra.mxu0 0
        %1654 = vmatprep.subr.bf16.mxu0 0
        %1655 = vmatpush1.bf16.msra.mxu0 0
        %1656 = vmatprep.subr.bf16.mxu0 0
        %1657 = vmatpush1.bf16.msra.mxu0 0
        %1658 = vmatprep.subr.bf16.mxu0 0
        %1659 = vmatpush1.bf16.msra.mxu0 0
        %1660 = vmatprep.subr.bf16.mxu0 0
        %1661 = vmatpush1.bf16.msra.mxu0 0
        %1662 = vmatprep.subr.bf16.mxu0 0
        %1663 = vmatpush1.bf16.msra.mxu0 0
        %1664 = vmatprep.subr.bf16.mxu0 0
        %1665 = vmatpush1.bf16.msra.mxu0 0
        %1666 = vmatprep.subr.bf16.mxu0 0
        %1667 = vmatpush1.bf16.msra.mxu0 0
        %1668 = vmatprep.subr.bf16.mxu0 0
        %1669 = vmatpush1.bf16.msra.mxu0 0
        %1670 = vmatprep.mubr.bf16.mxu0 0
        %1671 = vmatmul.mubr.bf16.gmra.mrb[0].mxu0 %v1630
        %v1672 = vpop.f32.mrb[0].mxu0
        %v1673 = vadd.f32 0.0, %v1672
        %v1674 = vpop.f32.mrb[0].mxu0
        %v1675 = vadd.f32 0.0, %v1674
        %v1676 = vpop.f32.mrb[0].mxu0
        %v1677 = vadd.f32 0.0, %v1676
        %v1678 = vpop.f32.mrb[0].mxu0
        %v1679 = vadd.f32 0.0, %v1678
        %1680 = vdwg.mxu0
        %v1681 = vadd.f32 %v1517, %v1673
        %v1682 = vadd.f32 %v1518, %v1675
        %v1683 = vadd.f32 %v1519, %v1677
        %v1684 = vadd.f32 %v1520, %v1679
        %s1685 = scalar_lea.vmem [#allocation5], 56
        %v1686 = vld [vmem:[%s1685] sm:$0xf]
        %v1687 = vld [vmem:[%s1685 + $0x4] sm:$0xf]
        %v1690 = vunpack.c.l.b16 %v1686
        %v1691 = vunpack.c.l.b16 %v1687
        %v1692 = vpack.c.b16 %v1691, %v1690
        %v1694 = vsel %vm549, %v1692, 0
        %1696 = vmatprep.subr.bf16.mxu0 0
        %1697 = vmatpush1.bf16.msra.mxu0 %v537
        %1698 = vmatprep.subr.bf16.mxu0 0
        %1699 = vmatpush1.bf16.msra.mxu0 %v538
        %1700 = vmatprep.subr.bf16.mxu0 0
        %1701 = vmatpush1.bf16.msra.mxu0 %v539
        %1702 = vmatprep.subr.bf16.mxu0 0
        %1703 = vmatpush1.bf16.msra.mxu0 %v540
        %1704 = vmatprep.subr.bf16.mxu0 0
        %1705 = vmatpush1.bf16.msra.mxu0 %v555
        %1706 = vmatprep.subr.bf16.mxu0 0
        %1707 = vmatpush1.bf16.msra.mxu0 0
        %1708 = vmatprep.subr.bf16.mxu0 0
        %1709 = vmatpush1.bf16.msra.mxu0 0
        %1710 = vmatprep.subr.bf16.mxu0 0
        %1711 = vmatpush1.bf16.msra.mxu0 0
        %1712 = vmatprep.subr.bf16.mxu0 0
        %1713 = vmatpush1.bf16.msra.mxu0 0
        %1714 = vmatprep.subr.bf16.mxu0 0
        %1715 = vmatpush1.bf16.msra.mxu0 0
        %1716 = vmatprep.subr.bf16.mxu0 0
        %1717 = vmatpush1.bf16.msra.mxu0 0
        %1718 = vmatprep.subr.bf16.mxu0 0
        %1719 = vmatpush1.bf16.msra.mxu0 0
        %1720 = vmatprep.subr.bf16.mxu0 0
        %1721 = vmatpush1.bf16.msra.mxu0 0
        %1722 = vmatprep.subr.bf16.mxu0 0
        %1723 = vmatpush1.bf16.msra.mxu0 0
        %1724 = vmatprep.subr.bf16.mxu0 0
        %1725 = vmatpush1.bf16.msra.mxu0 0
        %1726 = vmatprep.subr.bf16.mxu0 0
        %1727 = vmatpush1.bf16.msra.mxu0 0
        %1728 = vmatprep.mubr.bf16.mxu0 0
        %1729 = vmatmul.mubr.bf16.gmra.mrb[0].mxu0 %v1694
        %v1730 = vpop.f32.mrb[0].mxu0
        %v1731 = vadd.f32 0.0, %v1730
        %v1732 = vpop.f32.mrb[0].mxu0
        %v1733 = vpop.f32.mrb[0].mxu0
        %v1734 = vadd.f32 0.0, %v1733
        %v1735 = vpop.f32.mrb[0].mxu0
        %1736 = vdwg.mxu0
        %v1737 = vpack.c.bf16 %v1734, %v1731
        %s1738 = scalar_lea.vmem [#allocation7], 504
        %v1739 = vld [vmem:[%s1738] sm:$0xff]
        %v1740 = vld [vmem:[%s1738 + $0x8] sm:$0xff]
        %v1741 = vld [vmem:[%s1738 + $0x10] sm:$0xff]
        %v1742 = vld [vmem:[%s1738 + $0x18] sm:$0xff]
        %v1743 = vld [vmem:[%s1738 + $0x20] sm:$0xff]
        %v1744 = vld [vmem:[%s1738 + $0x28] sm:$0xff]
        %v1745 = vld [vmem:[%s1738 + $0x30] sm:$0xff]
        %v1746 = vld [vmem:[%s1738 + $0x38] sm:$0xff]
        %v1747 = vld [vmem:[%s1738 + $0x40] sm:$0xff]
        %v1757 = vunpack.c.l.b16 %v1739
        %v1758 = vunpack.c.h.b16 %v1739
        %v1759 = vunpack.c.l.b16 %v1740
        %v1760 = vunpack.c.h.b16 %v1740
        %v1761 = vunpack.c.l.b16 %v1741
        %v1762 = vunpack.c.h.b16 %v1741
        %v1763 = vunpack.c.l.b16 %v1742
        %v1764 = vunpack.c.h.b16 %v1742
        %v1765 = vunpack.c.l.b16 %v1743
        %v1766 = vunpack.c.h.b16 %v1743
        %v1767 = vunpack.c.l.b16 %v1744
        %v1768 = vunpack.c.h.b16 %v1744
        %v1769 = vunpack.c.l.b16 %v1745
        %v1770 = vunpack.c.h.b16 %v1745
        %v1771 = vunpack.c.l.b16 %v1746
        %v1772 = vunpack.c.h.b16 %v1746
        %v1773 = vunpack.c.l.b16 %v1747
        %v1774 = vunpack.c.h.b16 %v1747
        %v1775 = vpack.c.b16 %v1759, %v1757
        %v1776 = vpack.c.b16 %v1760, %v1758
        %v1777 = vpack.c.b16 %v1763, %v1761
        %v1778 = vpack.c.b16 %v1764, %v1762
        %v1779 = vpack.c.b16 %v1767, %v1765
        %v1780 = vpack.c.b16 %v1768, %v1766
        %v1781 = vpack.c.b16 %v1771, %v1769
        %v1782 = vpack.c.b16 %v1772, %v1770
        %v1783 = vpack.c.b16 %v1773, %v1773
        %v1784 = vpack.c.b16 %v1774, %v1774
        %v1794 = vsel %vm549, %v1737, 0
        %v1797 = vsel %vm553, %v1783, 0
        %v1800 = vsel %vm553, %v1784, 0
        %1802 = vmatprep.subr.bf16.mxu0 %v1776
        %1803 = vmatpush1.bf16.msra.mxu0 %v1775
        %1804 = vmatprep.subr.bf16.mxu0 %v1778
        %1805 = vmatpush1.bf16.msra.mxu0 %v1777
        %1806 = vmatprep.subr.bf16.mxu0 %v1780
        %1807 = vmatpush1.bf16.msra.mxu0 %v1779
        %1808 = vmatprep.subr.bf16.mxu0 %v1782
        %1809 = vmatpush1.bf16.msra.mxu0 %v1781
        %1810 = vmatprep.subr.bf16.mxu0 %v1800
        %1811 = vmatpush1.bf16.msra.mxu0 %v1797
        %1812 = vmatprep.subr.bf16.mxu0 0
        %1813 = vmatpush1.bf16.msra.mxu0 0
        %1814 = vmatprep.subr.bf16.mxu0 0
        %1815 = vmatpush1.bf16.msra.mxu0 0
        %1816 = vmatprep.subr.bf16.mxu0 0
        %1817 = vmatpush1.bf16.msra.mxu0 0
        %1818 = vmatprep.subr.bf16.mxu0 0
        %1819 = vmatpush1.bf16.msra.mxu0 0
        %1820 = vmatprep.subr.bf16.mxu0 0
        %1821 = vmatpush1.bf16.msra.mxu0 0
        %1822 = vmatprep.subr.bf16.mxu0 0
        %1823 = vmatpush1.bf16.msra.mxu0 0
        %1824 = vmatprep.subr.bf16.mxu0 0
        %1825 = vmatpush1.bf16.msra.mxu0 0
        %1826 = vmatprep.subr.bf16.mxu0 0
        %1827 = vmatpush1.bf16.msra.mxu0 0
        %1828 = vmatprep.subr.bf16.mxu0 0
        %1829 = vmatpush1.bf16.msra.mxu0 0
        %1830 = vmatprep.subr.bf16.mxu0 0
        %1831 = vmatpush1.bf16.msra.mxu0 0
        %1832 = vmatprep.subr.bf16.mxu0 0
        %1833 = vmatpush1.bf16.msra.mxu0 0
        %1834 = vmatprep.mubr.bf16.mxu0 0
        %1835 = vmatmul.mubr.bf16.gmra.mrb[0].mxu0 %v1794
        %v1836 = vpop.f32.mrb[0].mxu0
        %v1837 = vadd.f32 0.0, %v1836
        %v1838 = vpop.f32.mrb[0].mxu0
        %v1839 = vadd.f32 0.0, %v1838
        %v1840 = vpop.f32.mrb[0].mxu0
        %v1841 = vadd.f32 0.0, %v1840
        %v1842 = vpop.f32.mrb[0].mxu0
        %v1843 = vadd.f32 0.0, %v1842
        %1844 = vdwg.mxu0
        %v1845 = vadd.f32 %v1681, %v1837
        %v1846 = vadd.f32 %v1682, %v1839
        %v1847 = vadd.f32 %v1683, %v1841
        %v1848 = vadd.f32 %v1684, %v1843
        %s1849 = scalar_lea.vmem [#allocation5], 64
        %v1850 = vld [vmem:[%s1849] sm:$0xf]
        %v1851 = vld [vmem:[%s1849 + $0x4] sm:$0xf]
        %v1854 = vunpack.c.l.b16 %v1850
        %v1855 = vunpack.c.l.b16 %v1851
        %v1856 = vpack.c.b16 %v1855, %v1854
        %v1858 = vsel %vm549, %v1856, 0
        %1860 = vmatprep.subr.bf16.mxu0 0
        %1861 = vmatpush1.bf16.msra.mxu0 %v537
        %1862 = vmatprep.subr.bf16.mxu0 0
        %1863 = vmatpush1.bf16.msra.mxu0 %v538
        %1864 = vmatprep.subr.bf16.mxu0 0
        %1865 = vmatpush1.bf16.msra.mxu0 %v539
        %1866 = vmatprep.subr.bf16.mxu0 0
        %1867 = vmatpush1.bf16.msra.mxu0 %v540
        %1868 = vmatprep.subr.bf16.mxu0 0
        %1869 = vmatpush1.bf16.msra.mxu0 %v555
        %1870 = vmatprep.subr.bf16.mxu0 0
        %1871 = vmatpush1.bf16.msra.mxu0 0
        %1872 = vmatprep.subr.bf16.mxu0 0
        %1873 = vmatpush1.bf16.msra.mxu0 0
        %1874 = vmatprep.subr.bf16.mxu0 0
        %1875 = vmatpush1.bf16.msra.mxu0 0
        %1876 = vmatprep.subr.bf16.mxu0 0
        %1877 = vmatpush1.bf16.msra.mxu0 0
        %1878 = vmatprep.subr.bf16.mxu0 0
        %1879 = vmatpush1.bf16.msra.mxu0 0
        %1880 = vmatprep.subr.bf16.mxu0 0
        %1881 = vmatpush1.bf16.msra.mxu0 0
        %1882 = vmatprep.subr.bf16.mxu0 0
        %1883 = vmatpush1.bf16.msra.mxu0 0
        %1884 = vmatprep.subr.bf16.mxu0 0
        %1885 = vmatpush1.bf16.msra.mxu0 0
        %1886 = vmatprep.subr.bf16.mxu0 0
        %1887 = vmatpush1.bf16.msra.mxu0 0
        %1888 = vmatprep.subr.bf16.mxu0 0
        %1889 = vmatpush1.bf16.msra.mxu0 0
        %1890 = vmatprep.subr.bf16.mxu0 0
        %1891 = vmatpush1.bf16.msra.mxu0 0
        %1892 = vmatprep.mubr.bf16.mxu0 0
        %1893 = vmatmul.mubr.bf16.gmra.mrb[0].mxu0 %v1858
        %v1894 = vpop.f32.mrb[0].mxu0
        %v1895 = vadd.f32 0.0, %v1894
        %v1896 = vpop.f32.mrb[0].mxu0
        %v1897 = vpop.f32.mrb[0].mxu0
        %v1898 = vadd.f32 0.0, %v1897
        %v1899 = vpop.f32.mrb[0].mxu0
        %1900 = vdwg.mxu0
        %v1901 = vpack.c.bf16 %v1898, %v1895
        %s1902 = scalar_lea.vmem [#allocation7], 576
        %v1903 = vld [vmem:[%s1902] sm:$0xff]
        %v1904 = vld [vmem:[%s1902 + $0x8] sm:$0xff]
        %v1905 = vld [vmem:[%s1902 + $0x10] sm:$0xff]
        %v1906 = vld [vmem:[%s1902 + $0x18] sm:$0xff]
        %v1907 = vld [vmem:[%s1902 + $0x20] sm:$0xff]
        %v1908 = vld [vmem:[%s1902 + $0x28] sm:$0xff]
        %v1909 = vld [vmem:[%s1902 + $0x30] sm:$0xff]
        %v1910 = vld [vmem:[%s1902 + $0x38] sm:$0xff]
        %v1911 = vld [vmem:[%s1902 + $0x40] sm:$0xff]
        %v1921 = vunpack.c.l.b16 %v1903
        %v1922 = vunpack.c.h.b16 %v1903
        %v1923 = vunpack.c.l.b16 %v1904
        %v1924 = vunpack.c.h.b16 %v1904
        %v1925 = vunpack.c.l.b16 %v1905
        %v1926 = vunpack.c.h.b16 %v1905
        %v1927 = vunpack.c.l.b16 %v1906
        %v1928 = vunpack.c.h.b16 %v1906
        %v1929 = vunpack.c.l.b16 %v1907
        %v1930 = vunpack.c.h.b16 %v1907
        %v1931 = vunpack.c.l.b16 %v1908
        %v1932 = vunpack.c.h.b16 %v1908
        %v1933 = vunpack.c.l.b16 %v1909
        %v1934 = vunpack.c.h.b16 %v1909
        %v1935 = vunpack.c.l.b16 %v1910
        %v1936 = vunpack.c.h.b16 %v1910
        %v1937 = vunpack.c.l.b16 %v1911
        %v1938 = vunpack.c.h.b16 %v1911
        %v1939 = vpack.c.b16 %v1923, %v1921
        %v1940 = vpack.c.b16 %v1924, %v1922
        %v1941 = vpack.c.b16 %v1927, %v1925
        %v1942 = vpack.c.b16 %v1928, %v1926
        %v1943 = vpack.c.b16 %v1931, %v1929
        %v1944 = vpack.c.b16 %v1932, %v1930
        %v1945 = vpack.c.b16 %v1935, %v1933
        %v1946 = vpack.c.b16 %v1936, %v1934
        %v1947 = vpack.c.b16 %v1937, %v1937
        %v1948 = vpack.c.b16 %v1938, %v1938
        %v1958 = vsel %vm549, %v1901, 0
        %v1961 = vsel %vm553, %v1947, 0
        %v1964 = vsel %vm553, %v1948, 0
        %1966 = vmatprep.subr.bf16.mxu0 %v1940
        %1967 = vmatpush1.bf16.msra.mxu0 %v1939
        %1968 = vmatprep.subr.bf16.mxu0 %v1942
        %1969 = vmatpush1.bf16.msra.mxu0 %v1941
        %1970 = vmatprep.subr.bf16.mxu0 %v1944
        %1971 = vmatpush1.bf16.msra.mxu0 %v1943
        %1972 = vmatprep.subr.bf16.mxu0 %v1946
        %1973 = vmatpush1.bf16.msra.mxu0 %v1945
        %1974 = vmatprep.subr.bf16.mxu0 %v1964
        %1975 = vmatpush1.bf16.msra.mxu0 %v1961
        %1976 = vmatprep.subr.bf16.mxu0 0
        %1977 = vmatpush1.bf16.msra.mxu0 0
        %1978 = vmatprep.subr.bf16.mxu0 0
        %1979 = vmatpush1.bf16.msra.mxu0 0
        %1980 = vmatprep.subr.bf16.mxu0 0
        %1981 = vmatpush1.bf16.msra.mxu0 0
        %1982 = vmatprep.subr.bf16.mxu0 0
        %1983 = vmatpush1.bf16.msra.mxu0 0
        %1984 = vmatprep.subr.bf16.mxu0 0
        %1985 = vmatpush1.bf16.msra.mxu0 0
        %1986 = vmatprep.subr.bf16.mxu0 0
        %1987 = vmatpush1.bf16.msra.mxu0 0
        %1988 = vmatprep.subr.bf16.mxu0 0
        %1989 = vmatpush1.bf16.msra.mxu0 0
        %1990 = vmatprep.subr.bf16.mxu0 0
        %1991 = vmatpush1.bf16.msra.mxu0 0
        %1992 = vmatprep.subr.bf16.mxu0 0
        %1993 = vmatpush1.bf16.msra.mxu0 0
        %1994 = vmatprep.subr.bf16.mxu0 0
        %1995 = vmatpush1.bf16.msra.mxu0 0
        %1996 = vmatprep.subr.bf16.mxu0 0
        %1997 = vmatpush1.bf16.msra.mxu0 0
        %1998 = vmatprep.mubr.bf16.mxu0 0
        %1999 = vmatmul.mubr.bf16.gmra.mrb[0].mxu0 %v1958
        %v2000 = vpop.f32.mrb[0].mxu0
        %v2001 = vadd.f32 0.0, %v2000
        %v2002 = vpop.f32.mrb[0].mxu0
        %v2003 = vadd.f32 0.0, %v2002
        %v2004 = vpop.f32.mrb[0].mxu0
        %v2005 = vadd.f32 0.0, %v2004
        %v2006 = vpop.f32.mrb[0].mxu0
        %v2007 = vadd.f32 0.0, %v2006
        %2008 = vdwg.mxu0
        %v2009 = vadd.f32 %v1845, %v2001
        %v2010 = vadd.f32 %v1846, %v2003
        %v2011 = vadd.f32 %v1847, %v2005
        %v2012 = vadd.f32 %v1848, %v2007
        %s2013 = scalar_lea.vmem [#allocation5], 72
        %v2014 = vld [vmem:[%s2013] sm:$0xf]
        %v2015 = vld [vmem:[%s2013 + $0x4] sm:$0xf]
        %v2018 = vunpack.c.l.b16 %v2014
        %v2019 = vunpack.c.l.b16 %v2015
        %v2020 = vpack.c.b16 %v2019, %v2018
        %v2022 = vsel %vm549, %v2020, 0
        %2024 = vmatprep.subr.bf16.mxu0 0
        %2025 = vmatpush1.bf16.msra.mxu0 %v537
        %2026 = vmatprep.subr.bf16.mxu0 0
        %2027 = vmatpush1.bf16.msra.mxu0 %v538
        %2028 = vmatprep.subr.bf16.mxu0 0
        %2029 = vmatpush1.bf16.msra.mxu0 %v539
        %2030 = vmatprep.subr.bf16.mxu0 0
        %2031 = vmatpush1.bf16.msra.mxu0 %v540
        %2032 = vmatprep.subr.bf16.mxu0 0
        %2033 = vmatpush1.bf16.msra.mxu0 %v555
        %2034 = vmatprep.subr.bf16.mxu0 0
        %2035 = vmatpush1.bf16.msra.mxu0 0
        %2036 = vmatprep.subr.bf16.mxu0 0
        %2037 = vmatpush1.bf16.msra.mxu0 0
        %2038 = vmatprep.subr.bf16.mxu0 0
        %2039 = vmatpush1.bf16.msra.mxu0 0
        %2040 = vmatprep.subr.bf16.mxu0 0
        %2041 = vmatpush1.bf16.msra.mxu0 0
        %2042 = vmatprep.subr.bf16.mxu0 0
        %2043 = vmatpush1.bf16.msra.mxu0 0
        %2044 = vmatprep.subr.bf16.mxu0 0
        %2045 = vmatpush1.bf16.msra.mxu0 0
        %2046 = vmatprep.subr.bf16.mxu0 0
        %2047 = vmatpush1.bf16.msra.mxu0 0
        %2048 = vmatprep.subr.bf16.mxu0 0
        %2049 = vmatpush1.bf16.msra.mxu0 0
        %2050 = vmatprep.subr.bf16.mxu0 0
        %2051 = vmatpush1.bf16.msra.mxu0 0
        %2052 = vmatprep.subr.bf16.mxu0 0
        %2053 = vmatpush1.bf16.msra.mxu0 0
        %2054 = vmatprep.subr.bf16.mxu0 0
        %2055 = vmatpush1.bf16.msra.mxu0 0
        %2056 = vmatprep.mubr.bf16.mxu0 0
        %2057 = vmatmul.mubr.bf16.gmra.mrb[0].mxu0 %v2022
        %v2058 = vpop.f32.mrb[0].mxu0
        %v2059 = vadd.f32 0.0, %v2058
        %v2060 = vpop.f32.mrb[0].mxu0
        %v2061 = vpop.f32.mrb[0].mxu0
        %v2062 = vadd.f32 0.0, %v2061
        %v2063 = vpop.f32.mrb[0].mxu0
        %2064 = vdwg.mxu0
        %v2065 = vpack.c.bf16 %v2062, %v2059
        %s2066 = scalar_lea.vmem [#allocation7], 648
        %v2067 = vld [vmem:[%s2066] sm:$0xff]
        %v2068 = vld [vmem:[%s2066 + $0x8] sm:$0xff]
        %v2069 = vld [vmem:[%s2066 + $0x10] sm:$0xff]
        %v2070 = vld [vmem:[%s2066 + $0x18] sm:$0xff]
        %v2071 = vld [vmem:[%s2066 + $0x20] sm:$0xff]
        %v2072 = vld [vmem:[%s2066 + $0x28] sm:$0xff]
        %v2073 = vld [vmem:[%s2066 + $0x30] sm:$0xff]
        %v2074 = vld [vmem:[%s2066 + $0x38] sm:$0xff]
        %v2075 = vld [vmem:[%s2066 + $0x40] sm:$0xff]
        %v2085 = vunpack.c.l.b16 %v2067
        %v2086 = vunpack.c.h.b16 %v2067
        %v2087 = vunpack.c.l.b16 %v2068
        %v2088 = vunpack.c.h.b16 %v2068
        %v2089 = vunpack.c.l.b16 %v2069
        %v2090 = vunpack.c.h.b16 %v2069
        %v2091 = vunpack.c.l.b16 %v2070
        %v2092 = vunpack.c.h.b16 %v2070
        %v2093 = vunpack.c.l.b16 %v2071
        %v2094 = vunpack.c.h.b16 %v2071
        %v2095 = vunpack.c.l.b16 %v2072
        %v2096 = vunpack.c.h.b16 %v2072
        %v2097 = vunpack.c.l.b16 %v2073
        %v2098 = vunpack.c.h.b16 %v2073
        %v2099 = vunpack.c.l.b16 %v2074
        %v2100 = vunpack.c.h.b16 %v2074
        %v2101 = vunpack.c.l.b16 %v2075
        %v2102 = vunpack.c.h.b16 %v2075
        %v2103 = vpack.c.b16 %v2087, %v2085
        %v2104 = vpack.c.b16 %v2088, %v2086
        %v2105 = vpack.c.b16 %v2091, %v2089
        %v2106 = vpack.c.b16 %v2092, %v2090
        %v2107 = vpack.c.b16 %v2095, %v2093
        %v2108 = vpack.c.b16 %v2096, %v2094
        %v2109 = vpack.c.b16 %v2099, %v2097
        %v2110 = vpack.c.b16 %v2100, %v2098
        %v2111 = vpack.c.b16 %v2101, %v2101
        %v2112 = vpack.c.b16 %v2102, %v2102
        %v2122 = vsel %vm549, %v2065, 0
        %v2125 = vsel %vm553, %v2111, 0
        %v2128 = vsel %vm553, %v2112, 0
        %2130 = vmatprep.subr.bf16.mxu0 %v2104
        %2131 = vmatpush1.bf16.msra.mxu0 %v2103
        %2132 = vmatprep.subr.bf16.mxu0 %v2106
        %2133 = vmatpush1.bf16.msra.mxu0 %v2105
        %2134 = vmatprep.subr.bf16.mxu0 %v2108
        %2135 = vmatpush1.bf16.msra.mxu0 %v2107
        %2136 = vmatprep.subr.bf16.mxu0 %v2110
        %2137 = vmatpush1.bf16.msra.mxu0 %v2109
        %2138 = vmatprep.subr.bf16.mxu0 %v2128
        %2139 = vmatpush1.bf16.msra.mxu0 %v2125
        %2140 = vmatprep.subr.bf16.mxu0 0
        %2141 = vmatpush1.bf16.msra.mxu0 0
        %2142 = vmatprep.subr.bf16.mxu0 0
        %2143 = vmatpush1.bf16.msra.mxu0 0
        %2144 = vmatprep.subr.bf16.mxu0 0
        %2145 = vmatpush1.bf16.msra.mxu0 0
        %2146 = vmatprep.subr.bf16.mxu0 0
        %2147 = vmatpush1.bf16.msra.mxu0 0
        %2148 = vmatprep.subr.bf16.mxu0 0
        %2149 = vmatpush1.bf16.msra.mxu0 0
        %2150 = vmatprep.subr.bf16.mxu0 0
        %2151 = vmatpush1.bf16.msra.mxu0 0
        %2152 = vmatprep.subr.bf16.mxu0 0
        %2153 = vmatpush1.bf16.msra.mxu0 0
        %2154 = vmatprep.subr.bf16.mxu0 0
        %2155 = vmatpush1.bf16.msra.mxu0 0
        %2156 = vmatprep.subr.bf16.mxu0 0
        %2157 = vmatpush1.bf16.msra.mxu0 0
        %2158 = vmatprep.subr.bf16.mxu0 0
        %2159 = vmatpush1.bf16.msra.mxu0 0
        %2160 = vmatprep.subr.bf16.mxu0 0
        %2161 = vmatpush1.bf16.msra.mxu0 0
        %2162 = vmatprep.mubr.bf16.mxu0 0
        %2163 = vmatmul.mubr.bf16.gmra.mrb[0].mxu0 %v2122
        %v2164 = vpop.f32.mrb[0].mxu0
        %v2165 = vadd.f32 0.0, %v2164
        %v2166 = vpop.f32.mrb[0].mxu0
        %v2167 = vadd.f32 0.0, %v2166
        %v2168 = vpop.f32.mrb[0].mxu0
        %v2169 = vadd.f32 0.0, %v2168
        %v2170 = vpop.f32.mrb[0].mxu0
        %v2171 = vadd.f32 0.0, %v2170
        %2172 = vdwg.mxu0
        %v2173 = vadd.f32 %v2009, %v2165
        %v2174 = vadd.f32 %v2010, %v2167
        %v2175 = vadd.f32 %v2011, %v2169
        %v2176 = vadd.f32 %v2012, %v2171
        %s2177 = scalar_lea.vmem [#allocation5], 80
        %v2178 = vld [vmem:[%s2177] sm:$0xf]
        %v2179 = vld [vmem:[%s2177 + $0x4] sm:$0xf]
        %v2182 = vunpack.c.l.b16 %v2178
        %v2183 = vunpack.c.l.b16 %v2179
        %v2184 = vpack.c.b16 %v2183, %v2182
        %v2186 = vsel %vm549, %v2184, 0
        %2188 = vmatprep.subr.bf16.mxu0 0
        %2189 = vmatpush1.bf16.msra.mxu0 %v537
        %2190 = vmatprep.subr.bf16.mxu0 0
        %2191 = vmatpush1.bf16.msra.mxu0 %v538
        %2192 = vmatprep.subr.bf16.mxu0 0
        %2193 = vmatpush1.bf16.msra.mxu0 %v539
        %2194 = vmatprep.subr.bf16.mxu0 0
        %2195 = vmatpush1.bf16.msra.mxu0 %v540
        %2196 = vmatprep.subr.bf16.mxu0 0
        %2197 = vmatpush1.bf16.msra.mxu0 %v555
        %2198 = vmatprep.subr.bf16.mxu0 0
        %2199 = vmatpush1.bf16.msra.mxu0 0
        %2200 = vmatprep.subr.bf16.mxu0 0
        %2201 = vmatpush1.bf16.msra.mxu0 0
        %2202 = vmatprep.subr.bf16.mxu0 0
        %2203 = vmatpush1.bf16.msra.mxu0 0
        %2204 = vmatprep.subr.bf16.mxu0 0
        %2205 = vmatpush1.bf16.msra.mxu0 0
        %2206 = vmatprep.subr.bf16.mxu0 0
        %2207 = vmatpush1.bf16.msra.mxu0 0
        %2208 = vmatprep.subr.bf16.mxu0 0
        %2209 = vmatpush1.bf16.msra.mxu0 0
        %2210 = vmatprep.subr.bf16.mxu0 0
        %2211 = vmatpush1.bf16.msra.mxu0 0
        %2212 = vmatprep.subr.bf16.mxu0 0
        %2213 = vmatpush1.bf16.msra.mxu0 0
        %2214 = vmatprep.subr.bf16.mxu0 0
        %2215 = vmatpush1.bf16.msra.mxu0 0
        %2216 = vmatprep.subr.bf16.mxu0 0
        %2217 = vmatpush1.bf16.msra.mxu0 0
        %2218 = vmatprep.subr.bf16.mxu0 0
        %2219 = vmatpush1.bf16.msra.mxu0 0
        %2220 = vmatprep.mubr.bf16.mxu0 0
        %2221 = vmatmul.mubr.bf16.gmra.mrb[0].mxu0 %v2186
        %v2222 = vpop.f32.mrb[0].mxu0
        %v2223 = vadd.f32 0.0, %v2222
        %v2224 = vpop.f32.mrb[0].mxu0
        %v2225 = vpop.f32.mrb[0].mxu0
        %v2226 = vadd.f32 0.0, %v2225
        %v2227 = vpop.f32.mrb[0].mxu0
        %2228 = vdwg.mxu0
        %v2229 = vpack.c.bf16 %v2226, %v2223
        %s2230 = scalar_lea.vmem [#allocation7], 720
        %v2231 = vld [vmem:[%s2230] sm:$0xff]
        %v2232 = vld [vmem:[%s2230 + $0x8] sm:$0xff]
        %v2233 = vld [vmem:[%s2230 + $0x10] sm:$0xff]
        %v2234 = vld [vmem:[%s2230 + $0x18] sm:$0xff]
        %v2235 = vld [vmem:[%s2230 + $0x20] sm:$0xff]
        %v2236 = vld [vmem:[%s2230 + $0x28] sm:$0xff]
        %v2237 = vld [vmem:[%s2230 + $0x30] sm:$0xff]
        %v2238 = vld [vmem:[%s2230 + $0x38] sm:$0xff]
        %v2239 = vld [vmem:[%s2230 + $0x40] sm:$0xff]
        %v2249 = vunpack.c.l.b16 %v2231
        %v2250 = vunpack.c.h.b16 %v2231
        %v2251 = vunpack.c.l.b16 %v2232
        %v2252 = vunpack.c.h.b16 %v2232
        %v2253 = vunpack.c.l.b16 %v2233
        %v2254 = vunpack.c.h.b16 %v2233
        %v2255 = vunpack.c.l.b16 %v2234
        %v2256 = vunpack.c.h.b16 %v2234
        %v2257 = vunpack.c.l.b16 %v2235
        %v2258 = vunpack.c.h.b16 %v2235
        %v2259 = vunpack.c.l.b16 %v2236
        %v2260 = vunpack.c.h.b16 %v2236
        %v2261 = vunpack.c.l.b16 %v2237
        %v2262 = vunpack.c.h.b16 %v2237
        %v2263 = vunpack.c.l.b16 %v2238
        %v2264 = vunpack.c.h.b16 %v2238
        %v2265 = vunpack.c.l.b16 %v2239
        %v2266 = vunpack.c.h.b16 %v2239
        %v2267 = vpack.c.b16 %v2251, %v2249
        %v2268 = vpack.c.b16 %v2252, %v2250
        %v2269 = vpack.c.b16 %v2255, %v2253
        %v2270 = vpack.c.b16 %v2256, %v2254
        %v2271 = vpack.c.b16 %v2259, %v2257
        %v2272 = vpack.c.b16 %v2260, %v2258
        %v2273 = vpack.c.b16 %v2263, %v2261
        %v2274 = vpack.c.b16 %v2264, %v2262
        %v2275 = vpack.c.b16 %v2265, %v2265
        %v2276 = vpack.c.b16 %v2266, %v2266
        %v2286 = vsel %vm549, %v2229, 0
        %v2289 = vsel %vm553, %v2275, 0
        %v2292 = vsel %vm553, %v2276, 0
        %2294 = vmatprep.subr.bf16.mxu0 %v2268
        %2295 = vmatpush1.bf16.msra.mxu0 %v2267
        %2296 = vmatprep.subr.bf16.mxu0 %v2270
        %2297 = vmatpush1.bf16.msra.mxu0 %v2269
        %2298 = vmatprep.subr.bf16.mxu0 %v2272
        %2299 = vmatpush1.bf16.msra.mxu0 %v2271
        %2300 = vmatprep.subr.bf16.mxu0 %v2274
        %2301 = vmatpush1.bf16.msra.mxu0 %v2273
        %2302 = vmatprep.subr.bf16.mxu0 %v2292
        %2303 = vmatpush1.bf16.msra.mxu0 %v2289
        %2304 = vmatprep.subr.bf16.mxu0 0
        %2305 = vmatpush1.bf16.msra.mxu0 0
        %2306 = vmatprep.subr.bf16.mxu0 0
        %2307 = vmatpush1.bf16.msra.mxu0 0
        %2308 = vmatprep.subr.bf16.mxu0 0
        %2309 = vmatpush1.bf16.msra.mxu0 0
        %2310 = vmatprep.subr.bf16.mxu0 0
        %2311 = vmatpush1.bf16.msra.mxu0 0
        %2312 = vmatprep.subr.bf16.mxu0 0
        %2313 = vmatpush1.bf16.msra.mxu0 0
        %2314 = vmatprep.subr.bf16.mxu0 0
        %2315 = vmatpush1.bf16.msra.mxu0 0
        %2316 = vmatprep.subr.bf16.mxu0 0
        %2317 = vmatpush1.bf16.msra.mxu0 0
        %2318 = vmatprep.subr.bf16.mxu0 0
        %2319 = vmatpush1.bf16.msra.mxu0 0
        %2320 = vmatprep.subr.bf16.mxu0 0
        %2321 = vmatpush1.bf16.msra.mxu0 0
        %2322 = vmatprep.subr.bf16.mxu0 0
        %2323 = vmatpush1.bf16.msra.mxu0 0
        %2324 = vmatprep.subr.bf16.mxu0 0
        %2325 = vmatpush1.bf16.msra.mxu0 0
        %2326 = vmatprep.mubr.bf16.mxu0 0
        %2327 = vmatmul.mubr.bf16.gmra.mrb[0].mxu0 %v2286
        %v2328 = vpop.f32.mrb[0].mxu0
        %v2329 = vadd.f32 0.0, %v2328
        %v2330 = vpop.f32.mrb[0].mxu0
        %v2331 = vadd.f32 0.0, %v2330
        %v2332 = vpop.f32.mrb[0].mxu0
        %v2333 = vadd.f32 0.0, %v2332
        %v2334 = vpop.f32.mrb[0].mxu0
        %v2335 = vadd.f32 0.0, %v2334
        %2336 = vdwg.mxu0
        %v2337 = vadd.f32 %v2173, %v2329
        %v2338 = vadd.f32 %v2174, %v2331
        %v2339 = vadd.f32 %v2175, %v2333
        %v2340 = vadd.f32 %v2176, %v2335
        %s2341 = scalar_lea.vmem [#allocation5], 88
        %v2342 = vld [vmem:[%s2341] sm:$0xf]
        %v2343 = vld [vmem:[%s2341 + $0x4] sm:$0xf]
        %v2346 = vunpack.c.l.b16 %v2342
        %v2347 = vunpack.c.l.b16 %v2343
        %v2348 = vpack.c.b16 %v2347, %v2346
        %v2350 = vsel %vm549, %v2348, 0
        %2352 = vmatprep.subr.bf16.mxu0 0
        %2353 = vmatpush1.bf16.msra.mxu0 %v537
        %2354 = vmatprep.subr.bf16.mxu0 0
        %2355 = vmatpush1.bf16.msra.mxu0 %v538
        %2356 = vmatprep.subr.bf16.mxu0 0
        %2357 = vmatpush1.bf16.msra.mxu0 %v539
        %2358 = vmatprep.subr.bf16.mxu0 0
        %2359 = vmatpush1.bf16.msra.mxu0 %v540
        %2360 = vmatprep.subr.bf16.mxu0 0
        %2361 = vmatpush1.bf16.msra.mxu0 %v555
        %2362 = vmatprep.subr.bf16.mxu0 0
        %2363 = vmatpush1.bf16.msra.mxu0 0
        %2364 = vmatprep.subr.bf16.mxu0 0
        %2365 = vmatpush1.bf16.msra.mxu0 0
        %2366 = vmatprep.subr.bf16.mxu0 0
        %2367 = vmatpush1.bf16.msra.mxu0 0
        %2368 = vmatprep.subr.bf16.mxu0 0
        %2369 = vmatpush1.bf16.msra.mxu0 0
        %2370 = vmatprep.subr.bf16.mxu0 0
        %2371 = vmatpush1.bf16.msra.mxu0 0
        %2372 = vmatprep.subr.bf16.mxu0 0
        %2373 = vmatpush1.bf16.msra.mxu0 0
        %2374 = vmatprep.subr.bf16.mxu0 0
        %2375 = vmatpush1.bf16.msra.mxu0 0
        %2376 = vmatprep.subr.bf16.mxu0 0
        %2377 = vmatpush1.bf16.msra.mxu0 0
        %2378 = vmatprep.subr.bf16.mxu0 0
        %2379 = vmatpush1.bf16.msra.mxu0 0
        %2380 = vmatprep.subr.bf16.mxu0 0
        %2381 = vmatpush1.bf16.msra.mxu0 0
        %2382 = vmatprep.subr.bf16.mxu0 0
        %2383 = vmatpush1.bf16.msra.mxu0 0
        %2384 = vmatprep.mubr.bf16.mxu0 0
        %2385 = vmatmul.mubr.bf16.gmra.mrb[0].mxu0 %v2350
        %v2386 = vpop.f32.mrb[0].mxu0
        %v2387 = vadd.f32 0.0, %v2386
        %v2388 = vpop.f32.mrb[0].mxu0
        %v2389 = vpop.f32.mrb[0].mxu0
        %v2390 = vadd.f32 0.0, %v2389
        %v2391 = vpop.f32.mrb[0].mxu0
        %2392 = vdwg.mxu0
        %v2393 = vpack.c.bf16 %v2390, %v2387
        %s2394 = scalar_lea.vmem [#allocation7], 792
        %v2395 = vld [vmem:[%s2394] sm:$0xff]
        %v2396 = vld [vmem:[%s2394 + $0x8] sm:$0xff]
        %v2397 = vld [vmem:[%s2394 + $0x10] sm:$0xff]
        %v2398 = vld [vmem:[%s2394 + $0x18] sm:$0xff]
        %v2399 = vld [vmem:[%s2394 + $0x20] sm:$0xff]
        %v2400 = vld [vmem:[%s2394 + $0x28] sm:$0xff]
        %v2401 = vld [vmem:[%s2394 + $0x30] sm:$0xff]
        %v2402 = vld [vmem:[%s2394 + $0x38] sm:$0xff]
        %v2403 = vld [vmem:[%s2394 + $0x40] sm:$0xff]
        %v2413 = vunpack.c.l.b16 %v2395
        %v2414 = vunpack.c.h.b16 %v2395
        %v2415 = vunpack.c.l.b16 %v2396
        %v2416 = vunpack.c.h.b16 %v2396
        %v2417 = vunpack.c.l.b16 %v2397
        %v2418 = vunpack.c.h.b16 %v2397
        %v2419 = vunpack.c.l.b16 %v2398
        %v2420 = vunpack.c.h.b16 %v2398
        %v2421 = vunpack.c.l.b16 %v2399
        %v2422 = vunpack.c.h.b16 %v2399
        %v2423 = vunpack.c.l.b16 %v2400
        %v2424 = vunpack.c.h.b16 %v2400
        %v2425 = vunpack.c.l.b16 %v2401
        %v2426 = vunpack.c.h.b16 %v2401
        %v2427 = vunpack.c.l.b16 %v2402
        %v2428 = vunpack.c.h.b16 %v2402
        %v2429 = vunpack.c.l.b16 %v2403
        %v2430 = vunpack.c.h.b16 %v2403
        %v2431 = vpack.c.b16 %v2415, %v2413
        %v2432 = vpack.c.b16 %v2416, %v2414
        %v2433 = vpack.c.b16 %v2419, %v2417
        %v2434 = vpack.c.b16 %v2420, %v2418
        %v2435 = vpack.c.b16 %v2423, %v2421
        %v2436 = vpack.c.b16 %v2424, %v2422
        %v2437 = vpack.c.b16 %v2427, %v2425
        %v2438 = vpack.c.b16 %v2428, %v2426
        %v2439 = vpack.c.b16 %v2429, %v2429
        %v2440 = vpack.c.b16 %v2430, %v2430
        %v2450 = vsel %vm549, %v2393, 0
        %v2453 = vsel %vm553, %v2439, 0
        %v2456 = vsel %vm553, %v2440, 0
        %2458 = vmatprep.subr.bf16.mxu0 %v2432
        %2459 = vmatpush1.bf16.msra.mxu0 %v2431
        %2460 = vmatprep.subr.bf16.mxu0 %v2434
        %2461 = vmatpush1.bf16.msra.mxu0 %v2433
        %2462 = vmatprep.subr.bf16.mxu0 %v2436
        %2463 = vmatpush1.bf16.msra.mxu0 %v2435
        %2464 = vmatprep.subr.bf16.mxu0 %v2438
        %2465 = vmatpush1.bf16.msra.mxu0 %v2437
        %2466 = vmatprep.subr.bf16.mxu0 %v2456
        %2467 = vmatpush1.bf16.msra.mxu0 %v2453
        %2468 = vmatprep.subr.bf16.mxu0 0
        %2469 = vmatpush1.bf16.msra.mxu0 0
        %2470 = vmatprep.subr.bf16.mxu0 0
        %2471 = vmatpush1.bf16.msra.mxu0 0
        %2472 = vmatprep.subr.bf16.mxu0 0
        %2473 = vmatpush1.bf16.msra.mxu0 0
        %2474 = vmatprep.subr.bf16.mxu0 0
        %2475 = vmatpush1.bf16.msra.mxu0 0
        %2476 = vmatprep.subr.bf16.mxu0 0
        %2477 = vmatpush1.bf16.msra.mxu0 0
        %2478 = vmatprep.subr.bf16.mxu0 0
        %2479 = vmatpush1.bf16.msra.mxu0 0
        %2480 = vmatprep.subr.bf16.mxu0 0
        %2481 = vmatpush1.bf16.msra.mxu0 0
        %2482 = vmatprep.subr.bf16.mxu0 0
        %2483 = vmatpush1.bf16.msra.mxu0 0
        %2484 = vmatprep.subr.bf16.mxu0 0
        %2485 = vmatpush1.bf16.msra.mxu0 0
        %2486 = vmatprep.subr.bf16.mxu0 0
        %2487 = vmatpush1.bf16.msra.mxu0 0
        %2488 = vmatprep.subr.bf16.mxu0 0
        %2489 = vmatpush1.bf16.msra.mxu0 0
        %2490 = vmatprep.mubr.bf16.mxu0 0
        %2491 = vmatmul.mubr.bf16.gmra.mrb[0].mxu0 %v2450
        %v2492 = vpop.f32.mrb[0].mxu0
        %v2493 = vadd.f32 0.0, %v2492
        %v2494 = vpop.f32.mrb[0].mxu0
        %v2495 = vadd.f32 0.0, %v2494
        %v2496 = vpop.f32.mrb[0].mxu0
        %v2497 = vadd.f32 0.0, %v2496
        %v2498 = vpop.f32.mrb[0].mxu0
        %v2499 = vadd.f32 0.0, %v2498
        %2500 = vdwg.mxu0
        %v2501 = vadd.f32 %v2337, %v2493
        %v2502 = vadd.f32 %v2338, %v2495
        %v2503 = vadd.f32 %v2339, %v2497
        %v2504 = vadd.f32 %v2340, %v2499
        %s2505 = scalar_lea.vmem [#allocation5], 96
        %v2506 = vld [vmem:[%s2505] sm:$0xf]
        %v2507 = vld [vmem:[%s2505 + $0x4] sm:$0xf]
        %v2510 = vunpack.c.l.b16 %v2506
        %v2511 = vunpack.c.l.b16 %v2507
        %v2512 = vpack.c.b16 %v2511, %v2510
        %v2514 = vsel %vm549, %v2512, 0
        %2516 = vmatprep.subr.bf16.mxu0 0
        %2517 = vmatpush1.bf16.msra.mxu0 %v537
        %2518 = vmatprep.subr.bf16.mxu0 0
        %2519 = vmatpush1.bf16.msra.mxu0 %v538
        %2520 = vmatprep.subr.bf16.mxu0 0
        %2521 = vmatpush1.bf16.msra.mxu0 %v539
        %2522 = vmatprep.subr.bf16.mxu0 0
        %2523 = vmatpush1.bf16.msra.mxu0 %v540
        %2524 = vmatprep.subr.bf16.mxu0 0
        %2525 = vmatpush1.bf16.msra.mxu0 %v555
        %2526 = vmatprep.subr.bf16.mxu0 0
        %2527 = vmatpush1.bf16.msra.mxu0 0
        %2528 = vmatprep.subr.bf16.mxu0 0
        %2529 = vmatpush1.bf16.msra.mxu0 0
        %2530 = vmatprep.subr.bf16.mxu0 0
        %2531 = vmatpush1.bf16.msra.mxu0 0
        %2532 = vmatprep.subr.bf16.mxu0 0
        %2533 = vmatpush1.bf16.msra.mxu0 0
        %2534 = vmatprep.subr.bf16.mxu0 0
        %2535 = vmatpush1.bf16.msra.mxu0 0
        %2536 = vmatprep.subr.bf16.mxu0 0
        %2537 = vmatpush1.bf16.msra.mxu0 0
        %2538 = vmatprep.subr.bf16.mxu0 0
        %2539 = vmatpush1.bf16.msra.mxu0 0
        %2540 = vmatprep.subr.bf16.mxu0 0
        %2541 = vmatpush1.bf16.msra.mxu0 0
        %2542 = vmatprep.subr.bf16.mxu0 0
        %2543 = vmatpush1.bf16.msra.mxu0 0
        %2544 = vmatprep.subr.bf16.mxu0 0
        %2545 = vmatpush1.bf16.msra.mxu0 0
        %2546 = vmatprep.subr.bf16.mxu0 0
        %2547 = vmatpush1.bf16.msra.mxu0 0
        %2548 = vmatprep.mubr.bf16.mxu0 0
        %2549 = vmatmul.mubr.bf16.gmra.mrb[0].mxu0 %v2514
        %v2550 = vpop.f32.mrb[0].mxu0
        %v2551 = vadd.f32 0.0, %v2550
        %v2552 = vpop.f32.mrb[0].mxu0
        %v2553 = vpop.f32.mrb[0].mxu0
        %v2554 = vadd.f32 0.0, %v2553
        %v2555 = vpop.f32.mrb[0].mxu0
        %2556 = vdwg.mxu0
        %v2557 = vpack.c.bf16 %v2554, %v2551
        %s2558 = scalar_lea.vmem [#allocation7], 864
        %v2559 = vld [vmem:[%s2558] sm:$0xff]
        %v2560 = vld [vmem:[%s2558 + $0x8] sm:$0xff]
        %v2561 = vld [vmem:[%s2558 + $0x10] sm:$0xff]
        %v2562 = vld [vmem:[%s2558 + $0x18] sm:$0xff]
        %v2563 = vld [vmem:[%s2558 + $0x20] sm:$0xff]
        %v2564 = vld [vmem:[%s2558 + $0x28] sm:$0xff]
        %v2565 = vld [vmem:[%s2558 + $0x30] sm:$0xff]
        %v2566 = vld [vmem:[%s2558 + $0x38] sm:$0xff]
        %v2567 = vld [vmem:[%s2558 + $0x40] sm:$0xff]
        %v2577 = vunpack.c.l.b16 %v2559
        %v2578 = vunpack.c.h.b16 %v2559
        %v2579 = vunpack.c.l.b16 %v2560
        %v2580 = vunpack.c.h.b16 %v2560
        %v2581 = vunpack.c.l.b16 %v2561
        %v2582 = vunpack.c.h.b16 %v2561
        %v2583 = vunpack.c.l.b16 %v2562
        %v2584 = vunpack.c.h.b16 %v2562
        %v2585 = vunpack.c.l.b16 %v2563
        %v2586 = vunpack.c.h.b16 %v2563
        %v2587 = vunpack.c.l.b16 %v2564
        %v2588 = vunpack.c.h.b16 %v2564
        %v2589 = vunpack.c.l.b16 %v2565
        %v2590 = vunpack.c.h.b16 %v2565
        %v2591 = vunpack.c.l.b16 %v2566
        %v2592 = vunpack.c.h.b16 %v2566
        %v2593 = vunpack.c.l.b16 %v2567
        %v2594 = vunpack.c.h.b16 %v2567
        %v2595 = vpack.c.b16 %v2579, %v2577
        %v2596 = vpack.c.b16 %v2580, %v2578
        %v2597 = vpack.c.b16 %v2583, %v2581
        %v2598 = vpack.c.b16 %v2584, %v2582
        %v2599 = vpack.c.b16 %v2587, %v2585
        %v2600 = vpack.c.b16 %v2588, %v2586
        %v2601 = vpack.c.b16 %v2591, %v2589
        %v2602 = vpack.c.b16 %v2592, %v2590
        %v2603 = vpack.c.b16 %v2593, %v2593
        %v2604 = vpack.c.b16 %v2594, %v2594
        %v2614 = vsel %vm549, %v2557, 0
        %v2617 = vsel %vm553, %v2603, 0
        %v2620 = vsel %vm553, %v2604, 0
        %2622 = vmatprep.subr.bf16.mxu0 %v2596
        %2623 = vmatpush1.bf16.msra.mxu0 %v2595
        %2624 = vmatprep.subr.bf16.mxu0 %v2598
        %2625 = vmatpush1.bf16.msra.mxu0 %v2597
        %2626 = vmatprep.subr.bf16.mxu0 %v2600
        %2627 = vmatpush1.bf16.msra.mxu0 %v2599
        %2628 = vmatprep.subr.bf16.mxu0 %v2602
        %2629 = vmatpush1.bf16.msra.mxu0 %v2601
        %2630 = vmatprep.subr.bf16.mxu0 %v2620
        %2631 = vmatpush1.bf16.msra.mxu0 %v2617
        %2632 = vmatprep.subr.bf16.mxu0 0
        %2633 = vmatpush1.bf16.msra.mxu0 0
        %2634 = vmatprep.subr.bf16.mxu0 0
        %2635 = vmatpush1.bf16.msra.mxu0 0
        %2636 = vmatprep.subr.bf16.mxu0 0
        %2637 = vmatpush1.bf16.msra.mxu0 0
        %2638 = vmatprep.subr.bf16.mxu0 0
        %2639 = vmatpush1.bf16.msra.mxu0 0
        %2640 = vmatprep.subr.bf16.mxu0 0
        %2641 = vmatpush1.bf16.msra.mxu0 0
        %2642 = vmatprep.subr.bf16.mxu0 0
        %2643 = vmatpush1.bf16.msra.mxu0 0
        %2644 = vmatprep.subr.bf16.mxu0 0
        %2645 = vmatpush1.bf16.msra.mxu0 0
        %2646 = vmatprep.subr.bf16.mxu0 0
        %2647 = vmatpush1.bf16.msra.mxu0 0
        %2648 = vmatprep.subr.bf16.mxu0 0
        %2649 = vmatpush1.bf16.msra.mxu0 0
        %2650 = vmatprep.subr.bf16.mxu0 0
        %2651 = vmatpush1.bf16.msra.mxu0 0
        %2652 = vmatprep.subr.bf16.mxu0 0
        %2653 = vmatpush1.bf16.msra.mxu0 0
        %2654 = vmatprep.mubr.bf16.mxu0 0
        %2655 = vmatmul.mubr.bf16.gmra.mrb[0].mxu0 %v2614
        %v2656 = vpop.f32.mrb[0].mxu0
        %v2657 = vadd.f32 0.0, %v2656
        %v2658 = vpop.f32.mrb[0].mxu0
        %v2659 = vadd.f32 0.0, %v2658
        %v2660 = vpop.f32.mrb[0].mxu0
        %v2661 = vadd.f32 0.0, %v2660
        %v2662 = vpop.f32.mrb[0].mxu0
        %v2663 = vadd.f32 0.0, %v2662
        %2664 = vdwg.mxu0
        %v2665 = vadd.f32 %v2501, %v2657
        %v2666 = vadd.f32 %v2502, %v2659
        %v2667 = vadd.f32 %v2503, %v2661
        %v2668 = vadd.f32 %v2504, %v2663
        %s2669 = scalar_lea.vmem [#allocation5], 104
        %v2670 = vld [vmem:[%s2669] sm:$0xf]
        %v2671 = vld [vmem:[%s2669 + $0x4] sm:$0xf]
        %v2674 = vunpack.c.l.b16 %v2670
        %v2675 = vunpack.c.l.b16 %v2671
        %v2676 = vpack.c.b16 %v2675, %v2674
        %v2678 = vsel %vm549, %v2676, 0
        %2680 = vmatprep.subr.bf16.mxu0 0
        %2681 = vmatpush1.bf16.msra.mxu0 %v537
        %2682 = vmatprep.subr.bf16.mxu0 0
        %2683 = vmatpush1.bf16.msra.mxu0 %v538
        %2684 = vmatprep.subr.bf16.mxu0 0
        %2685 = vmatpush1.bf16.msra.mxu0 %v539
        %2686 = vmatprep.subr.bf16.mxu0 0
        %2687 = vmatpush1.bf16.msra.mxu0 %v540
        %2688 = vmatprep.subr.bf16.mxu0 0
        %2689 = vmatpush1.bf16.msra.mxu0 %v555
        %2690 = vmatprep.subr.bf16.mxu0 0
        %2691 = vmatpush1.bf16.msra.mxu0 0
        %2692 = vmatprep.subr.bf16.mxu0 0
        %2693 = vmatpush1.bf16.msra.mxu0 0
        %2694 = vmatprep.subr.bf16.mxu0 0
        %2695 = vmatpush1.bf16.msra.mxu0 0
        %2696 = vmatprep.subr.bf16.mxu0 0
        %2697 = vmatpush1.bf16.msra.mxu0 0
        %2698 = vmatprep.subr.bf16.mxu0 0
        %2699 = vmatpush1.bf16.msra.mxu0 0
        %2700 = vmatprep.subr.bf16.mxu0 0
        %2701 = vmatpush1.bf16.msra.mxu0 0
        %2702 = vmatprep.subr.bf16.mxu0 0
        %2703 = vmatpush1.bf16.msra.mxu0 0
        %2704 = vmatprep.subr.bf16.mxu0 0
        %2705 = vmatpush1.bf16.msra.mxu0 0
        %2706 = vmatprep.subr.bf16.mxu0 0
        %2707 = vmatpush1.bf16.msra.mxu0 0
        %2708 = vmatprep.subr.bf16.mxu0 0
        %2709 = vmatpush1.bf16.msra.mxu0 0
        %2710 = vmatprep.subr.bf16.mxu0 0
        %2711 = vmatpush1.bf16.msra.mxu0 0
        %2712 = vmatprep.mubr.bf16.mxu0 0
        %2713 = vmatmul.mubr.bf16.gmra.mrb[0].mxu0 %v2678
        %v2714 = vpop.f32.mrb[0].mxu0
        %v2715 = vadd.f32 0.0, %v2714
        %v2716 = vpop.f32.mrb[0].mxu0
        %v2717 = vpop.f32.mrb[0].mxu0
        %v2718 = vadd.f32 0.0, %v2717
        %v2719 = vpop.f32.mrb[0].mxu0
        %2720 = vdwg.mxu0
        %v2721 = vpack.c.bf16 %v2718, %v2715
        %s2722 = scalar_lea.vmem [#allocation7], 936
        %v2723 = vld [vmem:[%s2722] sm:$0xff]
        %v2724 = vld [vmem:[%s2722 + $0x8] sm:$0xff]
        %v2725 = vld [vmem:[%s2722 + $0x10] sm:$0xff]
        %v2726 = vld [vmem:[%s2722 + $0x18] sm:$0xff]
        %v2727 = vld [vmem:[%s2722 + $0x20] sm:$0xff]
        %v2728 = vld [vmem:[%s2722 + $0x28] sm:$0xff]
        %v2729 = vld [vmem:[%s2722 + $0x30] sm:$0xff]
        %v2730 = vld [vmem:[%s2722 + $0x38] sm:$0xff]
        %v2731 = vld [vmem:[%s2722 + $0x40] sm:$0xff]
        %v2741 = vunpack.c.l.b16 %v2723
        %v2742 = vunpack.c.h.b16 %v2723
        %v2743 = vunpack.c.l.b16 %v2724
        %v2744 = vunpack.c.h.b16 %v2724
        %v2745 = vunpack.c.l.b16 %v2725
        %v2746 = vunpack.c.h.b16 %v2725
        %v2747 = vunpack.c.l.b16 %v2726
        %v2748 = vunpack.c.h.b16 %v2726
        %v2749 = vunpack.c.l.b16 %v2727
        %v2750 = vunpack.c.h.b16 %v2727
        %v2751 = vunpack.c.l.b16 %v2728
        %v2752 = vunpack.c.h.b16 %v2728
        %v2753 = vunpack.c.l.b16 %v2729
        %v2754 = vunpack.c.h.b16 %v2729
        %v2755 = vunpack.c.l.b16 %v2730
        %v2756 = vunpack.c.h.b16 %v2730
        %v2757 = vunpack.c.l.b16 %v2731
        %v2758 = vunpack.c.h.b16 %v2731
        %v2759 = vpack.c.b16 %v2743, %v2741
        %v2760 = vpack.c.b16 %v2744, %v2742
        %v2761 = vpack.c.b16 %v2747, %v2745
        %v2762 = vpack.c.b16 %v2748, %v2746
        %v2763 = vpack.c.b16 %v2751, %v2749
        %v2764 = vpack.c.b16 %v2752, %v2750
        %v2765 = vpack.c.b16 %v2755, %v2753
        %v2766 = vpack.c.b16 %v2756, %v2754
        %v2767 = vpack.c.b16 %v2757, %v2757
        %v2768 = vpack.c.b16 %v2758, %v2758
        %v2778 = vsel %vm549, %v2721, 0
        %v2781 = vsel %vm553, %v2767, 0
        %v2784 = vsel %vm553, %v2768, 0
        %2786 = vmatprep.subr.bf16.mxu0 %v2760
        %2787 = vmatpush1.bf16.msra.mxu0 %v2759
        %2788 = vmatprep.subr.bf16.mxu0 %v2762
        %2789 = vmatpush1.bf16.msra.mxu0 %v2761
        %2790 = vmatprep.subr.bf16.mxu0 %v2764
        %2791 = vmatpush1.bf16.msra.mxu0 %v2763
        %2792 = vmatprep.subr.bf16.mxu0 %v2766
        %2793 = vmatpush1.bf16.msra.mxu0 %v2765
        %2794 = vmatprep.subr.bf16.mxu0 %v2784
        %2795 = vmatpush1.bf16.msra.mxu0 %v2781
        %2796 = vmatprep.subr.bf16.mxu0 0
        %2797 = vmatpush1.bf16.msra.mxu0 0
        %2798 = vmatprep.subr.bf16.mxu0 0
        %2799 = vmatpush1.bf16.msra.mxu0 0
        %2800 = vmatprep.subr.bf16.mxu0 0
        %2801 = vmatpush1.bf16.msra.mxu0 0
        %2802 = vmatprep.subr.bf16.mxu0 0
        %2803 = vmatpush1.bf16.msra.mxu0 0
        %2804 = vmatprep.subr.bf16.mxu0 0
        %2805 = vmatpush1.bf16.msra.mxu0 0
        %2806 = vmatprep.subr.bf16.mxu0 0
        %2807 = vmatpush1.bf16.msra.mxu0 0
        %2808 = vmatprep.subr.bf16.mxu0 0
        %2809 = vmatpush1.bf16.msra.mxu0 0
        %2810 = vmatprep.subr.bf16.mxu0 0
        %2811 = vmatpush1.bf16.msra.mxu0 0
        %2812 = vmatprep.subr.bf16.mxu0 0
        %2813 = vmatpush1.bf16.msra.mxu0 0
        %2814 = vmatprep.subr.bf16.mxu0 0
        %2815 = vmatpush1.bf16.msra.mxu0 0
        %2816 = vmatprep.subr.bf16.mxu0 0
        %2817 = vmatpush1.bf16.msra.mxu0 0
        %2818 = vmatprep.mubr.bf16.mxu0 0
        %2819 = vmatmul.mubr.bf16.gmra.mrb[0].mxu0 %v2778
        %v2820 = vpop.f32.mrb[0].mxu0
        %v2821 = vadd.f32 0.0, %v2820
        %v2822 = vpop.f32.mrb[0].mxu0
        %v2823 = vadd.f32 0.0, %v2822
        %v2824 = vpop.f32.mrb[0].mxu0
        %v2825 = vadd.f32 0.0, %v2824
        %v2826 = vpop.f32.mrb[0].mxu0
        %v2827 = vadd.f32 0.0, %v2826
        %2828 = vdwg.mxu0
        %v2829 = vadd.f32 %v2665, %v2821
        %v2830 = vadd.f32 %v2666, %v2823
        %v2831 = vadd.f32 %v2667, %v2825
        %v2832 = vadd.f32 %v2668, %v2827
        %s2833 = scalar_lea.vmem [#allocation5], 112
        %v2834 = vld [vmem:[%s2833] sm:$0xf]
        %v2835 = vld [vmem:[%s2833 + $0x4] sm:$0xf]
        %v2838 = vunpack.c.l.b16 %v2834
        %v2839 = vunpack.c.l.b16 %v2835
        %v2840 = vpack.c.b16 %v2839, %v2838
        %v2842 = vsel %vm549, %v2840, 0
        %2844 = vmatprep.subr.bf16.mxu0 0
        %2845 = vmatpush1.bf16.msra.mxu0 %v537
        %2846 = vmatprep.subr.bf16.mxu0 0
        %2847 = vmatpush1.bf16.msra.mxu0 %v538
        %2848 = vmatprep.subr.bf16.mxu0 0
        %2849 = vmatpush1.bf16.msra.mxu0 %v539
        %2850 = vmatprep.subr.bf16.mxu0 0
        %2851 = vmatpush1.bf16.msra.mxu0 %v540
        %2852 = vmatprep.subr.bf16.mxu0 0
        %2853 = vmatpush1.bf16.msra.mxu0 %v555
        %2854 = vmatprep.subr.bf16.mxu0 0
        %2855 = vmatpush1.bf16.msra.mxu0 0
        %2856 = vmatprep.subr.bf16.mxu0 0
        %2857 = vmatpush1.bf16.msra.mxu0 0
        %2858 = vmatprep.subr.bf16.mxu0 0
        %2859 = vmatpush1.bf16.msra.mxu0 0
        %2860 = vmatprep.subr.bf16.mxu0 0
        %2861 = vmatpush1.bf16.msra.mxu0 0
        %2862 = vmatprep.subr.bf16.mxu0 0
        %2863 = vmatpush1.bf16.msra.mxu0 0
        %2864 = vmatprep.subr.bf16.mxu0 0
        %2865 = vmatpush1.bf16.msra.mxu0 0
        %2866 = vmatprep.subr.bf16.mxu0 0
        %2867 = vmatpush1.bf16.msra.mxu0 0
        %2868 = vmatprep.subr.bf16.mxu0 0
        %2869 = vmatpush1.bf16.msra.mxu0 0
        %2870 = vmatprep.subr.bf16.mxu0 0
        %2871 = vmatpush1.bf16.msra.mxu0 0
        %2872 = vmatprep.subr.bf16.mxu0 0
        %2873 = vmatpush1.bf16.msra.mxu0 0
        %2874 = vmatprep.subr.bf16.mxu0 0
        %2875 = vmatpush1.bf16.msra.mxu0 0
        %2876 = vmatprep.mubr.bf16.mxu0 0
        %2877 = vmatmul.mubr.bf16.gmra.mrb[0].mxu0 %v2842
        %v2878 = vpop.f32.mrb[0].mxu0
        %v2879 = vadd.f32 0.0, %v2878
        %v2880 = vpop.f32.mrb[0].mxu0
        %v2881 = vpop.f32.mrb[0].mxu0
        %v2882 = vadd.f32 0.0, %v2881
        %v2883 = vpop.f32.mrb[0].mxu0
        %2884 = vdwg.mxu0
        %v2885 = vpack.c.bf16 %v2882, %v2879
        %s2886 = scalar_lea.vmem [#allocation7], 1008
        %v2887 = vld [vmem:[%s2886] sm:$0xff]
        %v2888 = vld [vmem:[%s2886 + $0x8] sm:$0xff]
        %v2889 = vld [vmem:[%s2886 + $0x10] sm:$0xff]
        %v2890 = vld [vmem:[%s2886 + $0x18] sm:$0xff]
        %v2891 = vld [vmem:[%s2886 + $0x20] sm:$0xff]
        %v2892 = vld [vmem:[%s2886 + $0x28] sm:$0xff]
        %v2893 = vld [vmem:[%s2886 + $0x30] sm:$0xff]
        %v2894 = vld [vmem:[%s2886 + $0x38] sm:$0xff]
        %v2895 = vld [vmem:[%s2886 + $0x40] sm:$0xff]
        %v2905 = vunpack.c.l.b16 %v2887
        %v2906 = vunpack.c.h.b16 %v2887
        %v2907 = vunpack.c.l.b16 %v2888
        %v2908 = vunpack.c.h.b16 %v2888
        %v2909 = vunpack.c.l.b16 %v2889
        %v2910 = vunpack.c.h.b16 %v2889
        %v2911 = vunpack.c.l.b16 %v2890
        %v2912 = vunpack.c.h.b16 %v2890
        %v2913 = vunpack.c.l.b16 %v2891
        %v2914 = vunpack.c.h.b16 %v2891
        %v2915 = vunpack.c.l.b16 %v2892
        %v2916 = vunpack.c.h.b16 %v2892
        %v2917 = vunpack.c.l.b16 %v2893
        %v2918 = vunpack.c.h.b16 %v2893
        %v2919 = vunpack.c.l.b16 %v2894
        %v2920 = vunpack.c.h.b16 %v2894
        %v2921 = vunpack.c.l.b16 %v2895
        %v2922 = vunpack.c.h.b16 %v2895
        %v2923 = vpack.c.b16 %v2907, %v2905
        %v2924 = vpack.c.b16 %v2908, %v2906
        %v2925 = vpack.c.b16 %v2911, %v2909
        %v2926 = vpack.c.b16 %v2912, %v2910
        %v2927 = vpack.c.b16 %v2915, %v2913
        %v2928 = vpack.c.b16 %v2916, %v2914
        %v2929 = vpack.c.b16 %v2919, %v2917
        %v2930 = vpack.c.b16 %v2920, %v2918
        %v2931 = vpack.c.b16 %v2921, %v2921
        %v2932 = vpack.c.b16 %v2922, %v2922
        %v2942 = vsel %vm549, %v2885, 0
        %v2945 = vsel %vm553, %v2931, 0
        %v2948 = vsel %vm553, %v2932, 0
        %2950 = vmatprep.subr.bf16.mxu0 %v2924
        %2951 = vmatpush1.bf16.msra.mxu0 %v2923
        %2952 = vmatprep.subr.bf16.mxu0 %v2926
        %2953 = vmatpush1.bf16.msra.mxu0 %v2925
        %2954 = vmatprep.subr.bf16.mxu0 %v2928
        %2955 = vmatpush1.bf16.msra.mxu0 %v2927
        %2956 = vmatprep.subr.bf16.mxu0 %v2930
        %2957 = vmatpush1.bf16.msra.mxu0 %v2929
        %2958 = vmatprep.subr.bf16.mxu0 %v2948
        %2959 = vmatpush1.bf16.msra.mxu0 %v2945
        %2960 = vmatprep.subr.bf16.mxu0 0
        %2961 = vmatpush1.bf16.msra.mxu0 0
        %2962 = vmatprep.subr.bf16.mxu0 0
        %2963 = vmatpush1.bf16.msra.mxu0 0
        %2964 = vmatprep.subr.bf16.mxu0 0
        %2965 = vmatpush1.bf16.msra.mxu0 0
        %2966 = vmatprep.subr.bf16.mxu0 0
        %2967 = vmatpush1.bf16.msra.mxu0 0
        %2968 = vmatprep.subr.bf16.mxu0 0
        %2969 = vmatpush1.bf16.msra.mxu0 0
        %2970 = vmatprep.subr.bf16.mxu0 0
        %2971 = vmatpush1.bf16.msra.mxu0 0
        %2972 = vmatprep.subr.bf16.mxu0 0
        %2973 = vmatpush1.bf16.msra.mxu0 0
        %2974 = vmatprep.subr.bf16.mxu0 0
        %2975 = vmatpush1.bf16.msra.mxu0 0
        %2976 = vmatprep.subr.bf16.mxu0 0
        %2977 = vmatpush1.bf16.msra.mxu0 0
        %2978 = vmatprep.subr.bf16.mxu0 0
        %2979 = vmatpush1.bf16.msra.mxu0 0
        %2980 = vmatprep.subr.bf16.mxu0 0
        %2981 = vmatpush1.bf16.msra.mxu0 0
        %2982 = vmatprep.mubr.bf16.mxu0 0
        %2983 = vmatmul.mubr.bf16.gmra.mrb[0].mxu0 %v2942
        %v2984 = vpop.f32.mrb[0].mxu0
        %v2985 = vadd.f32 0.0, %v2984
        %v2986 = vpop.f32.mrb[0].mxu0
        %v2987 = vadd.f32 0.0, %v2986
        %v2988 = vpop.f32.mrb[0].mxu0
        %v2989 = vadd.f32 0.0, %v2988
        %v2990 = vpop.f32.mrb[0].mxu0
        %v2991 = vadd.f32 0.0, %v2990
        %2992 = vdwg.mxu0
        %v2993 = vadd.f32 %v2829, %v2985
        %v2994 = vadd.f32 %v2830, %v2987
        %v2995 = vadd.f32 %v2831, %v2989
        %v2996 = vadd.f32 %v2832, %v2991
        %s2997 = scalar_lea.vmem [#allocation5], 120
        %v2998 = vld [vmem:[%s2997] sm:$0xf]
        %v2999 = vld [vmem:[%s2997 + $0x4] sm:$0xf]
        %v3002 = vunpack.c.l.b16 %v2998
        %v3003 = vunpack.c.l.b16 %v2999
        %v3004 = vpack.c.b16 %v3003, %v3002
        %v3006 = vsel %vm549, %v3004, 0
        %3008 = vmatprep.subr.bf16.mxu0 0
        %3009 = vmatpush1.bf16.msra.mxu0 %v537
        %3010 = vmatprep.subr.bf16.mxu0 0
        %3011 = vmatpush1.bf16.msra.mxu0 %v538
        %3012 = vmatprep.subr.bf16.mxu0 0
        %3013 = vmatpush1.bf16.msra.mxu0 %v539
        %3014 = vmatprep.subr.bf16.mxu0 0
        %3015 = vmatpush1.bf16.msra.mxu0 %v540
        %3016 = vmatprep.subr.bf16.mxu0 0
        %3017 = vmatpush1.bf16.msra.mxu0 %v555
        %3018 = vmatprep.subr.bf16.mxu0 0
        %3019 = vmatpush1.bf16.msra.mxu0 0
        %3020 = vmatprep.subr.bf16.mxu0 0
        %3021 = vmatpush1.bf16.msra.mxu0 0
        %3022 = vmatprep.subr.bf16.mxu0 0
        %3023 = vmatpush1.bf16.msra.mxu0 0
        %3024 = vmatprep.subr.bf16.mxu0 0
        %3025 = vmatpush1.bf16.msra.mxu0 0
        %3026 = vmatprep.subr.bf16.mxu0 0
        %3027 = vmatpush1.bf16.msra.mxu0 0
        %3028 = vmatprep.subr.bf16.mxu0 0
        %3029 = vmatpush1.bf16.msra.mxu0 0
        %3030 = vmatprep.subr.bf16.mxu0 0
        %3031 = vmatpush1.bf16.msra.mxu0 0
        %3032 = vmatprep.subr.bf16.mxu0 0
        %3033 = vmatpush1.bf16.msra.mxu0 0
        %3034 = vmatprep.subr.bf16.mxu0 0
        %3035 = vmatpush1.bf16.msra.mxu0 0
        %3036 = vmatprep.subr.bf16.mxu0 0
        %3037 = vmatpush1.bf16.msra.mxu0 0
        %3038 = vmatprep.subr.bf16.mxu0 0
        %3039 = vmatpush1.bf16.msra.mxu0 0
        %3040 = vmatprep.mubr.bf16.mxu0 0
        %3041 = vmatmul.mubr.bf16.gmra.mrb[0].mxu0 %v3006
        %v3042 = vpop.f32.mrb[0].mxu0
        %v3043 = vadd.f32 0.0, %v3042
        %v3044 = vpop.f32.mrb[0].mxu0
        %v3045 = vpop.f32.mrb[0].mxu0
        %v3046 = vadd.f32 0.0, %v3045
        %v3047 = vpop.f32.mrb[0].mxu0
        %3048 = vdwg.mxu0
        %v3049 = vpack.c.bf16 %v3046, %v3043
        %s3050 = scalar_lea.vmem [#allocation7], 1080
        %v3051 = vld [vmem:[%s3050] sm:$0xff]
        %v3052 = vld [vmem:[%s3050 + $0x8] sm:$0xff]
        %v3053 = vld [vmem:[%s3050 + $0x10] sm:$0xff]
        %v3054 = vld [vmem:[%s3050 + $0x18] sm:$0xff]
        %v3055 = vld [vmem:[%s3050 + $0x20] sm:$0xff]
        %v3056 = vld [vmem:[%s3050 + $0x28] sm:$0xff]
        %v3057 = vld [vmem:[%s3050 + $0x30] sm:$0xff]
        %v3058 = vld [vmem:[%s3050 + $0x38] sm:$0xff]
        %v3059 = vld [vmem:[%s3050 + $0x40] sm:$0xff]
        %v3069 = vunpack.c.l.b16 %v3051
        %v3070 = vunpack.c.h.b16 %v3051
        %v3071 = vunpack.c.l.b16 %v3052
        %v3072 = vunpack.c.h.b16 %v3052
        %v3073 = vunpack.c.l.b16 %v3053
        %v3074 = vunpack.c.h.b16 %v3053
        %v3075 = vunpack.c.l.b16 %v3054
        %v3076 = vunpack.c.h.b16 %v3054
        %v3077 = vunpack.c.l.b16 %v3055
        %v3078 = vunpack.c.h.b16 %v3055
        %v3079 = vunpack.c.l.b16 %v3056
        %v3080 = vunpack.c.h.b16 %v3056
        %v3081 = vunpack.c.l.b16 %v3057
        %v3082 = vunpack.c.h.b16 %v3057
        %v3083 = vunpack.c.l.b16 %v3058
        %v3084 = vunpack.c.h.b16 %v3058
        %v3085 = vunpack.c.l.b16 %v3059
        %v3086 = vunpack.c.h.b16 %v3059
        %v3087 = vpack.c.b16 %v3071, %v3069
        %v3088 = vpack.c.b16 %v3072, %v3070
        %v3089 = vpack.c.b16 %v3075, %v3073
        %v3090 = vpack.c.b16 %v3076, %v3074
        %v3091 = vpack.c.b16 %v3079, %v3077
        %v3092 = vpack.c.b16 %v3080, %v3078
        %v3093 = vpack.c.b16 %v3083, %v3081
        %v3094 = vpack.c.b16 %v3084, %v3082
        %v3095 = vpack.c.b16 %v3085, %v3085
        %v3096 = vpack.c.b16 %v3086, %v3086
        %v3106 = vsel %vm549, %v3049, 0
        %v3109 = vsel %vm553, %v3095, 0
        %v3112 = vsel %vm553, %v3096, 0
        %3114 = vmatprep.subr.bf16.mxu0 %v3088
        %3115 = vmatpush1.bf16.msra.mxu0 %v3087
        %3116 = vmatprep.subr.bf16.mxu0 %v3090
        %3117 = vmatpush1.bf16.msra.mxu0 %v3089
        %3118 = vmatprep.subr.bf16.mxu0 %v3092
        %3119 = vmatpush1.bf16.msra.mxu0 %v3091
        %3120 = vmatprep.subr.bf16.mxu0 %v3094
        %3121 = vmatpush1.bf16.msra.mxu0 %v3093
        %3122 = vmatprep.subr.bf16.mxu0 %v3112
        %3123 = vmatpush1.bf16.msra.mxu0 %v3109
        %3124 = vmatprep.subr.bf16.mxu0 0
        %3125 = vmatpush1.bf16.msra.mxu0 0
        %3126 = vmatprep.subr.bf16.mxu0 0
        %3127 = vmatpush1.bf16.msra.mxu0 0
        %3128 = vmatprep.subr.bf16.mxu0 0
        %3129 = vmatpush1.bf16.msra.mxu0 0
        %3130 = vmatprep.subr.bf16.mxu0 0
        %3131 = vmatpush1.bf16.msra.mxu0 0
        %3132 = vmatprep.subr.bf16.mxu0 0
        %3133 = vmatpush1.bf16.msra.mxu0 0
        %3134 = vmatprep.subr.bf16.mxu0 0
        %3135 = vmatpush1.bf16.msra.mxu0 0
        %3136 = vmatprep.subr.bf16.mxu0 0
        %3137 = vmatpush1.bf16.msra.mxu0 0
        %3138 = vmatprep.subr.bf16.mxu0 0
        %3139 = vmatpush1.bf16.msra.mxu0 0
        %3140 = vmatprep.subr.bf16.mxu0 0
        %3141 = vmatpush1.bf16.msra.mxu0 0
        %3142 = vmatprep.subr.bf16.mxu0 0
        %3143 = vmatpush1.bf16.msra.mxu0 0
        %3144 = vmatprep.subr.bf16.mxu0 0
        %3145 = vmatpush1.bf16.msra.mxu0 0
        %3146 = vmatprep.mubr.bf16.mxu0 0
        %3147 = vmatmul.mubr.bf16.gmra.mrb[0].mxu0 %v3106
        %v3148 = vpop.f32.mrb[0].mxu0
        %v3149 = vadd.f32 0.0, %v3148
        %v3150 = vpop.f32.mrb[0].mxu0
        %v3151 = vadd.f32 0.0, %v3150
        %v3152 = vpop.f32.mrb[0].mxu0
        %v3153 = vadd.f32 0.0, %v3152
        %v3154 = vpop.f32.mrb[0].mxu0
        %v3155 = vadd.f32 0.0, %v3154
        %3156 = vdwg.mxu0
        %v3157 = vadd.f32 %v2993, %v3149
        %v3158 = vadd.f32 %v2994, %v3151
        %v3159 = vadd.f32 %v2995, %v3153
        %v3160 = vadd.f32 %v2996, %v3155
        %s3161 = scalar_lea.vmem [#allocation5], 128
        %v3162 = vld [vmem:[%s3161] sm:$0xf]
        %v3163 = vld [vmem:[%s3161 + $0x4] sm:$0xf]
        %v3166 = vunpack.c.l.b16 %v3162
        %v3167 = vunpack.c.l.b16 %v3163
        %v3168 = vpack.c.b16 %v3167, %v3166
        %v3170 = vsel %vm549, %v3168, 0
        %3172 = vmatprep.subr.bf16.mxu0 0
        %3173 = vmatpush1.bf16.msra.mxu0 %v537
        %3174 = vmatprep.subr.bf16.mxu0 0
        %3175 = vmatpush1.bf16.msra.mxu0 %v538
        %3176 = vmatprep.subr.bf16.mxu0 0
        %3177 = vmatpush1.bf16.msra.mxu0 %v539
        %3178 = vmatprep.subr.bf16.mxu0 0
        %3179 = vmatpush1.bf16.msra.mxu0 %v540
        %3180 = vmatprep.subr.bf16.mxu0 0
        %3181 = vmatpush1.bf16.msra.mxu0 %v555
        %3182 = vmatprep.subr.bf16.mxu0 0
        %3183 = vmatpush1.bf16.msra.mxu0 0
        %3184 = vmatprep.subr.bf16.mxu0 0
        %3185 = vmatpush1.bf16.msra.mxu0 0
        %3186 = vmatprep.subr.bf16.mxu0 0
        %3187 = vmatpush1.bf16.msra.mxu0 0
        %3188 = vmatprep.subr.bf16.mxu0 0
        %3189 = vmatpush1.bf16.msra.mxu0 0
        %3190 = vmatprep.subr.bf16.mxu0 0
        %3191 = vmatpush1.bf16.msra.mxu0 0
        %3192 = vmatprep.subr.bf16.mxu0 0
        %3193 = vmatpush1.bf16.msra.mxu0 0
        %3194 = vmatprep.subr.bf16.mxu0 0
        %3195 = vmatpush1.bf16.msra.mxu0 0
        %3196 = vmatprep.subr.bf16.mxu0 0
        %3197 = vmatpush1.bf16.msra.mxu0 0
        %3198 = vmatprep.subr.bf16.mxu0 0
        %3199 = vmatpush1.bf16.msra.mxu0 0
        %3200 = vmatprep.subr.bf16.mxu0 0
        %3201 = vmatpush1.bf16.msra.mxu0 0
        %3202 = vmatprep.subr.bf16.mxu0 0
        %3203 = vmatpush1.bf16.msra.mxu0 0
        %3204 = vmatprep.mubr.bf16.mxu0 0
        %3205 = vmatmul.mubr.bf16.gmra.mrb[0].mxu0 %v3170
        %v3206 = vpop.f32.mrb[0].mxu0
        %v3207 = vadd.f32 0.0, %v3206
        %v3208 = vpop.f32.mrb[0].mxu0
        %v3209 = vpop.f32.mrb[0].mxu0
        %v3210 = vadd.f32 0.0, %v3209
        %v3211 = vpop.f32.mrb[0].mxu0
        %3212 = vdwg.mxu0
        %v3213 = vpack.c.bf16 %v3210, %v3207
        %s3214 = scalar_lea.vmem [#allocation7], 1152
        %v3215 = vld [vmem:[%s3214] sm:$0xff]
        %v3216 = vld [vmem:[%s3214 + $0x8] sm:$0xff]
        %v3217 = vld [vmem:[%s3214 + $0x10] sm:$0xff]
        %v3218 = vld [vmem:[%s3214 + $0x18] sm:$0xff]
        %v3219 = vld [vmem:[%s3214 + $0x20] sm:$0xff]
        %v3220 = vld [vmem:[%s3214 + $0x28] sm:$0xff]
        %v3221 = vld [vmem:[%s3214 + $0x30] sm:$0xff]
        %v3222 = vld [vmem:[%s3214 + $0x38] sm:$0xff]
        %v3223 = vld [vmem:[%s3214 + $0x40] sm:$0xff]
        %v3233 = vunpack.c.l.b16 %v3215
        %v3234 = vunpack.c.h.b16 %v3215
        %v3235 = vunpack.c.l.b16 %v3216
        %v3236 = vunpack.c.h.b16 %v3216
        %v3237 = vunpack.c.l.b16 %v3217
        %v3238 = vunpack.c.h.b16 %v3217
        %v3239 = vunpack.c.l.b16 %v3218
        %v3240 = vunpack.c.h.b16 %v3218
        %v3241 = vunpack.c.l.b16 %v3219
        %v3242 = vunpack.c.h.b16 %v3219
        %v3243 = vunpack.c.l.b16 %v3220
        %v3244 = vunpack.c.h.b16 %v3220
        %v3245 = vunpack.c.l.b16 %v3221
        %v3246 = vunpack.c.h.b16 %v3221
        %v3247 = vunpack.c.l.b16 %v3222
        %v3248 = vunpack.c.h.b16 %v3222
        %v3249 = vunpack.c.l.b16 %v3223
        %v3250 = vunpack.c.h.b16 %v3223
        %v3251 = vpack.c.b16 %v3235, %v3233
        %v3252 = vpack.c.b16 %v3236, %v3234
        %v3253 = vpack.c.b16 %v3239, %v3237
        %v3254 = vpack.c.b16 %v3240, %v3238
        %v3255 = vpack.c.b16 %v3243, %v3241
        %v3256 = vpack.c.b16 %v3244, %v3242
        %v3257 = vpack.c.b16 %v3247, %v3245
        %v3258 = vpack.c.b16 %v3248, %v3246
        %v3259 = vpack.c.b16 %v3249, %v3249
        %v3260 = vpack.c.b16 %v3250, %v3250
        %v3270 = vsel %vm549, %v3213, 0
        %v3273 = vsel %vm553, %v3259, 0
        %v3276 = vsel %vm553, %v3260, 0
        %3278 = vmatprep.subr.bf16.mxu0 %v3252
        %3279 = vmatpush1.bf16.msra.mxu0 %v3251
        %3280 = vmatprep.subr.bf16.mxu0 %v3254
        %3281 = vmatpush1.bf16.msra.mxu0 %v3253
        %3282 = vmatprep.subr.bf16.mxu0 %v3256
        %3283 = vmatpush1.bf16.msra.mxu0 %v3255
        %3284 = vmatprep.subr.bf16.mxu0 %v3258
        %3285 = vmatpush1.bf16.msra.mxu0 %v3257
        %3286 = vmatprep.subr.bf16.mxu0 %v3276
        %3287 = vmatpush1.bf16.msra.mxu0 %v3273
        %3288 = vmatprep.subr.bf16.mxu0 0
        %3289 = vmatpush1.bf16.msra.mxu0 0
        %3290 = vmatprep.subr.bf16.mxu0 0
        %3291 = vmatpush1.bf16.msra.mxu0 0
        %3292 = vmatprep.subr.bf16.mxu0 0
        %3293 = vmatpush1.bf16.msra.mxu0 0
        %3294 = vmatprep.subr.bf16.mxu0 0
        %3295 = vmatpush1.bf16.msra.mxu0 0
        %3296 = vmatprep.subr.bf16.mxu0 0
        %3297 = vmatpush1.bf16.msra.mxu0 0
        %3298 = vmatprep.subr.bf16.mxu0 0
        %3299 = vmatpush1.bf16.msra.mxu0 0
        %3300 = vmatprep.subr.bf16.mxu0 0
        %3301 = vmatpush1.bf16.msra.mxu0 0
        %3302 = vmatprep.subr.bf16.mxu0 0
        %3303 = vmatpush1.bf16.msra.mxu0 0
        %3304 = vmatprep.subr.bf16.mxu0 0
        %3305 = vmatpush1.bf16.msra.mxu0 0
        %3306 = vmatprep.subr.bf16.mxu0 0
        %3307 = vmatpush1.bf16.msra.mxu0 0
        %3308 = vmatprep.subr.bf16.mxu0 0
        %3309 = vmatpush1.bf16.msra.mxu0 0
        %3310 = vmatprep.mubr.bf16.mxu0 0
        %3311 = vmatmul.mubr.bf16.gmra.mrb[0].mxu0 %v3270
        %v3312 = vpop.f32.mrb[0].mxu0
        %v3313 = vadd.f32 0.0, %v3312
        %v3314 = vpop.f32.mrb[0].mxu0
        %v3315 = vadd.f32 0.0, %v3314
        %v3316 = vpop.f32.mrb[0].mxu0
        %v3317 = vadd.f32 0.0, %v3316
        %v3318 = vpop.f32.mrb[0].mxu0
        %v3319 = vadd.f32 0.0, %v3318
        %3320 = vdwg.mxu0
        %v3321 = vadd.f32 %v3157, %v3313
        %v3322 = vadd.f32 %v3158, %v3315
        %v3323 = vadd.f32 %v3159, %v3317
        %v3324 = vadd.f32 %v3160, %v3319
        %s3325 = scalar_lea.vmem [#allocation5], 136
        %v3326 = vld [vmem:[%s3325] sm:$0xf]
        %v3327 = vld [vmem:[%s3325 + $0x4] sm:$0xf]
        %v3330 = vunpack.c.l.b16 %v3326
        %v3331 = vunpack.c.l.b16 %v3327
        %v3332 = vpack.c.b16 %v3331, %v3330
        %v3334 = vsel %vm549, %v3332, 0
        %3336 = vmatprep.subr.bf16.mxu0 0
        %3337 = vmatpush1.bf16.msra.mxu0 %v537
        %3338 = vmatprep.subr.bf16.mxu0 0
        %3339 = vmatpush1.bf16.msra.mxu0 %v538
        %3340 = vmatprep.subr.bf16.mxu0 0
        %3341 = vmatpush1.bf16.msra.mxu0 %v539
        %3342 = vmatprep.subr.bf16.mxu0 0
        %3343 = vmatpush1.bf16.msra.mxu0 %v540
        %3344 = vmatprep.subr.bf16.mxu0 0
        %3345 = vmatpush1.bf16.msra.mxu0 %v555
        %3346 = vmatprep.subr.bf16.mxu0 0
        %3347 = vmatpush1.bf16.msra.mxu0 0
        %3348 = vmatprep.subr.bf16.mxu0 0
        %3349 = vmatpush1.bf16.msra.mxu0 0
        %3350 = vmatprep.subr.bf16.mxu0 0
        %3351 = vmatpush1.bf16.msra.mxu0 0
        %3352 = vmatprep.subr.bf16.mxu0 0
        %3353 = vmatpush1.bf16.msra.mxu0 0
        %3354 = vmatprep.subr.bf16.mxu0 0
        %3355 = vmatpush1.bf16.msra.mxu0 0
        %3356 = vmatprep.subr.bf16.mxu0 0
        %3357 = vmatpush1.bf16.msra.mxu0 0
        %3358 = vmatprep.subr.bf16.mxu0 0
        %3359 = vmatpush1.bf16.msra.mxu0 0
        %3360 = vmatprep.subr.bf16.mxu0 0
        %3361 = vmatpush1.bf16.msra.mxu0 0
        %3362 = vmatprep.subr.bf16.mxu0 0
        %3363 = vmatpush1.bf16.msra.mxu0 0
        %3364 = vmatprep.subr.bf16.mxu0 0
        %3365 = vmatpush1.bf16.msra.mxu0 0
        %3366 = vmatprep.subr.bf16.mxu0 0
        %3367 = vmatpush1.bf16.msra.mxu0 0
        %3368 = vmatprep.mubr.bf16.mxu0 0
        %3369 = vmatmul.mubr.bf16.gmra.mrb[0].mxu0 %v3334
        %v3370 = vpop.f32.mrb[0].mxu0
        %v3371 = vadd.f32 0.0, %v3370
        %v3372 = vpop.f32.mrb[0].mxu0
        %v3373 = vpop.f32.mrb[0].mxu0
        %v3374 = vadd.f32 0.0, %v3373
        %v3375 = vpop.f32.mrb[0].mxu0
        %3376 = vdwg.mxu0
        %v3377 = vpack.c.bf16 %v3374, %v3371
        %s3378 = scalar_lea.vmem [#allocation7], 1224
        %v3379 = vld [vmem:[%s3378] sm:$0xff]
        %v3380 = vld [vmem:[%s3378 + $0x8] sm:$0xff]
        %v3381 = vld [vmem:[%s3378 + $0x10] sm:$0xff]
        %v3382 = vld [vmem:[%s3378 + $0x18] sm:$0xff]
        %v3383 = vld [vmem:[%s3378 + $0x20] sm:$0xff]
        %v3384 = vld [vmem:[%s3378 + $0x28] sm:$0xff]
        %v3385 = vld [vmem:[%s3378 + $0x30] sm:$0xff]
        %v3386 = vld [vmem:[%s3378 + $0x38] sm:$0xff]
        %v3387 = vld [vmem:[%s3378 + $0x40] sm:$0xff]
        %v3397 = vunpack.c.l.b16 %v3379
        %v3398 = vunpack.c.h.b16 %v3379
        %v3399 = vunpack.c.l.b16 %v3380
        %v3400 = vunpack.c.h.b16 %v3380
        %v3401 = vunpack.c.l.b16 %v3381
        %v3402 = vunpack.c.h.b16 %v3381
        %v3403 = vunpack.c.l.b16 %v3382
        %v3404 = vunpack.c.h.b16 %v3382
        %v3405 = vunpack.c.l.b16 %v3383
        %v3406 = vunpack.c.h.b16 %v3383
        %v3407 = vunpack.c.l.b16 %v3384
        %v3408 = vunpack.c.h.b16 %v3384
        %v3409 = vunpack.c.l.b16 %v3385
        %v3410 = vunpack.c.h.b16 %v3385
        %v3411 = vunpack.c.l.b16 %v3386
        %v3412 = vunpack.c.h.b16 %v3386
        %v3413 = vunpack.c.l.b16 %v3387
        %v3414 = vunpack.c.h.b16 %v3387
        %v3415 = vpack.c.b16 %v3399, %v3397
        %v3416 = vpack.c.b16 %v3400, %v3398
        %v3417 = vpack.c.b16 %v3403, %v3401
        %v3418 = vpack.c.b16 %v3404, %v3402
        %v3419 = vpack.c.b16 %v3407, %v3405
        %v3420 = vpack.c.b16 %v3408, %v3406
        %v3421 = vpack.c.b16 %v3411, %v3409
        %v3422 = vpack.c.b16 %v3412, %v3410
        %v3423 = vpack.c.b16 %v3413, %v3413
        %v3424 = vpack.c.b16 %v3414, %v3414
        %v3434 = vsel %vm549, %v3377, 0
        %v3437 = vsel %vm553, %v3423, 0
        %v3440 = vsel %vm553, %v3424, 0
        %3442 = vmatprep.subr.bf16.mxu0 %v3416
        %3443 = vmatpush1.bf16.msra.mxu0 %v3415
        %3444 = vmatprep.subr.bf16.mxu0 %v3418
        %3445 = vmatpush1.bf16.msra.mxu0 %v3417
        %3446 = vmatprep.subr.bf16.mxu0 %v3420
        %3447 = vmatpush1.bf16.msra.mxu0 %v3419
        %3448 = vmatprep.subr.bf16.mxu0 %v3422
        %3449 = vmatpush1.bf16.msra.mxu0 %v3421
        %3450 = vmatprep.subr.bf16.mxu0 %v3440
        %3451 = vmatpush1.bf16.msra.mxu0 %v3437
        %3452 = vmatprep.subr.bf16.mxu0 0
        %3453 = vmatpush1.bf16.msra.mxu0 0
        %3454 = vmatprep.subr.bf16.mxu0 0
        %3455 = vmatpush1.bf16.msra.mxu0 0
        %3456 = vmatprep.subr.bf16.mxu0 0
        %3457 = vmatpush1.bf16.msra.mxu0 0
        %3458 = vmatprep.subr.bf16.mxu0 0
        %3459 = vmatpush1.bf16.msra.mxu0 0
        %3460 = vmatprep.subr.bf16.mxu0 0
        %3461 = vmatpush1.bf16.msra.mxu0 0
        %3462 = vmatprep.subr.bf16.mxu0 0
        %3463 = vmatpush1.bf16.msra.mxu0 0
        %3464 = vmatprep.subr.bf16.mxu0 0
        %3465 = vmatpush1.bf16.msra.mxu0 0
        %3466 = vmatprep.subr.bf16.mxu0 0
        %3467 = vmatpush1.bf16.msra.mxu0 0
        %3468 = vmatprep.subr.bf16.mxu0 0
        %3469 = vmatpush1.bf16.msra.mxu0 0
        %3470 = vmatprep.subr.bf16.mxu0 0
        %3471 = vmatpush1.bf16.msra.mxu0 0
        %3472 = vmatprep.subr.bf16.mxu0 0
        %3473 = vmatpush1.bf16.msra.mxu0 0
        %3474 = vmatprep.mubr.bf16.mxu0 0
        %3475 = vmatmul.mubr.bf16.gmra.mrb[0].mxu0 %v3434
        %v3476 = vpop.f32.mrb[0].mxu0
        %v3477 = vadd.f32 0.0, %v3476
        %v3478 = vpop.f32.mrb[0].mxu0
        %v3479 = vadd.f32 0.0, %v3478
        %v3480 = vpop.f32.mrb[0].mxu0
        %v3481 = vadd.f32 0.0, %v3480
        %v3482 = vpop.f32.mrb[0].mxu0
        %v3483 = vadd.f32 0.0, %v3482
        %3484 = vdwg.mxu0
        %v3485 = vadd.f32 %v3321, %v3477
        %v3486 = vadd.f32 %v3322, %v3479
        %v3487 = vadd.f32 %v3323, %v3481
        %v3488 = vadd.f32 %v3324, %v3483
        %s3489 = scalar_lea.vmem [#allocation5], 144
        %v3490 = vld [vmem:[%s3489] sm:$0xf]
        %v3491 = vld [vmem:[%s3489 + $0x4] sm:$0xf]
        %v3494 = vunpack.c.l.b16 %v3490
        %v3495 = vunpack.c.l.b16 %v3491
        %v3496 = vpack.c.b16 %v3495, %v3494
        %v3498 = vsel %vm549, %v3496, 0
        %3500 = vmatprep.subr.bf16.mxu0 0
        %3501 = vmatpush1.bf16.msra.mxu0 %v537
        %3502 = vmatprep.subr.bf16.mxu0 0
        %3503 = vmatpush1.bf16.msra.mxu0 %v538
        %3504 = vmatprep.subr.bf16.mxu0 0
        %3505 = vmatpush1.bf16.msra.mxu0 %v539
        %3506 = vmatprep.subr.bf16.mxu0 0
        %3507 = vmatpush1.bf16.msra.mxu0 %v540
        %3508 = vmatprep.subr.bf16.mxu0 0
        %3509 = vmatpush1.bf16.msra.mxu0 %v555
        %3510 = vmatprep.subr.bf16.mxu0 0
        %3511 = vmatpush1.bf16.msra.mxu0 0
        %3512 = vmatprep.subr.bf16.mxu0 0
        %3513 = vmatpush1.bf16.msra.mxu0 0
        %3514 = vmatprep.subr.bf16.mxu0 0
        %3515 = vmatpush1.bf16.msra.mxu0 0
        %3516 = vmatprep.subr.bf16.mxu0 0
        %3517 = vmatpush1.bf16.msra.mxu0 0
        %3518 = vmatprep.subr.bf16.mxu0 0
        %3519 = vmatpush1.bf16.msra.mxu0 0
        %3520 = vmatprep.subr.bf16.mxu0 0
        %3521 = vmatpush1.bf16.msra.mxu0 0
        %3522 = vmatprep.subr.bf16.mxu0 0
        %3523 = vmatpush1.bf16.msra.mxu0 0
        %3524 = vmatprep.subr.bf16.mxu0 0
        %3525 = vmatpush1.bf16.msra.mxu0 0
        %3526 = vmatprep.subr.bf16.mxu0 0
        %3527 = vmatpush1.bf16.msra.mxu0 0
        %3528 = vmatprep.subr.bf16.mxu0 0
        %3529 = vmatpush1.bf16.msra.mxu0 0
        %3530 = vmatprep.subr.bf16.mxu0 0
        %3531 = vmatpush1.bf16.msra.mxu0 0
        %3532 = vmatprep.mubr.bf16.mxu0 0
        %3533 = vmatmul.mubr.bf16.gmra.mrb[0].mxu0 %v3498
        %v3534 = vpop.f32.mrb[0].mxu0
        %v3535 = vadd.f32 0.0, %v3534
        %v3536 = vpop.f32.mrb[0].mxu0
        %v3537 = vpop.f32.mrb[0].mxu0
        %v3538 = vadd.f32 0.0, %v3537
        %v3539 = vpop.f32.mrb[0].mxu0
        %3540 = vdwg.mxu0
        %v3541 = vpack.c.bf16 %v3538, %v3535
        %s3542 = scalar_lea.vmem [#allocation7], 1296
        %v3543 = vld [vmem:[%s3542] sm:$0xff]
        %v3544 = vld [vmem:[%s3542 + $0x8] sm:$0xff]
        %v3545 = vld [vmem:[%s3542 + $0x10] sm:$0xff]
        %v3546 = vld [vmem:[%s3542 + $0x18] sm:$0xff]
        %v3547 = vld [vmem:[%s3542 + $0x20] sm:$0xff]
        %v3548 = vld [vmem:[%s3542 + $0x28] sm:$0xff]
        %v3549 = vld [vmem:[%s3542 + $0x30] sm:$0xff]
        %v3550 = vld [vmem:[%s3542 + $0x38] sm:$0xff]
        %v3551 = vld [vmem:[%s3542 + $0x40] sm:$0xff]
        %v3561 = vunpack.c.l.b16 %v3543
        %v3562 = vunpack.c.h.b16 %v3543
        %v3563 = vunpack.c.l.b16 %v3544
        %v3564 = vunpack.c.h.b16 %v3544
        %v3565 = vunpack.c.l.b16 %v3545
        %v3566 = vunpack.c.h.b16 %v3545
        %v3567 = vunpack.c.l.b16 %v3546
        %v3568 = vunpack.c.h.b16 %v3546
        %v3569 = vunpack.c.l.b16 %v3547
        %v3570 = vunpack.c.h.b16 %v3547
        %v3571 = vunpack.c.l.b16 %v3548
        %v3572 = vunpack.c.h.b16 %v3548
        %v3573 = vunpack.c.l.b16 %v3549
        %v3574 = vunpack.c.h.b16 %v3549
        %v3575 = vunpack.c.l.b16 %v3550
        %v3576 = vunpack.c.h.b16 %v3550
        %v3577 = vunpack.c.l.b16 %v3551
        %v3578 = vunpack.c.h.b16 %v3551
        %v3579 = vpack.c.b16 %v3563, %v3561
        %v3580 = vpack.c.b16 %v3564, %v3562
        %v3581 = vpack.c.b16 %v3567, %v3565
        %v3582 = vpack.c.b16 %v3568, %v3566
        %v3583 = vpack.c.b16 %v3571, %v3569
        %v3584 = vpack.c.b16 %v3572, %v3570
        %v3585 = vpack.c.b16 %v3575, %v3573
        %v3586 = vpack.c.b16 %v3576, %v3574
        %v3587 = vpack.c.b16 %v3577, %v3577
        %v3588 = vpack.c.b16 %v3578, %v3578
        %v3598 = vsel %vm549, %v3541, 0
        %v3601 = vsel %vm553, %v3587, 0
        %v3604 = vsel %vm553, %v3588, 0
        %3606 = vmatprep.subr.bf16.mxu0 %v3580
        %3607 = vmatpush1.bf16.msra.mxu0 %v3579
        %3608 = vmatprep.subr.bf16.mxu0 %v3582
        %3609 = vmatpush1.bf16.msra.mxu0 %v3581
        %3610 = vmatprep.subr.bf16.mxu0 %v3584
        %3611 = vmatpush1.bf16.msra.mxu0 %v3583
        %3612 = vmatprep.subr.bf16.mxu0 %v3586
        %3613 = vmatpush1.bf16.msra.mxu0 %v3585
        %3614 = vmatprep.subr.bf16.mxu0 %v3604
        %3615 = vmatpush1.bf16.msra.mxu0 %v3601
        %3616 = vmatprep.subr.bf16.mxu0 0
        %3617 = vmatpush1.bf16.msra.mxu0 0
        %3618 = vmatprep.subr.bf16.mxu0 0
        %3619 = vmatpush1.bf16.msra.mxu0 0
        %3620 = vmatprep.subr.bf16.mxu0 0
        %3621 = vmatpush1.bf16.msra.mxu0 0
        %3622 = vmatprep.subr.bf16.mxu0 0
        %3623 = vmatpush1.bf16.msra.mxu0 0
        %3624 = vmatprep.subr.bf16.mxu0 0
        %3625 = vmatpush1.bf16.msra.mxu0 0
        %3626 = vmatprep.subr.bf16.mxu0 0
        %3627 = vmatpush1.bf16.msra.mxu0 0
        %3628 = vmatprep.subr.bf16.mxu0 0
        %3629 = vmatpush1.bf16.msra.mxu0 0
        %3630 = vmatprep.subr.bf16.mxu0 0
        %3631 = vmatpush1.bf16.msra.mxu0 0
        %3632 = vmatprep.subr.bf16.mxu0 0
        %3633 = vmatpush1.bf16.msra.mxu0 0
        %3634 = vmatprep.subr.bf16.mxu0 0
        %3635 = vmatpush1.bf16.msra.mxu0 0
        %3636 = vmatprep.subr.bf16.mxu0 0
        %3637 = vmatpush1.bf16.msra.mxu0 0
        %3638 = vmatprep.mubr.bf16.mxu0 0
        %3639 = vmatmul.mubr.bf16.gmra.mrb[0].mxu0 %v3598
        %v3640 = vpop.f32.mrb[0].mxu0
        %v3641 = vadd.f32 0.0, %v3640
        %v3642 = vpop.f32.mrb[0].mxu0
        %v3643 = vadd.f32 0.0, %v3642
        %v3644 = vpop.f32.mrb[0].mxu0
        %v3645 = vadd.f32 0.0, %v3644
        %v3646 = vpop.f32.mrb[0].mxu0
        %v3647 = vadd.f32 0.0, %v3646
        %3648 = vdwg.mxu0
        %v3649 = vadd.f32 %v3485, %v3641
        %v3650 = vadd.f32 %v3486, %v3643
        %v3651 = vadd.f32 %v3487, %v3645
        %v3652 = vadd.f32 %v3488, %v3647
        %s3653 = scalar_lea.vmem [#allocation5], 152
        %v3654 = vld [vmem:[%s3653] sm:$0xf]
        %v3655 = vld [vmem:[%s3653 + $0x4] sm:$0xf]
        %v3658 = vunpack.c.l.b16 %v3654
        %v3659 = vunpack.c.l.b16 %v3655
        %v3660 = vpack.c.b16 %v3659, %v3658
        %v3662 = vsel %vm549, %v3660, 0
        %3664 = vmatprep.subr.bf16.mxu0 0
        %3665 = vmatpush1.bf16.msra.mxu0 %v537
        %3666 = vmatprep.subr.bf16.mxu0 0
        %3667 = vmatpush1.bf16.msra.mxu0 %v538
        %3668 = vmatprep.subr.bf16.mxu0 0
        %3669 = vmatpush1.bf16.msra.mxu0 %v539
        %3670 = vmatprep.subr.bf16.mxu0 0
        %3671 = vmatpush1.bf16.msra.mxu0 %v540
        %3672 = vmatprep.subr.bf16.mxu0 0
        %3673 = vmatpush1.bf16.msra.mxu0 %v555
        %3674 = vmatprep.subr.bf16.mxu0 0
        %3675 = vmatpush1.bf16.msra.mxu0 0
        %3676 = vmatprep.subr.bf16.mxu0 0
        %3677 = vmatpush1.bf16.msra.mxu0 0
        %3678 = vmatprep.subr.bf16.mxu0 0
        %3679 = vmatpush1.bf16.msra.mxu0 0
        %3680 = vmatprep.subr.bf16.mxu0 0
        %3681 = vmatpush1.bf16.msra.mxu0 0
        %3682 = vmatprep.subr.bf16.mxu0 0
        %3683 = vmatpush1.bf16.msra.mxu0 0
        %3684 = vmatprep.subr.bf16.mxu0 0
        %3685 = vmatpush1.bf16.msra.mxu0 0
        %3686 = vmatprep.subr.bf16.mxu0 0
        %3687 = vmatpush1.bf16.msra.mxu0 0
        %3688 = vmatprep.subr.bf16.mxu0 0
        %3689 = vmatpush1.bf16.msra.mxu0 0
        %3690 = vmatprep.subr.bf16.mxu0 0
        %3691 = vmatpush1.bf16.msra.mxu0 0
        %3692 = vmatprep.subr.bf16.mxu0 0
        %3693 = vmatpush1.bf16.msra.mxu0 0
        %3694 = vmatprep.subr.bf16.mxu0 0
        %3695 = vmatpush1.bf16.msra.mxu0 0
        %3696 = vmatprep.mubr.bf16.mxu0 0
        %3697 = vmatmul.mubr.bf16.gmra.mrb[0].mxu0 %v3662
        %v3698 = vpop.f32.mrb[0].mxu0
        %v3699 = vadd.f32 0.0, %v3698
        %v3700 = vpop.f32.mrb[0].mxu0
        %v3701 = vpop.f32.mrb[0].mxu0
        %v3702 = vadd.f32 0.0, %v3701
        %v3703 = vpop.f32.mrb[0].mxu0
        %3704 = vdwg.mxu0
        %v3705 = vpack.c.bf16 %v3702, %v3699
        %s3706 = scalar_lea.vmem [#allocation7], 1368
        %v3707 = vld [vmem:[%s3706] sm:$0xff]
        %v3708 = vld [vmem:[%s3706 + $0x8] sm:$0xff]
        %v3709 = vld [vmem:[%s3706 + $0x10] sm:$0xff]
        %v3710 = vld [vmem:[%s3706 + $0x18] sm:$0xff]
        %v3711 = vld [vmem:[%s3706 + $0x20] sm:$0xff]
        %v3712 = vld [vmem:[%s3706 + $0x28] sm:$0xff]
        %v3713 = vld [vmem:[%s3706 + $0x30] sm:$0xff]
        %v3714 = vld [vmem:[%s3706 + $0x38] sm:$0xff]
        %v3715 = vld [vmem:[%s3706 + $0x40] sm:$0xff]
        %v3725 = vunpack.c.l.b16 %v3707
        %v3726 = vunpack.c.h.b16 %v3707
        %v3727 = vunpack.c.l.b16 %v3708
        %v3728 = vunpack.c.h.b16 %v3708
        %v3729 = vunpack.c.l.b16 %v3709
        %v3730 = vunpack.c.h.b16 %v3709
        %v3731 = vunpack.c.l.b16 %v3710
        %v3732 = vunpack.c.h.b16 %v3710
        %v3733 = vunpack.c.l.b16 %v3711
        %v3734 = vunpack.c.h.b16 %v3711
        %v3735 = vunpack.c.l.b16 %v3712
        %v3736 = vunpack.c.h.b16 %v3712
        %v3737 = vunpack.c.l.b16 %v3713
        %v3738 = vunpack.c.h.b16 %v3713
        %v3739 = vunpack.c.l.b16 %v3714
        %v3740 = vunpack.c.h.b16 %v3714
        %v3741 = vunpack.c.l.b16 %v3715
        %v3742 = vunpack.c.h.b16 %v3715
        %v3743 = vpack.c.b16 %v3727, %v3725
        %v3744 = vpack.c.b16 %v3728, %v3726
        %v3745 = vpack.c.b16 %v3731, %v3729
        %v3746 = vpack.c.b16 %v3732, %v3730
        %v3747 = vpack.c.b16 %v3735, %v3733
        %v3748 = vpack.c.b16 %v3736, %v3734
        %v3749 = vpack.c.b16 %v3739, %v3737
        %v3750 = vpack.c.b16 %v3740, %v3738
        %v3751 = vpack.c.b16 %v3741, %v3741
        %v3752 = vpack.c.b16 %v3742, %v3742
        %v3762 = vsel %vm549, %v3705, 0
        %v3765 = vsel %vm553, %v3751, 0
        %v3768 = vsel %vm553, %v3752, 0
        %3770 = vmatprep.subr.bf16.mxu0 %v3744
        %3771 = vmatpush1.bf16.msra.mxu0 %v3743
        %3772 = vmatprep.subr.bf16.mxu0 %v3746
        %3773 = vmatpush1.bf16.msra.mxu0 %v3745
        %3774 = vmatprep.subr.bf16.mxu0 %v3748
        %3775 = vmatpush1.bf16.msra.mxu0 %v3747
        %3776 = vmatprep.subr.bf16.mxu0 %v3750
        %3777 = vmatpush1.bf16.msra.mxu0 %v3749
        %3778 = vmatprep.subr.bf16.mxu0 %v3768
        %3779 = vmatpush1.bf16.msra.mxu0 %v3765
        %3780 = vmatprep.subr.bf16.mxu0 0
        %3781 = vmatpush1.bf16.msra.mxu0 0
        %3782 = vmatprep.subr.bf16.mxu0 0
        %3783 = vmatpush1.bf16.msra.mxu0 0
        %3784 = vmatprep.subr.bf16.mxu0 0
        %3785 = vmatpush1.bf16.msra.mxu0 0
        %3786 = vmatprep.subr.bf16.mxu0 0
        %3787 = vmatpush1.bf16.msra.mxu0 0
        %3788 = vmatprep.subr.bf16.mxu0 0
        %3789 = vmatpush1.bf16.msra.mxu0 0
        %3790 = vmatprep.subr.bf16.mxu0 0
        %3791 = vmatpush1.bf16.msra.mxu0 0
        %3792 = vmatprep.subr.bf16.mxu0 0
        %3793 = vmatpush1.bf16.msra.mxu0 0
        %3794 = vmatprep.subr.bf16.mxu0 0
        %3795 = vmatpush1.bf16.msra.mxu0 0
        %3796 = vmatprep.subr.bf16.mxu0 0
        %3797 = vmatpush1.bf16.msra.mxu0 0
        %3798 = vmatprep.subr.bf16.mxu0 0
        %3799 = vmatpush1.bf16.msra.mxu0 0
        %3800 = vmatprep.subr.bf16.mxu0 0
        %3801 = vmatpush1.bf16.msra.mxu0 0
        %3802 = vmatprep.mubr.bf16.mxu0 0
        %3803 = vmatmul.mubr.bf16.gmra.mrb[0].mxu0 %v3762
        %v3804 = vpop.f32.mrb[0].mxu0
        %v3805 = vadd.f32 0.0, %v3804
        %v3806 = vpop.f32.mrb[0].mxu0
        %v3807 = vadd.f32 0.0, %v3806
        %v3808 = vpop.f32.mrb[0].mxu0
        %v3809 = vadd.f32 0.0, %v3808
        %v3810 = vpop.f32.mrb[0].mxu0
        %v3811 = vadd.f32 0.0, %v3810
        %3812 = vdwg.mxu0
        %v3813 = vadd.f32 %v3649, %v3805
        %v3814 = vadd.f32 %v3650, %v3807
        %v3815 = vadd.f32 %v3651, %v3809
        %v3816 = vadd.f32 %v3652, %v3811
        %s3817 = scalar_lea.vmem [#allocation5], 160
        %v3818 = vld [vmem:[%s3817] sm:$0xf]
        %v3819 = vld [vmem:[%s3817 + $0x4] sm:$0xf]
        %v3822 = vunpack.c.l.b16 %v3818
        %v3823 = vunpack.c.l.b16 %v3819
        %v3824 = vpack.c.b16 %v3823, %v3822
        %v3826 = vsel %vm549, %v3824, 0
        %3828 = vmatprep.subr.bf16.mxu0 0
        %3829 = vmatpush1.bf16.msra.mxu0 %v537
        %3830 = vmatprep.subr.bf16.mxu0 0
        %3831 = vmatpush1.bf16.msra.mxu0 %v538
        %3832 = vmatprep.subr.bf16.mxu0 0
        %3833 = vmatpush1.bf16.msra.mxu0 %v539
        %3834 = vmatprep.subr.bf16.mxu0 0
        %3835 = vmatpush1.bf16.msra.mxu0 %v540
        %3836 = vmatprep.subr.bf16.mxu0 0
        %3837 = vmatpush1.bf16.msra.mxu0 %v555
        %3838 = vmatprep.subr.bf16.mxu0 0
        %3839 = vmatpush1.bf16.msra.mxu0 0
        %3840 = vmatprep.subr.bf16.mxu0 0
        %3841 = vmatpush1.bf16.msra.mxu0 0
        %3842 = vmatprep.subr.bf16.mxu0 0
        %3843 = vmatpush1.bf16.msra.mxu0 0
        %3844 = vmatprep.subr.bf16.mxu0 0
        %3845 = vmatpush1.bf16.msra.mxu0 0
        %3846 = vmatprep.subr.bf16.mxu0 0
        %3847 = vmatpush1.bf16.msra.mxu0 0
        %3848 = vmatprep.subr.bf16.mxu0 0
        %3849 = vmatpush1.bf16.msra.mxu0 0
        %3850 = vmatprep.subr.bf16.mxu0 0
        %3851 = vmatpush1.bf16.msra.mxu0 0
        %3852 = vmatprep.subr.bf16.mxu0 0
        %3853 = vmatpush1.bf16.msra.mxu0 0
        %3854 = vmatprep.subr.bf16.mxu0 0
        %3855 = vmatpush1.bf16.msra.mxu0 0
        %3856 = vmatprep.subr.bf16.mxu0 0
        %3857 = vmatpush1.bf16.msra.mxu0 0
        %3858 = vmatprep.subr.bf16.mxu0 0
        %3859 = vmatpush1.bf16.msra.mxu0 0
        %3860 = vmatprep.mubr.bf16.mxu0 0
        %3861 = vmatmul.mubr.bf16.gmra.mrb[0].mxu0 %v3826
        %v3862 = vpop.f32.mrb[0].mxu0
        %v3863 = vadd.f32 0.0, %v3862
        %v3864 = vpop.f32.mrb[0].mxu0
        %v3865 = vpop.f32.mrb[0].mxu0
        %v3866 = vadd.f32 0.0, %v3865
        %v3867 = vpop.f32.mrb[0].mxu0
        %3868 = vdwg.mxu0
        %v3869 = vpack.c.bf16 %v3866, %v3863
        %s3870 = scalar_lea.vmem [#allocation7], 1440
        %v3871 = vld [vmem:[%s3870] sm:$0xff]
        %v3872 = vld [vmem:[%s3870 + $0x8] sm:$0xff]
        %v3873 = vld [vmem:[%s3870 + $0x10] sm:$0xff]
        %v3874 = vld [vmem:[%s3870 + $0x18] sm:$0xff]
        %v3875 = vld [vmem:[%s3870 + $0x20] sm:$0xff]
        %v3876 = vld [vmem:[%s3870 + $0x28] sm:$0xff]
        %v3877 = vld [vmem:[%s3870 + $0x30] sm:$0xff]
        %v3878 = vld [vmem:[%s3870 + $0x38] sm:$0xff]
        %v3879 = vld [vmem:[%s3870 + $0x40] sm:$0xff]
        %v3889 = vunpack.c.l.b16 %v3871
        %v3890 = vunpack.c.h.b16 %v3871
        %v3891 = vunpack.c.l.b16 %v3872
        %v3892 = vunpack.c.h.b16 %v3872
        %v3893 = vunpack.c.l.b16 %v3873
        %v3894 = vunpack.c.h.b16 %v3873
        %v3895 = vunpack.c.l.b16 %v3874
        %v3896 = vunpack.c.h.b16 %v3874
        %v3897 = vunpack.c.l.b16 %v3875
        %v3898 = vunpack.c.h.b16 %v3875
        %v3899 = vunpack.c.l.b16 %v3876
        %v3900 = vunpack.c.h.b16 %v3876
        %v3901 = vunpack.c.l.b16 %v3877
        %v3902 = vunpack.c.h.b16 %v3877
        %v3903 = vunpack.c.l.b16 %v3878
        %v3904 = vunpack.c.h.b16 %v3878
        %v3905 = vunpack.c.l.b16 %v3879
        %v3906 = vunpack.c.h.b16 %v3879
        %v3907 = vpack.c.b16 %v3891, %v3889
        %v3908 = vpack.c.b16 %v3892, %v3890
        %v3909 = vpack.c.b16 %v3895, %v3893
        %v3910 = vpack.c.b16 %v3896, %v3894
        %v3911 = vpack.c.b16 %v3899, %v3897
        %v3912 = vpack.c.b16 %v3900, %v3898
        %v3913 = vpack.c.b16 %v3903, %v3901
        %v3914 = vpack.c.b16 %v3904, %v3902
        %v3915 = vpack.c.b16 %v3905, %v3905
        %v3916 = vpack.c.b16 %v3906, %v3906
        %v3926 = vsel %vm549, %v3869, 0
        %v3929 = vsel %vm553, %v3915, 0
        %v3932 = vsel %vm553, %v3916, 0
        %3934 = vmatprep.subr.bf16.mxu0 %v3908
        %3935 = vmatpush1.bf16.msra.mxu0 %v3907
        %3936 = vmatprep.subr.bf16.mxu0 %v3910
        %3937 = vmatpush1.bf16.msra.mxu0 %v3909
        %3938 = vmatprep.subr.bf16.mxu0 %v3912
        %3939 = vmatpush1.bf16.msra.mxu0 %v3911
        %3940 = vmatprep.subr.bf16.mxu0 %v3914
        %3941 = vmatpush1.bf16.msra.mxu0 %v3913
        %3942 = vmatprep.subr.bf16.mxu0 %v3932
        %3943 = vmatpush1.bf16.msra.mxu0 %v3929
        %3944 = vmatprep.subr.bf16.mxu0 0
        %3945 = vmatpush1.bf16.msra.mxu0 0
        %3946 = vmatprep.subr.bf16.mxu0 0
        %3947 = vmatpush1.bf16.msra.mxu0 0
        %3948 = vmatprep.subr.bf16.mxu0 0
        %3949 = vmatpush1.bf16.msra.mxu0 0
        %3950 = vmatprep.subr.bf16.mxu0 0
        %3951 = vmatpush1.bf16.msra.mxu0 0
        %3952 = vmatprep.subr.bf16.mxu0 0
        %3953 = vmatpush1.bf16.msra.mxu0 0
        %3954 = vmatprep.subr.bf16.mxu0 0
        %3955 = vmatpush1.bf16.msra.mxu0 0
        %3956 = vmatprep.subr.bf16.mxu0 0
        %3957 = vmatpush1.bf16.msra.mxu0 0
        %3958 = vmatprep.subr.bf16.mxu0 0
        %3959 = vmatpush1.bf16.msra.mxu0 0
        %3960 = vmatprep.subr.bf16.mxu0 0
        %3961 = vmatpush1.bf16.msra.mxu0 0
        %3962 = vmatprep.subr.bf16.mxu0 0
        %3963 = vmatpush1.bf16.msra.mxu0 0
        %3964 = vmatprep.subr.bf16.mxu0 0
        %3965 = vmatpush1.bf16.msra.mxu0 0
        %3966 = vmatprep.mubr.bf16.mxu0 0
        %3967 = vmatmul.mubr.bf16.gmra.mrb[0].mxu0 %v3926
        %v3968 = vpop.f32.mrb[0].mxu0
        %v3969 = vadd.f32 0.0, %v3968
        %v3970 = vpop.f32.mrb[0].mxu0
        %v3971 = vadd.f32 0.0, %v3970
        %v3972 = vpop.f32.mrb[0].mxu0
        %v3973 = vadd.f32 0.0, %v3972
        %v3974 = vpop.f32.mrb[0].mxu0
        %v3975 = vadd.f32 0.0, %v3974
        %3976 = vdwg.mxu0
        %v3977 = vadd.f32 %v3813, %v3969
        %v3978 = vadd.f32 %v3814, %v3971
        %v3979 = vadd.f32 %v3815, %v3973
        %v3980 = vadd.f32 %v3816, %v3975
        %s3981 = scalar_lea.vmem [#allocation5], 168
        %v3982 = vld [vmem:[%s3981] sm:$0xf]
        %v3983 = vld [vmem:[%s3981 + $0x4] sm:$0xf]
        %v3986 = vunpack.c.l.b16 %v3982
        %v3987 = vunpack.c.l.b16 %v3983
        %v3988 = vpack.c.b16 %v3987, %v3986
        %v3990 = vsel %vm549, %v3988, 0
        %3992 = vmatprep.subr.bf16.mxu0 0
        %3993 = vmatpush1.bf16.msra.mxu0 %v537
        %3994 = vmatprep.subr.bf16.mxu0 0
        %3995 = vmatpush1.bf16.msra.mxu0 %v538
        %3996 = vmatprep.subr.bf16.mxu0 0
        %3997 = vmatpush1.bf16.msra.mxu0 %v539
        %3998 = vmatprep.subr.bf16.mxu0 0
        %3999 = vmatpush1.bf16.msra.mxu0 %v540
        %4000 = vmatprep.subr.bf16.mxu0 0
        %4001 = vmatpush1.bf16.msra.mxu0 %v555
        %4002 = vmatprep.subr.bf16.mxu0 0
        %4003 = vmatpush1.bf16.msra.mxu0 0
        %4004 = vmatprep.subr.bf16.mxu0 0
        %4005 = vmatpush1.bf16.msra.mxu0 0
        %4006 = vmatprep.subr.bf16.mxu0 0
        %4007 = vmatpush1.bf16.msra.mxu0 0
        %4008 = vmatprep.subr.bf16.mxu0 0
        %4009 = vmatpush1.bf16.msra.mxu0 0
        %4010 = vmatprep.subr.bf16.mxu0 0
        %4011 = vmatpush1.bf16.msra.mxu0 0
        %4012 = vmatprep.subr.bf16.mxu0 0
        %4013 = vmatpush1.bf16.msra.mxu0 0
        %4014 = vmatprep.subr.bf16.mxu0 0
        %4015 = vmatpush1.bf16.msra.mxu0 0
        %4016 = vmatprep.subr.bf16.mxu0 0
        %4017 = vmatpush1.bf16.msra.mxu0 0
        %4018 = vmatprep.subr.bf16.mxu0 0
        %4019 = vmatpush1.bf16.msra.mxu0 0
        %4020 = vmatprep.subr.bf16.mxu0 0
        %4021 = vmatpush1.bf16.msra.mxu0 0
        %4022 = vmatprep.subr.bf16.mxu0 0
        %4023 = vmatpush1.bf16.msra.mxu0 0
        %4024 = vmatprep.mubr.bf16.mxu0 0
        %4025 = vmatmul.mubr.bf16.gmra.mrb[0].mxu0 %v3990
        %v4026 = vpop.f32.mrb[0].mxu0
        %v4027 = vadd.f32 0.0, %v4026
        %v4028 = vpop.f32.mrb[0].mxu0
        %v4029 = vpop.f32.mrb[0].mxu0
        %v4030 = vadd.f32 0.0, %v4029
        %v4031 = vpop.f32.mrb[0].mxu0
        %4032 = vdwg.mxu0
        %v4033 = vpack.c.bf16 %v4030, %v4027
        %s4034 = scalar_lea.vmem [#allocation7], 1512
        %v4035 = vld [vmem:[%s4034] sm:$0xff]
        %v4036 = vld [vmem:[%s4034 + $0x8] sm:$0xff]
        %v4037 = vld [vmem:[%s4034 + $0x10] sm:$0xff]
        %v4038 = vld [vmem:[%s4034 + $0x18] sm:$0xff]
        %v4039 = vld [vmem:[%s4034 + $0x20] sm:$0xff]
        %v4040 = vld [vmem:[%s4034 + $0x28] sm:$0xff]
        %v4041 = vld [vmem:[%s4034 + $0x30] sm:$0xff]
        %v4042 = vld [vmem:[%s4034 + $0x38] sm:$0xff]
        %v4043 = vld [vmem:[%s4034 + $0x40] sm:$0xff]
        %v4053 = vunpack.c.l.b16 %v4035
        %v4054 = vunpack.c.h.b16 %v4035
        %v4055 = vunpack.c.l.b16 %v4036
        %v4056 = vunpack.c.h.b16 %v4036
        %v4057 = vunpack.c.l.b16 %v4037
        %v4058 = vunpack.c.h.b16 %v4037
        %v4059 = vunpack.c.l.b16 %v4038
        %v4060 = vunpack.c.h.b16 %v4038
        %v4061 = vunpack.c.l.b16 %v4039
        %v4062 = vunpack.c.h.b16 %v4039
        %v4063 = vunpack.c.l.b16 %v4040
        %v4064 = vunpack.c.h.b16 %v4040
        %v4065 = vunpack.c.l.b16 %v4041
        %v4066 = vunpack.c.h.b16 %v4041
        %v4067 = vunpack.c.l.b16 %v4042
        %v4068 = vunpack.c.h.b16 %v4042
        %v4069 = vunpack.c.l.b16 %v4043
        %v4070 = vunpack.c.h.b16 %v4043
        %v4071 = vpack.c.b16 %v4055, %v4053
        %v4072 = vpack.c.b16 %v4056, %v4054
        %v4073 = vpack.c.b16 %v4059, %v4057
        %v4074 = vpack.c.b16 %v4060, %v4058
        %v4075 = vpack.c.b16 %v4063, %v4061
        %v4076 = vpack.c.b16 %v4064, %v4062
        %v4077 = vpack.c.b16 %v4067, %v4065
        %v4078 = vpack.c.b16 %v4068, %v4066
        %v4079 = vpack.c.b16 %v4069, %v4069
        %v4080 = vpack.c.b16 %v4070, %v4070
        %v4090 = vsel %vm549, %v4033, 0
        %v4093 = vsel %vm553, %v4079, 0
        %v4096 = vsel %vm553, %v4080, 0
        %4098 = vmatprep.subr.bf16.mxu0 %v4072
        %4099 = vmatpush1.bf16.msra.mxu0 %v4071
        %4100 = vmatprep.subr.bf16.mxu0 %v4074
        %4101 = vmatpush1.bf16.msra.mxu0 %v4073
        %4102 = vmatprep.subr.bf16.mxu0 %v4076
        %4103 = vmatpush1.bf16.msra.mxu0 %v4075
        %4104 = vmatprep.subr.bf16.mxu0 %v4078
        %4105 = vmatpush1.bf16.msra.mxu0 %v4077
        %4106 = vmatprep.subr.bf16.mxu0 %v4096
        %4107 = vmatpush1.bf16.msra.mxu0 %v4093
        %4108 = vmatprep.subr.bf16.mxu0 0
        %4109 = vmatpush1.bf16.msra.mxu0 0
        %4110 = vmatprep.subr.bf16.mxu0 0
        %4111 = vmatpush1.bf16.msra.mxu0 0
        %4112 = vmatprep.subr.bf16.mxu0 0
        %4113 = vmatpush1.bf16.msra.mxu0 0
        %4114 = vmatprep.subr.bf16.mxu0 0
        %4115 = vmatpush1.bf16.msra.mxu0 0
        %4116 = vmatprep.subr.bf16.mxu0 0
        %4117 = vmatpush1.bf16.msra.mxu0 0
        %4118 = vmatprep.subr.bf16.mxu0 0
        %4119 = vmatpush1.bf16.msra.mxu0 0
        %4120 = vmatprep.subr.bf16.mxu0 0
        %4121 = vmatpush1.bf16.msra.mxu0 0
        %4122 = vmatprep.subr.bf16.mxu0 0
        %4123 = vmatpush1.bf16.msra.mxu0 0
        %4124 = vmatprep.subr.bf16.mxu0 0
        %4125 = vmatpush1.bf16.msra.mxu0 0
        %4126 = vmatprep.subr.bf16.mxu0 0
        %4127 = vmatpush1.bf16.msra.mxu0 0
        %4128 = vmatprep.subr.bf16.mxu0 0
        %4129 = vmatpush1.bf16.msra.mxu0 0
        %4130 = vmatprep.mubr.bf16.mxu0 0
        %4131 = vmatmul.mubr.bf16.gmra.mrb[0].mxu0 %v4090
        %v4132 = vpop.f32.mrb[0].mxu0
        %v4133 = vadd.f32 0.0, %v4132
        %v4134 = vpop.f32.mrb[0].mxu0
        %v4135 = vadd.f32 0.0, %v4134
        %v4136 = vpop.f32.mrb[0].mxu0
        %v4137 = vadd.f32 0.0, %v4136
        %v4138 = vpop.f32.mrb[0].mxu0
        %v4139 = vadd.f32 0.0, %v4138
        %4140 = vdwg.mxu0
        %v4141 = vadd.f32 %v3977, %v4133
        %v4142 = vadd.f32 %v3978, %v4135
        %v4143 = vadd.f32 %v3979, %v4137
        %v4144 = vadd.f32 %v3980, %v4139
        %s4145 = scalar_lea.vmem [#allocation5], 176
        %v4146 = vld [vmem:[%s4145] sm:$0xf]
        %v4147 = vld [vmem:[%s4145 + $0x4] sm:$0xf]
        %v4150 = vunpack.c.l.b16 %v4146
        %v4151 = vunpack.c.l.b16 %v4147
        %v4152 = vpack.c.b16 %v4151, %v4150
        %v4154 = vsel %vm549, %v4152, 0
        %4156 = vmatprep.subr.bf16.mxu0 0
        %4157 = vmatpush1.bf16.msra.mxu0 %v537
        %4158 = vmatprep.subr.bf16.mxu0 0
        %4159 = vmatpush1.bf16.msra.mxu0 %v538
        %4160 = vmatprep.subr.bf16.mxu0 0
        %4161 = vmatpush1.bf16.msra.mxu0 %v539
        %4162 = vmatprep.subr.bf16.mxu0 0
        %4163 = vmatpush1.bf16.msra.mxu0 %v540
        %4164 = vmatprep.subr.bf16.mxu0 0
        %4165 = vmatpush1.bf16.msra.mxu0 %v555
        %4166 = vmatprep.subr.bf16.mxu0 0
        %4167 = vmatpush1.bf16.msra.mxu0 0
        %4168 = vmatprep.subr.bf16.mxu0 0
        %4169 = vmatpush1.bf16.msra.mxu0 0
        %4170 = vmatprep.subr.bf16.mxu0 0
        %4171 = vmatpush1.bf16.msra.mxu0 0
        %4172 = vmatprep.subr.bf16.mxu0 0
        %4173 = vmatpush1.bf16.msra.mxu0 0
        %4174 = vmatprep.subr.bf16.mxu0 0
        %4175 = vmatpush1.bf16.msra.mxu0 0
        %4176 = vmatprep.subr.bf16.mxu0 0
        %4177 = vmatpush1.bf16.msra.mxu0 0
        %4178 = vmatprep.subr.bf16.mxu0 0
        %4179 = vmatpush1.bf16.msra.mxu0 0
        %4180 = vmatprep.subr.bf16.mxu0 0
        %4181 = vmatpush1.bf16.msra.mxu0 0
        %4182 = vmatprep.subr.bf16.mxu0 0
        %4183 = vmatpush1.bf16.msra.mxu0 0
        %4184 = vmatprep.subr.bf16.mxu0 0
        %4185 = vmatpush1.bf16.msra.mxu0 0
        %4186 = vmatprep.subr.bf16.mxu0 0
        %4187 = vmatpush1.bf16.msra.mxu0 0
        %4188 = vmatprep.mubr.bf16.mxu0 0
        %4189 = vmatmul.mubr.bf16.gmra.mrb[0].mxu0 %v4154
        %v4190 = vpop.f32.mrb[0].mxu0
        %v4191 = vadd.f32 0.0, %v4190
        %v4192 = vpop.f32.mrb[0].mxu0
        %v4193 = vpop.f32.mrb[0].mxu0
        %v4194 = vadd.f32 0.0, %v4193
        %v4195 = vpop.f32.mrb[0].mxu0
        %4196 = vdwg.mxu0
        %v4197 = vpack.c.bf16 %v4194, %v4191
        %s4198 = scalar_lea.vmem [#allocation7], 1584
        %v4199 = vld [vmem:[%s4198] sm:$0xff]
        %v4200 = vld [vmem:[%s4198 + $0x8] sm:$0xff]
        %v4201 = vld [vmem:[%s4198 + $0x10] sm:$0xff]
        %v4202 = vld [vmem:[%s4198 + $0x18] sm:$0xff]
        %v4203 = vld [vmem:[%s4198 + $0x20] sm:$0xff]
        %v4204 = vld [vmem:[%s4198 + $0x28] sm:$0xff]
        %v4205 = vld [vmem:[%s4198 + $0x30] sm:$0xff]
        %v4206 = vld [vmem:[%s4198 + $0x38] sm:$0xff]
        %v4207 = vld [vmem:[%s4198 + $0x40] sm:$0xff]
        %v4217 = vunpack.c.l.b16 %v4199
        %v4218 = vunpack.c.h.b16 %v4199
        %v4219 = vunpack.c.l.b16 %v4200
        %v4220 = vunpack.c.h.b16 %v4200
        %v4221 = vunpack.c.l.b16 %v4201
        %v4222 = vunpack.c.h.b16 %v4201
        %v4223 = vunpack.c.l.b16 %v4202
        %v4224 = vunpack.c.h.b16 %v4202
        %v4225 = vunpack.c.l.b16 %v4203
        %v4226 = vunpack.c.h.b16 %v4203
        %v4227 = vunpack.c.l.b16 %v4204
        %v4228 = vunpack.c.h.b16 %v4204
        %v4229 = vunpack.c.l.b16 %v4205
        %v4230 = vunpack.c.h.b16 %v4205
        %v4231 = vunpack.c.l.b16 %v4206
        %v4232 = vunpack.c.h.b16 %v4206
        %v4233 = vunpack.c.l.b16 %v4207
        %v4234 = vunpack.c.h.b16 %v4207
        %v4235 = vpack.c.b16 %v4219, %v4217
        %v4236 = vpack.c.b16 %v4220, %v4218
        %v4237 = vpack.c.b16 %v4223, %v4221
        %v4238 = vpack.c.b16 %v4224, %v4222
        %v4239 = vpack.c.b16 %v4227, %v4225
        %v4240 = vpack.c.b16 %v4228, %v4226
        %v4241 = vpack.c.b16 %v4231, %v4229
        %v4242 = vpack.c.b16 %v4232, %v4230
        %v4243 = vpack.c.b16 %v4233, %v4233
        %v4244 = vpack.c.b16 %v4234, %v4234
        %v4254 = vsel %vm549, %v4197, 0
        %v4257 = vsel %vm553, %v4243, 0
        %v4260 = vsel %vm553, %v4244, 0
        %4262 = vmatprep.subr.bf16.mxu0 %v4236
        %4263 = vmatpush1.bf16.msra.mxu0 %v4235
        %4264 = vmatprep.subr.bf16.mxu0 %v4238
        %4265 = vmatpush1.bf16.msra.mxu0 %v4237
        %4266 = vmatprep.subr.bf16.mxu0 %v4240
        %4267 = vmatpush1.bf16.msra.mxu0 %v4239
        %4268 = vmatprep.subr.bf16.mxu0 %v4242
        %4269 = vmatpush1.bf16.msra.mxu0 %v4241
        %4270 = vmatprep.subr.bf16.mxu0 %v4260
        %4271 = vmatpush1.bf16.msra.mxu0 %v4257
        %4272 = vmatprep.subr.bf16.mxu0 0
        %4273 = vmatpush1.bf16.msra.mxu0 0
        %4274 = vmatprep.subr.bf16.mxu0 0
        %4275 = vmatpush1.bf16.msra.mxu0 0
        %4276 = vmatprep.subr.bf16.mxu0 0
        %4277 = vmatpush1.bf16.msra.mxu0 0
        %4278 = vmatprep.subr.bf16.mxu0 0
        %4279 = vmatpush1.bf16.msra.mxu0 0
        %4280 = vmatprep.subr.bf16.mxu0 0
        %4281 = vmatpush1.bf16.msra.mxu0 0
        %4282 = vmatprep.subr.bf16.mxu0 0
        %4283 = vmatpush1.bf16.msra.mxu0 0
        %4284 = vmatprep.subr.bf16.mxu0 0
        %4285 = vmatpush1.bf16.msra.mxu0 0
        %4286 = vmatprep.subr.bf16.mxu0 0
        %4287 = vmatpush1.bf16.msra.mxu0 0
        %4288 = vmatprep.subr.bf16.mxu0 0
        %4289 = vmatpush1.bf16.msra.mxu0 0
        %4290 = vmatprep.subr.bf16.mxu0 0
        %4291 = vmatpush1.bf16.msra.mxu0 0
        %4292 = vmatprep.subr.bf16.mxu0 0
        %4293 = vmatpush1.bf16.msra.mxu0 0
        %4294 = vmatprep.mubr.bf16.mxu0 0
        %4295 = vmatmul.mubr.bf16.gmra.mrb[0].mxu0 %v4254
        %v4296 = vpop.f32.mrb[0].mxu0
        %v4297 = vadd.f32 0.0, %v4296
        %v4298 = vpop.f32.mrb[0].mxu0
        %v4299 = vadd.f32 0.0, %v4298
        %v4300 = vpop.f32.mrb[0].mxu0
        %v4301 = vadd.f32 0.0, %v4300
        %v4302 = vpop.f32.mrb[0].mxu0
        %v4303 = vadd.f32 0.0, %v4302
        %4304 = vdwg.mxu0
        %v4305 = vadd.f32 %v4141, %v4297
        %v4306 = vadd.f32 %v4142, %v4299
        %v4307 = vadd.f32 %v4143, %v4301
        %v4308 = vadd.f32 %v4144, %v4303
        %s4309 = scalar_lea.vmem [#allocation5], 184
        %v4310 = vld [vmem:[%s4309] sm:$0xf]
        %v4311 = vld [vmem:[%s4309 + $0x4] sm:$0xf]
        %v4314 = vunpack.c.l.b16 %v4310
        %v4315 = vunpack.c.l.b16 %v4311
        %v4316 = vpack.c.b16 %v4315, %v4314
        %v4318 = vsel %vm549, %v4316, 0
        %4320 = vmatprep.subr.bf16.mxu0 0
        %4321 = vmatpush1.bf16.msra.mxu0 %v537
        %4322 = vmatprep.subr.bf16.mxu0 0
        %4323 = vmatpush1.bf16.msra.mxu0 %v538
        %4324 = vmatprep.subr.bf16.mxu0 0
        %4325 = vmatpush1.bf16.msra.mxu0 %v539
        %4326 = vmatprep.subr.bf16.mxu0 0
        %4327 = vmatpush1.bf16.msra.mxu0 %v540
        %4328 = vmatprep.subr.bf16.mxu0 0
        %4329 = vmatpush1.bf16.msra.mxu0 %v555
        %4330 = vmatprep.subr.bf16.mxu0 0
        %4331 = vmatpush1.bf16.msra.mxu0 0
        %4332 = vmatprep.subr.bf16.mxu0 0
        %4333 = vmatpush1.bf16.msra.mxu0 0
        %4334 = vmatprep.subr.bf16.mxu0 0
        %4335 = vmatpush1.bf16.msra.mxu0 0
        %4336 = vmatprep.subr.bf16.mxu0 0
        %4337 = vmatpush1.bf16.msra.mxu0 0
        %4338 = vmatprep.subr.bf16.mxu0 0
        %4339 = vmatpush1.bf16.msra.mxu0 0
        %4340 = vmatprep.subr.bf16.mxu0 0
        %4341 = vmatpush1.bf16.msra.mxu0 0
        %4342 = vmatprep.subr.bf16.mxu0 0
        %4343 = vmatpush1.bf16.msra.mxu0 0
        %4344 = vmatprep.subr.bf16.mxu0 0
        %4345 = vmatpush1.bf16.msra.mxu0 0
        %4346 = vmatprep.subr.bf16.mxu0 0
        %4347 = vmatpush1.bf16.msra.mxu0 0
        %4348 = vmatprep.subr.bf16.mxu0 0
        %4349 = vmatpush1.bf16.msra.mxu0 0
        %4350 = vmatprep.subr.bf16.mxu0 0
        %4351 = vmatpush1.bf16.msra.mxu0 0
        %4352 = vmatprep.mubr.bf16.mxu0 0
        %4353 = vmatmul.mubr.bf16.gmra.mrb[0].mxu0 %v4318
        %v4354 = vpop.f32.mrb[0].mxu0
        %v4355 = vadd.f32 0.0, %v4354
        %v4356 = vpop.f32.mrb[0].mxu0
        %v4357 = vpop.f32.mrb[0].mxu0
        %v4358 = vadd.f32 0.0, %v4357
        %v4359 = vpop.f32.mrb[0].mxu0
        %4360 = vdwg.mxu0
        %v4361 = vpack.c.bf16 %v4358, %v4355
        %s4362 = scalar_lea.vmem [#allocation7], 1656
        %v4363 = vld [vmem:[%s4362] sm:$0xff]
        %v4364 = vld [vmem:[%s4362 + $0x8] sm:$0xff]
        %v4365 = vld [vmem:[%s4362 + $0x10] sm:$0xff]
        %v4366 = vld [vmem:[%s4362 + $0x18] sm:$0xff]
        %v4367 = vld [vmem:[%s4362 + $0x20] sm:$0xff]
        %v4368 = vld [vmem:[%s4362 + $0x28] sm:$0xff]
        %v4369 = vld [vmem:[%s4362 + $0x30] sm:$0xff]
        %v4370 = vld [vmem:[%s4362 + $0x38] sm:$0xff]
        %v4371 = vld [vmem:[%s4362 + $0x40] sm:$0xff]
        %v4381 = vunpack.c.l.b16 %v4363
        %v4382 = vunpack.c.h.b16 %v4363
        %v4383 = vunpack.c.l.b16 %v4364
        %v4384 = vunpack.c.h.b16 %v4364
        %v4385 = vunpack.c.l.b16 %v4365
        %v4386 = vunpack.c.h.b16 %v4365
        %v4387 = vunpack.c.l.b16 %v4366
        %v4388 = vunpack.c.h.b16 %v4366
        %v4389 = vunpack.c.l.b16 %v4367
        %v4390 = vunpack.c.h.b16 %v4367
        %v4391 = vunpack.c.l.b16 %v4368
        %v4392 = vunpack.c.h.b16 %v4368
        %v4393 = vunpack.c.l.b16 %v4369
        %v4394 = vunpack.c.h.b16 %v4369
        %v4395 = vunpack.c.l.b16 %v4370
        %v4396 = vunpack.c.h.b16 %v4370
        %v4397 = vunpack.c.l.b16 %v4371
        %v4398 = vunpack.c.h.b16 %v4371
        %v4399 = vpack.c.b16 %v4383, %v4381
        %v4400 = vpack.c.b16 %v4384, %v4382
        %v4401 = vpack.c.b16 %v4387, %v4385
        %v4402 = vpack.c.b16 %v4388, %v4386
        %v4403 = vpack.c.b16 %v4391, %v4389
        %v4404 = vpack.c.b16 %v4392, %v4390
        %v4405 = vpack.c.b16 %v4395, %v4393
        %v4406 = vpack.c.b16 %v4396, %v4394
        %v4407 = vpack.c.b16 %v4397, %v4397
        %v4408 = vpack.c.b16 %v4398, %v4398
        %v4418 = vsel %vm549, %v4361, 0
        %v4421 = vsel %vm553, %v4407, 0
        %v4424 = vsel %vm553, %v4408, 0
        %4426 = vmatprep.subr.bf16.mxu0 %v4400
        %4427 = vmatpush1.bf16.msra.mxu0 %v4399
        %4428 = vmatprep.subr.bf16.mxu0 %v4402
        %4429 = vmatpush1.bf16.msra.mxu0 %v4401
        %4430 = vmatprep.subr.bf16.mxu0 %v4404
        %4431 = vmatpush1.bf16.msra.mxu0 %v4403
        %4432 = vmatprep.subr.bf16.mxu0 %v4406
        %4433 = vmatpush1.bf16.msra.mxu0 %v4405
        %4434 = vmatprep.subr.bf16.mxu0 %v4424
        %4435 = vmatpush1.bf16.msra.mxu0 %v4421
        %4436 = vmatprep.subr.bf16.mxu0 0
        %4437 = vmatpush1.bf16.msra.mxu0 0
        %4438 = vmatprep.subr.bf16.mxu0 0
        %4439 = vmatpush1.bf16.msra.mxu0 0
        %4440 = vmatprep.subr.bf16.mxu0 0
        %4441 = vmatpush1.bf16.msra.mxu0 0
        %4442 = vmatprep.subr.bf16.mxu0 0
        %4443 = vmatpush1.bf16.msra.mxu0 0
        %4444 = vmatprep.subr.bf16.mxu0 0
        %4445 = vmatpush1.bf16.msra.mxu0 0
        %4446 = vmatprep.subr.bf16.mxu0 0
        %4447 = vmatpush1.bf16.msra.mxu0 0
        %4448 = vmatprep.subr.bf16.mxu0 0
        %4449 = vmatpush1.bf16.msra.mxu0 0
        %4450 = vmatprep.subr.bf16.mxu0 0
        %4451 = vmatpush1.bf16.msra.mxu0 0
        %4452 = vmatprep.subr.bf16.mxu0 0
        %4453 = vmatpush1.bf16.msra.mxu0 0
        %4454 = vmatprep.subr.bf16.mxu0 0
        %4455 = vmatpush1.bf16.msra.mxu0 0
        %4456 = vmatprep.subr.bf16.mxu0 0
        %4457 = vmatpush1.bf16.msra.mxu0 0
        %4458 = vmatprep.mubr.bf16.mxu0 0
        %4459 = vmatmul.mubr.bf16.gmra.mrb[0].mxu0 %v4418
        %v4460 = vpop.f32.mrb[0].mxu0
        %v4461 = vadd.f32 0.0, %v4460
        %v4462 = vpop.f32.mrb[0].mxu0
        %v4463 = vadd.f32 0.0, %v4462
        %v4464 = vpop.f32.mrb[0].mxu0
        %v4465 = vadd.f32 0.0, %v4464
        %v4466 = vpop.f32.mrb[0].mxu0
        %v4467 = vadd.f32 0.0, %v4466
        %4468 = vdwg.mxu0
        %v4469 = vadd.f32 %v4305, %v4461
        %v4470 = vadd.f32 %v4306, %v4463
        %v4471 = vadd.f32 %v4307, %v4465
        %v4472 = vadd.f32 %v4308, %v4467
        %s4473 = scalar_lea.vmem [#allocation5], 192
        %v4474 = vld [vmem:[%s4473] sm:$0xf]
        %v4475 = vld [vmem:[%s4473 + $0x4] sm:$0xf]
        %v4478 = vunpack.c.l.b16 %v4474
        %v4479 = vunpack.c.l.b16 %v4475
        %v4480 = vpack.c.b16 %v4479, %v4478
        %v4482 = vsel %vm549, %v4480, 0
        %4484 = vmatprep.subr.bf16.mxu0 0
        %4485 = vmatpush1.bf16.msra.mxu0 %v537
        %4486 = vmatprep.subr.bf16.mxu0 0
        %4487 = vmatpush1.bf16.msra.mxu0 %v538
        %4488 = vmatprep.subr.bf16.mxu0 0
        %4489 = vmatpush1.bf16.msra.mxu0 %v539
        %4490 = vmatprep.subr.bf16.mxu0 0
        %4491 = vmatpush1.bf16.msra.mxu0 %v540
        %4492 = vmatprep.subr.bf16.mxu0 0
        %4493 = vmatpush1.bf16.msra.mxu0 %v555
        %4494 = vmatprep.subr.bf16.mxu0 0
        %4495 = vmatpush1.bf16.msra.mxu0 0
        %4496 = vmatprep.subr.bf16.mxu0 0
        %4497 = vmatpush1.bf16.msra.mxu0 0
        %4498 = vmatprep.subr.bf16.mxu0 0
        %4499 = vmatpush1.bf16.msra.mxu0 0
        %4500 = vmatprep.subr.bf16.mxu0 0
        %4501 = vmatpush1.bf16.msra.mxu0 0
        %4502 = vmatprep.subr.bf16.mxu0 0
        %4503 = vmatpush1.bf16.msra.mxu0 0
        %4504 = vmatprep.subr.bf16.mxu0 0
        %4505 = vmatpush1.bf16.msra.mxu0 0
        %4506 = vmatprep.subr.bf16.mxu0 0
        %4507 = vmatpush1.bf16.msra.mxu0 0
        %4508 = vmatprep.subr.bf16.mxu0 0
        %4509 = vmatpush1.bf16.msra.mxu0 0
        %4510 = vmatprep.subr.bf16.mxu0 0
        %4511 = vmatpush1.bf16.msra.mxu0 0
        %4512 = vmatprep.subr.bf16.mxu0 0
        %4513 = vmatpush1.bf16.msra.mxu0 0
        %4514 = vmatprep.subr.bf16.mxu0 0
        %4515 = vmatpush1.bf16.msra.mxu0 0
        %4516 = vmatprep.mubr.bf16.mxu0 0
        %4517 = vmatmul.mubr.bf16.gmra.mrb[0].mxu0 %v4482
        %v4518 = vpop.f32.mrb[0].mxu0
        %v4519 = vadd.f32 0.0, %v4518
        %v4520 = vpop.f32.mrb[0].mxu0
        %v4521 = vpop.f32.mrb[0].mxu0
        %v4522 = vadd.f32 0.0, %v4521
        %v4523 = vpop.f32.mrb[0].mxu0
        %4524 = vdwg.mxu0
        %v4525 = vpack.c.bf16 %v4522, %v4519
        %s4526 = scalar_lea.vmem [#allocation7], 1728
        %v4527 = vld [vmem:[%s4526] sm:$0xff]
        %v4528 = vld [vmem:[%s4526 + $0x8] sm:$0xff]
        %v4529 = vld [vmem:[%s4526 + $0x10] sm:$0xff]
        %v4530 = vld [vmem:[%s4526 + $0x18] sm:$0xff]
        %v4531 = vld [vmem:[%s4526 + $0x20] sm:$0xff]
        %v4532 = vld [vmem:[%s4526 + $0x28] sm:$0xff]
        %v4533 = vld [vmem:[%s4526 + $0x30] sm:$0xff]
        %v4534 = vld [vmem:[%s4526 + $0x38] sm:$0xff]
        %v4535 = vld [vmem:[%s4526 + $0x40] sm:$0xff]
        %v4545 = vunpack.c.l.b16 %v4527
        %v4546 = vunpack.c.h.b16 %v4527
        %v4547 = vunpack.c.l.b16 %v4528
        %v4548 = vunpack.c.h.b16 %v4528
        %v4549 = vunpack.c.l.b16 %v4529
        %v4550 = vunpack.c.h.b16 %v4529
        %v4551 = vunpack.c.l.b16 %v4530
        %v4552 = vunpack.c.h.b16 %v4530
        %v4553 = vunpack.c.l.b16 %v4531
        %v4554 = vunpack.c.h.b16 %v4531
        %v4555 = vunpack.c.l.b16 %v4532
        %v4556 = vunpack.c.h.b16 %v4532
        %v4557 = vunpack.c.l.b16 %v4533
        %v4558 = vunpack.c.h.b16 %v4533
        %v4559 = vunpack.c.l.b16 %v4534
        %v4560 = vunpack.c.h.b16 %v4534
        %v4561 = vunpack.c.l.b16 %v4535
        %v4562 = vunpack.c.h.b16 %v4535
        %v4563 = vpack.c.b16 %v4547, %v4545
        %v4564 = vpack.c.b16 %v4548, %v4546
        %v4565 = vpack.c.b16 %v4551, %v4549
        %v4566 = vpack.c.b16 %v4552, %v4550
        %v4567 = vpack.c.b16 %v4555, %v4553
        %v4568 = vpack.c.b16 %v4556, %v4554
        %v4569 = vpack.c.b16 %v4559, %v4557
        %v4570 = vpack.c.b16 %v4560, %v4558
        %v4571 = vpack.c.b16 %v4561, %v4561
        %v4572 = vpack.c.b16 %v4562, %v4562
        %v4582 = vsel %vm549, %v4525, 0
        %v4585 = vsel %vm553, %v4571, 0
        %v4588 = vsel %vm553, %v4572, 0
        %4590 = vmatprep.subr.bf16.mxu0 %v4564
        %4591 = vmatpush1.bf16.msra.mxu0 %v4563
        %4592 = vmatprep.subr.bf16.mxu0 %v4566
        %4593 = vmatpush1.bf16.msra.mxu0 %v4565
        %4594 = vmatprep.subr.bf16.mxu0 %v4568
        %4595 = vmatpush1.bf16.msra.mxu0 %v4567
        %4596 = vmatprep.subr.bf16.mxu0 %v4570
        %4597 = vmatpush1.bf16.msra.mxu0 %v4569
        %4598 = vmatprep.subr.bf16.mxu0 %v4588
        %4599 = vmatpush1.bf16.msra.mxu0 %v4585
        %4600 = vmatprep.subr.bf16.mxu0 0
        %4601 = vmatpush1.bf16.msra.mxu0 0
        %4602 = vmatprep.subr.bf16.mxu0 0
        %4603 = vmatpush1.bf16.msra.mxu0 0
        %4604 = vmatprep.subr.bf16.mxu0 0
        %4605 = vmatpush1.bf16.msra.mxu0 0
        %4606 = vmatprep.subr.bf16.mxu0 0
        %4607 = vmatpush1.bf16.msra.mxu0 0
        %4608 = vmatprep.subr.bf16.mxu0 0
        %4609 = vmatpush1.bf16.msra.mxu0 0
        %4610 = vmatprep.subr.bf16.mxu0 0
        %4611 = vmatpush1.bf16.msra.mxu0 0
        %4612 = vmatprep.subr.bf16.mxu0 0
        %4613 = vmatpush1.bf16.msra.mxu0 0
        %4614 = vmatprep.subr.bf16.mxu0 0
        %4615 = vmatpush1.bf16.msra.mxu0 0
        %4616 = vmatprep.subr.bf16.mxu0 0
        %4617 = vmatpush1.bf16.msra.mxu0 0
        %4618 = vmatprep.subr.bf16.mxu0 0
        %4619 = vmatpush1.bf16.msra.mxu0 0
        %4620 = vmatprep.subr.bf16.mxu0 0
        %4621 = vmatpush1.bf16.msra.mxu0 0
        %4622 = vmatprep.mubr.bf16.mxu0 0
        %4623 = vmatmul.mubr.bf16.gmra.mrb[0].mxu0 %v4582
        %v4624 = vpop.f32.mrb[0].mxu0
        %v4625 = vadd.f32 0.0, %v4624
        %v4626 = vpop.f32.mrb[0].mxu0
        %v4627 = vadd.f32 0.0, %v4626
        %v4628 = vpop.f32.mrb[0].mxu0
        %v4629 = vadd.f32 0.0, %v4628
        %v4630 = vpop.f32.mrb[0].mxu0
        %v4631 = vadd.f32 0.0, %v4630
        %4632 = vdwg.mxu0
        %v4633 = vadd.f32 %v4469, %v4625
        %v4634 = vadd.f32 %v4470, %v4627
        %v4635 = vadd.f32 %v4471, %v4629
        %v4636 = vadd.f32 %v4472, %v4631
        %s4637 = scalar_lea.vmem [#allocation5], 200
        %v4638 = vld [vmem:[%s4637] sm:$0xf]
        %v4639 = vld [vmem:[%s4637 + $0x4] sm:$0xf]
        %v4642 = vunpack.c.l.b16 %v4638
        %v4643 = vunpack.c.l.b16 %v4639
        %v4644 = vpack.c.b16 %v4643, %v4642
        %v4646 = vsel %vm549, %v4644, 0
        %4648 = vmatprep.subr.bf16.mxu0 0
        %4649 = vmatpush1.bf16.msra.mxu0 %v537
        %4650 = vmatprep.subr.bf16.mxu0 0
        %4651 = vmatpush1.bf16.msra.mxu0 %v538
        %4652 = vmatprep.subr.bf16.mxu0 0
        %4653 = vmatpush1.bf16.msra.mxu0 %v539
        %4654 = vmatprep.subr.bf16.mxu0 0
        %4655 = vmatpush1.bf16.msra.mxu0 %v540
        %4656 = vmatprep.subr.bf16.mxu0 0
        %4657 = vmatpush1.bf16.msra.mxu0 %v555
        %4658 = vmatprep.subr.bf16.mxu0 0
        %4659 = vmatpush1.bf16.msra.mxu0 0
        %4660 = vmatprep.subr.bf16.mxu0 0
        %4661 = vmatpush1.bf16.msra.mxu0 0
        %4662 = vmatprep.subr.bf16.mxu0 0
        %4663 = vmatpush1.bf16.msra.mxu0 0
        %4664 = vmatprep.subr.bf16.mxu0 0
        %4665 = vmatpush1.bf16.msra.mxu0 0
        %4666 = vmatprep.subr.bf16.mxu0 0
        %4667 = vmatpush1.bf16.msra.mxu0 0
        %4668 = vmatprep.subr.bf16.mxu0 0
        %4669 = vmatpush1.bf16.msra.mxu0 0
        %4670 = vmatprep.subr.bf16.mxu0 0
        %4671 = vmatpush1.bf16.msra.mxu0 0
        %4672 = vmatprep.subr.bf16.mxu0 0
        %4673 = vmatpush1.bf16.msra.mxu0 0
        %4674 = vmatprep.subr.bf16.mxu0 0
        %4675 = vmatpush1.bf16.msra.mxu0 0
        %4676 = vmatprep.subr.bf16.mxu0 0
        %4677 = vmatpush1.bf16.msra.mxu0 0
        %4678 = vmatprep.subr.bf16.mxu0 0
        %4679 = vmatpush1.bf16.msra.mxu0 0
        %4680 = vmatprep.mubr.bf16.mxu0 0
        %4681 = vmatmul.mubr.bf16.gmra.mrb[0].mxu0 %v4646
        %v4682 = vpop.f32.mrb[0].mxu0
        %v4683 = vadd.f32 0.0, %v4682
        %v4684 = vpop.f32.mrb[0].mxu0
        %v4685 = vpop.f32.mrb[0].mxu0
        %v4686 = vadd.f32 0.0, %v4685
        %v4687 = vpop.f32.mrb[0].mxu0
        %4688 = vdwg.mxu0
        %v4689 = vpack.c.bf16 %v4686, %v4683
        %s4690 = scalar_lea.vmem [#allocation7], 1800
        %v4691 = vld [vmem:[%s4690] sm:$0xff]
        %v4692 = vld [vmem:[%s4690 + $0x8] sm:$0xff]
        %v4693 = vld [vmem:[%s4690 + $0x10] sm:$0xff]
        %v4694 = vld [vmem:[%s4690 + $0x18] sm:$0xff]
        %v4695 = vld [vmem:[%s4690 + $0x20] sm:$0xff]
        %v4696 = vld [vmem:[%s4690 + $0x28] sm:$0xff]
        %v4697 = vld [vmem:[%s4690 + $0x30] sm:$0xff]
        %v4698 = vld [vmem:[%s4690 + $0x38] sm:$0xff]
        %v4699 = vld [vmem:[%s4690 + $0x40] sm:$0xff]
        %v4709 = vunpack.c.l.b16 %v4691
        %v4710 = vunpack.c.h.b16 %v4691
        %v4711 = vunpack.c.l.b16 %v4692
        %v4712 = vunpack.c.h.b16 %v4692
        %v4713 = vunpack.c.l.b16 %v4693
        %v4714 = vunpack.c.h.b16 %v4693
        %v4715 = vunpack.c.l.b16 %v4694
        %v4716 = vunpack.c.h.b16 %v4694
        %v4717 = vunpack.c.l.b16 %v4695
        %v4718 = vunpack.c.h.b16 %v4695
        %v4719 = vunpack.c.l.b16 %v4696
        %v4720 = vunpack.c.h.b16 %v4696
        %v4721 = vunpack.c.l.b16 %v4697
        %v4722 = vunpack.c.h.b16 %v4697
        %v4723 = vunpack.c.l.b16 %v4698
        %v4724 = vunpack.c.h.b16 %v4698
        %v4725 = vunpack.c.l.b16 %v4699
        %v4726 = vunpack.c.h.b16 %v4699
        %v4727 = vpack.c.b16 %v4711, %v4709
        %v4728 = vpack.c.b16 %v4712, %v4710
        %v4729 = vpack.c.b16 %v4715, %v4713
        %v4730 = vpack.c.b16 %v4716, %v4714
        %v4731 = vpack.c.b16 %v4719, %v4717
        %v4732 = vpack.c.b16 %v4720, %v4718
        %v4733 = vpack.c.b16 %v4723, %v4721
        %v4734 = vpack.c.b16 %v4724, %v4722
        %v4735 = vpack.c.b16 %v4725, %v4725
        %v4736 = vpack.c.b16 %v4726, %v4726
        %v4746 = vsel %vm549, %v4689, 0
        %v4749 = vsel %vm553, %v4735, 0
        %v4752 = vsel %vm553, %v4736, 0
        %4754 = vmatprep.subr.bf16.mxu0 %v4728
        %4755 = vmatpush1.bf16.msra.mxu0 %v4727
        %4756 = vmatprep.subr.bf16.mxu0 %v4730
        %4757 = vmatpush1.bf16.msra.mxu0 %v4729
        %4758 = vmatprep.subr.bf16.mxu0 %v4732
        %4759 = vmatpush1.bf16.msra.mxu0 %v4731
        %4760 = vmatprep.subr.bf16.mxu0 %v4734
        %4761 = vmatpush1.bf16.msra.mxu0 %v4733
        %4762 = vmatprep.subr.bf16.mxu0 %v4752
        %4763 = vmatpush1.bf16.msra.mxu0 %v4749
        %4764 = vmatprep.subr.bf16.mxu0 0
        %4765 = vmatpush1.bf16.msra.mxu0 0
        %4766 = vmatprep.subr.bf16.mxu0 0
        %4767 = vmatpush1.bf16.msra.mxu0 0
        %4768 = vmatprep.subr.bf16.mxu0 0
        %4769 = vmatpush1.bf16.msra.mxu0 0
        %4770 = vmatprep.subr.bf16.mxu0 0
        %4771 = vmatpush1.bf16.msra.mxu0 0
        %4772 = vmatprep.subr.bf16.mxu0 0
        %4773 = vmatpush1.bf16.msra.mxu0 0
        %4774 = vmatprep.subr.bf16.mxu0 0
        %4775 = vmatpush1.bf16.msra.mxu0 0
        %4776 = vmatprep.subr.bf16.mxu0 0
        %4777 = vmatpush1.bf16.msra.mxu0 0
        %4778 = vmatprep.subr.bf16.mxu0 0
        %4779 = vmatpush1.bf16.msra.mxu0 0
        %4780 = vmatprep.subr.bf16.mxu0 0
        %4781 = vmatpush1.bf16.msra.mxu0 0
        %4782 = vmatprep.subr.bf16.mxu0 0
        %4783 = vmatpush1.bf16.msra.mxu0 0
        %4784 = vmatprep.subr.bf16.mxu0 0
        %4785 = vmatpush1.bf16.msra.mxu0 0
        %4786 = vmatprep.mubr.bf16.mxu0 0
        %4787 = vmatmul.mubr.bf16.gmra.mrb[0].mxu0 %v4746
        %v4788 = vpop.f32.mrb[0].mxu0
        %v4789 = vadd.f32 0.0, %v4788
        %v4790 = vpop.f32.mrb[0].mxu0
        %v4791 = vadd.f32 0.0, %v4790
        %v4792 = vpop.f32.mrb[0].mxu0
        %v4793 = vadd.f32 0.0, %v4792
        %v4794 = vpop.f32.mrb[0].mxu0
        %v4795 = vadd.f32 0.0, %v4794
        %4796 = vdwg.mxu0
        %v4797 = vadd.f32 %v4633, %v4789
        %v4798 = vadd.f32 %v4634, %v4791
        %v4799 = vadd.f32 %v4635, %v4793
        %v4800 = vadd.f32 %v4636, %v4795
        %s4801 = scalar_lea.vmem [#allocation5], 208
        %v4802 = vld [vmem:[%s4801] sm:$0xf]
        %v4803 = vld [vmem:[%s4801 + $0x4] sm:$0xf]
        %v4806 = vunpack.c.l.b16 %v4802
        %v4807 = vunpack.c.l.b16 %v4803
        %v4808 = vpack.c.b16 %v4807, %v4806
        %v4810 = vsel %vm549, %v4808, 0
        %4812 = vmatprep.subr.bf16.mxu0 0
        %4813 = vmatpush1.bf16.msra.mxu0 %v537
        %4814 = vmatprep.subr.bf16.mxu0 0
        %4815 = vmatpush1.bf16.msra.mxu0 %v538
        %4816 = vmatprep.subr.bf16.mxu0 0
        %4817 = vmatpush1.bf16.msra.mxu0 %v539
        %4818 = vmatprep.subr.bf16.mxu0 0
        %4819 = vmatpush1.bf16.msra.mxu0 %v540
        %4820 = vmatprep.subr.bf16.mxu0 0
        %4821 = vmatpush1.bf16.msra.mxu0 %v555
        %4822 = vmatprep.subr.bf16.mxu0 0
        %4823 = vmatpush1.bf16.msra.mxu0 0
        %4824 = vmatprep.subr.bf16.mxu0 0
        %4825 = vmatpush1.bf16.msra.mxu0 0
        %4826 = vmatprep.subr.bf16.mxu0 0
        %4827 = vmatpush1.bf16.msra.mxu0 0
        %4828 = vmatprep.subr.bf16.mxu0 0
        %4829 = vmatpush1.bf16.msra.mxu0 0
        %4830 = vmatprep.subr.bf16.mxu0 0
        %4831 = vmatpush1.bf16.msra.mxu0 0
        %4832 = vmatprep.subr.bf16.mxu0 0
        %4833 = vmatpush1.bf16.msra.mxu0 0
        %4834 = vmatprep.subr.bf16.mxu0 0
        %4835 = vmatpush1.bf16.msra.mxu0 0
        %4836 = vmatprep.subr.bf16.mxu0 0
        %4837 = vmatpush1.bf16.msra.mxu0 0
        %4838 = vmatprep.subr.bf16.mxu0 0
        %4839 = vmatpush1.bf16.msra.mxu0 0
        %4840 = vmatprep.subr.bf16.mxu0 0
        %4841 = vmatpush1.bf16.msra.mxu0 0
        %4842 = vmatprep.subr.bf16.mxu0 0
        %4843 = vmatpush1.bf16.msra.mxu0 0
        %4844 = vmatprep.mubr.bf16.mxu0 0
        %4845 = vmatmul.mubr.bf16.gmra.mrb[0].mxu0 %v4810
        %v4846 = vpop.f32.mrb[0].mxu0
        %v4847 = vadd.f32 0.0, %v4846
        %v4848 = vpop.f32.mrb[0].mxu0
        %v4849 = vpop.f32.mrb[0].mxu0
        %v4850 = vadd.f32 0.0, %v4849
        %v4851 = vpop.f32.mrb[0].mxu0
        %4852 = vdwg.mxu0
        %v4853 = vpack.c.bf16 %v4850, %v4847
        %s4854 = scalar_lea.vmem [#allocation7], 1872
        %v4855 = vld [vmem:[%s4854] sm:$0xff]
        %v4856 = vld [vmem:[%s4854 + $0x8] sm:$0xff]
        %v4857 = vld [vmem:[%s4854 + $0x10] sm:$0xff]
        %v4858 = vld [vmem:[%s4854 + $0x18] sm:$0xff]
        %v4859 = vld [vmem:[%s4854 + $0x20] sm:$0xff]
        %v4860 = vld [vmem:[%s4854 + $0x28] sm:$0xff]
        %v4861 = vld [vmem:[%s4854 + $0x30] sm:$0xff]
        %v4862 = vld [vmem:[%s4854 + $0x38] sm:$0xff]
        %v4863 = vld [vmem:[%s4854 + $0x40] sm:$0xff]
        %v4873 = vunpack.c.l.b16 %v4855
        %v4874 = vunpack.c.h.b16 %v4855
        %v4875 = vunpack.c.l.b16 %v4856
        %v4876 = vunpack.c.h.b16 %v4856
        %v4877 = vunpack.c.l.b16 %v4857
        %v4878 = vunpack.c.h.b16 %v4857
        %v4879 = vunpack.c.l.b16 %v4858
        %v4880 = vunpack.c.h.b16 %v4858
        %v4881 = vunpack.c.l.b16 %v4859
        %v4882 = vunpack.c.h.b16 %v4859
        %v4883 = vunpack.c.l.b16 %v4860
        %v4884 = vunpack.c.h.b16 %v4860
        %v4885 = vunpack.c.l.b16 %v4861
        %v4886 = vunpack.c.h.b16 %v4861
        %v4887 = vunpack.c.l.b16 %v4862
        %v4888 = vunpack.c.h.b16 %v4862
        %v4889 = vunpack.c.l.b16 %v4863
        %v4890 = vunpack.c.h.b16 %v4863
        %v4891 = vpack.c.b16 %v4875, %v4873
        %v4892 = vpack.c.b16 %v4876, %v4874
        %v4893 = vpack.c.b16 %v4879, %v4877
        %v4894 = vpack.c.b16 %v4880, %v4878
        %v4895 = vpack.c.b16 %v4883, %v4881
        %v4896 = vpack.c.b16 %v4884, %v4882
        %v4897 = vpack.c.b16 %v4887, %v4885
        %v4898 = vpack.c.b16 %v4888, %v4886
        %v4899 = vpack.c.b16 %v4889, %v4889
        %v4900 = vpack.c.b16 %v4890, %v4890
        %v4910 = vsel %vm549, %v4853, 0
        %v4913 = vsel %vm553, %v4899, 0
        %v4916 = vsel %vm553, %v4900, 0
        %4918 = vmatprep.subr.bf16.mxu0 %v4892
        %4919 = vmatpush1.bf16.msra.mxu0 %v4891
        %4920 = vmatprep.subr.bf16.mxu0 %v4894
        %4921 = vmatpush1.bf16.msra.mxu0 %v4893
        %4922 = vmatprep.subr.bf16.mxu0 %v4896
        %4923 = vmatpush1.bf16.msra.mxu0 %v4895
        %4924 = vmatprep.subr.bf16.mxu0 %v4898
        %4925 = vmatpush1.bf16.msra.mxu0 %v4897
        %4926 = vmatprep.subr.bf16.mxu0 %v4916
        %4927 = vmatpush1.bf16.msra.mxu0 %v4913
        %4928 = vmatprep.subr.bf16.mxu0 0
        %4929 = vmatpush1.bf16.msra.mxu0 0
        %4930 = vmatprep.subr.bf16.mxu0 0
        %4931 = vmatpush1.bf16.msra.mxu0 0
        %4932 = vmatprep.subr.bf16.mxu0 0
        %4933 = vmatpush1.bf16.msra.mxu0 0
        %4934 = vmatprep.subr.bf16.mxu0 0
        %4935 = vmatpush1.bf16.msra.mxu0 0
        %4936 = vmatprep.subr.bf16.mxu0 0
        %4937 = vmatpush1.bf16.msra.mxu0 0
        %4938 = vmatprep.subr.bf16.mxu0 0
        %4939 = vmatpush1.bf16.msra.mxu0 0
        %4940 = vmatprep.subr.bf16.mxu0 0
        %4941 = vmatpush1.bf16.msra.mxu0 0
        %4942 = vmatprep.subr.bf16.mxu0 0
        %4943 = vmatpush1.bf16.msra.mxu0 0
        %4944 = vmatprep.subr.bf16.mxu0 0
        %4945 = vmatpush1.bf16.msra.mxu0 0
        %4946 = vmatprep.subr.bf16.mxu0 0
        %4947 = vmatpush1.bf16.msra.mxu0 0
        %4948 = vmatprep.subr.bf16.mxu0 0
        %4949 = vmatpush1.bf16.msra.mxu0 0
        %4950 = vmatprep.mubr.bf16.mxu0 0
        %4951 = vmatmul.mubr.bf16.gmra.mrb[0].mxu0 %v4910
        %v4952 = vpop.f32.mrb[0].mxu0
        %v4953 = vadd.f32 0.0, %v4952
        %v4954 = vpop.f32.mrb[0].mxu0
        %v4955 = vadd.f32 0.0, %v4954
        %v4956 = vpop.f32.mrb[0].mxu0
        %v4957 = vadd.f32 0.0, %v4956
        %v4958 = vpop.f32.mrb[0].mxu0
        %v4959 = vadd.f32 0.0, %v4958
        %4960 = vdwg.mxu0
        %v4961 = vadd.f32 %v4797, %v4953
        %v4962 = vadd.f32 %v4798, %v4955
        %v4963 = vadd.f32 %v4799, %v4957
        %v4964 = vadd.f32 %v4800, %v4959
        %s4965 = scalar_lea.vmem [#allocation5], 216
        %v4966 = vld [vmem:[%s4965] sm:$0xf]
        %v4967 = vld [vmem:[%s4965 + $0x4] sm:$0xf]
        %v4970 = vunpack.c.l.b16 %v4966
        %v4971 = vunpack.c.l.b16 %v4967
        %v4972 = vpack.c.b16 %v4971, %v4970
        %v4974 = vsel %vm549, %v4972, 0
        %4976 = vmatprep.subr.bf16.mxu0 0
        %4977 = vmatpush1.bf16.msra.mxu0 %v537
        %4978 = vmatprep.subr.bf16.mxu0 0
        %4979 = vmatpush1.bf16.msra.mxu0 %v538
        %4980 = vmatprep.subr.bf16.mxu0 0
        %4981 = vmatpush1.bf16.msra.mxu0 %v539
        %4982 = vmatprep.subr.bf16.mxu0 0
        %4983 = vmatpush1.bf16.msra.mxu0 %v540
        %4984 = vmatprep.subr.bf16.mxu0 0
        %4985 = vmatpush1.bf16.msra.mxu0 %v555
        %4986 = vmatprep.subr.bf16.mxu0 0
        %4987 = vmatpush1.bf16.msra.mxu0 0
        %4988 = vmatprep.subr.bf16.mxu0 0
        %4989 = vmatpush1.bf16.msra.mxu0 0
        %4990 = vmatprep.subr.bf16.mxu0 0
        %4991 = vmatpush1.bf16.msra.mxu0 0
        %4992 = vmatprep.subr.bf16.mxu0 0
        %4993 = vmatpush1.bf16.msra.mxu0 0
        %4994 = vmatprep.subr.bf16.mxu0 0
        %4995 = vmatpush1.bf16.msra.mxu0 0
        %4996 = vmatprep.subr.bf16.mxu0 0
        %4997 = vmatpush1.bf16.msra.mxu0 0
        %4998 = vmatprep.subr.bf16.mxu0 0
        %4999 = vmatpush1.bf16.msra.mxu0 0
        %5000 = vmatprep.subr.bf16.mxu0 0
        %5001 = vmatpush1.bf16.msra.mxu0 0
        %5002 = vmatprep.subr.bf16.mxu0 0
        %5003 = vmatpush1.bf16.msra.mxu0 0
        %5004 = vmatprep.subr.bf16.mxu0 0
        %5005 = vmatpush1.bf16.msra.mxu0 0
        %5006 = vmatprep.subr.bf16.mxu0 0
        %5007 = vmatpush1.bf16.msra.mxu0 0
        %5008 = vmatprep.mubr.bf16.mxu0 0
        %5009 = vmatmul.mubr.bf16.gmra.mrb[0].mxu0 %v4974
        %v5010 = vpop.f32.mrb[0].mxu0
        %v5011 = vadd.f32 0.0, %v5010
        %v5012 = vpop.f32.mrb[0].mxu0
        %v5013 = vpop.f32.mrb[0].mxu0
        %v5014 = vadd.f32 0.0, %v5013
        %v5015 = vpop.f32.mrb[0].mxu0
        %5016 = vdwg.mxu0
        %v5017 = vpack.c.bf16 %v5014, %v5011
        %s5018 = scalar_lea.vmem [#allocation7], 1944
        %v5019 = vld [vmem:[%s5018] sm:$0xff]
        %v5020 = vld [vmem:[%s5018 + $0x8] sm:$0xff]
        %v5021 = vld [vmem:[%s5018 + $0x10] sm:$0xff]
        %v5022 = vld [vmem:[%s5018 + $0x18] sm:$0xff]
        %v5023 = vld [vmem:[%s5018 + $0x20] sm:$0xff]
        %v5024 = vld [vmem:[%s5018 + $0x28] sm:$0xff]
        %v5025 = vld [vmem:[%s5018 + $0x30] sm:$0xff]
        %v5026 = vld [vmem:[%s5018 + $0x38] sm:$0xff]
        %v5027 = vld [vmem:[%s5018 + $0x40] sm:$0xff]
        %v5037 = vunpack.c.l.b16 %v5019
        %v5038 = vunpack.c.h.b16 %v5019
        %v5039 = vunpack.c.l.b16 %v5020
        %v5040 = vunpack.c.h.b16 %v5020
        %v5041 = vunpack.c.l.b16 %v5021
        %v5042 = vunpack.c.h.b16 %v5021
        %v5043 = vunpack.c.l.b16 %v5022
        %v5044 = vunpack.c.h.b16 %v5022
        %v5045 = vunpack.c.l.b16 %v5023
        %v5046 = vunpack.c.h.b16 %v5023
        %v5047 = vunpack.c.l.b16 %v5024
        %v5048 = vunpack.c.h.b16 %v5024
        %v5049 = vunpack.c.l.b16 %v5025
        %v5050 = vunpack.c.h.b16 %v5025
        %v5051 = vunpack.c.l.b16 %v5026
        %v5052 = vunpack.c.h.b16 %v5026
        %v5053 = vunpack.c.l.b16 %v5027
        %v5054 = vunpack.c.h.b16 %v5027
        %v5055 = vpack.c.b16 %v5039, %v5037
        %v5056 = vpack.c.b16 %v5040, %v5038
        %v5057 = vpack.c.b16 %v5043, %v5041
        %v5058 = vpack.c.b16 %v5044, %v5042
        %v5059 = vpack.c.b16 %v5047, %v5045
        %v5060 = vpack.c.b16 %v5048, %v5046
        %v5061 = vpack.c.b16 %v5051, %v5049
        %v5062 = vpack.c.b16 %v5052, %v5050
        %v5063 = vpack.c.b16 %v5053, %v5053
        %v5064 = vpack.c.b16 %v5054, %v5054
        %v5074 = vsel %vm549, %v5017, 0
        %v5077 = vsel %vm553, %v5063, 0
        %v5080 = vsel %vm553, %v5064, 0
        %5082 = vmatprep.subr.bf16.mxu0 %v5056
        %5083 = vmatpush1.bf16.msra.mxu0 %v5055
        %5084 = vmatprep.subr.bf16.mxu0 %v5058
        %5085 = vmatpush1.bf16.msra.mxu0 %v5057
        %5086 = vmatprep.subr.bf16.mxu0 %v5060
        %5087 = vmatpush1.bf16.msra.mxu0 %v5059
        %5088 = vmatprep.subr.bf16.mxu0 %v5062
        %5089 = vmatpush1.bf16.msra.mxu0 %v5061
        %5090 = vmatprep.subr.bf16.mxu0 %v5080
        %5091 = vmatpush1.bf16.msra.mxu0 %v5077
        %5092 = vmatprep.subr.bf16.mxu0 0
        %5093 = vmatpush1.bf16.msra.mxu0 0
        %5094 = vmatprep.subr.bf16.mxu0 0
        %5095 = vmatpush1.bf16.msra.mxu0 0
        %5096 = vmatprep.subr.bf16.mxu0 0
        %5097 = vmatpush1.bf16.msra.mxu0 0
        %5098 = vmatprep.subr.bf16.mxu0 0
        %5099 = vmatpush1.bf16.msra.mxu0 0
        %5100 = vmatprep.subr.bf16.mxu0 0
        %5101 = vmatpush1.bf16.msra.mxu0 0
        %5102 = vmatprep.subr.bf16.mxu0 0
        %5103 = vmatpush1.bf16.msra.mxu0 0
        %5104 = vmatprep.subr.bf16.mxu0 0
        %5105 = vmatpush1.bf16.msra.mxu0 0
        %5106 = vmatprep.subr.bf16.mxu0 0
        %5107 = vmatpush1.bf16.msra.mxu0 0
        %5108 = vmatprep.subr.bf16.mxu0 0
        %5109 = vmatpush1.bf16.msra.mxu0 0
        %5110 = vmatprep.subr.bf16.mxu0 0
        %5111 = vmatpush1.bf16.msra.mxu0 0
        %5112 = vmatprep.subr.bf16.mxu0 0
        %5113 = vmatpush1.bf16.msra.mxu0 0
        %5114 = vmatprep.mubr.bf16.mxu0 0
        %5115 = vmatmul.mubr.bf16.gmra.mrb[0].mxu0 %v5074
        %v5116 = vpop.f32.mrb[0].mxu0
        %v5117 = vadd.f32 0.0, %v5116
        %v5118 = vpop.f32.mrb[0].mxu0
        %v5119 = vadd.f32 0.0, %v5118
        %v5120 = vpop.f32.mrb[0].mxu0
        %v5121 = vadd.f32 0.0, %v5120
        %v5122 = vpop.f32.mrb[0].mxu0
        %v5123 = vadd.f32 0.0, %v5122
        %5124 = vdwg.mxu0
        %v5125 = vadd.f32 %v4961, %v5117
        %v5126 = vadd.f32 %v4962, %v5119
        %v5127 = vadd.f32 %v4963, %v5121
        %v5128 = vadd.f32 %v4964, %v5123
        %s5129 = scalar_lea.vmem [#allocation5], 224
        %v5130 = vld [vmem:[%s5129] sm:$0xf]
        %v5131 = vld [vmem:[%s5129 + $0x4] sm:$0xf]
        %v5134 = vunpack.c.l.b16 %v5130
        %v5135 = vunpack.c.l.b16 %v5131
        %v5136 = vpack.c.b16 %v5135, %v5134
        %v5138 = vsel %vm549, %v5136, 0
        %5140 = vmatprep.subr.bf16.mxu0 0
        %5141 = vmatpush1.bf16.msra.mxu0 %v537
        %5142 = vmatprep.subr.bf16.mxu0 0
        %5143 = vmatpush1.bf16.msra.mxu0 %v538
        %5144 = vmatprep.subr.bf16.mxu0 0
        %5145 = vmatpush1.bf16.msra.mxu0 %v539
        %5146 = vmatprep.subr.bf16.mxu0 0
        %5147 = vmatpush1.bf16.msra.mxu0 %v540
        %5148 = vmatprep.subr.bf16.mxu0 0
        %5149 = vmatpush1.bf16.msra.mxu0 %v555
        %5150 = vmatprep.subr.bf16.mxu0 0
        %5151 = vmatpush1.bf16.msra.mxu0 0
        %5152 = vmatprep.subr.bf16.mxu0 0
        %5153 = vmatpush1.bf16.msra.mxu0 0
        %5154 = vmatprep.subr.bf16.mxu0 0
        %5155 = vmatpush1.bf16.msra.mxu0 0
        %5156 = vmatprep.subr.bf16.mxu0 0
        %5157 = vmatpush1.bf16.msra.mxu0 0
        %5158 = vmatprep.subr.bf16.mxu0 0
        %5159 = vmatpush1.bf16.msra.mxu0 0
        %5160 = vmatprep.subr.bf16.mxu0 0
        %5161 = vmatpush1.bf16.msra.mxu0 0
        %5162 = vmatprep.subr.bf16.mxu0 0
        %5163 = vmatpush1.bf16.msra.mxu0 0
        %5164 = vmatprep.subr.bf16.mxu0 0
        %5165 = vmatpush1.bf16.msra.mxu0 0
        %5166 = vmatprep.subr.bf16.mxu0 0
        %5167 = vmatpush1.bf16.msra.mxu0 0
        %5168 = vmatprep.subr.bf16.mxu0 0
        %5169 = vmatpush1.bf16.msra.mxu0 0
        %5170 = vmatprep.subr.bf16.mxu0 0
        %5171 = vmatpush1.bf16.msra.mxu0 0
        %5172 = vmatprep.mubr.bf16.mxu0 0
        %5173 = vmatmul.mubr.bf16.gmra.mrb[0].mxu0 %v5138
        %v5174 = vpop.f32.mrb[0].mxu0
        %v5175 = vadd.f32 0.0, %v5174
        %v5176 = vpop.f32.mrb[0].mxu0
        %v5177 = vpop.f32.mrb[0].mxu0
        %v5178 = vadd.f32 0.0, %v5177
        %v5179 = vpop.f32.mrb[0].mxu0
        %5180 = vdwg.mxu0
        %v5181 = vpack.c.bf16 %v5178, %v5175
        %s5182 = scalar_lea.vmem [#allocation7], 2016
        %v5183 = vld [vmem:[%s5182] sm:$0xff]
        %v5184 = vld [vmem:[%s5182 + $0x8] sm:$0xff]
        %v5185 = vld [vmem:[%s5182 + $0x10] sm:$0xff]
        %v5186 = vld [vmem:[%s5182 + $0x18] sm:$0xff]
        %v5187 = vld [vmem:[%s5182 + $0x20] sm:$0xff]
        %v5188 = vld [vmem:[%s5182 + $0x28] sm:$0xff]
        %v5189 = vld [vmem:[%s5182 + $0x30] sm:$0xff]
        %v5190 = vld [vmem:[%s5182 + $0x38] sm:$0xff]
        %v5191 = vld [vmem:[%s5182 + $0x40] sm:$0xff]
        %v5201 = vunpack.c.l.b16 %v5183
        %v5202 = vunpack.c.h.b16 %v5183
        %v5203 = vunpack.c.l.b16 %v5184
        %v5204 = vunpack.c.h.b16 %v5184
        %v5205 = vunpack.c.l.b16 %v5185
        %v5206 = vunpack.c.h.b16 %v5185
        %v5207 = vunpack.c.l.b16 %v5186
        %v5208 = vunpack.c.h.b16 %v5186
        %v5209 = vunpack.c.l.b16 %v5187
        %v5210 = vunpack.c.h.b16 %v5187
        %v5211 = vunpack.c.l.b16 %v5188
        %v5212 = vunpack.c.h.b16 %v5188
        %v5213 = vunpack.c.l.b16 %v5189
        %v5214 = vunpack.c.h.b16 %v5189
        %v5215 = vunpack.c.l.b16 %v5190
        %v5216 = vunpack.c.h.b16 %v5190
        %v5217 = vunpack.c.l.b16 %v5191
        %v5218 = vunpack.c.h.b16 %v5191
        %v5219 = vpack.c.b16 %v5203, %v5201
        %v5220 = vpack.c.b16 %v5204, %v5202
        %v5221 = vpack.c.b16 %v5207, %v5205
        %v5222 = vpack.c.b16 %v5208, %v5206
        %v5223 = vpack.c.b16 %v5211, %v5209
        %v5224 = vpack.c.b16 %v5212, %v5210
        %v5225 = vpack.c.b16 %v5215, %v5213
        %v5226 = vpack.c.b16 %v5216, %v5214
        %v5227 = vpack.c.b16 %v5217, %v5217
        %v5228 = vpack.c.b16 %v5218, %v5218
        %v5238 = vsel %vm549, %v5181, 0
        %v5241 = vsel %vm553, %v5227, 0
        %v5244 = vsel %vm553, %v5228, 0
        %5246 = vmatprep.subr.bf16.mxu0 %v5220
        %5247 = vmatpush1.bf16.msra.mxu0 %v5219
        %5248 = vmatprep.subr.bf16.mxu0 %v5222
        %5249 = vmatpush1.bf16.msra.mxu0 %v5221
        %5250 = vmatprep.subr.bf16.mxu0 %v5224
        %5251 = vmatpush1.bf16.msra.mxu0 %v5223
        %5252 = vmatprep.subr.bf16.mxu0 %v5226
        %5253 = vmatpush1.bf16.msra.mxu0 %v5225
        %5254 = vmatprep.subr.bf16.mxu0 %v5244
        %5255 = vmatpush1.bf16.msra.mxu0 %v5241
        %5256 = vmatprep.subr.bf16.mxu0 0
        %5257 = vmatpush1.bf16.msra.mxu0 0
        %5258 = vmatprep.subr.bf16.mxu0 0
        %5259 = vmatpush1.bf16.msra.mxu0 0
        %5260 = vmatprep.subr.bf16.mxu0 0
        %5261 = vmatpush1.bf16.msra.mxu0 0
        %5262 = vmatprep.subr.bf16.mxu0 0
        %5263 = vmatpush1.bf16.msra.mxu0 0
        %5264 = vmatprep.subr.bf16.mxu0 0
        %5265 = vmatpush1.bf16.msra.mxu0 0
        %5266 = vmatprep.subr.bf16.mxu0 0
        %5267 = vmatpush1.bf16.msra.mxu0 0
        %5268 = vmatprep.subr.bf16.mxu0 0
        %5269 = vmatpush1.bf16.msra.mxu0 0
        %5270 = vmatprep.subr.bf16.mxu0 0
        %5271 = vmatpush1.bf16.msra.mxu0 0
        %5272 = vmatprep.subr.bf16.mxu0 0
        %5273 = vmatpush1.bf16.msra.mxu0 0
        %5274 = vmatprep.subr.bf16.mxu0 0
        %5275 = vmatpush1.bf16.msra.mxu0 0
        %5276 = vmatprep.subr.bf16.mxu0 0
        %5277 = vmatpush1.bf16.msra.mxu0 0
        %5278 = vmatprep.mubr.bf16.mxu0 0
        %5279 = vmatmul.mubr.bf16.gmra.mrb[0].mxu0 %v5238
        %v5280 = vpop.f32.mrb[0].mxu0
        %v5281 = vadd.f32 0.0, %v5280
        %v5282 = vpop.f32.mrb[0].mxu0
        %v5283 = vadd.f32 0.0, %v5282
        %v5284 = vpop.f32.mrb[0].mxu0
        %v5285 = vadd.f32 0.0, %v5284
        %v5286 = vpop.f32.mrb[0].mxu0
        %v5287 = vadd.f32 0.0, %v5286
        %5288 = vdwg.mxu0
        %v5289 = vadd.f32 %v5125, %v5281
        %v5290 = vadd.f32 %v5126, %v5283
        %v5291 = vadd.f32 %v5127, %v5285
        %v5292 = vadd.f32 %v5128, %v5287
        %s5293 = scalar_lea.vmem [#allocation5], 232
        %v5294 = vld [vmem:[%s5293] sm:$0xf]
        %v5295 = vld [vmem:[%s5293 + $0x4] sm:$0xf]
        %v5298 = vunpack.c.l.b16 %v5294
        %v5299 = vunpack.c.l.b16 %v5295
        %v5300 = vpack.c.b16 %v5299, %v5298
        %v5302 = vsel %vm549, %v5300, 0
        %5304 = vmatprep.subr.bf16.mxu0 0
        %5305 = vmatpush1.bf16.msra.mxu0 %v537
        %5306 = vmatprep.subr.bf16.mxu0 0
        %5307 = vmatpush1.bf16.msra.mxu0 %v538
        %5308 = vmatprep.subr.bf16.mxu0 0
        %5309 = vmatpush1.bf16.msra.mxu0 %v539
        %5310 = vmatprep.subr.bf16.mxu0 0
        %5311 = vmatpush1.bf16.msra.mxu0 %v540
        %5312 = vmatprep.subr.bf16.mxu0 0
        %5313 = vmatpush1.bf16.msra.mxu0 %v555
        %5314 = vmatprep.subr.bf16.mxu0 0
        %5315 = vmatpush1.bf16.msra.mxu0 0
        %5316 = vmatprep.subr.bf16.mxu0 0
        %5317 = vmatpush1.bf16.msra.mxu0 0
        %5318 = vmatprep.subr.bf16.mxu0 0
        %5319 = vmatpush1.bf16.msra.mxu0 0
        %5320 = vmatprep.subr.bf16.mxu0 0
        %5321 = vmatpush1.bf16.msra.mxu0 0
        %5322 = vmatprep.subr.bf16.mxu0 0
        %5323 = vmatpush1.bf16.msra.mxu0 0
        %5324 = vmatprep.subr.bf16.mxu0 0
        %5325 = vmatpush1.bf16.msra.mxu0 0
        %5326 = vmatprep.subr.bf16.mxu0 0
        %5327 = vmatpush1.bf16.msra.mxu0 0
        %5328 = vmatprep.subr.bf16.mxu0 0
        %5329 = vmatpush1.bf16.msra.mxu0 0
        %5330 = vmatprep.subr.bf16.mxu0 0
        %5331 = vmatpush1.bf16.msra.mxu0 0
        %5332 = vmatprep.subr.bf16.mxu0 0
        %5333 = vmatpush1.bf16.msra.mxu0 0
        %5334 = vmatprep.subr.bf16.mxu0 0
        %5335 = vmatpush1.bf16.msra.mxu0 0
        %5336 = vmatprep.mubr.bf16.mxu0 0
        %5337 = vmatmul.mubr.bf16.gmra.mrb[0].mxu0 %v5302
        %v5338 = vpop.f32.mrb[0].mxu0
        %v5339 = vadd.f32 0.0, %v5338
        %v5340 = vpop.f32.mrb[0].mxu0
        %v5341 = vpop.f32.mrb[0].mxu0
        %v5342 = vadd.f32 0.0, %v5341
        %v5343 = vpop.f32.mrb[0].mxu0
        %5344 = vdwg.mxu0
        %v5345 = vpack.c.bf16 %v5342, %v5339
        %s5346 = scalar_lea.vmem [#allocation7], 2088
        %v5347 = vld [vmem:[%s5346] sm:$0xff]
        %v5348 = vld [vmem:[%s5346 + $0x8] sm:$0xff]
        %v5349 = vld [vmem:[%s5346 + $0x10] sm:$0xff]
        %v5350 = vld [vmem:[%s5346 + $0x18] sm:$0xff]
        %v5351 = vld [vmem:[%s5346 + $0x20] sm:$0xff]
        %v5352 = vld [vmem:[%s5346 + $0x28] sm:$0xff]
        %v5353 = vld [vmem:[%s5346 + $0x30] sm:$0xff]
        %v5354 = vld [vmem:[%s5346 + $0x38] sm:$0xff]
        %v5355 = vld [vmem:[%s5346 + $0x40] sm:$0xff]
        %v5365 = vunpack.c.l.b16 %v5347
        %v5366 = vunpack.c.h.b16 %v5347
        %v5367 = vunpack.c.l.b16 %v5348
        %v5368 = vunpack.c.h.b16 %v5348
        %v5369 = vunpack.c.l.b16 %v5349
        %v5370 = vunpack.c.h.b16 %v5349
        %v5371 = vunpack.c.l.b16 %v5350
        %v5372 = vunpack.c.h.b16 %v5350
        %v5373 = vunpack.c.l.b16 %v5351
        %v5374 = vunpack.c.h.b16 %v5351
        %v5375 = vunpack.c.l.b16 %v5352
        %v5376 = vunpack.c.h.b16 %v5352
        %v5377 = vunpack.c.l.b16 %v5353
        %v5378 = vunpack.c.h.b16 %v5353
        %v5379 = vunpack.c.l.b16 %v5354
        %v5380 = vunpack.c.h.b16 %v5354
        %v5381 = vunpack.c.l.b16 %v5355
        %v5382 = vunpack.c.h.b16 %v5355
        %v5383 = vpack.c.b16 %v5367, %v5365
        %v5384 = vpack.c.b16 %v5368, %v5366
        %v5385 = vpack.c.b16 %v5371, %v5369
        %v5386 = vpack.c.b16 %v5372, %v5370
        %v5387 = vpack.c.b16 %v5375, %v5373
        %v5388 = vpack.c.b16 %v5376, %v5374
        %v5389 = vpack.c.b16 %v5379, %v5377
        %v5390 = vpack.c.b16 %v5380, %v5378
        %v5391 = vpack.c.b16 %v5381, %v5381
        %v5392 = vpack.c.b16 %v5382, %v5382
        %v5402 = vsel %vm549, %v5345, 0
        %v5405 = vsel %vm553, %v5391, 0
        %v5408 = vsel %vm553, %v5392, 0
        %5410 = vmatprep.subr.bf16.mxu0 %v5384
        %5411 = vmatpush1.bf16.msra.mxu0 %v5383
        %5412 = vmatprep.subr.bf16.mxu0 %v5386
        %5413 = vmatpush1.bf16.msra.mxu0 %v5385
        %5414 = vmatprep.subr.bf16.mxu0 %v5388
        %5415 = vmatpush1.bf16.msra.mxu0 %v5387
        %5416 = vmatprep.subr.bf16.mxu0 %v5390
        %5417 = vmatpush1.bf16.msra.mxu0 %v5389
        %5418 = vmatprep.subr.bf16.mxu0 %v5408
        %5419 = vmatpush1.bf16.msra.mxu0 %v5405
        %5420 = vmatprep.subr.bf16.mxu0 0
        %5421 = vmatpush1.bf16.msra.mxu0 0
        %5422 = vmatprep.subr.bf16.mxu0 0
        %5423 = vmatpush1.bf16.msra.mxu0 0
        %5424 = vmatprep.subr.bf16.mxu0 0
        %5425 = vmatpush1.bf16.msra.mxu0 0
        %5426 = vmatprep.subr.bf16.mxu0 0
        %5427 = vmatpush1.bf16.msra.mxu0 0
        %5428 = vmatprep.subr.bf16.mxu0 0
        %5429 = vmatpush1.bf16.msra.mxu0 0
        %5430 = vmatprep.subr.bf16.mxu0 0
        %5431 = vmatpush1.bf16.msra.mxu0 0
        %5432 = vmatprep.subr.bf16.mxu0 0
        %5433 = vmatpush1.bf16.msra.mxu0 0
        %5434 = vmatprep.subr.bf16.mxu0 0
        %5435 = vmatpush1.bf16.msra.mxu0 0
        %5436 = vmatprep.subr.bf16.mxu0 0
        %5437 = vmatpush1.bf16.msra.mxu0 0
        %5438 = vmatprep.subr.bf16.mxu0 0
        %5439 = vmatpush1.bf16.msra.mxu0 0
        %5440 = vmatprep.subr.bf16.mxu0 0
        %5441 = vmatpush1.bf16.msra.mxu0 0
        %5442 = vmatprep.mubr.bf16.mxu0 0
        %5443 = vmatmul.mubr.bf16.gmra.mrb[0].mxu0 %v5402
        %v5444 = vpop.f32.mrb[0].mxu0
        %v5445 = vadd.f32 0.0, %v5444
        %v5446 = vpop.f32.mrb[0].mxu0
        %v5447 = vadd.f32 0.0, %v5446
        %v5448 = vpop.f32.mrb[0].mxu0
        %v5449 = vadd.f32 0.0, %v5448
        %v5450 = vpop.f32.mrb[0].mxu0
        %v5451 = vadd.f32 0.0, %v5450
        %5452 = vdwg.mxu0
        %v5453 = vadd.f32 %v5289, %v5445
        %v5454 = vadd.f32 %v5290, %v5447
        %v5455 = vadd.f32 %v5291, %v5449
        %v5456 = vadd.f32 %v5292, %v5451
        %v5457 = vld [vmem:[#allocation8] sm:$0x3]
        %v5459 = vlaneseq
        %v5460 = vshrl.u32 %v5459, 7
        %v5461 = vsub.s32 0, %v5460
        %v5462 = vrot.slane %v5457, %v5461
        %v5463 = vlaneseq
        %v5464 = vshrl.u32 %v5463, 7
        %v5465 = vsub.s32 1, %v5464
        %v5466 = vrot.slane %v5457, %v5465
        %v5469 = vadd.f32 %v5453, %v5462
        %v5470 = vadd.f32 %v5454, %v5466
        %v5471 = vadd.f32 %v5455, %v5462
        %v5472 = vadd.f32 %v5456, %v5466
        %v5473 = vmax.f32 %v5469, 0.0
        %v5474 = vmax.f32 %v5470, 0.0
        %v5475 = vmax.f32 %v5471, 0.0
        %v5476 = vmax.f32 %v5472, 0.0
        %v5477 = vpack.c.bf16 %v5475, %v5473
        %v5478 = vpack.c.bf16 %v5476, %v5474
        %v5479 = vld [vmem:[#allocation10] sm:$0xf]
        %vm5480 = vcmask 130048
        %v5482 = vsel %vm5480, %v5479, 0
        %5484 = vmatprep.subr.bf16.mxu0 %v5478
        %5485 = vmatpush1.bf16.msra.mxu0 %v5477
        %5486 = vmatprep.subr.bf16.mxu0 0
        %5487 = vmatpush1.bf16.msra.mxu0 0
        %5488 = vmatprep.subr.bf16.mxu0 0
        %5489 = vmatpush1.bf16.msra.mxu0 0
        %5490 = vmatprep.subr.bf16.mxu0 0
        %5491 = vmatpush1.bf16.msra.mxu0 0
        %5492 = vmatprep.subr.bf16.mxu0 0
        %5493 = vmatpush1.bf16.msra.mxu0 0
        %5494 = vmatprep.subr.bf16.mxu0 0
        %5495 = vmatpush1.bf16.msra.mxu0 0
        %5496 = vmatprep.subr.bf16.mxu0 0
        %5497 = vmatpush1.bf16.msra.mxu0 0
        %5498 = vmatprep.subr.bf16.mxu0 0
        %5499 = vmatpush1.bf16.msra.mxu0 0
        %5500 = vmatprep.subr.bf16.mxu0 0
        %5501 = vmatpush1.bf16.msra.mxu0 0
        %5502 = vmatprep.subr.bf16.mxu0 0
        %5503 = vmatpush1.bf16.msra.mxu0 0
        %5504 = vmatprep.subr.bf16.mxu0 0
        %5505 = vmatpush1.bf16.msra.mxu0 0
        %5506 = vmatprep.subr.bf16.mxu0 0
        %5507 = vmatpush1.bf16.msra.mxu0 0
        %5508 = vmatprep.subr.bf16.mxu0 0
        %5509 = vmatpush1.bf16.msra.mxu0 0
        %5510 = vmatprep.subr.bf16.mxu0 0
        %5511 = vmatpush1.bf16.msra.mxu0 0
        %5512 = vmatprep.subr.bf16.mxu0 0
        %5513 = vmatpush1.bf16.msra.mxu0 0
        %5514 = vmatprep.subr.bf16.mxu0 0
        %5515 = vmatpush1.bf16.msra.mxu0 0
        %5516 = vmatprep.mubr.bf16.mxu0 0
        %5517 = vmatmul.mubr.bf16.gmra.mrb[0].mxu0 %v5482
        %v5518 = vpop.f32.mrb[0].mxu0
        %v5519 = vadd.f32 0.0, %v5518
        %v5520 = vpop.f32.mrb[0].mxu0
        %v5521 = vadd.f32 0.0, %v5520
        %v5522 = vpop.f32.mrb[0].mxu0
        %v5523 = vpop.f32.mrb[0].mxu0
        %5524 = vdwg.mxu0
        %v5525 = vpack.c.bf16 %v5519, %v5519
        %v5526 = vpack.c.bf16 %v5521, %v5521
        %v5527 = vld [vmem:[%s5] sm:$0xff]
        %v5528 = vld [vmem:[%s5 + $0x8] sm:$0xff]
        %v5529 = vld [vmem:[%s5 + $0x10] sm:$0xff]
        %v5530 = vld [vmem:[%s5 + $0x18] sm:$0xff]
        %v5531 = vld [vmem:[%s5 + $0x20] sm:$0xff]
        %v5532 = vld [vmem:[%s5 + $0x28] sm:$0xff]
        %v5533 = vld [vmem:[%s5 + $0x30] sm:$0xff]
        %v5534 = vld [vmem:[%s5 + $0x38] sm:$0xff]
        %v5535 = vld [vmem:[%s5 + $0x40] sm:$0xff]
        %v5536 = vld [vmem:[%s5 + $0x48] sm:$0xff]
        %v5537 = vld [vmem:[%s5 + $0x50] sm:$0xff]
        %v5538 = vld [vmem:[%s5 + $0x58] sm:$0xff]
        %v5539 = vld [vmem:[%s5 + $0x60] sm:$0xff]
        %v5540 = vld [vmem:[%s5 + $0x68] sm:$0xff]
        %v5541 = vld [vmem:[%s5 + $0x70] sm:$0xff]
        %v5542 = vld [vmem:[%s5 + $0x78] sm:$0xff]
        %v5543 = vld [vmem:[%s5 + $0x80] sm:$0xff]
        %v5544 = vld [vmem:[%s5 + $0x88] sm:$0xff]
        %v5545 = vld [vmem:[%s5 + $0x90] sm:$0xff]
        %v5546 = vld [vmem:[%s5 + $0x98] sm:$0xff]
        %v5547 = vld [vmem:[%s5 + $0xa0] sm:$0xff]
        %v5548 = vld [vmem:[%s5 + $0xa8] sm:$0xff]
        %v5549 = vld [vmem:[%s5 + $0xb0] sm:$0xff]
        %v5550 = vld [vmem:[%s5 + $0xb8] sm:$0xff]
        %v5551 = vld [vmem:[%s5 + $0xc0] sm:$0xff]
        %v5552 = vld [vmem:[%s5 + $0xc8] sm:$0xff]
        %v5553 = vld [vmem:[%s5 + $0xd0] sm:$0xff]
        %v5554 = vld [vmem:[%s5 + $0xd8] sm:$0xff]
        %v5555 = vld [vmem:[%s5 + $0xe0] sm:$0xff]
        %v5556 = vld [vmem:[%s5 + $0xe8] sm:$0xff]
        %s5557 = scalar_lea.vmem [#allocation10], 4
        %v5558 = vld [vmem:[%s5557] sm:$0xf]
        %v5560 = vsel %vm5480, %v5558, 0
        %5562 = vmatprep.subr.bf16.mxu0 %v5478
        %5563 = vmatpush1.bf16.msra.mxu0 %v5477
        %5564 = vmatprep.subr.bf16.mxu0 0
        %5565 = vmatpush1.bf16.msra.mxu0 0
        %5566 = vmatprep.subr.bf16.mxu0 0
        %5567 = vmatpush1.bf16.msra.mxu0 0
        %5568 = vmatprep.subr.bf16.mxu0 0
        %5569 = vmatpush1.bf16.msra.mxu0 0
        %5570 = vmatprep.subr.bf16.mxu0 0
        %5571 = vmatpush1.bf16.msra.mxu0 0
        %5572 = vmatprep.subr.bf16.mxu0 0
        %5573 = vmatpush1.bf16.msra.mxu0 0
        %5574 = vmatprep.subr.bf16.mxu0 0
        %5575 = vmatpush1.bf16.msra.mxu0 0
        %5576 = vmatprep.subr.bf16.mxu0 0
        %5577 = vmatpush1.bf16.msra.mxu0 0
        %5578 = vmatprep.subr.bf16.mxu0 0
        %5579 = vmatpush1.bf16.msra.mxu0 0
        %5580 = vmatprep.subr.bf16.mxu0 0
        %5581 = vmatpush1.bf16.msra.mxu0 0
        %5582 = vmatprep.subr.bf16.mxu0 0
        %5583 = vmatpush1.bf16.msra.mxu0 0
        %5584 = vmatprep.subr.bf16.mxu0 0
        %5585 = vmatpush1.bf16.msra.mxu0 0
        %5586 = vmatprep.subr.bf16.mxu0 0
        %5587 = vmatpush1.bf16.msra.mxu0 0
        %5588 = vmatprep.subr.bf16.mxu0 0
        %5589 = vmatpush1.bf16.msra.mxu0 0
        %5590 = vmatprep.subr.bf16.mxu0 0
        %5591 = vmatpush1.bf16.msra.mxu0 0
        %5592 = vmatprep.subr.bf16.mxu0 0
        %5593 = vmatpush1.bf16.msra.mxu0 0
        %5594 = vmatprep.mubr.bf16.mxu0 0
        %5595 = vmatmul.mubr.bf16.gmra.mrb[0].mxu0 %v5560
        %v5596 = vpop.f32.mrb[0].mxu0
        %v5597 = vadd.f32 0.0, %v5596
        %v5598 = vpop.f32.mrb[0].mxu0
        %v5599 = vadd.f32 0.0, %v5598
        %v5600 = vpop.f32.mrb[0].mxu0
        %v5601 = vpop.f32.mrb[0].mxu0
        %5602 = vdwg.mxu0
        %v5603 = vpack.c.bf16 %v5597, %v5597
        %v5604 = vpack.c.bf16 %v5599, %v5599
        %s5605 = scalar_lea.vmem %s5, 240
        %v5606 = vld [vmem:[%s5605] sm:$0xff]
        %v5607 = vld [vmem:[%s5605 + $0x8] sm:$0xff]
        %v5608 = vld [vmem:[%s5605 + $0x10] sm:$0xff]
        %v5609 = vld [vmem:[%s5605 + $0x18] sm:$0xff]
        %v5610 = vld [vmem:[%s5605 + $0x20] sm:$0xff]
        %v5611 = vld [vmem:[%s5605 + $0x28] sm:$0xff]
        %v5612 = vld [vmem:[%s5605 + $0x30] sm:$0xff]
        %v5613 = vld [vmem:[%s5605 + $0x38] sm:$0xff]
        %v5614 = vld [vmem:[%s5605 + $0x40] sm:$0xff]
        %v5615 = vld [vmem:[%s5605 + $0x48] sm:$0xff]
        %v5616 = vld [vmem:[%s5605 + $0x50] sm:$0xff]
        %v5617 = vld [vmem:[%s5605 + $0x58] sm:$0xff]
        %v5618 = vld [vmem:[%s5605 + $0x60] sm:$0xff]
        %v5619 = vld [vmem:[%s5605 + $0x68] sm:$0xff]
        %v5620 = vld [vmem:[%s5605 + $0x70] sm:$0xff]
        %v5621 = vld [vmem:[%s5605 + $0x78] sm:$0xff]
        %v5622 = vld [vmem:[%s5605 + $0x80] sm:$0xff]
        %v5623 = vld [vmem:[%s5605 + $0x88] sm:$0xff]
        %v5624 = vld [vmem:[%s5605 + $0x90] sm:$0xff]
        %v5625 = vld [vmem:[%s5605 + $0x98] sm:$0xff]
        %v5626 = vld [vmem:[%s5605 + $0xa0] sm:$0xff]
        %v5627 = vld [vmem:[%s5605 + $0xa8] sm:$0xff]
        %v5628 = vld [vmem:[%s5605 + $0xb0] sm:$0xff]
        %v5629 = vld [vmem:[%s5605 + $0xb8] sm:$0xff]
        %v5630 = vld [vmem:[%s5605 + $0xc0] sm:$0xff]
        %v5631 = vld [vmem:[%s5605 + $0xc8] sm:$0xff]
        %v5632 = vld [vmem:[%s5605 + $0xd0] sm:$0xff]
        %v5633 = vld [vmem:[%s5605 + $0xd8] sm:$0xff]
        %v5634 = vld [vmem:[%s5605 + $0xe0] sm:$0xff]
        %v5635 = vld [vmem:[%s5605 + $0xe8] sm:$0xff]
        %v5666 = vunpack.c.l.b16 %v5606
        %v5667 = vunpack.c.h.b16 %v5606
        %v5668 = vunpack.c.l.b16 %v5607
        %v5669 = vunpack.c.h.b16 %v5607
        %v5670 = vunpack.c.l.b16 %v5608
        %v5671 = vunpack.c.h.b16 %v5608
        %v5672 = vunpack.c.l.b16 %v5609
        %v5673 = vunpack.c.h.b16 %v5609
        %v5674 = vunpack.c.l.b16 %v5610
        %v5675 = vunpack.c.h.b16 %v5610
        %v5676 = vunpack.c.l.b16 %v5611
        %v5677 = vunpack.c.h.b16 %v5611
        %v5678 = vunpack.c.l.b16 %v5612
        %v5679 = vunpack.c.h.b16 %v5612
        %v5680 = vunpack.c.l.b16 %v5613
        %v5681 = vunpack.c.h.b16 %v5613
        %v5682 = vunpack.c.l.b16 %v5614
        %v5683 = vunpack.c.h.b16 %v5614
        %v5684 = vunpack.c.l.b16 %v5615
        %v5685 = vunpack.c.h.b16 %v5615
        %v5686 = vunpack.c.l.b16 %v5616
        %v5687 = vunpack.c.h.b16 %v5616
        %v5688 = vunpack.c.l.b16 %v5617
        %v5689 = vunpack.c.h.b16 %v5617
        %v5690 = vunpack.c.l.b16 %v5618
        %v5691 = vunpack.c.h.b16 %v5618
        %v5692 = vunpack.c.l.b16 %v5619
        %v5693 = vunpack.c.h.b16 %v5619
        %v5694 = vunpack.c.l.b16 %v5620
        %v5695 = vunpack.c.h.b16 %v5620
        %v5696 = vunpack.c.l.b16 %v5621
        %v5697 = vunpack.c.h.b16 %v5621
        %v5698 = vunpack.c.l.b16 %v5622
        %v5699 = vunpack.c.h.b16 %v5622
        %v5700 = vunpack.c.l.b16 %v5623
        %v5701 = vunpack.c.h.b16 %v5623
        %v5702 = vunpack.c.l.b16 %v5624
        %v5703 = vunpack.c.h.b16 %v5624
        %v5704 = vunpack.c.l.b16 %v5625
        %v5705 = vunpack.c.h.b16 %v5625
        %v5706 = vunpack.c.l.b16 %v5626
        %v5707 = vunpack.c.h.b16 %v5626
        %v5708 = vunpack.c.l.b16 %v5627
        %v5709 = vunpack.c.h.b16 %v5627
        %v5710 = vunpack.c.l.b16 %v5628
        %v5711 = vunpack.c.h.b16 %v5628
        %v5712 = vunpack.c.l.b16 %v5629
        %v5713 = vunpack.c.h.b16 %v5629
        %v5714 = vunpack.c.l.b16 %v5630
        %v5715 = vunpack.c.h.b16 %v5630
        %v5716 = vunpack.c.l.b16 %v5631
        %v5717 = vunpack.c.h.b16 %v5631
        %v5718 = vunpack.c.l.b16 %v5632
        %v5719 = vunpack.c.h.b16 %v5632
        %v5720 = vunpack.c.l.b16 %v5633
        %v5721 = vunpack.c.h.b16 %v5633
        %v5722 = vunpack.c.l.b16 %v5634
        %v5723 = vunpack.c.h.b16 %v5634
        %v5724 = vunpack.c.l.b16 %v5635
        %v5725 = vunpack.c.h.b16 %v5635
        %v5726 = vpack.c.b16 %v5668, %v5666
        %v5727 = vpack.c.b16 %v5669, %v5667
        %v5728 = vpack.c.b16 %v5672, %v5670
        %v5729 = vpack.c.b16 %v5673, %v5671
        %v5730 = vpack.c.b16 %v5676, %v5674
        %v5731 = vpack.c.b16 %v5677, %v5675
        %v5732 = vpack.c.b16 %v5680, %v5678
        %v5733 = vpack.c.b16 %v5681, %v5679
        %v5734 = vpack.c.b16 %v5684, %v5682
        %v5735 = vpack.c.b16 %v5685, %v5683
        %v5736 = vpack.c.b16 %v5688, %v5686
        %v5737 = vpack.c.b16 %v5689, %v5687
        %v5738 = vpack.c.b16 %v5692, %v5690
        %v5739 = vpack.c.b16 %v5693, %v5691
        %v5740 = vpack.c.b16 %v5696, %v5694
        %v5741 = vpack.c.b16 %v5697, %v5695
        %v5742 = vpack.c.b16 %v5700, %v5698
        %v5743 = vpack.c.b16 %v5701, %v5699
        %v5744 = vpack.c.b16 %v5704, %v5702
        %v5745 = vpack.c.b16 %v5705, %v5703
        %v5746 = vpack.c.b16 %v5708, %v5706
        %v5747 = vpack.c.b16 %v5709, %v5707
        %v5748 = vpack.c.b16 %v5712, %v5710
        %v5749 = vpack.c.b16 %v5713, %v5711
        %v5750 = vpack.c.b16 %v5716, %v5714
        %v5751 = vpack.c.b16 %v5717, %v5715
        %v5752 = vpack.c.b16 %v5720, %v5718
        %v5753 = vpack.c.b16 %v5721, %v5719
        %v5754 = vpack.c.b16 %v5724, %v5722
        %v5755 = vpack.c.b16 %v5725, %v5723
        %vm5786 = vcmask 916480
        %v5788 = vsel %vm5786, %v5604, 0
        %5790 = vmatprep.subr.bf16.mxu0 %v5727
        %5791 = vmatpush1.bf16.msra.mxu0 %v5726
        %5792 = vmatprep.subr.bf16.mxu0 %v5729
        %5793 = vmatpush1.bf16.msra.mxu0 %v5728
        %5794 = vmatprep.subr.bf16.mxu0 %v5731
        %5795 = vmatpush1.bf16.msra.mxu0 %v5730
        %5796 = vmatprep.subr.bf16.mxu0 %v5733
        %5797 = vmatpush1.bf16.msra.mxu0 %v5732
        %5798 = vmatprep.subr.bf16.mxu0 %v5735
        %5799 = vmatpush1.bf16.msra.mxu0 %v5734
        %5800 = vmatprep.subr.bf16.mxu0 %v5737
        %5801 = vmatpush1.bf16.msra.mxu0 %v5736
        %5802 = vmatprep.subr.bf16.mxu0 %v5739
        %5803 = vmatpush1.bf16.msra.mxu0 %v5738
        %5804 = vmatprep.subr.bf16.mxu0 %v5741
        %5805 = vmatpush1.bf16.msra.mxu0 %v5740
        %5806 = vmatprep.subr.bf16.mxu0 %v5743
        %5807 = vmatpush1.bf16.msra.mxu0 %v5742
        %5808 = vmatprep.subr.bf16.mxu0 %v5745
        %5809 = vmatpush1.bf16.msra.mxu0 %v5744
        %5810 = vmatprep.subr.bf16.mxu0 %v5747
        %5811 = vmatpush1.bf16.msra.mxu0 %v5746
        %5812 = vmatprep.subr.bf16.mxu0 %v5749
        %5813 = vmatpush1.bf16.msra.mxu0 %v5748
        %5814 = vmatprep.subr.bf16.mxu0 %v5751
        %5815 = vmatpush1.bf16.msra.mxu0 %v5750
        %5816 = vmatprep.subr.bf16.mxu0 %v5753
        %5817 = vmatpush1.bf16.msra.mxu0 %v5752
        %5818 = vmatprep.subr.bf16.mxu0 %v5755
        %5819 = vmatpush1.bf16.msra.mxu0 %v5754
        %5820 = vmatprep.subr.bf16.mxu0 0
        %5821 = vmatpush1.bf16.msra.mxu0 0
        %5822 = vmatprep.mubr.bf16.mxu0 %v5788
        %5823 = vmatmul.mubr.bf16.gmra.mrb[0].mxu0 %v5603
        %v5824 = vpop.f32.mrb[0].mxu0
        %v5825 = vadd.f32 0.0, %v5824
        %v5826 = vpop.f32.mrb[0].mxu0
        %v5827 = vadd.f32 0.0, %v5826
        %v5828 = vpop.f32.mrb[0].mxu0
        %v5829 = vpop.f32.mrb[0].mxu0
        %5830 = vdwg.mxu0
        %v5861 = vunpack.c.l.b16 %v5527
        %v5862 = vunpack.c.h.b16 %v5527
        %v5863 = vunpack.c.l.b16 %v5528
        %v5864 = vunpack.c.h.b16 %v5528
        %v5865 = vunpack.c.l.b16 %v5529
        %v5866 = vunpack.c.h.b16 %v5529
        %v5867 = vunpack.c.l.b16 %v5530
        %v5868 = vunpack.c.h.b16 %v5530
        %v5869 = vunpack.c.l.b16 %v5531
        %v5870 = vunpack.c.h.b16 %v5531
        %v5871 = vunpack.c.l.b16 %v5532
        %v5872 = vunpack.c.h.b16 %v5532
        %v5873 = vunpack.c.l.b16 %v5533
        %v5874 = vunpack.c.h.b16 %v5533
        %v5875 = vunpack.c.l.b16 %v5534
        %v5876 = vunpack.c.h.b16 %v5534
        %v5877 = vunpack.c.l.b16 %v5535
        %v5878 = vunpack.c.h.b16 %v5535
        %v5879 = vunpack.c.l.b16 %v5536
        %v5880 = vunpack.c.h.b16 %v5536
        %v5881 = vunpack.c.l.b16 %v5537
        %v5882 = vunpack.c.h.b16 %v5537
        %v5883 = vunpack.c.l.b16 %v5538
        %v5884 = vunpack.c.h.b16 %v5538
        %v5885 = vunpack.c.l.b16 %v5539
        %v5886 = vunpack.c.h.b16 %v5539
        %v5887 = vunpack.c.l.b16 %v5540
        %v5888 = vunpack.c.h.b16 %v5540
        %v5889 = vunpack.c.l.b16 %v5541
        %v5890 = vunpack.c.h.b16 %v5541
        %v5891 = vunpack.c.l.b16 %v5542
        %v5892 = vunpack.c.h.b16 %v5542
        %v5893 = vunpack.c.l.b16 %v5543
        %v5894 = vunpack.c.h.b16 %v5543
        %v5895 = vunpack.c.l.b16 %v5544
        %v5896 = vunpack.c.h.b16 %v5544
        %v5897 = vunpack.c.l.b16 %v5545
        %v5898 = vunpack.c.h.b16 %v5545
        %v5899 = vunpack.c.l.b16 %v5546
        %v5900 = vunpack.c.h.b16 %v5546
        %v5901 = vunpack.c.l.b16 %v5547
        %v5902 = vunpack.c.h.b16 %v5547
        %v5903 = vunpack.c.l.b16 %v5548
        %v5904 = vunpack.c.h.b16 %v5548
        %v5905 = vunpack.c.l.b16 %v5549
        %v5906 = vunpack.c.h.b16 %v5549
        %v5907 = vunpack.c.l.b16 %v5550
        %v5908 = vunpack.c.h.b16 %v5550
        %v5909 = vunpack.c.l.b16 %v5551
        %v5910 = vunpack.c.h.b16 %v5551
        %v5911 = vunpack.c.l.b16 %v5552
        %v5912 = vunpack.c.h.b16 %v5552
        %v5913 = vunpack.c.l.b16 %v5553
        %v5914 = vunpack.c.h.b16 %v5553
        %v5915 = vunpack.c.l.b16 %v5554
        %v5916 = vunpack.c.h.b16 %v5554
        %v5917 = vunpack.c.l.b16 %v5555
        %v5918 = vunpack.c.h.b16 %v5555
        %v5919 = vunpack.c.l.b16 %v5556
        %v5920 = vunpack.c.h.b16 %v5556
        %v5921 = vpack.c.b16 %v5863, %v5861
        %v5922 = vpack.c.b16 %v5864, %v5862
        %v5923 = vpack.c.b16 %v5867, %v5865
        %v5924 = vpack.c.b16 %v5868, %v5866
        %v5925 = vpack.c.b16 %v5871, %v5869
        %v5926 = vpack.c.b16 %v5872, %v5870
        %v5927 = vpack.c.b16 %v5875, %v5873
        %v5928 = vpack.c.b16 %v5876, %v5874
        %v5929 = vpack.c.b16 %v5879, %v5877
        %v5930 = vpack.c.b16 %v5880, %v5878
        %v5931 = vpack.c.b16 %v5883, %v5881
        %v5932 = vpack.c.b16 %v5884, %v5882
        %v5933 = vpack.c.b16 %v5887, %v5885
        %v5934 = vpack.c.b16 %v5888, %v5886
        %v5935 = vpack.c.b16 %v5891, %v5889
        %v5936 = vpack.c.b16 %v5892, %v5890
        %v5937 = vpack.c.b16 %v5895, %v5893
        %v5938 = vpack.c.b16 %v5896, %v5894
        %v5939 = vpack.c.b16 %v5899, %v5897
        %v5940 = vpack.c.b16 %v5900, %v5898
        %v5941 = vpack.c.b16 %v5903, %v5901
        %v5942 = vpack.c.b16 %v5904, %v5902
        %v5943 = vpack.c.b16 %v5907, %v5905
        %v5944 = vpack.c.b16 %v5908, %v5906
        %v5945 = vpack.c.b16 %v5911, %v5909
        %v5946 = vpack.c.b16 %v5912, %v5910
        %v5947 = vpack.c.b16 %v5915, %v5913
        %v5948 = vpack.c.b16 %v5916, %v5914
        %v5949 = vpack.c.b16 %v5919, %v5917
        %v5950 = vpack.c.b16 %v5920, %v5918
        %v5982 = vsel %vm5786, %v5526, 0
        %5984 = vmatprep.subr.bf16.mxu0 %v5922
        %5985 = vmatpush1.bf16.msra.mxu0 %v5921
        %5986 = vmatprep.subr.bf16.mxu0 %v5924
        %5987 = vmatpush1.bf16.msra.mxu0 %v5923
        %5988 = vmatprep.subr.bf16.mxu0 %v5926
        %5989 = vmatpush1.bf16.msra.mxu0 %v5925
        %5990 = vmatprep.subr.bf16.mxu0 %v5928
        %5991 = vmatpush1.bf16.msra.mxu0 %v5927
        %5992 = vmatprep.subr.bf16.mxu0 %v5930
        %5993 = vmatpush1.bf16.msra.mxu0 %v5929
        %5994 = vmatprep.subr.bf16.mxu0 %v5932
        %5995 = vmatpush1.bf16.msra.mxu0 %v5931
        %5996 = vmatprep.subr.bf16.mxu0 %v5934
        %5997 = vmatpush1.bf16.msra.mxu0 %v5933
        %5998 = vmatprep.subr.bf16.mxu0 %v5936
        %5999 = vmatpush1.bf16.msra.mxu0 %v5935
        %6000 = vmatprep.subr.bf16.mxu0 %v5938
        %6001 = vmatpush1.bf16.msra.mxu0 %v5937
        %6002 = vmatprep.subr.bf16.mxu0 %v5940
        %6003 = vmatpush1.bf16.msra.mxu0 %v5939
        %6004 = vmatprep.subr.bf16.mxu0 %v5942
        %6005 = vmatpush1.bf16.msra.mxu0 %v5941
        %6006 = vmatprep.subr.bf16.mxu0 %v5944
        %6007 = vmatpush1.bf16.msra.mxu0 %v5943
        %6008 = vmatprep.subr.bf16.mxu0 %v5946
        %6009 = vmatpush1.bf16.msra.mxu0 %v5945
        %6010 = vmatprep.subr.bf16.mxu0 %v5948
        %6011 = vmatpush1.bf16.msra.mxu0 %v5947
        %6012 = vmatprep.subr.bf16.mxu0 %v5950
        %6013 = vmatpush1.bf16.msra.mxu0 %v5949
        %6014 = vmatprep.subr.bf16.mxu0 0
        %6015 = vmatpush1.bf16.msra.mxu0 0
        %6016 = vmatprep.mubr.bf16.mxu0 %v5982
        %6017 = vmatmul.mubr.bf16.gmra.mrb[0].mxu0 %v5525
        %v6018 = vpop.f32.mrb[0].mxu0
        %v6019 = vadd.f32 %v5825, %v6018
        %v6020 = vpop.f32.mrb[0].mxu0
        %v6021 = vadd.f32 %v5827, %v6020
        %v6022 = vpop.f32.mrb[0].mxu0
        %v6023 = vpop.f32.mrb[0].mxu0
        %6024 = vdwg.mxu0
        %s6025 = scalar_lea.vmem [#allocation10], 8
        %v6026 = vld [vmem:[%s6025] sm:$0xf]
        %v6028 = vsel %vm5480, %v6026, 0
        %6030 = vmatprep.subr.bf16.mxu0 %v5478
        %6031 = vmatpush1.bf16.msra.mxu0 %v5477
        %6032 = vmatprep.subr.bf16.mxu0 0
        %6033 = vmatpush1.bf16.msra.mxu0 0
        %6034 = vmatprep.subr.bf16.mxu0 0
        %6035 = vmatpush1.bf16.msra.mxu0 0
        %6036 = vmatprep.subr.bf16.mxu0 0
        %6037 = vmatpush1.bf16.msra.mxu0 0
        %6038 = vmatprep.subr.bf16.mxu0 0
        %6039 = vmatpush1.bf16.msra.mxu0 0
        %6040 = vmatprep.subr.bf16.mxu0 0
        %6041 = vmatpush1.bf16.msra.mxu0 0
        %6042 = vmatprep.subr.bf16.mxu0 0
        %6043 = vmatpush1.bf16.msra.mxu0 0
        %6044 = vmatprep.subr.bf16.mxu0 0
        %6045 = vmatpush1.bf16.msra.mxu0 0
        %6046 = vmatprep.subr.bf16.mxu0 0
        %6047 = vmatpush1.bf16.msra.mxu0 0
        %6048 = vmatprep.subr.bf16.mxu0 0
        %6049 = vmatpush1.bf16.msra.mxu0 0
        %6050 = vmatprep.subr.bf16.mxu0 0
        %6051 = vmatpush1.bf16.msra.mxu0 0
        %6052 = vmatprep.subr.bf16.mxu0 0
        %6053 = vmatpush1.bf16.msra.mxu0 0
        %6054 = vmatprep.subr.bf16.mxu0 0
        %6055 = vmatpush1.bf16.msra.mxu0 0
        %6056 = vmatprep.subr.bf16.mxu0 0
        %6057 = vmatpush1.bf16.msra.mxu0 0
        %6058 = vmatprep.subr.bf16.mxu0 0
        %6059 = vmatpush1.bf16.msra.mxu0 0
        %6060 = vmatprep.subr.bf16.mxu0 0
        %6061 = vmatpush1.bf16.msra.mxu0 0
        %6062 = vmatprep.mubr.bf16.mxu0 0
        %6063 = vmatmul.mubr.bf16.gmra.mrb[0].mxu0 %v6028
        %v6064 = vpop.f32.mrb[0].mxu0
        %v6065 = vadd.f32 0.0, %v6064
        %v6066 = vpop.f32.mrb[0].mxu0
        %v6067 = vadd.f32 0.0, %v6066
        %v6068 = vpop.f32.mrb[0].mxu0
        %v6069 = vpop.f32.mrb[0].mxu0
        %6070 = vdwg.mxu0
        %v6071 = vpack.c.bf16 %v6065, %v6065
        %v6072 = vpack.c.bf16 %v6067, %v6067
        %s6073 = scalar_lea.vmem %s5, 480
        %v6074 = vld [vmem:[%s6073] sm:$0xff]
        %v6075 = vld [vmem:[%s6073 + $0x8] sm:$0xff]
        %v6076 = vld [vmem:[%s6073 + $0x10] sm:$0xff]
        %v6077 = vld [vmem:[%s6073 + $0x18] sm:$0xff]
        %v6078 = vld [vmem:[%s6073 + $0x20] sm:$0xff]
        %v6079 = vld [vmem:[%s6073 + $0x28] sm:$0xff]
        %v6080 = vld [vmem:[%s6073 + $0x30] sm:$0xff]
        %v6081 = vld [vmem:[%s6073 + $0x38] sm:$0xff]
        %v6082 = vld [vmem:[%s6073 + $0x40] sm:$0xff]
        %v6083 = vld [vmem:[%s6073 + $0x48] sm:$0xff]
        %v6084 = vld [vmem:[%s6073 + $0x50] sm:$0xff]
        %v6085 = vld [vmem:[%s6073 + $0x58] sm:$0xff]
        %v6086 = vld [vmem:[%s6073 + $0x60] sm:$0xff]
        %v6087 = vld [vmem:[%s6073 + $0x68] sm:$0xff]
        %v6088 = vld [vmem:[%s6073 + $0x70] sm:$0xff]
        %v6089 = vld [vmem:[%s6073 + $0x78] sm:$0xff]
        %v6090 = vld [vmem:[%s6073 + $0x80] sm:$0xff]
        %v6091 = vld [vmem:[%s6073 + $0x88] sm:$0xff]
        %v6092 = vld [vmem:[%s6073 + $0x90] sm:$0xff]
        %v6093 = vld [vmem:[%s6073 + $0x98] sm:$0xff]
        %v6094 = vld [vmem:[%s6073 + $0xa0] sm:$0xff]
        %v6095 = vld [vmem:[%s6073 + $0xa8] sm:$0xff]
        %v6096 = vld [vmem:[%s6073 + $0xb0] sm:$0xff]
        %v6097 = vld [vmem:[%s6073 + $0xb8] sm:$0xff]
        %v6098 = vld [vmem:[%s6073 + $0xc0] sm:$0xff]
        %v6099 = vld [vmem:[%s6073 + $0xc8] sm:$0xff]
        %v6100 = vld [vmem:[%s6073 + $0xd0] sm:$0xff]
        %v6101 = vld [vmem:[%s6073 + $0xd8] sm:$0xff]
        %v6102 = vld [vmem:[%s6073 + $0xe0] sm:$0xff]
        %v6103 = vld [vmem:[%s6073 + $0xe8] sm:$0xff]
        %v6134 = vunpack.c.l.b16 %v6074
        %v6135 = vunpack.c.h.b16 %v6074
        %v6136 = vunpack.c.l.b16 %v6075
        %v6137 = vunpack.c.h.b16 %v6075
        %v6138 = vunpack.c.l.b16 %v6076
        %v6139 = vunpack.c.h.b16 %v6076
        %v6140 = vunpack.c.l.b16 %v6077
        %v6141 = vunpack.c.h.b16 %v6077
        %v6142 = vunpack.c.l.b16 %v6078
        %v6143 = vunpack.c.h.b16 %v6078
        %v6144 = vunpack.c.l.b16 %v6079
        %v6145 = vunpack.c.h.b16 %v6079
        %v6146 = vunpack.c.l.b16 %v6080
        %v6147 = vunpack.c.h.b16 %v6080
        %v6148 = vunpack.c.l.b16 %v6081
        %v6149 = vunpack.c.h.b16 %v6081
        %v6150 = vunpack.c.l.b16 %v6082
        %v6151 = vunpack.c.h.b16 %v6082
        %v6152 = vunpack.c.l.b16 %v6083
        %v6153 = vunpack.c.h.b16 %v6083
        %v6154 = vunpack.c.l.b16 %v6084
        %v6155 = vunpack.c.h.b16 %v6084
        %v6156 = vunpack.c.l.b16 %v6085
        %v6157 = vunpack.c.h.b16 %v6085
        %v6158 = vunpack.c.l.b16 %v6086
        %v6159 = vunpack.c.h.b16 %v6086
        %v6160 = vunpack.c.l.b16 %v6087
        %v6161 = vunpack.c.h.b16 %v6087
        %v6162 = vunpack.c.l.b16 %v6088
        %v6163 = vunpack.c.h.b16 %v6088
        %v6164 = vunpack.c.l.b16 %v6089
        %v6165 = vunpack.c.h.b16 %v6089
        %v6166 = vunpack.c.l.b16 %v6090
        %v6167 = vunpack.c.h.b16 %v6090
        %v6168 = vunpack.c.l.b16 %v6091
        %v6169 = vunpack.c.h.b16 %v6091
        %v6170 = vunpack.c.l.b16 %v6092
        %v6171 = vunpack.c.h.b16 %v6092
        %v6172 = vunpack.c.l.b16 %v6093
        %v6173 = vunpack.c.h.b16 %v6093
        %v6174 = vunpack.c.l.b16 %v6094
        %v6175 = vunpack.c.h.b16 %v6094
        %v6176 = vunpack.c.l.b16 %v6095
        %v6177 = vunpack.c.h.b16 %v6095
        %v6178 = vunpack.c.l.b16 %v6096
        %v6179 = vunpack.c.h.b16 %v6096
        %v6180 = vunpack.c.l.b16 %v6097
        %v6181 = vunpack.c.h.b16 %v6097
        %v6182 = vunpack.c.l.b16 %v6098
        %v6183 = vunpack.c.h.b16 %v6098
        %v6184 = vunpack.c.l.b16 %v6099
        %v6185 = vunpack.c.h.b16 %v6099
        %v6186 = vunpack.c.l.b16 %v6100
        %v6187 = vunpack.c.h.b16 %v6100
        %v6188 = vunpack.c.l.b16 %v6101
        %v6189 = vunpack.c.h.b16 %v6101
        %v6190 = vunpack.c.l.b16 %v6102
        %v6191 = vunpack.c.h.b16 %v6102
        %v6192 = vunpack.c.l.b16 %v6103
        %v6193 = vunpack.c.h.b16 %v6103
        %v6194 = vpack.c.b16 %v6136, %v6134
        %v6195 = vpack.c.b16 %v6137, %v6135
        %v6196 = vpack.c.b16 %v6140, %v6138
        %v6197 = vpack.c.b16 %v6141, %v6139
        %v6198 = vpack.c.b16 %v6144, %v6142
        %v6199 = vpack.c.b16 %v6145, %v6143
        %v6200 = vpack.c.b16 %v6148, %v6146
        %v6201 = vpack.c.b16 %v6149, %v6147
        %v6202 = vpack.c.b16 %v6152, %v6150
        %v6203 = vpack.c.b16 %v6153, %v6151
        %v6204 = vpack.c.b16 %v6156, %v6154
        %v6205 = vpack.c.b16 %v6157, %v6155
        %v6206 = vpack.c.b16 %v6160, %v6158
        %v6207 = vpack.c.b16 %v6161, %v6159
        %v6208 = vpack.c.b16 %v6164, %v6162
        %v6209 = vpack.c.b16 %v6165, %v6163
        %v6210 = vpack.c.b16 %v6168, %v6166
        %v6211 = vpack.c.b16 %v6169, %v6167
        %v6212 = vpack.c.b16 %v6172, %v6170
        %v6213 = vpack.c.b16 %v6173, %v6171
        %v6214 = vpack.c.b16 %v6176, %v6174
        %v6215 = vpack.c.b16 %v6177, %v6175
        %v6216 = vpack.c.b16 %v6180, %v6178
        %v6217 = vpack.c.b16 %v6181, %v6179
        %v6218 = vpack.c.b16 %v6184, %v6182
        %v6219 = vpack.c.b16 %v6185, %v6183
        %v6220 = vpack.c.b16 %v6188, %v6186
        %v6221 = vpack.c.b16 %v6189, %v6187
        %v6222 = vpack.c.b16 %v6192, %v6190
        %v6223 = vpack.c.b16 %v6193, %v6191
        %v6255 = vsel %vm5786, %v6072, 0
        %6257 = vmatprep.subr.bf16.mxu0 %v6195
        %6258 = vmatpush1.bf16.msra.mxu0 %v6194
        %6259 = vmatprep.subr.bf16.mxu0 %v6197
        %6260 = vmatpush1.bf16.msra.mxu0 %v6196
        %6261 = vmatprep.subr.bf16.mxu0 %v6199
        %6262 = vmatpush1.bf16.msra.mxu0 %v6198
        %6263 = vmatprep.subr.bf16.mxu0 %v6201
        %6264 = vmatpush1.bf16.msra.mxu0 %v6200
        %6265 = vmatprep.subr.bf16.mxu0 %v6203
        %6266 = vmatpush1.bf16.msra.mxu0 %v6202
        %6267 = vmatprep.subr.bf16.mxu0 %v6205
        %6268 = vmatpush1.bf16.msra.mxu0 %v6204
        %6269 = vmatprep.subr.bf16.mxu0 %v6207
        %6270 = vmatpush1.bf16.msra.mxu0 %v6206
        %6271 = vmatprep.subr.bf16.mxu0 %v6209
        %6272 = vmatpush1.bf16.msra.mxu0 %v6208
        %6273 = vmatprep.subr.bf16.mxu0 %v6211
        %6274 = vmatpush1.bf16.msra.mxu0 %v6210
        %6275 = vmatprep.subr.bf16.mxu0 %v6213
        %6276 = vmatpush1.bf16.msra.mxu0 %v6212
        %6277 = vmatprep.subr.bf16.mxu0 %v6215
        %6278 = vmatpush1.bf16.msra.mxu0 %v6214
        %6279 = vmatprep.subr.bf16.mxu0 %v6217
        %6280 = vmatpush1.bf16.msra.mxu0 %v6216
        %6281 = vmatprep.subr.bf16.mxu0 %v6219
        %6282 = vmatpush1.bf16.msra.mxu0 %v6218
        %6283 = vmatprep.subr.bf16.mxu0 %v6221
        %6284 = vmatpush1.bf16.msra.mxu0 %v6220
        %6285 = vmatprep.subr.bf16.mxu0 %v6223
        %6286 = vmatpush1.bf16.msra.mxu0 %v6222
        %6287 = vmatprep.subr.bf16.mxu0 0
        %6288 = vmatpush1.bf16.msra.mxu0 0
        %6289 = vmatprep.mubr.bf16.mxu0 %v6255
        %6290 = vmatmul.mubr.bf16.gmra.mrb[0].mxu0 %v6071
        %v6291 = vpop.f32.mrb[0].mxu0
        %v6292 = vadd.f32 0.0, %v6291
        %v6293 = vpop.f32.mrb[0].mxu0
        %v6294 = vadd.f32 0.0, %v6293
        %v6295 = vpop.f32.mrb[0].mxu0
        %v6296 = vpop.f32.mrb[0].mxu0
        %6297 = vdwg.mxu0
        %v6298 = vadd.f32 %v6019, %v6292
        %v6299 = vadd.f32 %v6021, %v6294
        %v6300 = vld [vmem:[#allocation11] sm:$0x3]
        %v6302 = vlaneseq
        %v6303 = vshrl.u32 %v6302, 7
        %v6304 = vsub.s32 0, %v6303
        %v6305 = vrot.slane %v6300, %v6304
        %v6306 = vlaneseq
        %v6307 = vshrl.u32 %v6306, 7
        %v6308 = vsub.s32 1, %v6307
        %v6309 = vrot.slane %v6300, %v6308
        %v6312 = vadd.f32 %v6298, %v6305
        %v6313 = vadd.f32 %v6299, %v6309
        %v6314 = vmax.f32 %v6312, 0.0
        %v6315 = vmax.f32 %v6313, 0.0
        %v6316 = vpack.c.bf16 %v6314, %v6314
        %v6317 = vpack.c.bf16 %v6315, %v6315
        %v6318 = vld [vmem:[#allocation13] sm:$0xff]
        %v6319 = vld [vmem:[#allocation13 + $0x8] sm:$0xff]
        %v6320 = vld [vmem:[#allocation13 + $0x10] sm:$0xff]
        %v6321 = vld [vmem:[#allocation13 + $0x18] sm:$0xff]
        %v6322 = vld [vmem:[#allocation13 + $0x20] sm:$0xff]
        %v6323 = vld [vmem:[#allocation13 + $0x28] sm:$0xff]
        %v6324 = vld [vmem:[#allocation13 + $0x30] sm:$0xff]
        %v6325 = vld [vmem:[#allocation13 + $0x38] sm:$0xff]
        %v6326 = vld [vmem:[#allocation13 + $0x40] sm:$0xff]
        %v6327 = vld [vmem:[#allocation13 + $0x48] sm:$0xff]
        %v6328 = vld [vmem:[#allocation13 + $0x50] sm:$0xff]
        %v6329 = vld [vmem:[#allocation13 + $0x58] sm:$0xff]
        %v6330 = vld [vmem:[#allocation13 + $0x60] sm:$0xff]
        %v6331 = vld [vmem:[#allocation13 + $0x68] sm:$0xff]
        %v6332 = vld [vmem:[#allocation13 + $0x70] sm:$0xff]
        %v6333 = vld [vmem:[#allocation13 + $0x78] sm:$0xff]
        %v6334 = vld [vmem:[#allocation13 + $0x80] sm:$0xff]
        %v6335 = vld [vmem:[#allocation13 + $0x88] sm:$0xff]
        %v6336 = vld [vmem:[#allocation13 + $0x90] sm:$0xff]
        %v6337 = vld [vmem:[#allocation13 + $0x98] sm:$0xff]
        %v6338 = vld [vmem:[#allocation13 + $0xa0] sm:$0xff]
        %v6339 = vld [vmem:[#allocation13 + $0xa8] sm:$0xff]
        %v6340 = vld [vmem:[#allocation13 + $0xb0] sm:$0xff]
        %v6341 = vld [vmem:[#allocation13 + $0xb8] sm:$0xff]
        %v6342 = vld [vmem:[#allocation13 + $0xc0] sm:$0xff]
        %v6343 = vld [vmem:[#allocation13 + $0xc8] sm:$0xff]
        %v6344 = vld [vmem:[#allocation13 + $0xd0] sm:$0xff]
        %v6345 = vld [vmem:[#allocation13 + $0xd8] sm:$0xff]
        %s6346 = scalar_lea.vmem [#allocation13], 224
        %v6347 = vld [vmem:[%s6346] sm:$0xff]
        %v6348 = vld [vmem:[%s6346 + $0x8] sm:$0xff]
        %v6349 = vld [vmem:[%s6346 + $0x10] sm:$0xff]
        %v6350 = vld [vmem:[%s6346 + $0x18] sm:$0xff]
        %v6351 = vld [vmem:[%s6346 + $0x20] sm:$0xff]
        %v6352 = vld [vmem:[%s6346 + $0x28] sm:$0xff]
        %v6353 = vld [vmem:[%s6346 + $0x30] sm:$0xff]
        %v6354 = vld [vmem:[%s6346 + $0x38] sm:$0xff]
        %v6355 = vld [vmem:[%s6346 + $0x40] sm:$0xff]
        %v6356 = vld [vmem:[%s6346 + $0x48] sm:$0xff]
        %v6357 = vld [vmem:[%s6346 + $0x50] sm:$0xff]
        %v6358 = vld [vmem:[%s6346 + $0x58] sm:$0xff]
        %v6359 = vld [vmem:[%s6346 + $0x60] sm:$0xff]
        %v6360 = vld [vmem:[%s6346 + $0x68] sm:$0xff]
        %v6361 = vld [vmem:[%s6346 + $0x70] sm:$0xff]
        %v6362 = vld [vmem:[%s6346 + $0x78] sm:$0xff]
        %v6363 = vld [vmem:[%s6346 + $0x80] sm:$0xff]
        %v6364 = vld [vmem:[%s6346 + $0x88] sm:$0xff]
        %v6365 = vld [vmem:[%s6346 + $0x90] sm:$0xff]
        %v6366 = vld [vmem:[%s6346 + $0x98] sm:$0xff]
        %v6367 = vld [vmem:[%s6346 + $0xa0] sm:$0xff]
        %v6368 = vld [vmem:[%s6346 + $0xa8] sm:$0xff]
        %v6369 = vld [vmem:[%s6346 + $0xb0] sm:$0xff]
        %v6370 = vld [vmem:[%s6346 + $0xb8] sm:$0xff]
        %v6371 = vld [vmem:[%s6346 + $0xc0] sm:$0xff]
        %v6372 = vld [vmem:[%s6346 + $0xc8] sm:$0xff]
        %v6373 = vld [vmem:[%s6346 + $0xd0] sm:$0xff]
        %v6374 = vld [vmem:[%s6346 + $0xd8] sm:$0xff]
        %v6376 = vshrl.u32 %v6316, 16
        %v6379 = vshrl.u32 %v6317, 16
        %v6410 = vunpack.c.l.b16 %v6347
        %v6411 = vunpack.c.h.b16 %v6347
        %v6412 = vunpack.c.l.b16 %v6348
        %v6413 = vunpack.c.h.b16 %v6348
        %v6414 = vunpack.c.l.b16 %v6349
        %v6415 = vunpack.c.h.b16 %v6349
        %v6416 = vunpack.c.l.b16 %v6350
        %v6417 = vunpack.c.h.b16 %v6350
        %v6418 = vunpack.c.l.b16 %v6351
        %v6419 = vunpack.c.h.b16 %v6351
        %v6420 = vunpack.c.l.b16 %v6352
        %v6421 = vunpack.c.h.b16 %v6352
        %v6422 = vunpack.c.l.b16 %v6353
        %v6423 = vunpack.c.h.b16 %v6353
        %v6424 = vunpack.c.l.b16 %v6354
        %v6425 = vunpack.c.h.b16 %v6354
        %v6426 = vunpack.c.l.b16 %v6355
        %v6427 = vunpack.c.h.b16 %v6355
        %v6428 = vunpack.c.l.b16 %v6356
        %v6429 = vunpack.c.h.b16 %v6356
        %v6430 = vunpack.c.l.b16 %v6357
        %v6431 = vunpack.c.h.b16 %v6357
        %v6432 = vunpack.c.l.b16 %v6358
        %v6433 = vunpack.c.h.b16 %v6358
        %v6434 = vunpack.c.l.b16 %v6359
        %v6435 = vunpack.c.h.b16 %v6359
        %v6436 = vunpack.c.l.b16 %v6360
        %v6437 = vunpack.c.h.b16 %v6360
        %v6438 = vunpack.c.l.b16 %v6361
        %v6439 = vunpack.c.h.b16 %v6361
        %v6440 = vunpack.c.l.b16 %v6362
        %v6441 = vunpack.c.h.b16 %v6362
        %v6442 = vunpack.c.l.b16 %v6363
        %v6443 = vunpack.c.h.b16 %v6363
        %v6444 = vunpack.c.l.b16 %v6364
        %v6445 = vunpack.c.h.b16 %v6364
        %v6446 = vunpack.c.l.b16 %v6365
        %v6447 = vunpack.c.h.b16 %v6365
        %v6448 = vunpack.c.l.b16 %v6366
        %v6449 = vunpack.c.h.b16 %v6366
        %v6450 = vunpack.c.l.b16 %v6367
        %v6451 = vunpack.c.h.b16 %v6367
        %v6452 = vunpack.c.l.b16 %v6368
        %v6453 = vunpack.c.h.b16 %v6368
        %v6454 = vunpack.c.l.b16 %v6369
        %v6455 = vunpack.c.h.b16 %v6369
        %v6456 = vunpack.c.l.b16 %v6370
        %v6457 = vunpack.c.h.b16 %v6370
        %v6458 = vunpack.c.l.b16 %v6371
        %v6459 = vunpack.c.h.b16 %v6371
        %v6460 = vunpack.c.l.b16 %v6372
        %v6461 = vunpack.c.h.b16 %v6372
        %v6462 = vunpack.c.l.b16 %v6373
        %v6463 = vunpack.c.h.b16 %v6373
        %v6464 = vunpack.c.l.b16 %v6374
        %v6465 = vunpack.c.h.b16 %v6374
        %v6466 = vpack.c.b16 %v6412, %v6410
        %v6467 = vpack.c.b16 %v6413, %v6411
        %v6468 = vpack.c.b16 %v6416, %v6414
        %v6469 = vpack.c.b16 %v6417, %v6415
        %v6470 = vpack.c.b16 %v6420, %v6418
        %v6471 = vpack.c.b16 %v6421, %v6419
        %v6472 = vpack.c.b16 %v6424, %v6422
        %v6473 = vpack.c.b16 %v6425, %v6423
        %v6474 = vpack.c.b16 %v6428, %v6426
        %v6475 = vpack.c.b16 %v6429, %v6427
        %v6476 = vpack.c.b16 %v6432, %v6430
        %v6477 = vpack.c.b16 %v6433, %v6431
        %v6478 = vpack.c.b16 %v6436, %v6434
        %v6479 = vpack.c.b16 %v6437, %v6435
        %v6480 = vpack.c.b16 %v6440, %v6438
        %v6481 = vpack.c.b16 %v6441, %v6439
        %v6482 = vpack.c.b16 %v6444, %v6442
        %v6483 = vpack.c.b16 %v6445, %v6443
        %v6484 = vpack.c.b16 %v6448, %v6446
        %v6485 = vpack.c.b16 %v6449, %v6447
        %v6486 = vpack.c.b16 %v6452, %v6450
        %v6487 = vpack.c.b16 %v6453, %v6451
        %v6488 = vpack.c.b16 %v6456, %v6454
        %v6489 = vpack.c.b16 %v6457, %v6455
        %v6490 = vpack.c.b16 %v6460, %v6458
        %v6491 = vpack.c.b16 %v6461, %v6459
        %v6492 = vpack.c.b16 %v6464, %v6462
        %v6493 = vpack.c.b16 %v6465, %v6463
        %vm6522 = vcmask 785408
        %v6524 = vsel %vm6522, %v6379, 0
        %6526 = vmatprep.subr.bf16.mxu0 %v6467
        %6527 = vmatpush1.bf16.msra.mxu0 %v6466
        %6528 = vmatprep.subr.bf16.mxu0 %v6469
        %6529 = vmatpush1.bf16.msra.mxu0 %v6468
        %6530 = vmatprep.subr.bf16.mxu0 %v6471
        %6531 = vmatpush1.bf16.msra.mxu0 %v6470
        %6532 = vmatprep.subr.bf16.mxu0 %v6473
        %6533 = vmatpush1.bf16.msra.mxu0 %v6472
        %6534 = vmatprep.subr.bf16.mxu0 %v6475
        %6535 = vmatpush1.bf16.msra.mxu0 %v6474
        %6536 = vmatprep.subr.bf16.mxu0 %v6477
        %6537 = vmatpush1.bf16.msra.mxu0 %v6476
        %6538 = vmatprep.subr.bf16.mxu0 %v6479
        %6539 = vmatpush1.bf16.msra.mxu0 %v6478
        %6540 = vmatprep.subr.bf16.mxu0 %v6481
        %6541 = vmatpush1.bf16.msra.mxu0 %v6480
        %6542 = vmatprep.subr.bf16.mxu0 %v6483
        %6543 = vmatpush1.bf16.msra.mxu0 %v6482
        %6544 = vmatprep.subr.bf16.mxu0 %v6485
        %6545 = vmatpush1.bf16.msra.mxu0 %v6484
        %6546 = vmatprep.subr.bf16.mxu0 %v6487
        %6547 = vmatpush1.bf16.msra.mxu0 %v6486
        %6548 = vmatprep.subr.bf16.mxu0 %v6489
        %6549 = vmatpush1.bf16.msra.mxu0 %v6488
        %6550 = vmatprep.subr.bf16.mxu0 %v6491
        %6551 = vmatpush1.bf16.msra.mxu0 %v6490
        %6552 = vmatprep.subr.bf16.mxu0 %v6493
        %6553 = vmatpush1.bf16.msra.mxu0 %v6492
        %6554 = vmatprep.subr.bf16.mxu0 0
        %6555 = vmatpush1.bf16.msra.mxu0 0
        %6556 = vmatprep.subr.bf16.mxu0 0
        %6557 = vmatpush1.bf16.msra.mxu0 0
        %6558 = vmatprep.mubr.bf16.mxu0 %v6524
        %6559 = vmatmul.mubr.bf16.gmra.mrb[0].mxu0 %v6376
        %v6560 = vpop.f32.mrb[0].mxu0
        %v6561 = vadd.f32 0.0, %v6560
        %v6562 = vpop.f32.mrb[0].mxu0
        %v6563 = vadd.f32 0.0, %v6562
        %v6564 = vpop.f32.mrb[0].mxu0
        %v6565 = vpop.f32.mrb[0].mxu0
        %6566 = vdwg.mxu0
        %v6595 = vunpack.c.l.b16 %v6318
        %v6596 = vunpack.c.h.b16 %v6318
        %v6597 = vunpack.c.l.b16 %v6319
        %v6598 = vunpack.c.h.b16 %v6319
        %v6599 = vunpack.c.l.b16 %v6320
        %v6600 = vunpack.c.h.b16 %v6320
        %v6601 = vunpack.c.l.b16 %v6321
        %v6602 = vunpack.c.h.b16 %v6321
        %v6603 = vunpack.c.l.b16 %v6322
        %v6604 = vunpack.c.h.b16 %v6322
        %v6605 = vunpack.c.l.b16 %v6323
        %v6606 = vunpack.c.h.b16 %v6323
        %v6607 = vunpack.c.l.b16 %v6324
        %v6608 = vunpack.c.h.b16 %v6324
        %v6609 = vunpack.c.l.b16 %v6325
        %v6610 = vunpack.c.h.b16 %v6325
        %v6611 = vunpack.c.l.b16 %v6326
        %v6612 = vunpack.c.h.b16 %v6326
        %v6613 = vunpack.c.l.b16 %v6327
        %v6614 = vunpack.c.h.b16 %v6327
        %v6615 = vunpack.c.l.b16 %v6328
        %v6616 = vunpack.c.h.b16 %v6328
        %v6617 = vunpack.c.l.b16 %v6329
        %v6618 = vunpack.c.h.b16 %v6329
        %v6619 = vunpack.c.l.b16 %v6330
        %v6620 = vunpack.c.h.b16 %v6330
        %v6621 = vunpack.c.l.b16 %v6331
        %v6622 = vunpack.c.h.b16 %v6331
        %v6623 = vunpack.c.l.b16 %v6332
        %v6624 = vunpack.c.h.b16 %v6332
        %v6625 = vunpack.c.l.b16 %v6333
        %v6626 = vunpack.c.h.b16 %v6333
        %v6627 = vunpack.c.l.b16 %v6334
        %v6628 = vunpack.c.h.b16 %v6334
        %v6629 = vunpack.c.l.b16 %v6335
        %v6630 = vunpack.c.h.b16 %v6335
        %v6631 = vunpack.c.l.b16 %v6336
        %v6632 = vunpack.c.h.b16 %v6336
        %v6633 = vunpack.c.l.b16 %v6337
        %v6634 = vunpack.c.h.b16 %v6337
        %v6635 = vunpack.c.l.b16 %v6338
        %v6636 = vunpack.c.h.b16 %v6338
        %v6637 = vunpack.c.l.b16 %v6339
        %v6638 = vunpack.c.h.b16 %v6339
        %v6639 = vunpack.c.l.b16 %v6340
        %v6640 = vunpack.c.h.b16 %v6340
        %v6641 = vunpack.c.l.b16 %v6341
        %v6642 = vunpack.c.h.b16 %v6341
        %v6643 = vunpack.c.l.b16 %v6342
        %v6644 = vunpack.c.h.b16 %v6342
        %v6645 = vunpack.c.l.b16 %v6343
        %v6646 = vunpack.c.h.b16 %v6343
        %v6647 = vunpack.c.l.b16 %v6344
        %v6648 = vunpack.c.h.b16 %v6344
        %v6649 = vunpack.c.l.b16 %v6345
        %v6650 = vunpack.c.h.b16 %v6345
        %v6651 = vpack.c.b16 %v6597, %v6595
        %v6652 = vpack.c.b16 %v6598, %v6596
        %v6653 = vpack.c.b16 %v6601, %v6599
        %v6654 = vpack.c.b16 %v6602, %v6600
        %v6655 = vpack.c.b16 %v6605, %v6603
        %v6656 = vpack.c.b16 %v6606, %v6604
        %v6657 = vpack.c.b16 %v6609, %v6607
        %v6658 = vpack.c.b16 %v6610, %v6608
        %v6659 = vpack.c.b16 %v6613, %v6611
        %v6660 = vpack.c.b16 %v6614, %v6612
        %v6661 = vpack.c.b16 %v6617, %v6615
        %v6662 = vpack.c.b16 %v6618, %v6616
        %v6663 = vpack.c.b16 %v6621, %v6619
        %v6664 = vpack.c.b16 %v6622, %v6620
        %v6665 = vpack.c.b16 %v6625, %v6623
        %v6666 = vpack.c.b16 %v6626, %v6624
        %v6667 = vpack.c.b16 %v6629, %v6627
        %v6668 = vpack.c.b16 %v6630, %v6628
        %v6669 = vpack.c.b16 %v6633, %v6631
        %v6670 = vpack.c.b16 %v6634, %v6632
        %v6671 = vpack.c.b16 %v6637, %v6635
        %v6672 = vpack.c.b16 %v6638, %v6636
        %v6673 = vpack.c.b16 %v6641, %v6639
        %v6674 = vpack.c.b16 %v6642, %v6640
        %v6675 = vpack.c.b16 %v6645, %v6643
        %v6676 = vpack.c.b16 %v6646, %v6644
        %v6677 = vpack.c.b16 %v6649, %v6647
        %v6678 = vpack.c.b16 %v6650, %v6648
        %v6707 = vsel %vm6522, %v6317, 0
        %6709 = vmatprep.subr.bf16.mxu0 %v6652
        %6710 = vmatpush1.bf16.msra.mxu0 %v6651
        %6711 = vmatprep.subr.bf16.mxu0 %v6654
        %6712 = vmatpush1.bf16.msra.mxu0 %v6653
        %6713 = vmatprep.subr.bf16.mxu0 %v6656
        %6714 = vmatpush1.bf16.msra.mxu0 %v6655
        %6715 = vmatprep.subr.bf16.mxu0 %v6658
        %6716 = vmatpush1.bf16.msra.mxu0 %v6657
        %6717 = vmatprep.subr.bf16.mxu0 %v6660
        %6718 = vmatpush1.bf16.msra.mxu0 %v6659
        %6719 = vmatprep.subr.bf16.mxu0 %v6662
        %6720 = vmatpush1.bf16.msra.mxu0 %v6661
        %6721 = vmatprep.subr.bf16.mxu0 %v6664
        %6722 = vmatpush1.bf16.msra.mxu0 %v6663
        %6723 = vmatprep.subr.bf16.mxu0 %v6666
        %6724 = vmatpush1.bf16.msra.mxu0 %v6665
        %6725 = vmatprep.subr.bf16.mxu0 %v6668
        %6726 = vmatpush1.bf16.msra.mxu0 %v6667
        %6727 = vmatprep.subr.bf16.mxu0 %v6670
        %6728 = vmatpush1.bf16.msra.mxu0 %v6669
        %6729 = vmatprep.subr.bf16.mxu0 %v6672
        %6730 = vmatpush1.bf16.msra.mxu0 %v6671
        %6731 = vmatprep.subr.bf16.mxu0 %v6674
        %6732 = vmatpush1.bf16.msra.mxu0 %v6673
        %6733 = vmatprep.subr.bf16.mxu0 %v6676
        %6734 = vmatpush1.bf16.msra.mxu0 %v6675
        %6735 = vmatprep.subr.bf16.mxu0 %v6678
        %6736 = vmatpush1.bf16.msra.mxu0 %v6677
        %6737 = vmatprep.subr.bf16.mxu0 0
        %6738 = vmatpush1.bf16.msra.mxu0 0
        %6739 = vmatprep.subr.bf16.mxu0 0
        %6740 = vmatpush1.bf16.msra.mxu0 0
        %6741 = vmatprep.mubr.bf16.mxu0 %v6707
        %6742 = vmatmul.mubr.bf16.gmra.mrb[0].mxu0 %v6316
        %v6743 = vpop.f32.mrb[0].mxu0
        %v6744 = vadd.f32 %v6561, %v6743
        %v6745 = vpop.f32.mrb[0].mxu0
        %v6746 = vadd.f32 %v6563, %v6745
        %v6747 = vpop.f32.mrb[0].mxu0
        %v6748 = vpop.f32.mrb[0].mxu0
        %6749 = vdwg.mxu0
        %s6750 = scalar_lea.vmem [#allocation13], 448
        %v6751 = vld [vmem:[%s6750] sm:$0xff]
        %v6752 = vld [vmem:[%s6750 + $0x8] sm:$0xff]
        %v6753 = vld [vmem:[%s6750 + $0x10] sm:$0xff]
        %v6754 = vld [vmem:[%s6750 + $0x18] sm:$0xff]
        %v6755 = vld [vmem:[%s6750 + $0x20] sm:$0xff]
        %v6756 = vld [vmem:[%s6750 + $0x28] sm:$0xff]
        %v6757 = vld [vmem:[%s6750 + $0x30] sm:$0xff]
        %v6758 = vld [vmem:[%s6750 + $0x38] sm:$0xff]
        %v6759 = vld [vmem:[%s6750 + $0x40] sm:$0xff]
        %v6760 = vld [vmem:[%s6750 + $0x48] sm:$0xff]
        %v6761 = vld [vmem:[%s6750 + $0x50] sm:$0xff]
        %v6762 = vld [vmem:[%s6750 + $0x58] sm:$0xff]
        %v6763 = vld [vmem:[%s6750 + $0x60] sm:$0xff]
        %v6764 = vld [vmem:[%s6750 + $0x68] sm:$0xff]
        %v6765 = vld [vmem:[%s6750 + $0x70] sm:$0xff]
        %v6766 = vld [vmem:[%s6750 + $0x78] sm:$0xff]
        %v6767 = vld [vmem:[%s6750 + $0x80] sm:$0xff]
        %v6768 = vld [vmem:[%s6750 + $0x88] sm:$0xff]
        %v6769 = vld [vmem:[%s6750 + $0x90] sm:$0xff]
        %v6770 = vld [vmem:[%s6750 + $0x98] sm:$0xff]
        %v6771 = vld [vmem:[%s6750 + $0xa0] sm:$0xff]
        %v6772 = vld [vmem:[%s6750 + $0xa8] sm:$0xff]
        %v6773 = vld [vmem:[%s6750 + $0xb0] sm:$0xff]
        %v6774 = vld [vmem:[%s6750 + $0xb8] sm:$0xff]
        %v6775 = vld [vmem:[%s6750 + $0xc0] sm:$0xff]
        %v6776 = vld [vmem:[%s6750 + $0xc8] sm:$0xff]
        %v6777 = vld [vmem:[%s6750 + $0xd0] sm:$0xff]
        %v6778 = vld [vmem:[%s6750 + $0xd8] sm:$0xff]
        %v6781 = vrot.slane %v6316, 1
        %v6782 = vrot.slane %v6317, 1
        %v6812 = vunpack.c.l.b16 %v6751
        %v6813 = vunpack.c.h.b16 %v6751
        %v6814 = vunpack.c.l.b16 %v6752
        %v6815 = vunpack.c.h.b16 %v6752
        %v6816 = vunpack.c.l.b16 %v6753
        %v6817 = vunpack.c.h.b16 %v6753
        %v6818 = vunpack.c.l.b16 %v6754
        %v6819 = vunpack.c.h.b16 %v6754
        %v6820 = vunpack.c.l.b16 %v6755
        %v6821 = vunpack.c.h.b16 %v6755
        %v6822 = vunpack.c.l.b16 %v6756
        %v6823 = vunpack.c.h.b16 %v6756
        %v6824 = vunpack.c.l.b16 %v6757
        %v6825 = vunpack.c.h.b16 %v6757
        %v6826 = vunpack.c.l.b16 %v6758
        %v6827 = vunpack.c.h.b16 %v6758
        %v6828 = vunpack.c.l.b16 %v6759
        %v6829 = vunpack.c.h.b16 %v6759
        %v6830 = vunpack.c.l.b16 %v6760
        %v6831 = vunpack.c.h.b16 %v6760
        %v6832 = vunpack.c.l.b16 %v6761
        %v6833 = vunpack.c.h.b16 %v6761
        %v6834 = vunpack.c.l.b16 %v6762
        %v6835 = vunpack.c.h.b16 %v6762
        %v6836 = vunpack.c.l.b16 %v6763
        %v6837 = vunpack.c.h.b16 %v6763
        %v6838 = vunpack.c.l.b16 %v6764
        %v6839 = vunpack.c.h.b16 %v6764
        %v6840 = vunpack.c.l.b16 %v6765
        %v6841 = vunpack.c.h.b16 %v6765
        %v6842 = vunpack.c.l.b16 %v6766
        %v6843 = vunpack.c.h.b16 %v6766
        %v6844 = vunpack.c.l.b16 %v6767
        %v6845 = vunpack.c.h.b16 %v6767
        %v6846 = vunpack.c.l.b16 %v6768
        %v6847 = vunpack.c.h.b16 %v6768
        %v6848 = vunpack.c.l.b16 %v6769
        %v6849 = vunpack.c.h.b16 %v6769
        %v6850 = vunpack.c.l.b16 %v6770
        %v6851 = vunpack.c.h.b16 %v6770
        %v6852 = vunpack.c.l.b16 %v6771
        %v6853 = vunpack.c.h.b16 %v6771
        %v6854 = vunpack.c.l.b16 %v6772
        %v6855 = vunpack.c.h.b16 %v6772
        %v6856 = vunpack.c.l.b16 %v6773
        %v6857 = vunpack.c.h.b16 %v6773
        %v6858 = vunpack.c.l.b16 %v6774
        %v6859 = vunpack.c.h.b16 %v6774
        %v6860 = vunpack.c.l.b16 %v6775
        %v6861 = vunpack.c.h.b16 %v6775
        %v6862 = vunpack.c.l.b16 %v6776
        %v6863 = vunpack.c.h.b16 %v6776
        %v6864 = vunpack.c.l.b16 %v6777
        %v6865 = vunpack.c.h.b16 %v6777
        %v6866 = vunpack.c.l.b16 %v6778
        %v6867 = vunpack.c.h.b16 %v6778
        %v6868 = vpack.c.b16 %v6814, %v6812
        %v6869 = vpack.c.b16 %v6815, %v6813
        %v6870 = vpack.c.b16 %v6818, %v6816
        %v6871 = vpack.c.b16 %v6819, %v6817
        %v6872 = vpack.c.b16 %v6822, %v6820
        %v6873 = vpack.c.b16 %v6823, %v6821
        %v6874 = vpack.c.b16 %v6826, %v6824
        %v6875 = vpack.c.b16 %v6827, %v6825
        %v6876 = vpack.c.b16 %v6830, %v6828
        %v6877 = vpack.c.b16 %v6831, %v6829
        %v6878 = vpack.c.b16 %v6834, %v6832
        %v6879 = vpack.c.b16 %v6835, %v6833
        %v6880 = vpack.c.b16 %v6838, %v6836
        %v6881 = vpack.c.b16 %v6839, %v6837
        %v6882 = vpack.c.b16 %v6842, %v6840
        %v6883 = vpack.c.b16 %v6843, %v6841
        %v6884 = vpack.c.b16 %v6846, %v6844
        %v6885 = vpack.c.b16 %v6847, %v6845
        %v6886 = vpack.c.b16 %v6850, %v6848
        %v6887 = vpack.c.b16 %v6851, %v6849
        %v6888 = vpack.c.b16 %v6854, %v6852
        %v6889 = vpack.c.b16 %v6855, %v6853
        %v6890 = vpack.c.b16 %v6858, %v6856
        %v6891 = vpack.c.b16 %v6859, %v6857
        %v6892 = vpack.c.b16 %v6862, %v6860
        %v6893 = vpack.c.b16 %v6863, %v6861
        %v6894 = vpack.c.b16 %v6866, %v6864
        %v6895 = vpack.c.b16 %v6867, %v6865
        %v6925 = vsel %vm6522, %v6782, 0
        %6927 = vmatprep.subr.bf16.mxu0 %v6869
        %6928 = vmatpush1.bf16.msra.mxu0 %v6868
        %6929 = vmatprep.subr.bf16.mxu0 %v6871
        %6930 = vmatpush1.bf16.msra.mxu0 %v6870
        %6931 = vmatprep.subr.bf16.mxu0 %v6873
        %6932 = vmatpush1.bf16.msra.mxu0 %v6872
        %6933 = vmatprep.subr.bf16.mxu0 %v6875
        %6934 = vmatpush1.bf16.msra.mxu0 %v6874
        %6935 = vmatprep.subr.bf16.mxu0 %v6877
        %6936 = vmatpush1.bf16.msra.mxu0 %v6876
        %6937 = vmatprep.subr.bf16.mxu0 %v6879
        %6938 = vmatpush1.bf16.msra.mxu0 %v6878
        %6939 = vmatprep.subr.bf16.mxu0 %v6881
        %6940 = vmatpush1.bf16.msra.mxu0 %v6880
        %6941 = vmatprep.subr.bf16.mxu0 %v6883
        %6942 = vmatpush1.bf16.msra.mxu0 %v6882
        %6943 = vmatprep.subr.bf16.mxu0 %v6885
        %6944 = vmatpush1.bf16.msra.mxu0 %v6884
        %6945 = vmatprep.subr.bf16.mxu0 %v6887
        %6946 = vmatpush1.bf16.msra.mxu0 %v6886
        %6947 = vmatprep.subr.bf16.mxu0 %v6889
        %6948 = vmatpush1.bf16.msra.mxu0 %v6888
        %6949 = vmatprep.subr.bf16.mxu0 %v6891
        %6950 = vmatpush1.bf16.msra.mxu0 %v6890
        %6951 = vmatprep.subr.bf16.mxu0 %v6893
        %6952 = vmatpush1.bf16.msra.mxu0 %v6892
        %6953 = vmatprep.subr.bf16.mxu0 %v6895
        %6954 = vmatpush1.bf16.msra.mxu0 %v6894
        %6955 = vmatprep.subr.bf16.mxu0 0
        %6956 = vmatpush1.bf16.msra.mxu0 0
        %6957 = vmatprep.subr.bf16.mxu0 0
        %6958 = vmatpush1.bf16.msra.mxu0 0
        %6959 = vmatprep.mubr.bf16.mxu0 %v6925
        %6960 = vmatmul.mubr.bf16.gmra.mrb[0].mxu0 %v6781
        %v6961 = vpop.f32.mrb[0].mxu0
        %v6962 = vadd.f32 0.0, %v6961
        %v6963 = vpop.f32.mrb[0].mxu0
        %v6964 = vadd.f32 0.0, %v6963
        %v6965 = vpop.f32.mrb[0].mxu0
        %v6966 = vpop.f32.mrb[0].mxu0
        %6967 = vdwg.mxu0
        %v6968 = vadd.f32 %v6744, %v6962
        %v6969 = vadd.f32 %v6746, %v6964
        %s6970 = scalar_lea.vmem [#allocation13], 672
        %v6971 = vld [vmem:[%s6970] sm:$0xff]
        %v6972 = vld [vmem:[%s6970 + $0x8] sm:$0xff]
        %v6973 = vld [vmem:[%s6970 + $0x10] sm:$0xff]
        %v6974 = vld [vmem:[%s6970 + $0x18] sm:$0xff]
        %v6975 = vld [vmem:[%s6970 + $0x20] sm:$0xff]
        %v6976 = vld [vmem:[%s6970 + $0x28] sm:$0xff]
        %v6977 = vld [vmem:[%s6970 + $0x30] sm:$0xff]
        %v6978 = vld [vmem:[%s6970 + $0x38] sm:$0xff]
        %v6979 = vld [vmem:[%s6970 + $0x40] sm:$0xff]
        %v6980 = vld [vmem:[%s6970 + $0x48] sm:$0xff]
        %v6981 = vld [vmem:[%s6970 + $0x50] sm:$0xff]
        %v6982 = vld [vmem:[%s6970 + $0x58] sm:$0xff]
        %v6983 = vld [vmem:[%s6970 + $0x60] sm:$0xff]
        %v6984 = vld [vmem:[%s6970 + $0x68] sm:$0xff]
        %v6985 = vld [vmem:[%s6970 + $0x70] sm:$0xff]
        %v6986 = vld [vmem:[%s6970 + $0x78] sm:$0xff]
        %v6987 = vld [vmem:[%s6970 + $0x80] sm:$0xff]
        %v6988 = vld [vmem:[%s6970 + $0x88] sm:$0xff]
        %v6989 = vld [vmem:[%s6970 + $0x90] sm:$0xff]
        %v6990 = vld [vmem:[%s6970 + $0x98] sm:$0xff]
        %v6991 = vld [vmem:[%s6970 + $0xa0] sm:$0xff]
        %v6992 = vld [vmem:[%s6970 + $0xa8] sm:$0xff]
        %v6993 = vld [vmem:[%s6970 + $0xb0] sm:$0xff]
        %v6994 = vld [vmem:[%s6970 + $0xb8] sm:$0xff]
        %v6995 = vld [vmem:[%s6970 + $0xc0] sm:$0xff]
        %v6996 = vld [vmem:[%s6970 + $0xc8] sm:$0xff]
        %v6997 = vld [vmem:[%s6970 + $0xd0] sm:$0xff]
        %v6998 = vld [vmem:[%s6970 + $0xd8] sm:$0xff]
        %v6999 = vrot.slane %v6376, 1
        %v7000 = vrot.slane %v6379, 1
        %v7030 = vunpack.c.l.b16 %v6971
        %v7031 = vunpack.c.h.b16 %v6971
        %v7032 = vunpack.c.l.b16 %v6972
        %v7033 = vunpack.c.h.b16 %v6972
        %v7034 = vunpack.c.l.b16 %v6973
        %v7035 = vunpack.c.h.b16 %v6973
        %v7036 = vunpack.c.l.b16 %v6974
        %v7037 = vunpack.c.h.b16 %v6974
        %v7038 = vunpack.c.l.b16 %v6975
        %v7039 = vunpack.c.h.b16 %v6975
        %v7040 = vunpack.c.l.b16 %v6976
        %v7041 = vunpack.c.h.b16 %v6976
        %v7042 = vunpack.c.l.b16 %v6977
        %v7043 = vunpack.c.h.b16 %v6977
        %v7044 = vunpack.c.l.b16 %v6978
        %v7045 = vunpack.c.h.b16 %v6978
        %v7046 = vunpack.c.l.b16 %v6979
        %v7047 = vunpack.c.h.b16 %v6979
        %v7048 = vunpack.c.l.b16 %v6980
        %v7049 = vunpack.c.h.b16 %v6980
        %v7050 = vunpack.c.l.b16 %v6981
        %v7051 = vunpack.c.h.b16 %v6981
        %v7052 = vunpack.c.l.b16 %v6982
        %v7053 = vunpack.c.h.b16 %v6982
        %v7054 = vunpack.c.l.b16 %v6983
        %v7055 = vunpack.c.h.b16 %v6983
        %v7056 = vunpack.c.l.b16 %v6984
        %v7057 = vunpack.c.h.b16 %v6984
        %v7058 = vunpack.c.l.b16 %v6985
        %v7059 = vunpack.c.h.b16 %v6985
        %v7060 = vunpack.c.l.b16 %v6986
        %v7061 = vunpack.c.h.b16 %v6986
        %v7062 = vunpack.c.l.b16 %v6987
        %v7063 = vunpack.c.h.b16 %v6987
        %v7064 = vunpack.c.l.b16 %v6988
        %v7065 = vunpack.c.h.b16 %v6988
        %v7066 = vunpack.c.l.b16 %v6989
        %v7067 = vunpack.c.h.b16 %v6989
        %v7068 = vunpack.c.l.b16 %v6990
        %v7069 = vunpack.c.h.b16 %v6990
        %v7070 = vunpack.c.l.b16 %v6991
        %v7071 = vunpack.c.h.b16 %v6991
        %v7072 = vunpack.c.l.b16 %v6992
        %v7073 = vunpack.c.h.b16 %v6992
        %v7074 = vunpack.c.l.b16 %v6993
        %v7075 = vunpack.c.h.b16 %v6993
        %v7076 = vunpack.c.l.b16 %v6994
        %v7077 = vunpack.c.h.b16 %v6994
        %v7078 = vunpack.c.l.b16 %v6995
        %v7079 = vunpack.c.h.b16 %v6995
        %v7080 = vunpack.c.l.b16 %v6996
        %v7081 = vunpack.c.h.b16 %v6996
        %v7082 = vunpack.c.l.b16 %v6997
        %v7083 = vunpack.c.h.b16 %v6997
        %v7084 = vunpack.c.l.b16 %v6998
        %v7085 = vunpack.c.h.b16 %v6998
        %v7086 = vpack.c.b16 %v7032, %v7030
        %v7087 = vpack.c.b16 %v7033, %v7031
        %v7088 = vpack.c.b16 %v7036, %v7034
        %v7089 = vpack.c.b16 %v7037, %v7035
        %v7090 = vpack.c.b16 %v7040, %v7038
        %v7091 = vpack.c.b16 %v7041, %v7039
        %v7092 = vpack.c.b16 %v7044, %v7042
        %v7093 = vpack.c.b16 %v7045, %v7043
        %v7094 = vpack.c.b16 %v7048, %v7046
        %v7095 = vpack.c.b16 %v7049, %v7047
        %v7096 = vpack.c.b16 %v7052, %v7050
        %v7097 = vpack.c.b16 %v7053, %v7051
        %v7098 = vpack.c.b16 %v7056, %v7054
        %v7099 = vpack.c.b16 %v7057, %v7055
        %v7100 = vpack.c.b16 %v7060, %v7058
        %v7101 = vpack.c.b16 %v7061, %v7059
        %v7102 = vpack.c.b16 %v7064, %v7062
        %v7103 = vpack.c.b16 %v7065, %v7063
        %v7104 = vpack.c.b16 %v7068, %v7066
        %v7105 = vpack.c.b16 %v7069, %v7067
        %v7106 = vpack.c.b16 %v7072, %v7070
        %v7107 = vpack.c.b16 %v7073, %v7071
        %v7108 = vpack.c.b16 %v7076, %v7074
        %v7109 = vpack.c.b16 %v7077, %v7075
        %v7110 = vpack.c.b16 %v7080, %v7078
        %v7111 = vpack.c.b16 %v7081, %v7079
        %v7112 = vpack.c.b16 %v7084, %v7082
        %v7113 = vpack.c.b16 %v7085, %v7083
        %v7143 = vsel %vm6522, %v7000, 0
        %7145 = vmatprep.subr.bf16.mxu0 %v7087
        %7146 = vmatpush1.bf16.msra.mxu0 %v7086
        %7147 = vmatprep.subr.bf16.mxu0 %v7089
        %7148 = vmatpush1.bf16.msra.mxu0 %v7088
        %7149 = vmatprep.subr.bf16.mxu0 %v7091
        %7150 = vmatpush1.bf16.msra.mxu0 %v7090
        %7151 = vmatprep.subr.bf16.mxu0 %v7093
        %7152 = vmatpush1.bf16.msra.mxu0 %v7092
        %7153 = vmatprep.subr.bf16.mxu0 %v7095
        %7154 = vmatpush1.bf16.msra.mxu0 %v7094
        %7155 = vmatprep.subr.bf16.mxu0 %v7097
        %7156 = vmatpush1.bf16.msra.mxu0 %v7096
        %7157 = vmatprep.subr.bf16.mxu0 %v7099
        %7158 = vmatpush1.bf16.msra.mxu0 %v7098
        %7159 = vmatprep.subr.bf16.mxu0 %v7101
        %7160 = vmatpush1.bf16.msra.mxu0 %v7100
        %7161 = vmatprep.subr.bf16.mxu0 %v7103
        %7162 = vmatpush1.bf16.msra.mxu0 %v7102
        %7163 = vmatprep.subr.bf16.mxu0 %v7105
        %7164 = vmatpush1.bf16.msra.mxu0 %v7104
        %7165 = vmatprep.subr.bf16.mxu0 %v7107
        %7166 = vmatpush1.bf16.msra.mxu0 %v7106
        %7167 = vmatprep.subr.bf16.mxu0 %v7109
        %7168 = vmatpush1.bf16.msra.mxu0 %v7108
        %7169 = vmatprep.subr.bf16.mxu0 %v7111
        %7170 = vmatpush1.bf16.msra.mxu0 %v7110
        %7171 = vmatprep.subr.bf16.mxu0 %v7113
        %7172 = vmatpush1.bf16.msra.mxu0 %v7112
        %7173 = vmatprep.subr.bf16.mxu0 0
        %7174 = vmatpush1.bf16.msra.mxu0 0
        %7175 = vmatprep.subr.bf16.mxu0 0
        %7176 = vmatpush1.bf16.msra.mxu0 0
        %7177 = vmatprep.mubr.bf16.mxu0 %v7143
        %7178 = vmatmul.mubr.bf16.gmra.mrb[0].mxu0 %v6999
        %v7179 = vpop.f32.mrb[0].mxu0
        %v7180 = vadd.f32 0.0, %v7179
        %v7181 = vpop.f32.mrb[0].mxu0
        %v7182 = vadd.f32 0.0, %v7181
        %v7183 = vpop.f32.mrb[0].mxu0
        %v7184 = vpop.f32.mrb[0].mxu0
        %7185 = vdwg.mxu0
        %v7186 = vadd.f32 %v6968, %v7180
        %v7187 = vadd.f32 %v6969, %v7182
        %s7188 = scalar_lea.vmem [#allocation13], 896
        %v7189 = vld [vmem:[%s7188] sm:$0xff]
        %v7190 = vld [vmem:[%s7188 + $0x8] sm:$0xff]
        %v7191 = vld [vmem:[%s7188 + $0x10] sm:$0xff]
        %v7192 = vld [vmem:[%s7188 + $0x18] sm:$0xff]
        %v7193 = vld [vmem:[%s7188 + $0x20] sm:$0xff]
        %v7194 = vld [vmem:[%s7188 + $0x28] sm:$0xff]
        %v7195 = vld [vmem:[%s7188 + $0x30] sm:$0xff]
        %v7196 = vld [vmem:[%s7188 + $0x38] sm:$0xff]
        %v7197 = vld [vmem:[%s7188 + $0x40] sm:$0xff]
        %v7198 = vld [vmem:[%s7188 + $0x48] sm:$0xff]
        %v7199 = vld [vmem:[%s7188 + $0x50] sm:$0xff]
        %v7200 = vld [vmem:[%s7188 + $0x58] sm:$0xff]
        %v7201 = vld [vmem:[%s7188 + $0x60] sm:$0xff]
        %v7202 = vld [vmem:[%s7188 + $0x68] sm:$0xff]
        %v7203 = vld [vmem:[%s7188 + $0x70] sm:$0xff]
        %v7204 = vld [vmem:[%s7188 + $0x78] sm:$0xff]
        %v7205 = vld [vmem:[%s7188 + $0x80] sm:$0xff]
        %v7206 = vld [vmem:[%s7188 + $0x88] sm:$0xff]
        %v7207 = vld [vmem:[%s7188 + $0x90] sm:$0xff]
        %v7208 = vld [vmem:[%s7188 + $0x98] sm:$0xff]
        %v7209 = vld [vmem:[%s7188 + $0xa0] sm:$0xff]
        %v7210 = vld [vmem:[%s7188 + $0xa8] sm:$0xff]
        %v7211 = vld [vmem:[%s7188 + $0xb0] sm:$0xff]
        %v7212 = vld [vmem:[%s7188 + $0xb8] sm:$0xff]
        %v7213 = vld [vmem:[%s7188 + $0xc0] sm:$0xff]
        %v7214 = vld [vmem:[%s7188 + $0xc8] sm:$0xff]
        %v7215 = vld [vmem:[%s7188 + $0xd0] sm:$0xff]
        %v7216 = vld [vmem:[%s7188 + $0xd8] sm:$0xff]
        %v7217 = vrot.slane %v6316, 2
        %v7218 = vrot.slane %v6317, 2
        %v7248 = vunpack.c.l.b16 %v7189
        %v7249 = vunpack.c.h.b16 %v7189
        %v7250 = vunpack.c.l.b16 %v7190
        %v7251 = vunpack.c.h.b16 %v7190
        %v7252 = vunpack.c.l.b16 %v7191
        %v7253 = vunpack.c.h.b16 %v7191
        %v7254 = vunpack.c.l.b16 %v7192
        %v7255 = vunpack.c.h.b16 %v7192
        %v7256 = vunpack.c.l.b16 %v7193
        %v7257 = vunpack.c.h.b16 %v7193
        %v7258 = vunpack.c.l.b16 %v7194
        %v7259 = vunpack.c.h.b16 %v7194
        %v7260 = vunpack.c.l.b16 %v7195
        %v7261 = vunpack.c.h.b16 %v7195
        %v7262 = vunpack.c.l.b16 %v7196
        %v7263 = vunpack.c.h.b16 %v7196
        %v7264 = vunpack.c.l.b16 %v7197
        %v7265 = vunpack.c.h.b16 %v7197
        %v7266 = vunpack.c.l.b16 %v7198
        %v7267 = vunpack.c.h.b16 %v7198
        %v7268 = vunpack.c.l.b16 %v7199
        %v7269 = vunpack.c.h.b16 %v7199
        %v7270 = vunpack.c.l.b16 %v7200
        %v7271 = vunpack.c.h.b16 %v7200
        %v7272 = vunpack.c.l.b16 %v7201
        %v7273 = vunpack.c.h.b16 %v7201
        %v7274 = vunpack.c.l.b16 %v7202
        %v7275 = vunpack.c.h.b16 %v7202
        %v7276 = vunpack.c.l.b16 %v7203
        %v7277 = vunpack.c.h.b16 %v7203
        %v7278 = vunpack.c.l.b16 %v7204
        %v7279 = vunpack.c.h.b16 %v7204
        %v7280 = vunpack.c.l.b16 %v7205
        %v7281 = vunpack.c.h.b16 %v7205
        %v7282 = vunpack.c.l.b16 %v7206
        %v7283 = vunpack.c.h.b16 %v7206
        %v7284 = vunpack.c.l.b16 %v7207
        %v7285 = vunpack.c.h.b16 %v7207
        %v7286 = vunpack.c.l.b16 %v7208
        %v7287 = vunpack.c.h.b16 %v7208
        %v7288 = vunpack.c.l.b16 %v7209
        %v7289 = vunpack.c.h.b16 %v7209
        %v7290 = vunpack.c.l.b16 %v7210
        %v7291 = vunpack.c.h.b16 %v7210
        %v7292 = vunpack.c.l.b16 %v7211
        %v7293 = vunpack.c.h.b16 %v7211
        %v7294 = vunpack.c.l.b16 %v7212
        %v7295 = vunpack.c.h.b16 %v7212
        %v7296 = vunpack.c.l.b16 %v7213
        %v7297 = vunpack.c.h.b16 %v7213
        %v7298 = vunpack.c.l.b16 %v7214
        %v7299 = vunpack.c.h.b16 %v7214
        %v7300 = vunpack.c.l.b16 %v7215
        %v7301 = vunpack.c.h.b16 %v7215
        %v7302 = vunpack.c.l.b16 %v7216
        %v7303 = vunpack.c.h.b16 %v7216
        %v7304 = vpack.c.b16 %v7250, %v7248
        %v7305 = vpack.c.b16 %v7251, %v7249
        %v7306 = vpack.c.b16 %v7254, %v7252
        %v7307 = vpack.c.b16 %v7255, %v7253
        %v7308 = vpack.c.b16 %v7258, %v7256
        %v7309 = vpack.c.b16 %v7259, %v7257
        %v7310 = vpack.c.b16 %v7262, %v7260
        %v7311 = vpack.c.b16 %v7263, %v7261
        %v7312 = vpack.c.b16 %v7266, %v7264
        %v7313 = vpack.c.b16 %v7267, %v7265
        %v7314 = vpack.c.b16 %v7270, %v7268
        %v7315 = vpack.c.b16 %v7271, %v7269
        %v7316 = vpack.c.b16 %v7274, %v7272
        %v7317 = vpack.c.b16 %v7275, %v7273
        %v7318 = vpack.c.b16 %v7278, %v7276
        %v7319 = vpack.c.b16 %v7279, %v7277
        %v7320 = vpack.c.b16 %v7282, %v7280
        %v7321 = vpack.c.b16 %v7283, %v7281
        %v7322 = vpack.c.b16 %v7286, %v7284
        %v7323 = vpack.c.b16 %v7287, %v7285
        %v7324 = vpack.c.b16 %v7290, %v7288
        %v7325 = vpack.c.b16 %v7291, %v7289
        %v7326 = vpack.c.b16 %v7294, %v7292
        %v7327 = vpack.c.b16 %v7295, %v7293
        %v7328 = vpack.c.b16 %v7298, %v7296
        %v7329 = vpack.c.b16 %v7299, %v7297
        %v7330 = vpack.c.b16 %v7302, %v7300
        %v7331 = vpack.c.b16 %v7303, %v7301
        %v7361 = vsel %vm6522, %v7218, 0
        %7363 = vmatprep.subr.bf16.mxu0 %v7305
        %7364 = vmatpush1.bf16.msra.mxu0 %v7304
        %7365 = vmatprep.subr.bf16.mxu0 %v7307
        %7366 = vmatpush1.bf16.msra.mxu0 %v7306
        %7367 = vmatprep.subr.bf16.mxu0 %v7309
        %7368 = vmatpush1.bf16.msra.mxu0 %v7308
        %7369 = vmatprep.subr.bf16.mxu0 %v7311
        %7370 = vmatpush1.bf16.msra.mxu0 %v7310
        %7371 = vmatprep.subr.bf16.mxu0 %v7313
        %7372 = vmatpush1.bf16.msra.mxu0 %v7312
        %7373 = vmatprep.subr.bf16.mxu0 %v7315
        %7374 = vmatpush1.bf16.msra.mxu0 %v7314
        %7375 = vmatprep.subr.bf16.mxu0 %v7317
        %7376 = vmatpush1.bf16.msra.mxu0 %v7316
        %7377 = vmatprep.subr.bf16.mxu0 %v7319
        %7378 = vmatpush1.bf16.msra.mxu0 %v7318
        %7379 = vmatprep.subr.bf16.mxu0 %v7321
        %7380 = vmatpush1.bf16.msra.mxu0 %v7320
        %7381 = vmatprep.subr.bf16.mxu0 %v7323
        %7382 = vmatpush1.bf16.msra.mxu0 %v7322
        %7383 = vmatprep.subr.bf16.mxu0 %v7325
        %7384 = vmatpush1.bf16.msra.mxu0 %v7324
        %7385 = vmatprep.subr.bf16.mxu0 %v7327
        %7386 = vmatpush1.bf16.msra.mxu0 %v7326
        %7387 = vmatprep.subr.bf16.mxu0 %v7329
        %7388 = vmatpush1.bf16.msra.mxu0 %v7328
        %7389 = vmatprep.subr.bf16.mxu0 %v7331
        %7390 = vmatpush1.bf16.msra.mxu0 %v7330
        %7391 = vmatprep.subr.bf16.mxu0 0
        %7392 = vmatpush1.bf16.msra.mxu0 0
        %7393 = vmatprep.subr.bf16.mxu0 0
        %7394 = vmatpush1.bf16.msra.mxu0 0
        %7395 = vmatprep.mubr.bf16.mxu0 %v7361
        %7396 = vmatmul.mubr.bf16.gmra.mrb[0].mxu0 %v7217
        %v7397 = vpop.f32.mrb[0].mxu0
        %v7398 = vadd.f32 0.0, %v7397
        %v7399 = vpop.f32.mrb[0].mxu0
        %v7400 = vadd.f32 0.0, %v7399
        %v7401 = vpop.f32.mrb[0].mxu0
        %v7402 = vpop.f32.mrb[0].mxu0
        %7403 = vdwg.mxu0
        %v7404 = vadd.f32 %v7186, %v7398
        %v7405 = vadd.f32 %v7187, %v7400
        %s7406 = scalar_lea.vmem [#allocation13], 1120
        %v7407 = vld [vmem:[%s7406] sm:$0xff]
        %v7408 = vld [vmem:[%s7406 + $0x8] sm:$0xff]
        %v7409 = vld [vmem:[%s7406 + $0x10] sm:$0xff]
        %v7410 = vld [vmem:[%s7406 + $0x18] sm:$0xff]
        %v7411 = vld [vmem:[%s7406 + $0x20] sm:$0xff]
        %v7412 = vld [vmem:[%s7406 + $0x28] sm:$0xff]
        %v7413 = vld [vmem:[%s7406 + $0x30] sm:$0xff]
        %v7414 = vld [vmem:[%s7406 + $0x38] sm:$0xff]
        %v7415 = vld [vmem:[%s7406 + $0x40] sm:$0xff]
        %v7416 = vld [vmem:[%s7406 + $0x48] sm:$0xff]
        %v7417 = vld [vmem:[%s7406 + $0x50] sm:$0xff]
        %v7418 = vld [vmem:[%s7406 + $0x58] sm:$0xff]
        %v7419 = vld [vmem:[%s7406 + $0x60] sm:$0xff]
        %v7420 = vld [vmem:[%s7406 + $0x68] sm:$0xff]
        %v7421 = vld [vmem:[%s7406 + $0x70] sm:$0xff]
        %v7422 = vld [vmem:[%s7406 + $0x78] sm:$0xff]
        %v7423 = vld [vmem:[%s7406 + $0x80] sm:$0xff]
        %v7424 = vld [vmem:[%s7406 + $0x88] sm:$0xff]
        %v7425 = vld [vmem:[%s7406 + $0x90] sm:$0xff]
        %v7426 = vld [vmem:[%s7406 + $0x98] sm:$0xff]
        %v7427 = vld [vmem:[%s7406 + $0xa0] sm:$0xff]
        %v7428 = vld [vmem:[%s7406 + $0xa8] sm:$0xff]
        %v7429 = vld [vmem:[%s7406 + $0xb0] sm:$0xff]
        %v7430 = vld [vmem:[%s7406 + $0xb8] sm:$0xff]
        %v7431 = vld [vmem:[%s7406 + $0xc0] sm:$0xff]
        %v7432 = vld [vmem:[%s7406 + $0xc8] sm:$0xff]
        %v7433 = vld [vmem:[%s7406 + $0xd0] sm:$0xff]
        %v7434 = vld [vmem:[%s7406 + $0xd8] sm:$0xff]
        %v7435 = vrot.slane %v6376, 2
        %v7436 = vrot.slane %v6379, 2
        %v7466 = vunpack.c.l.b16 %v7407
        %v7467 = vunpack.c.h.b16 %v7407
        %v7468 = vunpack.c.l.b16 %v7408
        %v7469 = vunpack.c.h.b16 %v7408
        %v7470 = vunpack.c.l.b16 %v7409
        %v7471 = vunpack.c.h.b16 %v7409
        %v7472 = vunpack.c.l.b16 %v7410
        %v7473 = vunpack.c.h.b16 %v7410
        %v7474 = vunpack.c.l.b16 %v7411
        %v7475 = vunpack.c.h.b16 %v7411
        %v7476 = vunpack.c.l.b16 %v7412
        %v7477 = vunpack.c.h.b16 %v7412
        %v7478 = vunpack.c.l.b16 %v7413
        %v7479 = vunpack.c.h.b16 %v7413
        %v7480 = vunpack.c.l.b16 %v7414
        %v7481 = vunpack.c.h.b16 %v7414
        %v7482 = vunpack.c.l.b16 %v7415
        %v7483 = vunpack.c.h.b16 %v7415
        %v7484 = vunpack.c.l.b16 %v7416
        %v7485 = vunpack.c.h.b16 %v7416
        %v7486 = vunpack.c.l.b16 %v7417
        %v7487 = vunpack.c.h.b16 %v7417
        %v7488 = vunpack.c.l.b16 %v7418
        %v7489 = vunpack.c.h.b16 %v7418
        %v7490 = vunpack.c.l.b16 %v7419
        %v7491 = vunpack.c.h.b16 %v7419
        %v7492 = vunpack.c.l.b16 %v7420
        %v7493 = vunpack.c.h.b16 %v7420
        %v7494 = vunpack.c.l.b16 %v7421
        %v7495 = vunpack.c.h.b16 %v7421
        %v7496 = vunpack.c.l.b16 %v7422
        %v7497 = vunpack.c.h.b16 %v7422
        %v7498 = vunpack.c.l.b16 %v7423
        %v7499 = vunpack.c.h.b16 %v7423
        %v7500 = vunpack.c.l.b16 %v7424
        %v7501 = vunpack.c.h.b16 %v7424
        %v7502 = vunpack.c.l.b16 %v7425
        %v7503 = vunpack.c.h.b16 %v7425
        %v7504 = vunpack.c.l.b16 %v7426
        %v7505 = vunpack.c.h.b16 %v7426
        %v7506 = vunpack.c.l.b16 %v7427
        %v7507 = vunpack.c.h.b16 %v7427
        %v7508 = vunpack.c.l.b16 %v7428
        %v7509 = vunpack.c.h.b16 %v7428
        %v7510 = vunpack.c.l.b16 %v7429
        %v7511 = vunpack.c.h.b16 %v7429
        %v7512 = vunpack.c.l.b16 %v7430
        %v7513 = vunpack.c.h.b16 %v7430
        %v7514 = vunpack.c.l.b16 %v7431
        %v7515 = vunpack.c.h.b16 %v7431
        %v7516 = vunpack.c.l.b16 %v7432
        %v7517 = vunpack.c.h.b16 %v7432
        %v7518 = vunpack.c.l.b16 %v7433
        %v7519 = vunpack.c.h.b16 %v7433
        %v7520 = vunpack.c.l.b16 %v7434
        %v7521 = vunpack.c.h.b16 %v7434
        %v7522 = vpack.c.b16 %v7468, %v7466
        %v7523 = vpack.c.b16 %v7469, %v7467
        %v7524 = vpack.c.b16 %v7472, %v7470
        %v7525 = vpack.c.b16 %v7473, %v7471
        %v7526 = vpack.c.b16 %v7476, %v7474
        %v7527 = vpack.c.b16 %v7477, %v7475
        %v7528 = vpack.c.b16 %v7480, %v7478
        %v7529 = vpack.c.b16 %v7481, %v7479
        %v7530 = vpack.c.b16 %v7484, %v7482
        %v7531 = vpack.c.b16 %v7485, %v7483
        %v7532 = vpack.c.b16 %v7488, %v7486
        %v7533 = vpack.c.b16 %v7489, %v7487
        %v7534 = vpack.c.b16 %v7492, %v7490
        %v7535 = vpack.c.b16 %v7493, %v7491
        %v7536 = vpack.c.b16 %v7496, %v7494
        %v7537 = vpack.c.b16 %v7497, %v7495
        %v7538 = vpack.c.b16 %v7500, %v7498
        %v7539 = vpack.c.b16 %v7501, %v7499
        %v7540 = vpack.c.b16 %v7504, %v7502
        %v7541 = vpack.c.b16 %v7505, %v7503
        %v7542 = vpack.c.b16 %v7508, %v7506
        %v7543 = vpack.c.b16 %v7509, %v7507
        %v7544 = vpack.c.b16 %v7512, %v7510
        %v7545 = vpack.c.b16 %v7513, %v7511
        %v7546 = vpack.c.b16 %v7516, %v7514
        %v7547 = vpack.c.b16 %v7517, %v7515
        %v7548 = vpack.c.b16 %v7520, %v7518
        %v7549 = vpack.c.b16 %v7521, %v7519
        %v7579 = vsel %vm6522, %v7436, 0
        %7581 = vmatprep.subr.bf16.mxu0 %v7523
        %7582 = vmatpush1.bf16.msra.mxu0 %v7522
        %7583 = vmatprep.subr.bf16.mxu0 %v7525
        %7584 = vmatpush1.bf16.msra.mxu0 %v7524
        %7585 = vmatprep.subr.bf16.mxu0 %v7527
        %7586 = vmatpush1.bf16.msra.mxu0 %v7526
        %7587 = vmatprep.subr.bf16.mxu0 %v7529
        %7588 = vmatpush1.bf16.msra.mxu0 %v7528
        %7589 = vmatprep.subr.bf16.mxu0 %v7531
        %7590 = vmatpush1.bf16.msra.mxu0 %v7530
        %7591 = vmatprep.subr.bf16.mxu0 %v7533
        %7592 = vmatpush1.bf16.msra.mxu0 %v7532
        %7593 = vmatprep.subr.bf16.mxu0 %v7535
        %7594 = vmatpush1.bf16.msra.mxu0 %v7534
        %7595 = vmatprep.subr.bf16.mxu0 %v7537
        %7596 = vmatpush1.bf16.msra.mxu0 %v7536
        %7597 = vmatprep.subr.bf16.mxu0 %v7539
        %7598 = vmatpush1.bf16.msra.mxu0 %v7538
        %7599 = vmatprep.subr.bf16.mxu0 %v7541
        %7600 = vmatpush1.bf16.msra.mxu0 %v7540
        %7601 = vmatprep.subr.bf16.mxu0 %v7543
        %7602 = vmatpush1.bf16.msra.mxu0 %v7542
        %7603 = vmatprep.subr.bf16.mxu0 %v7545
        %7604 = vmatpush1.bf16.msra.mxu0 %v7544
        %7605 = vmatprep.subr.bf16.mxu0 %v7547
        %7606 = vmatpush1.bf16.msra.mxu0 %v7546
        %7607 = vmatprep.subr.bf16.mxu0 %v7549
        %7608 = vmatpush1.bf16.msra.mxu0 %v7548
        %7609 = vmatprep.subr.bf16.mxu0 0
        %7610 = vmatpush1.bf16.msra.mxu0 0
        %7611 = vmatprep.subr.bf16.mxu0 0
        %7612 = vmatpush1.bf16.msra.mxu0 0
        %7613 = vmatprep.mubr.bf16.mxu0 %v7579
        %7614 = vmatmul.mubr.bf16.gmra.mrb[0].mxu0 %v7435
        %v7615 = vpop.f32.mrb[0].mxu0
        %v7616 = vadd.f32 0.0, %v7615
        %v7617 = vpop.f32.mrb[0].mxu0
        %v7618 = vadd.f32 0.0, %v7617
        %v7619 = vpop.f32.mrb[0].mxu0
        %v7620 = vpop.f32.mrb[0].mxu0
        %7621 = vdwg.mxu0
        %v7622 = vadd.f32 %v7404, %v7616
        %v7623 = vadd.f32 %v7405, %v7618
        %s7624 = scalar_lea.vmem [#allocation13], 1344
        %v7625 = vld [vmem:[%s7624] sm:$0xff]
        %v7626 = vld [vmem:[%s7624 + $0x8] sm:$0xff]
        %v7627 = vld [vmem:[%s7624 + $0x10] sm:$0xff]
        %v7628 = vld [vmem:[%s7624 + $0x18] sm:$0xff]
        %v7629 = vld [vmem:[%s7624 + $0x20] sm:$0xff]
        %v7630 = vld [vmem:[%s7624 + $0x28] sm:$0xff]
        %v7631 = vld [vmem:[%s7624 + $0x30] sm:$0xff]
        %v7632 = vld [vmem:[%s7624 + $0x38] sm:$0xff]
        %v7633 = vld [vmem:[%s7624 + $0x40] sm:$0xff]
        %v7634 = vld [vmem:[%s7624 + $0x48] sm:$0xff]
        %v7635 = vld [vmem:[%s7624 + $0x50] sm:$0xff]
        %v7636 = vld [vmem:[%s7624 + $0x58] sm:$0xff]
        %v7637 = vld [vmem:[%s7624 + $0x60] sm:$0xff]
        %v7638 = vld [vmem:[%s7624 + $0x68] sm:$0xff]
        %v7639 = vld [vmem:[%s7624 + $0x70] sm:$0xff]
        %v7640 = vld [vmem:[%s7624 + $0x78] sm:$0xff]
        %v7641 = vld [vmem:[%s7624 + $0x80] sm:$0xff]
        %v7642 = vld [vmem:[%s7624 + $0x88] sm:$0xff]
        %v7643 = vld [vmem:[%s7624 + $0x90] sm:$0xff]
        %v7644 = vld [vmem:[%s7624 + $0x98] sm:$0xff]
        %v7645 = vld [vmem:[%s7624 + $0xa0] sm:$0xff]
        %v7646 = vld [vmem:[%s7624 + $0xa8] sm:$0xff]
        %v7647 = vld [vmem:[%s7624 + $0xb0] sm:$0xff]
        %v7648 = vld [vmem:[%s7624 + $0xb8] sm:$0xff]
        %v7649 = vld [vmem:[%s7624 + $0xc0] sm:$0xff]
        %v7650 = vld [vmem:[%s7624 + $0xc8] sm:$0xff]
        %v7651 = vld [vmem:[%s7624 + $0xd0] sm:$0xff]
        %v7652 = vld [vmem:[%s7624 + $0xd8] sm:$0xff]
        %v7653 = vrot.slane %v6316, 3
        %v7654 = vrot.slane %v6317, 3
        %v7684 = vunpack.c.l.b16 %v7625
        %v7685 = vunpack.c.h.b16 %v7625
        %v7686 = vunpack.c.l.b16 %v7626
        %v7687 = vunpack.c.h.b16 %v7626
        %v7688 = vunpack.c.l.b16 %v7627
        %v7689 = vunpack.c.h.b16 %v7627
        %v7690 = vunpack.c.l.b16 %v7628
        %v7691 = vunpack.c.h.b16 %v7628
        %v7692 = vunpack.c.l.b16 %v7629
        %v7693 = vunpack.c.h.b16 %v7629
        %v7694 = vunpack.c.l.b16 %v7630
        %v7695 = vunpack.c.h.b16 %v7630
        %v7696 = vunpack.c.l.b16 %v7631
        %v7697 = vunpack.c.h.b16 %v7631
        %v7698 = vunpack.c.l.b16 %v7632
        %v7699 = vunpack.c.h.b16 %v7632
        %v7700 = vunpack.c.l.b16 %v7633
        %v7701 = vunpack.c.h.b16 %v7633
        %v7702 = vunpack.c.l.b16 %v7634
        %v7703 = vunpack.c.h.b16 %v7634
        %v7704 = vunpack.c.l.b16 %v7635
        %v7705 = vunpack.c.h.b16 %v7635
        %v7706 = vunpack.c.l.b16 %v7636
        %v7707 = vunpack.c.h.b16 %v7636
        %v7708 = vunpack.c.l.b16 %v7637
        %v7709 = vunpack.c.h.b16 %v7637
        %v7710 = vunpack.c.l.b16 %v7638
        %v7711 = vunpack.c.h.b16 %v7638
        %v7712 = vunpack.c.l.b16 %v7639
        %v7713 = vunpack.c.h.b16 %v7639
        %v7714 = vunpack.c.l.b16 %v7640
        %v7715 = vunpack.c.h.b16 %v7640
        %v7716 = vunpack.c.l.b16 %v7641
        %v7717 = vunpack.c.h.b16 %v7641
        %v7718 = vunpack.c.l.b16 %v7642
        %v7719 = vunpack.c.h.b16 %v7642
        %v7720 = vunpack.c.l.b16 %v7643
        %v7721 = vunpack.c.h.b16 %v7643
        %v7722 = vunpack.c.l.b16 %v7644
        %v7723 = vunpack.c.h.b16 %v7644
        %v7724 = vunpack.c.l.b16 %v7645
        %v7725 = vunpack.c.h.b16 %v7645
        %v7726 = vunpack.c.l.b16 %v7646
        %v7727 = vunpack.c.h.b16 %v7646
        %v7728 = vunpack.c.l.b16 %v7647
        %v7729 = vunpack.c.h.b16 %v7647
        %v7730 = vunpack.c.l.b16 %v7648
        %v7731 = vunpack.c.h.b16 %v7648
        %v7732 = vunpack.c.l.b16 %v7649
        %v7733 = vunpack.c.h.b16 %v7649
        %v7734 = vunpack.c.l.b16 %v7650
        %v7735 = vunpack.c.h.b16 %v7650
        %v7736 = vunpack.c.l.b16 %v7651
        %v7737 = vunpack.c.h.b16 %v7651
        %v7738 = vunpack.c.l.b16 %v7652
        %v7739 = vunpack.c.h.b16 %v7652
        %v7740 = vpack.c.b16 %v7686, %v7684
        %v7741 = vpack.c.b16 %v7687, %v7685
        %v7742 = vpack.c.b16 %v7690, %v7688
        %v7743 = vpack.c.b16 %v7691, %v7689
        %v7744 = vpack.c.b16 %v7694, %v7692
        %v7745 = vpack.c.b16 %v7695, %v7693
        %v7746 = vpack.c.b16 %v7698, %v7696
        %v7747 = vpack.c.b16 %v7699, %v7697
        %v7748 = vpack.c.b16 %v7702, %v7700
        %v7749 = vpack.c.b16 %v7703, %v7701
        %v7750 = vpack.c.b16 %v7706, %v7704
        %v7751 = vpack.c.b16 %v7707, %v7705
        %v7752 = vpack.c.b16 %v7710, %v7708
        %v7753 = vpack.c.b16 %v7711, %v7709
        %v7754 = vpack.c.b16 %v7714, %v7712
        %v7755 = vpack.c.b16 %v7715, %v7713
        %v7756 = vpack.c.b16 %v7718, %v7716
        %v7757 = vpack.c.b16 %v7719, %v7717
        %v7758 = vpack.c.b16 %v7722, %v7720
        %v7759 = vpack.c.b16 %v7723, %v7721
        %v7760 = vpack.c.b16 %v7726, %v7724
        %v7761 = vpack.c.b16 %v7727, %v7725
        %v7762 = vpack.c.b16 %v7730, %v7728
        %v7763 = vpack.c.b16 %v7731, %v7729
        %v7764 = vpack.c.b16 %v7734, %v7732
        %v7765 = vpack.c.b16 %v7735, %v7733
        %v7766 = vpack.c.b16 %v7738, %v7736
        %v7767 = vpack.c.b16 %v7739, %v7737
        %v7797 = vsel %vm6522, %v7654, 0
        %7799 = vmatprep.subr.bf16.mxu0 %v7741
        %7800 = vmatpush1.bf16.msra.mxu0 %v7740
        %7801 = vmatprep.subr.bf16.mxu0 %v7743
        %7802 = vmatpush1.bf16.msra.mxu0 %v7742
        %7803 = vmatprep.subr.bf16.mxu0 %v7745
        %7804 = vmatpush1.bf16.msra.mxu0 %v7744
        %7805 = vmatprep.subr.bf16.mxu0 %v7747
        %7806 = vmatpush1.bf16.msra.mxu0 %v7746
        %7807 = vmatprep.subr.bf16.mxu0 %v7749
        %7808 = vmatpush1.bf16.msra.mxu0 %v7748
        %7809 = vmatprep.subr.bf16.mxu0 %v7751
        %7810 = vmatpush1.bf16.msra.mxu0 %v7750
        %7811 = vmatprep.subr.bf16.mxu0 %v7753
        %7812 = vmatpush1.bf16.msra.mxu0 %v7752
        %7813 = vmatprep.subr.bf16.mxu0 %v7755
        %7814 = vmatpush1.bf16.msra.mxu0 %v7754
        %7815 = vmatprep.subr.bf16.mxu0 %v7757
        %7816 = vmatpush1.bf16.msra.mxu0 %v7756
        %7817 = vmatprep.subr.bf16.mxu0 %v7759
        %7818 = vmatpush1.bf16.msra.mxu0 %v7758
        %7819 = vmatprep.subr.bf16.mxu0 %v7761
        %7820 = vmatpush1.bf16.msra.mxu0 %v7760
        %7821 = vmatprep.subr.bf16.mxu0 %v7763
        %7822 = vmatpush1.bf16.msra.mxu0 %v7762
        %7823 = vmatprep.subr.bf16.mxu0 %v7765
        %7824 = vmatpush1.bf16.msra.mxu0 %v7764
        %7825 = vmatprep.subr.bf16.mxu0 %v7767
        %7826 = vmatpush1.bf16.msra.mxu0 %v7766
        %7827 = vmatprep.subr.bf16.mxu0 0
        %7828 = vmatpush1.bf16.msra.mxu0 0
        %7829 = vmatprep.subr.bf16.mxu0 0
        %7830 = vmatpush1.bf16.msra.mxu0 0
        %7831 = vmatprep.mubr.bf16.mxu0 %v7797
        %7832 = vmatmul.mubr.bf16.gmra.mrb[0].mxu0 %v7653
        %v7833 = vpop.f32.mrb[0].mxu0
        %v7834 = vadd.f32 0.0, %v7833
        %v7835 = vpop.f32.mrb[0].mxu0
        %v7836 = vadd.f32 0.0, %v7835
        %v7837 = vpop.f32.mrb[0].mxu0
        %v7838 = vpop.f32.mrb[0].mxu0
        %7839 = vdwg.mxu0
        %v7840 = vadd.f32 %v7622, %v7834
        %v7841 = vadd.f32 %v7623, %v7836
        %v7842 = vld [vmem:[#allocation14] sm:$0x3]
        %v7844 = vlaneseq
        %v7845 = vshrl.u32 %v7844, 7
        %v7846 = vsub.s32 0, %v7845
        %v7847 = vrot.slane %v7842, %v7846
        %v7848 = vlaneseq
        %v7849 = vshrl.u32 %v7848, 7
        %v7850 = vsub.s32 1, %v7849
        %v7851 = vrot.slane %v7842, %v7850
        %v7854 = vadd.f32 %v7840, %v7847
        %v7855 = vadd.f32 %v7841, %v7851
        %v7856 = vmax.f32 %v7854, 0.0
        %v7857 = vmax.f32 %v7855, 0.0
        %v7858 = vpack.c.bf16 %v7856, %v7856
        %v7859 = vpack.c.bf16 %v7857, %v7857
        %v7860 = vld [vmem:[#allocation16] sm:$0xf]
        %v7861 = vld [vmem:[#allocation16 + $0x4] sm:$0xf]
        %v7862 = vld [vmem:[#allocation16 + $0x8] sm:$0xf]
        %v7863 = vld [vmem:[#allocation16 + $0xc] sm:$0xf]
        %v7864 = vld [vmem:[#allocation16 + $0x10] sm:$0xf]
        %v7865 = vld [vmem:[#allocation16 + $0x14] sm:$0xf]
        %v7866 = vld [vmem:[#allocation16 + $0x18] sm:$0xf]
        %v7867 = vld [vmem:[#allocation16 + $0x1c] sm:$0xf]
        %v7868 = vld [vmem:[#allocation16 + $0x20] sm:$0xf]
        %v7869 = vld [vmem:[#allocation16 + $0x24] sm:$0xf]
        %v7870 = vld [vmem:[#allocation16 + $0x28] sm:$0xf]
        %v7871 = vld [vmem:[#allocation16 + $0x2c] sm:$0xf]
        %v7872 = vld [vmem:[#allocation16 + $0x30] sm:$0xf]
        %v7873 = vld [vmem:[#allocation16 + $0x34] sm:$0xf]
        %v7874 = vld [vmem:[#allocation16 + $0x38] sm:$0xf]
        %v7875 = vld [vmem:[#allocation16 + $0x3c] sm:$0xf]
        %v7876 = vld [vmem:[#allocation16 + $0x40] sm:$0xf]
        %v7877 = vld [vmem:[#allocation16 + $0x44] sm:$0xf]
        %v7878 = vld [vmem:[#allocation16 + $0x48] sm:$0xf]
        %v7879 = vld [vmem:[#allocation16 + $0x4c] sm:$0xf]
        %v7880 = vld [vmem:[#allocation16 + $0x50] sm:$0xf]
        %v7881 = vld [vmem:[#allocation16 + $0x54] sm:$0xf]
        %v7882 = vld [vmem:[#allocation16 + $0x58] sm:$0xf]
        %v7883 = vld [vmem:[#allocation16 + $0x5c] sm:$0xf]
        %v7884 = vld [vmem:[#allocation16 + $0x60] sm:$0xf]
        %v7885 = vld [vmem:[#allocation16 + $0x64] sm:$0xf]
        %v7886 = vld [vmem:[#allocation16 + $0x68] sm:$0xf]
        %v7887 = vld [vmem:[#allocation16 + $0x6c] sm:$0xf]
        %v7888 = vld [vmem:[#allocation16 + $0x70] sm:$0xf]
        %v7889 = vld [vmem:[#allocation16 + $0x74] sm:$0xf]
        %v7890 = vld [vmem:[#allocation16 + $0x78] sm:$0xf]
        %v7891 = vld [vmem:[#allocation16 + $0x7c] sm:$0xf]
        %v7892 = vld [vmem:[#allocation17] sm:$0x1]
        %v7925 = vunpack.c.l.b16 %v7860
        %v7926 = vunpack.c.l.b16 %v7861
        %v7927 = vunpack.c.l.b16 %v7862
        %v7928 = vunpack.c.l.b16 %v7863
        %v7929 = vunpack.c.l.b16 %v7864
        %v7930 = vunpack.c.l.b16 %v7865
        %v7931 = vunpack.c.l.b16 %v7866
        %v7932 = vunpack.c.l.b16 %v7867
        %v7933 = vunpack.c.l.b16 %v7868
        %v7934 = vunpack.c.l.b16 %v7869
        %v7935 = vunpack.c.l.b16 %v7870
        %v7936 = vunpack.c.l.b16 %v7871
        %v7937 = vunpack.c.l.b16 %v7872
        %v7938 = vunpack.c.l.b16 %v7873
        %v7939 = vunpack.c.l.b16 %v7874
        %v7940 = vunpack.c.l.b16 %v7875
        %v7941 = vunpack.c.l.b16 %v7876
        %v7942 = vunpack.c.l.b16 %v7877
        %v7943 = vunpack.c.l.b16 %v7878
        %v7944 = vunpack.c.l.b16 %v7879
        %v7945 = vunpack.c.l.b16 %v7880
        %v7946 = vunpack.c.l.b16 %v7881
        %v7947 = vunpack.c.l.b16 %v7882
        %v7948 = vunpack.c.l.b16 %v7883
        %v7949 = vunpack.c.l.b16 %v7884
        %v7950 = vunpack.c.l.b16 %v7885
        %v7951 = vunpack.c.l.b16 %v7886
        %v7952 = vunpack.c.l.b16 %v7887
        %v7953 = vunpack.c.l.b16 %v7888
        %v7954 = vunpack.c.l.b16 %v7889
        %v7955 = vunpack.c.l.b16 %v7890
        %v7956 = vunpack.c.l.b16 %v7891
        %v7957 = vpack.c.b16 %v7926, %v7925
        %v7958 = vpack.c.b16 %v7928, %v7927
        %v7959 = vpack.c.b16 %v7930, %v7929
        %v7960 = vpack.c.b16 %v7932, %v7931
        %v7961 = vpack.c.b16 %v7934, %v7933
        %v7962 = vpack.c.b16 %v7936, %v7935
        %v7963 = vpack.c.b16 %v7938, %v7937
        %v7964 = vpack.c.b16 %v7940, %v7939
        %v7965 = vpack.c.b16 %v7942, %v7941
        %v7966 = vpack.c.b16 %v7944, %v7943
        %v7967 = vpack.c.b16 %v7946, %v7945
        %v7968 = vpack.c.b16 %v7948, %v7947
        %v7969 = vpack.c.b16 %v7950, %v7949
        %v7970 = vpack.c.b16 %v7952, %v7951
        %v7971 = vpack.c.b16 %v7954, %v7953
        %v7972 = vpack.c.b16 %v7956, %v7955
        %7989 = vmatprep.subr.bf16.mxu0 0
        %7990 = vmatpush1.bf16.msra.mxu0 %v7957
        %7991 = vmatprep.subr.bf16.mxu0 0
        %7992 = vmatpush1.bf16.msra.mxu0 %v7958
        %7993 = vmatprep.subr.bf16.mxu0 0
        %7994 = vmatpush1.bf16.msra.mxu0 %v7959
        %7995 = vmatprep.subr.bf16.mxu0 0
        %7996 = vmatpush1.bf16.msra.mxu0 %v7960
        %7997 = vmatprep.subr.bf16.mxu0 0
        %7998 = vmatpush1.bf16.msra.mxu0 %v7961
        %7999 = vmatprep.subr.bf16.mxu0 0
        %8000 = vmatpush1.bf16.msra.mxu0 %v7962
        %8001 = vmatprep.subr.bf16.mxu0 0
        %8002 = vmatpush1.bf16.msra.mxu0 %v7963
        %8003 = vmatprep.subr.bf16.mxu0 0
        %8004 = vmatpush1.bf16.msra.mxu0 %v7964
        %8005 = vmatprep.subr.bf16.mxu0 0
        %8006 = vmatpush1.bf16.msra.mxu0 %v7965
        %8007 = vmatprep.subr.bf16.mxu0 0
        %8008 = vmatpush1.bf16.msra.mxu0 %v7966
        %8009 = vmatprep.subr.bf16.mxu0 0
        %8010 = vmatpush1.bf16.msra.mxu0 %v7967
        %8011 = vmatprep.subr.bf16.mxu0 0
        %8012 = vmatpush1.bf16.msra.mxu0 %v7968
        %8013 = vmatprep.subr.bf16.mxu0 0
        %8014 = vmatpush1.bf16.msra.mxu0 %v7969
        %8015 = vmatprep.subr.bf16.mxu0 0
        %8016 = vmatpush1.bf16.msra.mxu0 %v7970
        %8017 = vmatprep.subr.bf16.mxu0 0
        %8018 = vmatpush1.bf16.msra.mxu0 %v7971
        %8019 = vmatprep.subr.bf16.mxu0 0
        %8020 = vmatpush1.bf16.msra.mxu0 %v7972
        %8021 = vmatprep.mubr.bf16.mxu0 %v7859
        %8022 = vmatmul.mubr.bf16.gmra.mrb[0].mxu0 %v7858
        %v8023 = vpop.f32.mrb[0].mxu0
        %v8024 = vadd.f32 %v7892, %v8023
        %v8025 = vpop.f32.mrb[0].mxu0
        %v8026 = vpop.f32.mrb[0].mxu0
        %v8027 = vpop.f32.mrb[0].mxu0
        %8028 = vdwg.mxu0
        %8029 = vst [vmem:[%s526] sm:$0x1] %v8024
        %s8030 = sand.u32 %s277, 1
        %s8031 = scalar_lea.sflag [#allocation4], %s8030
        %s8032 = sand.u32 %s277, 1
        %s8033 = scalar_lea.vmem [#allocation19], %s8032
        // Predicated region
        $region105: #{dqn_forward.1} parent=63 // pred_check
          %p8034 = pneg %p287
        $region106: #{dqn_forward.1} parent=63 // pred_check_branch
          %8036 = sbr.rel (%p8034) target = $region108
        $region107: #{dqn_forward.1} parent=63 // pred_region
          %s8038 = ssub.s32 16, 16
          %8039 = vsyncadd %s8031, %s8038
          %s8040 = smul.addr %s33, 16
          %s8041 = scalar_lea.hbm %s11, %s8040
          %s8043 = sshll.u32 %s8033, 4
          %s8044 = int_to_ptr.vmem [resolvable:$true] %s8043
          %8046 = dma.vmem_to_hbm [thread:$0]  %s8044, 16, %s8041, %s8031
        $region108: #{dqn_forward.1} parent=63 // pred_fallthru
          _
      $region64: #{dqn_forward.1} parent=5 // pred_fallthru
        _
      %p8047 = scmp.le.s32.totalorder 2, %s28
      // Predicated region
      $region109: #{dqn_forward.1} parent=5 // pred_check
        %p8048 = pneg %p8047
      $region110: #{dqn_forward.1} parent=5 // pred_check_branch
        %8050 = sbr.rel (%p8048) target = $region112
      $region111: #{dqn_forward.1} parent=5 // pred_region
        %s8051 = ssub.s32 %s28, 2
        // Predicated region
        $region113: #{dqn_forward.1} parent=111 // pred_check
          %p8052 = pneg %p293
        $region114: #{dqn_forward.1} parent=111 // pred_check_branch
          %8054 = sbr.rel (%p8052) target = $region116
        $region115: #{dqn_forward.1} parent=111 // pred_region
          %s8055 = sand.u32 %s278, 1
          %s8056 = scalar_lea.sflag [#allocation4], %s8055
          %s8057 = sand.u32 %s278, 1
          %s8058 = scalar_lea.vmem [#allocation19], %s8057
          %8059 = dma.done %s8056, 16
        $region116: #{dqn_forward.1} parent=111 // pred_fallthru
          _
      $region112: #{dqn_forward.1} parent=5 // pred_fallthru
        _
    $region6: #{dqn_forward.1} parent=1 // loop_footer
      %s32 = sadd.s32 1, %s28
    $region7: #{dqn_forward.1} parent=1 // loop_footer_branch
      %27 = sbr.rel target = $region3
    $region8: #{dqn_forward.1} parent=1 // loop_exit
      _
    %8060 = vsyncpa [#allocation3], 1
    %s8061 = scalar_lea.sflag [#allocation3], 1
    %8062 = vsyncpa %s8061, 1
    %8063 = vsyncpa [#allocation6], 1
    %8064 = vsyncpa [#allocation9], 1
    %8065 = vsyncpa [#allocation12], 1
    %8066 = vsyncpa [#allocation15], 1
    %8067 = vsyncpa [#allocation18], 1
    %8068 = vsyncpa [#allocation4], 1
    %s8069 = scalar_lea.sflag [#allocation4], 1
    %8070 = vsyncpa %s8069, 1

</llo_original>
